<compile_context>
chip_gen: v7x
topology: tpu7x:2x2x1
jax: 0.10.0
libtpu: 0.0.40
codegen_flags: <defaults>
</compile_context>

<pallas_src>
import functools

import jax
import jax.numpy as jnp
from jax.experimental import pallas as pl
from jax.experimental.pallas import tpu as pltpu


# ---------------------------------------------------------------------------
# Spatial bookkeeping (fixed by the module: 10x10x5 obs -> 64*7*7 = 3136 feat).
# ---------------------------------------------------------------------------
_H = _W = 10                      # input spatial size
_CIN = 5
_TAP_OFFS = (0, 1, 10, 11)        # 2x2 taps: spatial row offset = kh*_W + kw
# Rows (per batch element) each activation slab must provide.  The spatial row
# stride stays 10 through all convs, so a conv is 4 shifted slab matmuls; rows
# beyond each stage's valid region are never consumed downstream.
_N3 = 6 * 10 + 6 + 1              # 67: conv3 rows read by the FC (7x7 valid)
_N2 = _N3 + 11                    # 78: conv2 rows read by conv3
_N1 = _N2 + 11                    # 89: conv1 rows read by conv2
# (conv1 reads _N1 + 11 = 100 = 10*10 input rows — exactly the obs.)


# ---------------------------------------------------------------------------
# Fused forward kernel.
# ---------------------------------------------------------------------------
def _fused_forward_kernel(x_ref, w1_ref, b1_ref, w2_ref, b2_ref, w3_ref, b3_ref,
                          wfc_ref, bfc_ref, wh_ref, bh_ref,
                          out_ref, a1_ref, a2_ref, a3_ref, *, batch):
    B = batch

    def conv2x2_relu(src_ref, w_ref, b_ref, dst_ref):
        n, cout = dst_ref.shape
        acc = jnp.zeros((n, cout), jnp.float32)
        for t, off in enumerate(_TAP_OFFS):
            lhs = src_ref[pl.ds(off * B, n), :]          # shifted slab, stays in VMEM
            acc = acc + jnp.dot(lhs, w_ref[t], preferred_element_type=jnp.float32)
        dst_ref[...] = jnp.maximum(acc + b_ref[...], 0.0)

    conv2x2_relu(x_ref, w1_ref, b1_ref, a1_ref)      # (100B, 5)  -> (89B, 32)
    conv2x2_relu(a1_ref, w2_ref, b2_ref, a2_ref)     # (89B, 32)  -> (78B, 64)
    conv2x2_relu(a2_ref, w3_ref, b3_ref, a3_ref)     # (78B, 64)  -> (67B, 64)

    # Flatten + Linear(3136, 64): the NCHW flatten permutation is folded into
    # wfc's row order, so the FC is a sum over the 49 valid spatial positions
    # of tiny matmuls against the VMEM-resident conv3 slab (no transpose).
    hidden = jnp.zeros((B, 64), jnp.float32)
    for h in range(7):
        for w in range(7):
            p = h * 10 + w                   # row block in the conv3 slab
            r = (h * 7 + w) * 64             # matching row block of permuted fc_w
            hidden = hidden + jnp.dot(a3_ref[pl.ds(p * B, B), :],
                                      wfc_ref[pl.ds(r, 64), :],
                                      preferred_element_type=jnp.float32)
    hidden = jnp.maximum(hidden + bfc_ref[...], 0.0)

    # Merged policy + value heads: (B, 64) @ (64, A+1) + bias.
    out_ref[...] = (jnp.dot(hidden, wh_ref[...], preferred_element_type=jnp.float32)
                    + bh_ref[...])


def _full_spec(shape):
    nd = len(shape)
    return pl.BlockSpec(shape, lambda i, _nd=nd: (0,) * _nd)


@functools.lru_cache(maxsize=None)
def _build_fused_forward(batch, nh):
    # NOTE: for large batches one would tile a leading grid axis with
    # dimension_semantics=("parallel", ...) to use both v7x TensorCores;
    # at B=2 the workload is launch/latency bound and a single step is right.
    in_shapes = [
        (100 * batch, _CIN),       # interleaved obs rows
        (4, 5, 32), (1, 32),       # conv1 taps + bias
        (4, 32, 64), (1, 64),      # conv2
        (4, 64, 64), (1, 64),      # conv3
        (3136, 64), (1, 64),       # fc (rows pre-permuted for NHWC consumption)
        (64, nh), (1, nh),         # merged policy+value head
    ]
    return pl.pallas_call(
        functools.partial(_fused_forward_kernel, batch=batch),
        out_shape=jax.ShapeDtypeStruct((batch, nh), jnp.float32),
        grid=(1,),
        in_specs=[_full_spec(s) for s in in_shapes],
        out_specs=_full_spec((batch, nh)),
        scratch_shapes=[
            pltpu.VMEM((_N1 * batch, 32), jnp.float32),   # conv1 activation
            pltpu.VMEM((_N2 * batch, 64), jnp.float32),   # conv2 activation
            pltpu.VMEM((_N3 * batch, 64), jnp.float32),   # conv3 activation
        ],
        compiler_params=pltpu.CompilerParams(
            dimension_semantics=("arbitrary",)),
    )


# ---------------------------------------------------------------------------
# Parameters: reference layout + one-time conversion to kernel layout.
# ---------------------------------------------------------------------------
def init_params(num_outputs, key):
    """Parameters in reference layout: conv weights HWIO (2,2,Cin,Cout),
    fc_w (3136,64) with rows in NCHW flatten order (c*49 + h*7 + w),
    heads (64,A)/(64,1).  (Bias init is random, not PyTorch's uniform —
    irrelevant to kernel semantics.)"""
    ks = jax.random.split(key, 12)

    def w(k, shape, fan_in):
        return jax.random.normal(k, shape, jnp.float32) / jnp.sqrt(fan_in)

    return {
        "conv1_w": w(ks[0], (2, 2, 5, 32), 2 * 2 * 5),
        "conv1_b": w(ks[1], (32,), 32),
        "conv2_w": w(ks[2], (2, 2, 32, 64), 2 * 2 * 32),
        "conv2_b": w(ks[3], (64,), 64),
        "conv3_w": w(ks[4], (2, 2, 64, 64), 2 * 2 * 64),
        "conv3_b": w(ks[5], (64,), 64),
        "fc_w":    w(ks[6], (3136, 64), 3136),
        "fc_b":    w(ks[7], (64,), 64),
        "policy_w": w(ks[8], (64, num_outputs), 64),
        "policy_b": w(ks[9], (num_outputs,), num_outputs),
        "value_w": w(ks[10], (64, 1), 64),
        "value_b": w(ks[11], (1,), 1),
    }


def prepare_params(params):
    """One-time re-layout into what the fused kernel consumes.

    (If loading real PyTorch weights: conv weights must first be permuted
    (Cout,Cin,kh,kw)->(kh,kw,Cin,Cout) and fc/policy/value weights transposed
    to (in, out) before calling this.)"""
    num_outputs = params["policy_w"].shape[1]
    # Fold the NCHW Flatten into the FC weight rows:
    #   kernel row (h*7+w)*64 + c   <-   reference row c*49 + h*7 + w
    hw = jnp.arange(7 * 7)
    c = jnp.arange(64)
    src = (c[None, :] * 49 + hw[:, None]).reshape(-1)
    return {
        "w1": params["conv1_w"].reshape(4, 5, 32),
        "b1": params["conv1_b"].reshape(1, 32),
        "w2": params["conv2_w"].reshape(4, 32, 64),
        "b2": params["conv2_b"].reshape(1, 64),
        "w3": params["conv3_w"].reshape(4, 64, 64),
        "b3": params["conv3_b"].reshape(1, 64),
        "wfc": params["fc_w"][src, :],
        "bfc": params["fc_b"].reshape(1, 64),
        "whead": jnp.concatenate([params["policy_w"], params["value_w"]], axis=1),
        "bhead": jnp.concatenate(
            [params["policy_b"], params["value_b"]]).reshape(1, num_outputs + 1),
    }


# ---------------------------------------------------------------------------
# Forward pass (single pallas_call + trivial glue).
# ---------------------------------------------------------------------------
def adversarial_pursuit_forward(kparams, obs):
    """obs: (B, 10, 10, 5) float32 NHWC.  (The PyTorch module permutes to NCHW;
    here the layout handling is folded into the weights.)"""
    B, H, W, C = obs.shape
    assert (H, W, C) == (_H, _W, _CIN), obs.shape
    nh = kparams["whead"].shape[1]                     # num_outputs + 1
    # Interleave rows as (spatial-major, batch-minor): row = (h*10+w)*B + b.
    x_il = jnp.transpose(obs.astype(jnp.float32).reshape(B, H * W, C),
                         (1, 0, 2)).reshape(B * H * W, C)
    out = _build_fused_forward(B, nh)(
        x_il,
        kparams["w1"], kparams["b1"],
        kparams["w2"], kparams["b2"],
        kparams["w3"], kparams["b3"],
        kparams["wfc"], kparams["bfc"],
        kparams["whead"], kparams["bhead"],
    )
    logits = out[:, : nh - 1]
    value = out[:, nh - 1:]
    return logits, value


def value_function(value_out):
    return value_out.reshape(-1)


# ---------------------------------------------------------------------------
# Pure-JAX reference of the PyTorch module (for numerical validation).
# ---------------------------------------------------------------------------
def reference_forward(params, obs):
    hp = jax.lax.Precision.HIGHEST
    x = obs.astype(jnp.float32)

    def conv(x, w, b):
        Ho, Wo = x.shape[1] - 1, x.shape[2] - 1
        y = b
        for kh in range(2):
            for kw in range(2):
                y = y + jnp.einsum("bhwc,cd->bhwd",
                                   x[:, kh:kh + Ho, kw:kw + Wo, :], w[kh, kw],
                                   precision=hp)
        return jax.nn.relu(y)

    x = conv(x, params["conv1_w"], params["conv1_b"])
    x = conv(x, params["conv2_w"], params["conv2_b"])
    x = conv(x, params["conv3_w"], params["conv3_b"])
    B = x.shape[0]
    feat = jnp.transpose(x, (0, 3, 1, 2)).reshape(B, 64 * 7 * 7)   # nn.Flatten on NCHW
    hidden = jax.nn.relu(jnp.dot(feat, params["fc_w"], precision=hp) + params["fc_b"])
    logits = jnp.dot(hidden, params["policy_w"], precision=hp) + params["policy_b"]
    value = jnp.dot(hidden, params["value_w"], precision=hp) + params["value_b"]
    return logits, value


if __name__ == "__main__":
    NUM_OUTPUTS = 13                  # policy action-space size
    B = 2                             # obs: (B, 10, 10, 5)

    key = jax.random.PRNGKey(0)
    k_params, k_obs = jax.random.split(key)
    params = init_params(NUM_OUTPUTS, k_params)
    kparams = prepare_params(params)
    obs = jax.random.normal(k_obs, (B, _H, _W, _CIN), jnp.float32)

    fwd = jax.jit(adversarial_pursuit_forward)
    logits, value = fwd(kparams, obs)
    jax.block_until_ready((logits, value))

    assert logits.shape == (B, NUM_OUTPUTS), logits.shape
    assert value.shape == (B, 1), value.shape
    assert value_function(value).shape == (B,)

    # Numerical check against the pure-JAX reference of the PyTorch module.
    ref_logits, ref_value = reference_forward(params, obs)
    err_l = float(jnp.max(jnp.abs(logits - ref_logits)))
    err_v = float(jnp.max(jnp.abs(value - ref_value)))
    assert err_l < 2e-2 and err_v < 2e-2, (err_l, err_v)

    print("KERNEL_OK")
</pallas_src>

<mosaic_0001>
module attributes {stable_mosaic.version = 11 : i64} {
  func.func @_fused_forward_kernel(%arg0: i32, %arg1: memref<200x5xf32, #tpu.memory_space<vmem>>, %arg2: memref<4x5x32xf32, #tpu.memory_space<vmem>>, %arg3: memref<1x32xf32, #tpu.memory_space<vmem>>, %arg4: memref<4x32x64xf32, #tpu.memory_space<vmem>>, %arg5: memref<1x64xf32, #tpu.memory_space<vmem>>, %arg6: memref<4x64x64xf32, #tpu.memory_space<vmem>>, %arg7: memref<1x64xf32, #tpu.memory_space<vmem>>, %arg8: memref<3136x64xf32, #tpu.memory_space<vmem>>, %arg9: memref<1x64xf32, #tpu.memory_space<vmem>>, %arg10: memref<64x14xf32, #tpu.memory_space<vmem>>, %arg11: memref<1x14xf32, #tpu.memory_space<vmem>>, %arg12: memref<2x14xf32, #tpu.memory_space<vmem>>, %arg13: memref<178x32xf32, #tpu.memory_space<vmem>>, %arg14: memref<156x64xf32, #tpu.memory_space<vmem>>, %arg15: memref<134x64xf32, #tpu.memory_space<vmem>>) attributes {dimension_semantics = [#tpu.dimension_semantics<arbitrary>], iteration_bounds = array<i64: 1>, scalar_prefetch = 0 : i64, scratch_operands = 3 : i64, tpu.core_type = #tpu.core_type<tc>, window_params = [{pipeline_mode = #tpu.pipeline_mode<synchronous>, transform_indices = @transform_0, window_bounds = array<i64: 200, 5>}, {pipeline_mode = #tpu.pipeline_mode<synchronous>, transform_indices = @transform_1, window_bounds = array<i64: 4, 5, 32>}, {pipeline_mode = #tpu.pipeline_mode<synchronous>, transform_indices = @transform_2, window_bounds = array<i64: 1, 32>}, {pipeline_mode = #tpu.pipeline_mode<synchronous>, transform_indices = @transform_3, window_bounds = array<i64: 4, 32, 64>}, {pipeline_mode = #tpu.pipeline_mode<synchronous>, transform_indices = @transform_4, window_bounds = array<i64: 1, 64>}, {pipeline_mode = #tpu.pipeline_mode<synchronous>, transform_indices = @transform_5, window_bounds = array<i64: 4, 64, 64>}, {pipeline_mode = #tpu.pipeline_mode<synchronous>, transform_indices = @transform_6, window_bounds = array<i64: 1, 64>}, {pipeline_mode = #tpu.pipeline_mode<synchronous>, transform_indices = @transform_7, window_bounds = array<i64: 3136, 64>}, {pipeline_mode = #tpu.pipeline_mode<synchronous>, transform_indices = @transform_8, window_bounds = array<i64: 1, 64>}, {pipeline_mode = #tpu.pipeline_mode<synchronous>, transform_indices = @transform_9, window_bounds = array<i64: 64, 14>}, {pipeline_mode = #tpu.pipeline_mode<synchronous>, transform_indices = @transform_10, window_bounds = array<i64: 1, 14>}, {pipeline_mode = #tpu.pipeline_mode<synchronous>, transform_indices = @transform_11, window_bounds = array<i64: 2, 14>}]} {
    %cst = arith.constant 0.000000e+00 : f32
    %0 = vector.broadcast %cst : f32 to vector<178x32xf32>
    %c0 = arith.constant 0 : index
    %c0_0 = arith.constant 0 : index
    %1 = vector.load %arg1[%c0, %c0_0] : memref<200x5xf32, #tpu.memory_space<vmem>>, vector<178x5xf32>
    %c0_1 = arith.constant 0 : index
    %c0_2 = arith.constant 0 : index
    %c0_3 = arith.constant 0 : index
    %2 = vector.load %arg2[%c0_1, %c0_2, %c0_3] : memref<4x5x32xf32, #tpu.memory_space<vmem>>, vector<1x5x32xf32>
    %3 = vector.shape_cast %2 : vector<1x5x32xf32> to vector<5x32xf32>
    %cst_4 = arith.constant dense<0.000000e+00> : vector<178x32xf32>
    %4 = tpu.matmul %1, %3, %cst_4 {dimension_numbers = #tpu.dot_dimension_numbers<[1], [0], [0], [1], [0, 0, 1, 1], [], []>} : vector<178x5xf32>, vector<5x32xf32>, vector<178x32xf32> -> vector<178x32xf32>
    %5 = arith.addf %0, %4 : vector<178x32xf32>
    %c2 = arith.constant 2 : index
    %c0_5 = arith.constant 0 : index
    %6 = vector.load %arg1[%c2, %c0_5] : memref<200x5xf32, #tpu.memory_space<vmem>>, vector<178x5xf32>
    %c1 = arith.constant 1 : index
    %c0_6 = arith.constant 0 : index
    %c0_7 = arith.constant 0 : index
    %7 = vector.load %arg2[%c1, %c0_6, %c0_7] : memref<4x5x32xf32, #tpu.memory_space<vmem>>, vector<1x5x32xf32>
    %8 = vector.shape_cast %7 : vector<1x5x32xf32> to vector<5x32xf32>
    %cst_8 = arith.constant dense<0.000000e+00> : vector<178x32xf32>
    %9 = tpu.matmul %6, %8, %cst_8 {dimension_numbers = #tpu.dot_dimension_numbers<[1], [0], [0], [1], [0, 0, 1, 1], [], []>} : vector<178x5xf32>, vector<5x32xf32>, vector<178x32xf32> -> vector<178x32xf32>
    %10 = arith.addf %5, %9 : vector<178x32xf32>
    %c20 = arith.constant 20 : index
    %c0_9 = arith.constant 0 : index
    %11 = vector.load %arg1[%c20, %c0_9] : memref<200x5xf32, #tpu.memory_space<vmem>>, vector<178x5xf32>
    %c2_10 = arith.constant 2 : index
    %c0_11 = arith.constant 0 : index
    %c0_12 = arith.constant 0 : index
    %12 = vector.load %arg2[%c2_10, %c0_11, %c0_12] : memref<4x5x32xf32, #tpu.memory_space<vmem>>, vector<1x5x32xf32>
    %13 = vector.shape_cast %12 : vector<1x5x32xf32> to vector<5x32xf32>
    %cst_13 = arith.constant dense<0.000000e+00> : vector<178x32xf32>
    %14 = tpu.matmul %11, %13, %cst_13 {dimension_numbers = #tpu.dot_dimension_numbers<[1], [0], [0], [1], [0, 0, 1, 1], [], []>} : vector<178x5xf32>, vector<5x32xf32>, vector<178x32xf32> -> vector<178x32xf32>
    %15 = arith.addf %10, %14 : vector<178x32xf32>
    %c22 = arith.constant 22 : index
    %c0_14 = arith.constant 0 : index
    %16 = vector.load %arg1[%c22, %c0_14] : memref<200x5xf32, #tpu.memory_space<vmem>>, vector<178x5xf32>
    %c3 = arith.constant 3 : index
    %c0_15 = arith.constant 0 : index
    %c0_16 = arith.constant 0 : index
    %17 = vector.load %arg2[%c3, %c0_15, %c0_16] : memref<4x5x32xf32, #tpu.memory_space<vmem>>, vector<1x5x32xf32>
    %18 = vector.shape_cast %17 : vector<1x5x32xf32> to vector<5x32xf32>
    %cst_17 = arith.constant dense<0.000000e+00> : vector<178x32xf32>
    %19 = tpu.matmul %16, %18, %cst_17 {dimension_numbers = #tpu.dot_dimension_numbers<[1], [0], [0], [1], [0, 0, 1, 1], [], []>} : vector<178x5xf32>, vector<5x32xf32>, vector<178x32xf32> -> vector<178x32xf32>
    %20 = arith.addf %15, %19 : vector<178x32xf32>
    %c0_18 = arith.constant 0 : index
    %c0_19 = arith.constant 0 : index
    %21 = vector.load %arg3[%c0_18, %c0_19] : memref<1x32xf32, #tpu.memory_space<vmem>>, vector<1x32xf32>
    %22 = vector.broadcast %21 : vector<1x32xf32> to vector<178x32xf32>
    %23 = arith.addf %20, %22 : vector<178x32xf32>
    %cst_20 = arith.constant 0.000000e+00 : f32
    %24 = vector.broadcast %cst_20 : f32 to vector<178x32xf32>
    %25 = arith.maximumf %23, %24 : vector<178x32xf32>
    %c0_21 = arith.constant 0 : index
    %c0_22 = arith.constant 0 : index
    %26 = vector.load %arg13[%c0_21, %c0_22] : memref<178x32xf32, #tpu.memory_space<vmem>>, vector<178x32xf32>
    tpu.vector_store %arg13[%c0_21, %c0_22], %25 {strides = array<i32>} : memref<178x32xf32, #tpu.memory_space<vmem>>, vector<178x32xf32>,
    %cst_23 = arith.constant 0.000000e+00 : f32
    %27 = vector.broadcast %cst_23 : f32 to vector<156x64xf32>
    %c0_24 = arith.constant 0 : index
    %c0_25 = arith.constant 0 : index
    %28 = vector.load %arg13[%c0_24, %c0_25] : memref<178x32xf32, #tpu.memory_space<vmem>>, vector<156x32xf32>
    %c0_26 = arith.constant 0 : index
    %c0_27 = arith.constant 0 : index
    %c0_28 = arith.constant 0 : index
    %29 = vector.load %arg4[%c0_26, %c0_27, %c0_28] : memref<4x32x64xf32, #tpu.memory_space<vmem>>, vector<1x32x64xf32>
    %30 = vector.shape_cast %29 : vector<1x32x64xf32> to vector<32x64xf32>
    %cst_29 = arith.constant dense<0.000000e+00> : vector<156x64xf32>
    %31 = tpu.matmul %28, %30, %cst_29 {dimension_numbers = #tpu.dot_dimension_numbers<[1], [0], [0], [1], [0, 0, 1, 1], [], []>} : vector<156x32xf32>, vector<32x64xf32>, vector<156x64xf32> -> vector<156x64xf32>
    %32 = arith.addf %27, %31 : vector<156x64xf32>
    %c2_30 = arith.constant 2 : index
    %c0_31 = arith.constant 0 : index
    %33 = vector.load %arg13[%c2_30, %c0_31] : memref<178x32xf32, #tpu.memory_space<vmem>>, vector<156x32xf32>
    %c1_32 = arith.constant 1 : index
    %c0_33 = arith.constant 0 : index
    %c0_34 = arith.constant 0 : index
    %34 = vector.load %arg4[%c1_32, %c0_33, %c0_34] : memref<4x32x64xf32, #tpu.memory_space<vmem>>, vector<1x32x64xf32>
    %35 = vector.shape_cast %34 : vector<1x32x64xf32> to vector<32x64xf32>
    %cst_35 = arith.constant dense<0.000000e+00> : vector<156x64xf32>
    %36 = tpu.matmul %33, %35, %cst_35 {dimension_numbers = #tpu.dot_dimension_numbers<[1], [0], [0], [1], [0, 0, 1, 1], [], []>} : vector<156x32xf32>, vector<32x64xf32>, vector<156x64xf32> -> vector<156x64xf32>
    %37 = arith.addf %32, %36 : vector<156x64xf32>
    %c20_36 = arith.constant 20 : index
    %c0_37 = arith.constant 0 : index
    %38 = vector.load %arg13[%c20_36, %c0_37] : memref<178x32xf32, #tpu.memory_space<vmem>>, vector<156x32xf32>
    %c2_38 = arith.constant 2 : index
    %c0_39 = arith.constant 0 : index
    %c0_40 = arith.constant 0 : index
    %39 = vector.load %arg4[%c2_38, %c0_39, %c0_40] : memref<4x32x64xf32, #tpu.memory_space<vmem>>, vector<1x32x64xf32>
    %40 = vector.shape_cast %39 : vector<1x32x64xf32> to vector<32x64xf32>
    %cst_41 = arith.constant dense<0.000000e+00> : vector<156x64xf32>
    %41 = tpu.matmul %38, %40, %cst_41 {dimension_numbers = #tpu.dot_dimension_numbers<[1], [0], [0], [1], [0, 0, 1, 1], [], []>} : vector<156x32xf32>, vector<32x64xf32>, vector<156x64xf32> -> vector<156x64xf32>
    %42 = arith.addf %37, %41 : vector<156x64xf32>
    %c22_42 = arith.constant 22 : index
    %c0_43 = arith.constant 0 : index
    %43 = vector.load %arg13[%c22_42, %c0_43] : memref<178x32xf32, #tpu.memory_space<vmem>>, vector<156x32xf32>
    %c3_44 = arith.constant 3 : index
    %c0_45 = arith.constant 0 : index
    %c0_46 = arith.constant 0 : index
    %44 = vector.load %arg4[%c3_44, %c0_45, %c0_46] : memref<4x32x64xf32, #tpu.memory_space<vmem>>, vector<1x32x64xf32>
    %45 = vector.shape_cast %44 : vector<1x32x64xf32> to vector<32x64xf32>
    %cst_47 = arith.constant dense<0.000000e+00> : vector<156x64xf32>
    %46 = tpu.matmul %43, %45, %cst_47 {dimension_numbers = #tpu.dot_dimension_numbers<[1], [0], [0], [1], [0, 0, 1, 1], [], []>} : vector<156x32xf32>, vector<32x64xf32>, vector<156x64xf32> -> vector<156x64xf32>
    %47 = arith.addf %42, %46 : vector<156x64xf32>
    %c0_48 = arith.constant 0 : index
    %c0_49 = arith.constant 0 : index
    %48 = vector.load %arg5[%c0_48, %c0_49] : memref<1x64xf32, #tpu.memory_space<vmem>>, vector<1x64xf32>
    %49 = vector.broadcast %48 : vector<1x64xf32> to vector<156x64xf32>
    %50 = arith.addf %47, %49 : vector<156x64xf32>
    %cst_50 = arith.constant 0.000000e+00 : f32
    %51 = vector.broadcast %cst_50 : f32 to vector<156x64xf32>
    %52 = arith.maximumf %50, %51 : vector<156x64xf32>
    %c0_51 = arith.constant 0 : index
    %c0_52 = arith.constant 0 : index
    %53 = vector.load %arg14[%c0_51, %c0_52] : memref<156x64xf32, #tpu.memory_space<vmem>>, vector<156x64xf32>
    tpu.vector_store %arg14[%c0_51, %c0_52], %52 {strides = array<i32>} : memref<156x64xf32, #tpu.memory_space<vmem>>, vector<156x64xf32>,
    %cst_53 = arith.constant 0.000000e+00 : f32
    %54 = vector.broadcast %cst_53 : f32 to vector<134x64xf32>
    %c0_54 = arith.constant 0 : index
    %c0_55 = arith.constant 0 : index
    %55 = vector.load %arg14[%c0_54, %c0_55] : memref<156x64xf32, #tpu.memory_space<vmem>>, vector<134x64xf32>
    %c0_56 = arith.constant 0 : index
    %c0_57 = arith.constant 0 : index
    %c0_58 = arith.constant 0 : index
    %56 = vector.load %arg6[%c0_56, %c0_57, %c0_58] : memref<4x64x64xf32, #tpu.memory_space<vmem>>, vector<1x64x64xf32>
    %57 = vector.shape_cast %56 : vector<1x64x64xf32> to vector<64x64xf32>
    %cst_59 = arith.constant dense<0.000000e+00> : vector<134x64xf32>
    %58 = tpu.matmul %55, %57, %cst_59 {dimension_numbers = #tpu.dot_dimension_numbers<[1], [0], [0], [1], [0, 0, 1, 1], [], []>} : vector<134x64xf32>, vector<64x64xf32>, vector<134x64xf32> -> vector<134x64xf32>
    %59 = arith.addf %54, %58 : vector<134x64xf32>
    %c2_60 = arith.constant 2 : index
    %c0_61 = arith.constant 0 : index
    %60 = vector.load %arg14[%c2_60, %c0_61] : memref<156x64xf32, #tpu.memory_space<vmem>>, vector<134x64xf32>
    %c1_62 = arith.constant 1 : index
    %c0_63 = arith.constant 0 : index
    %c0_64 = arith.constant 0 : index
    %61 = vector.load %arg6[%c1_62, %c0_63, %c0_64] : memref<4x64x64xf32, #tpu.memory_space<vmem>>, vector<1x64x64xf32>
    %62 = vector.shape_cast %61 : vector<1x64x64xf32> to vector<64x64xf32>
    %cst_65 = arith.constant dense<0.000000e+00> : vector<134x64xf32>
    %63 = tpu.matmul %60, %62, %cst_65 {dimension_numbers = #tpu.dot_dimension_numbers<[1], [0], [0], [1], [0, 0, 1, 1], [], []>} : vector<134x64xf32>, vector<64x64xf32>, vector<134x64xf32> -> vector<134x64xf32>
    %64 = arith.addf %59, %63 : vector<134x64xf32>
    %c20_66 = arith.constant 20 : index
    %c0_67 = arith.constant 0 : index
    %65 = vector.load %arg14[%c20_66, %c0_67] : memref<156x64xf32, #tpu.memory_space<vmem>>, vector<134x64xf32>
    %c2_68 = arith.constant 2 : index
    %c0_69 = arith.constant 0 : index
    %c0_70 = arith.constant 0 : index
    %66 = vector.load %arg6[%c2_68, %c0_69, %c0_70] : memref<4x64x64xf32, #tpu.memory_space<vmem>>, vector<1x64x64xf32>
    %67 = vector.shape_cast %66 : vector<1x64x64xf32> to vector<64x64xf32>
    %cst_71 = arith.constant dense<0.000000e+00> : vector<134x64xf32>
    %68 = tpu.matmul %65, %67, %cst_71 {dimension_numbers = #tpu.dot_dimension_numbers<[1], [0], [0], [1], [0, 0, 1, 1], [], []>} : vector<134x64xf32>, vector<64x64xf32>, vector<134x64xf32> -> vector<134x64xf32>
    %69 = arith.addf %64, %68 : vector<134x64xf32>
    %c22_72 = arith.constant 22 : index
    %c0_73 = arith.constant 0 : index
    %70 = vector.load %arg14[%c22_72, %c0_73] : memref<156x64xf32, #tpu.memory_space<vmem>>, vector<134x64xf32>
    %c3_74 = arith.constant 3 : index
    %c0_75 = arith.constant 0 : index
    %c0_76 = arith.constant 0 : index
    %71 = vector.load %arg6[%c3_74, %c0_75, %c0_76] : memref<4x64x64xf32, #tpu.memory_space<vmem>>, vector<1x64x64xf32>
    %72 = vector.shape_cast %71 : vector<1x64x64xf32> to vector<64x64xf32>
    %cst_77 = arith.constant dense<0.000000e+00> : vector<134x64xf32>
    %73 = tpu.matmul %70, %72, %cst_77 {dimension_numbers = #tpu.dot_dimension_numbers<[1], [0], [0], [1], [0, 0, 1, 1], [], []>} : vector<134x64xf32>, vector<64x64xf32>, vector<134x64xf32> -> vector<134x64xf32>
    %74 = arith.addf %69, %73 : vector<134x64xf32>
    %c0_78 = arith.constant 0 : index
    %c0_79 = arith.constant 0 : index
    %75 = vector.load %arg7[%c0_78, %c0_79] : memref<1x64xf32, #tpu.memory_space<vmem>>, vector<1x64xf32>
    %76 = vector.broadcast %75 : vector<1x64xf32> to vector<134x64xf32>
    %77 = arith.addf %74, %76 : vector<134x64xf32>
    %cst_80 = arith.constant 0.000000e+00 : f32
    %78 = vector.broadcast %cst_80 : f32 to vector<134x64xf32>
    %79 = arith.maximumf %77, %78 : vector<134x64xf32>
    %c0_81 = arith.constant 0 : index
    %c0_82 = arith.constant 0 : index
    %80 = vector.load %arg15[%c0_81, %c0_82] : memref<134x64xf32, #tpu.memory_space<vmem>>, vector<134x64xf32>
    tpu.vector_store %arg15[%c0_81, %c0_82], %79 {strides = array<i32>} : memref<134x64xf32, #tpu.memory_space<vmem>>, vector<134x64xf32>,
    %cst_83 = arith.constant 0.000000e+00 : f32
    %81 = vector.broadcast %cst_83 : f32 to vector<2x64xf32>
    %c0_84 = arith.constant 0 : index
    %c0_85 = arith.constant 0 : index
    %82 = vector.load %arg15[%c0_84, %c0_85] : memref<134x64xf32, #tpu.memory_space<vmem>>, vector<2x64xf32>
    %c0_86 = arith.constant 0 : index
    %c0_87 = arith.constant 0 : index
    %83 = vector.load %arg8[%c0_86, %c0_87] : memref<3136x64xf32, #tpu.memory_space<vmem>>, vector<64x64xf32>
    %cst_88 = arith.constant dense<0.000000e+00> : vector<2x64xf32>
    %84 = tpu.matmul %82, %83, %cst_88 {dimension_numbers = #tpu.dot_dimension_numbers<[1], [0], [0], [1], [0, 0, 1, 1], [], []>} : vector<2x64xf32>, vector<64x64xf32>, vector<2x64xf32> -> vector<2x64xf32>
    %85 = arith.addf %81, %84 : vector<2x64xf32>
    %c2_89 = arith.constant 2 : index
    %c0_90 = arith.constant 0 : index
    %86 = vector.load %arg15[%c2_89, %c0_90] : memref<134x64xf32, #tpu.memory_space<vmem>>, vector<2x64xf32>
    %c64 = arith.constant 64 : index
    %c0_91 = arith.constant 0 : index
    %87 = vector.load %arg8[%c64, %c0_91] : memref<3136x64xf32, #tpu.memory_space<vmem>>, vector<64x64xf32>
    %cst_92 = arith.constant dense<0.000000e+00> : vector<2x64xf32>
    %88 = tpu.matmul %86, %87, %cst_92 {dimension_numbers = #tpu.dot_dimension_numbers<[1], [0], [0], [1], [0, 0, 1, 1], [], []>} : vector<2x64xf32>, vector<64x64xf32>, vector<2x64xf32> -> vector<2x64xf32>
    %89 = arith.addf %85, %88 : vector<2x64xf32>
    %c4 = arith.constant 4 : index
    %c0_93 = arith.constant 0 : index
    %90 = vector.load %arg15[%c4, %c0_93] : memref<134x64xf32, #tpu.memory_space<vmem>>, vector<2x64xf32>
    %c128 = arith.constant 128 : index
    %c0_94 = arith.constant 0 : index
    %91 = vector.load %arg8[%c128, %c0_94] : memref<3136x64xf32, #tpu.memory_space<vmem>>, vector<64x64xf32>
    %cst_95 = arith.constant dense<0.000000e+00> : vector<2x64xf32>
    %92 = tpu.matmul %90, %91, %cst_95 {dimension_numbers = #tpu.dot_dimension_numbers<[1], [0], [0], [1], [0, 0, 1, 1], [], []>} : vector<2x64xf32>, vector<64x64xf32>, vector<2x64xf32> -> vector<2x64xf32>
    %93 = arith.addf %89, %92 : vector<2x64xf32>
    %c6 = arith.constant 6 : index
    %c0_96 = arith.constant 0 : index
    %94 = vector.load %arg15[%c6, %c0_96] : memref<134x64xf32, #tpu.memory_space<vmem>>, vector<2x64xf32>
    %c192 = arith.constant 192 : index
    %c0_97 = arith.constant 0 : index
    %95 = vector.load %arg8[%c192, %c0_97] : memref<3136x64xf32, #tpu.memory_space<vmem>>, vector<64x64xf32>
    %cst_98 = arith.constant dense<0.000000e+00> : vector<2x64xf32>
    %96 = tpu.matmul %94, %95, %cst_98 {dimension_numbers = #tpu.dot_dimension_numbers<[1], [0], [0], [1], [0, 0, 1, 1], [], []>} : vector<2x64xf32>, vector<64x64xf32>, vector<2x64xf32> -> vector<2x64xf32>
    %97 = arith.addf %93, %96 : vector<2x64xf32>
    %c8 = arith.constant 8 : index
    %c0_99 = arith.constant 0 : index
    %98 = vector.load %arg15[%c8, %c0_99] : memref<134x64xf32, #tpu.memory_space<vmem>>, vector<2x64xf32>
    %c256 = arith.constant 256 : index
    %c0_100 = arith.constant 0 : index
    %99 = vector.load %arg8[%c256, %c0_100] : memref<3136x64xf32, #tpu.memory_space<vmem>>, vector<64x64xf32>
    %cst_101 = arith.constant dense<0.000000e+00> : vector<2x64xf32>
    %100 = tpu.matmul %98, %99, %cst_101 {dimension_numbers = #tpu.dot_dimension_numbers<[1], [0], [0], [1], [0, 0, 1, 1], [], []>} : vector<2x64xf32>, vector<64x64xf32>, vector<2x64xf32> -> vector<2x64xf32>
    %101 = arith.addf %97, %100 : vector<2x64xf32>
    %c10 = arith.constant 10 : index
    %c0_102 = arith.constant 0 : index
    %102 = vector.load %arg15[%c10, %c0_102] : memref<134x64xf32, #tpu.memory_space<vmem>>, vector<2x64xf32>
    %c320 = arith.constant 320 : index
    %c0_103 = arith.constant 0 : index
    %103 = vector.load %arg8[%c320, %c0_103] : memref<3136x64xf32, #tpu.memory_space<vmem>>, vector<64x64xf32>
    %cst_104 = arith.constant dense<0.000000e+00> : vector<2x64xf32>
    %104 = tpu.matmul %102, %103, %cst_104 {dimension_numbers = #tpu.dot_dimension_numbers<[1], [0], [0], [1], [0, 0, 1, 1], [], []>} : vector<2x64xf32>, vector<64x64xf32>, vector<2x64xf32> -> vector<2x64xf32>
    %105 = arith.addf %101, %104 : vector<2x64xf32>
    %c12 = arith.constant 12 : index
    %c0_105 = arith.constant 0 : index
    %106 = vector.load %arg15[%c12, %c0_105] : memref<134x64xf32, #tpu.memory_space<vmem>>, vector<2x64xf32>
    %c384 = arith.constant 384 : index
    %c0_106 = arith.constant 0 : index
    %107 = vector.load %arg8[%c384, %c0_106] : memref<3136x64xf32, #tpu.memory_space<vmem>>, vector<64x64xf32>
    %cst_107 = arith.constant dense<0.000000e+00> : vector<2x64xf32>
    %108 = tpu.matmul %106, %107, %cst_107 {dimension_numbers = #tpu.dot_dimension_numbers<[1], [0], [0], [1], [0, 0, 1, 1], [], []>} : vector<2x64xf32>, vector<64x64xf32>, vector<2x64xf32> -> vector<2x64xf32>
    %109 = arith.addf %105, %108 : vector<2x64xf32>
    %c20_108 = arith.constant 20 : index
    %c0_109 = arith.constant 0 : index
    %110 = vector.load %arg15[%c20_108, %c0_109] : memref<134x64xf32, #tpu.memory_space<vmem>>, vector<2x64xf32>
    %c448 = arith.constant 448 : index
    %c0_110 = arith.constant 0 : index
    %111 = vector.load %arg8[%c448, %c0_110] : memref<3136x64xf32, #tpu.memory_space<vmem>>, vector<64x64xf32>
    %cst_111 = arith.constant dense<0.000000e+00> : vector<2x64xf32>
    %112 = tpu.matmul %110, %111, %cst_111 {dimension_numbers = #tpu.dot_dimension_numbers<[1], [0], [0], [1], [0, 0, 1, 1], [], []>} : vector<2x64xf32>, vector<64x64xf32>, vector<2x64xf32> -> vector<2x64xf32>
    %113 = arith.addf %109, %112 : vector<2x64xf32>
    %c22_112 = arith.constant 22 : index
    %c0_113 = arith.constant 0 : index
    %114 = vector.load %arg15[%c22_112, %c0_113] : memref<134x64xf32, #tpu.memory_space<vmem>>, vector<2x64xf32>
    %c512 = arith.constant 512 : index
    %c0_114 = arith.constant 0 : index
    %115 = vector.load %arg8[%c512, %c0_114] : memref<3136x64xf32, #tpu.memory_space<vmem>>, vector<64x64xf32>
    %cst_115 = arith.constant dense<0.000000e+00> : vector<2x64xf32>
    %116 = tpu.matmul %114, %115, %cst_115 {dimension_numbers = #tpu.dot_dimension_numbers<[1], [0], [0], [1], [0, 0, 1, 1], [], []>} : vector<2x64xf32>, vector<64x64xf32>, vector<2x64xf32> -> vector<2x64xf32>
    %117 = arith.addf %113, %116 : vector<2x64xf32>
    %c24 = arith.constant 24 : index
    %c0_116 = arith.constant 0 : index
    %118 = vector.load %arg15[%c24, %c0_116] : memref<134x64xf32, #tpu.memory_space<vmem>>, vector<2x64xf32>
    %c576 = arith.constant 576 : index
    %c0_117 = arith.constant 0 : index
    %119 = vector.load %arg8[%c576, %c0_117] : memref<3136x64xf32, #tpu.memory_space<vmem>>, vector<64x64xf32>
    %cst_118 = arith.constant dense<0.000000e+00> : vector<2x64xf32>
    %120 = tpu.matmul %118, %119, %cst_118 {dimension_numbers = #tpu.dot_dimension_numbers<[1], [0], [0], [1], [0, 0, 1, 1], [], []>} : vector<2x64xf32>, vector<64x64xf32>, vector<2x64xf32> -> vector<2x64xf32>
    %121 = arith.addf %117, %120 : vector<2x64xf32>
    %c26 = arith.constant 26 : index
    %c0_119 = arith.constant 0 : index
    %122 = vector.load %arg15[%c26, %c0_119] : memref<134x64xf32, #tpu.memory_space<vmem>>, vector<2x64xf32>
    %c640 = arith.constant 640 : index
    %c0_120 = arith.constant 0 : index
    %123 = vector.load %arg8[%c640, %c0_120] : memref<3136x64xf32, #tpu.memory_space<vmem>>, vector<64x64xf32>
    %cst_121 = arith.constant dense<0.000000e+00> : vector<2x64xf32>
    %124 = tpu.matmul %122, %123, %cst_121 {dimension_numbers = #tpu.dot_dimension_numbers<[1], [0], [0], [1], [0, 0, 1, 1], [], []>} : vector<2x64xf32>, vector<64x64xf32>, vector<2x64xf32> -> vector<2x64xf32>
    %125 = arith.addf %121, %124 : vector<2x64xf32>
    %c28 = arith.constant 28 : index
    %c0_122 = arith.constant 0 : index
    %126 = vector.load %arg15[%c28, %c0_122] : memref<134x64xf32, #tpu.memory_space<vmem>>, vector<2x64xf32>
    %c704 = arith.constant 704 : index
    %c0_123 = arith.constant 0 : index
    %127 = vector.load %arg8[%c704, %c0_123] : memref<3136x64xf32, #tpu.memory_space<vmem>>, vector<64x64xf32>
    %cst_124 = arith.constant dense<0.000000e+00> : vector<2x64xf32>
    %128 = tpu.matmul %126, %127, %cst_124 {dimension_numbers = #tpu.dot_dimension_numbers<[1], [0], [0], [1], [0, 0, 1, 1], [], []>} : vector<2x64xf32>, vector<64x64xf32>, vector<2x64xf32> -> vector<2x64xf32>
    %129 = arith.addf %125, %128 : vector<2x64xf32>
    %c30 = arith.constant 30 : index
    %c0_125 = arith.constant 0 : index
    %130 = vector.load %arg15[%c30, %c0_125] : memref<134x64xf32, #tpu.memory_space<vmem>>, vector<2x64xf32>
    %c768 = arith.constant 768 : index
    %c0_126 = arith.constant 0 : index
    %131 = vector.load %arg8[%c768, %c0_126] : memref<3136x64xf32, #tpu.memory_space<vmem>>, vector<64x64xf32>
    %cst_127 = arith.constant dense<0.000000e+00> : vector<2x64xf32>
    %132 = tpu.matmul %130, %131, %cst_127 {dimension_numbers = #tpu.dot_dimension_numbers<[1], [0], [0], [1], [0, 0, 1, 1], [], []>} : vector<2x64xf32>, vector<64x64xf32>, vector<2x64xf32> -> vector<2x64xf32>
    %133 = arith.addf %129, %132 : vector<2x64xf32>
    %c32 = arith.constant 32 : index
    %c0_128 = arith.constant 0 : index
    %134 = vector.load %arg15[%c32, %c0_128] : memref<134x64xf32, #tpu.memory_space<vmem>>, vector<2x64xf32>
    %c832 = arith.constant 832 : index
    %c0_129 = arith.constant 0 : index
    %135 = vector.load %arg8[%c832, %c0_129] : memref<3136x64xf32, #tpu.memory_space<vmem>>, vector<64x64xf32>
    %cst_130 = arith.constant dense<0.000000e+00> : vector<2x64xf32>
    %136 = tpu.matmul %134, %135, %cst_130 {dimension_numbers = #tpu.dot_dimension_numbers<[1], [0], [0], [1], [0, 0, 1, 1], [], []>} : vector<2x64xf32>, vector<64x64xf32>, vector<2x64xf32> -> vector<2x64xf32>
    %137 = arith.addf %133, %136 : vector<2x64xf32>
    %c40 = arith.constant 40 : index
    %c0_131 = arith.constant 0 : index
    %138 = vector.load %arg15[%c40, %c0_131] : memref<134x64xf32, #tpu.memory_space<vmem>>, vector<2x64xf32>
    %c896 = arith.constant 896 : index
    %c0_132 = arith.constant 0 : index
    %139 = vector.load %arg8[%c896, %c0_132] : memref<3136x64xf32, #tpu.memory_space<vmem>>, vector<64x64xf32>
    %cst_133 = arith.constant dense<0.000000e+00> : vector<2x64xf32>
    %140 = tpu.matmul %138, %139, %cst_133 {dimension_numbers = #tpu.dot_dimension_numbers<[1], [0], [0], [1], [0, 0, 1, 1], [], []>} : vector<2x64xf32>, vector<64x64xf32>, vector<2x64xf32> -> vector<2x64xf32>
    %141 = arith.addf %137, %140 : vector<2x64xf32>
    %c42 = arith.constant 42 : index
    %c0_134 = arith.constant 0 : index
    %142 = vector.load %arg15[%c42, %c0_134] : memref<134x64xf32, #tpu.memory_space<vmem>>, vector<2x64xf32>
    %c960 = arith.constant 960 : index
    %c0_135 = arith.constant 0 : index
    %143 = vector.load %arg8[%c960, %c0_135] : memref<3136x64xf32, #tpu.memory_space<vmem>>, vector<64x64xf32>
    %cst_136 = arith.constant dense<0.000000e+00> : vector<2x64xf32>
    %144 = tpu.matmul %142, %143, %cst_136 {dimension_numbers = #tpu.dot_dimension_numbers<[1], [0], [0], [1], [0, 0, 1, 1], [], []>} : vector<2x64xf32>, vector<64x64xf32>, vector<2x64xf32> -> vector<2x64xf32>
    %145 = arith.addf %141, %144 : vector<2x64xf32>
    %c44 = arith.constant 44 : index
    %c0_137 = arith.constant 0 : index
    %146 = vector.load %arg15[%c44, %c0_137] : memref<134x64xf32, #tpu.memory_space<vmem>>, vector<2x64xf32>
    %c1024 = arith.constant 1024 : index
    %c0_138 = arith.constant 0 : index
    %147 = vector.load %arg8[%c1024, %c0_138] : memref<3136x64xf32, #tpu.memory_space<vmem>>, vector<64x64xf32>
    %cst_139 = arith.constant dense<0.000000e+00> : vector<2x64xf32>
    %148 = tpu.matmul %146, %147, %cst_139 {dimension_numbers = #tpu.dot_dimension_numbers<[1], [0], [0], [1], [0, 0, 1, 1], [], []>} : vector<2x64xf32>, vector<64x64xf32>, vector<2x64xf32> -> vector<2x64xf32>
    %149 = arith.addf %145, %148 : vector<2x64xf32>
    %c46 = arith.constant 46 : index
    %c0_140 = arith.constant 0 : index
    %150 = vector.load %arg15[%c46, %c0_140] : memref<134x64xf32, #tpu.memory_space<vmem>>, vector<2x64xf32>
    %c1088 = arith.constant 1088 : index
    %c0_141 = arith.constant 0 : index
    %151 = vector.load %arg8[%c1088, %c0_141] : memref<3136x64xf32, #tpu.memory_space<vmem>>, vector<64x64xf32>
    %cst_142 = arith.constant dense<0.000000e+00> : vector<2x64xf32>
    %152 = tpu.matmul %150, %151, %cst_142 {dimension_numbers = #tpu.dot_dimension_numbers<[1], [0], [0], [1], [0, 0, 1, 1], [], []>} : vector<2x64xf32>, vector<64x64xf32>, vector<2x64xf32> -> vector<2x64xf32>
    %153 = arith.addf %149, %152 : vector<2x64xf32>
    %c48 = arith.constant 48 : index
    %c0_143 = arith.constant 0 : index
    %154 = vector.load %arg15[%c48, %c0_143] : memref<134x64xf32, #tpu.memory_space<vmem>>, vector<2x64xf32>
    %c1152 = arith.constant 1152 : index
    %c0_144 = arith.constant 0 : index
    %155 = vector.load %arg8[%c1152, %c0_144] : memref<3136x64xf32, #tpu.memory_space<vmem>>, vector<64x64xf32>
    %cst_145 = arith.constant dense<0.000000e+00> : vector<2x64xf32>
    %156 = tpu.matmul %154, %155, %cst_145 {dimension_numbers = #tpu.dot_dimension_numbers<[1], [0], [0], [1], [0, 0, 1, 1], [], []>} : vector<2x64xf32>, vector<64x64xf32>, vector<2x64xf32> -> vector<2x64xf32>
    %157 = arith.addf %153, %156 : vector<2x64xf32>
    %c50 = arith.constant 50 : index
    %c0_146 = arith.constant 0 : index
    %158 = vector.load %arg15[%c50, %c0_146] : memref<134x64xf32, #tpu.memory_space<vmem>>, vector<2x64xf32>
    %c1216 = arith.constant 1216 : index
    %c0_147 = arith.constant 0 : index
    %159 = vector.load %arg8[%c1216, %c0_147] : memref<3136x64xf32, #tpu.memory_space<vmem>>, vector<64x64xf32>
    %cst_148 = arith.constant dense<0.000000e+00> : vector<2x64xf32>
    %160 = tpu.matmul %158, %159, %cst_148 {dimension_numbers = #tpu.dot_dimension_numbers<[1], [0], [0], [1], [0, 0, 1, 1], [], []>} : vector<2x64xf32>, vector<64x64xf32>, vector<2x64xf32> -> vector<2x64xf32>
    %161 = arith.addf %157, %160 : vector<2x64xf32>
    %c52 = arith.constant 52 : index
    %c0_149 = arith.constant 0 : index
    %162 = vector.load %arg15[%c52, %c0_149] : memref<134x64xf32, #tpu.memory_space<vmem>>, vector<2x64xf32>
    %c1280 = arith.constant 1280 : index
    %c0_150 = arith.constant 0 : index
    %163 = vector.load %arg8[%c1280, %c0_150] : memref<3136x64xf32, #tpu.memory_space<vmem>>, vector<64x64xf32>
    %cst_151 = arith.constant dense<0.000000e+00> : vector<2x64xf32>
    %164 = tpu.matmul %162, %163, %cst_151 {dimension_numbers = #tpu.dot_dimension_numbers<[1], [0], [0], [1], [0, 0, 1, 1], [], []>} : vector<2x64xf32>, vector<64x64xf32>, vector<2x64xf32> -> vector<2x64xf32>
    %165 = arith.addf %161, %164 : vector<2x64xf32>
    %c60 = arith.constant 60 : index
    %c0_152 = arith.constant 0 : index
    %166 = vector.load %arg15[%c60, %c0_152] : memref<134x64xf32, #tpu.memory_space<vmem>>, vector<2x64xf32>
    %c1344 = arith.constant 1344 : index
    %c0_153 = arith.constant 0 : index
    %167 = vector.load %arg8[%c1344, %c0_153] : memref<3136x64xf32, #tpu.memory_space<vmem>>, vector<64x64xf32>
    %cst_154 = arith.constant dense<0.000000e+00> : vector<2x64xf32>
    %168 = tpu.matmul %166, %167, %cst_154 {dimension_numbers = #tpu.dot_dimension_numbers<[1], [0], [0], [1], [0, 0, 1, 1], [], []>} : vector<2x64xf32>, vector<64x64xf32>, vector<2x64xf32> -> vector<2x64xf32>
    %169 = arith.addf %165, %168 : vector<2x64xf32>
    %c62 = arith.constant 62 : index
    %c0_155 = arith.constant 0 : index
    %170 = vector.load %arg15[%c62, %c0_155] : memref<134x64xf32, #tpu.memory_space<vmem>>, vector<2x64xf32>
    %c1408 = arith.constant 1408 : index
    %c0_156 = arith.constant 0 : index
    %171 = vector.load %arg8[%c1408, %c0_156] : memref<3136x64xf32, #tpu.memory_space<vmem>>, vector<64x64xf32>
    %cst_157 = arith.constant dense<0.000000e+00> : vector<2x64xf32>
    %172 = tpu.matmul %170, %171, %cst_157 {dimension_numbers = #tpu.dot_dimension_numbers<[1], [0], [0], [1], [0, 0, 1, 1], [], []>} : vector<2x64xf32>, vector<64x64xf32>, vector<2x64xf32> -> vector<2x64xf32>
    %173 = arith.addf %169, %172 : vector<2x64xf32>
    %c64_158 = arith.constant 64 : index
    %c0_159 = arith.constant 0 : index
    %174 = vector.load %arg15[%c64_158, %c0_159] : memref<134x64xf32, #tpu.memory_space<vmem>>, vector<2x64xf32>
    %c1472 = arith.constant 1472 : index
    %c0_160 = arith.constant 0 : index
    %175 = vector.load %arg8[%c1472, %c0_160] : memref<3136x64xf32, #tpu.memory_space<vmem>>, vector<64x64xf32>
    %cst_161 = arith.constant dense<0.000000e+00> : vector<2x64xf32>
    %176 = tpu.matmul %174, %175, %cst_161 {dimension_numbers = #tpu.dot_dimension_numbers<[1], [0], [0], [1], [0, 0, 1, 1], [], []>} : vector<2x64xf32>, vector<64x64xf32>, vector<2x64xf32> -> vector<2x64xf32>
    %177 = arith.addf %173, %176 : vector<2x64xf32>
    %c66 = arith.constant 66 : index
    %c0_162 = arith.constant 0 : index
    %178 = vector.load %arg15[%c66, %c0_162] : memref<134x64xf32, #tpu.memory_space<vmem>>, vector<2x64xf32>
    %c1536 = arith.constant 1536 : index
    %c0_163 = arith.constant 0 : index
    %179 = vector.load %arg8[%c1536, %c0_163] : memref<3136x64xf32, #tpu.memory_space<vmem>>, vector<64x64xf32>
    %cst_164 = arith.constant dense<0.000000e+00> : vector<2x64xf32>
    %180 = tpu.matmul %178, %179, %cst_164 {dimension_numbers = #tpu.dot_dimension_numbers<[1], [0], [0], [1], [0, 0, 1, 1], [], []>} : vector<2x64xf32>, vector<64x64xf32>, vector<2x64xf32> -> vector<2x64xf32>
    %181 = arith.addf %177, %180 : vector<2x64xf32>
    %c68 = arith.constant 68 : index
    %c0_165 = arith.constant 0 : index
    %182 = vector.load %arg15[%c68, %c0_165] : memref<134x64xf32, #tpu.memory_space<vmem>>, vector<2x64xf32>
    %c1600 = arith.constant 1600 : index
    %c0_166 = arith.constant 0 : index
    %183 = vector.load %arg8[%c1600, %c0_166] : memref<3136x64xf32, #tpu.memory_space<vmem>>, vector<64x64xf32>
    %cst_167 = arith.constant dense<0.000000e+00> : vector<2x64xf32>
    %184 = tpu.matmul %182, %183, %cst_167 {dimension_numbers = #tpu.dot_dimension_numbers<[1], [0], [0], [1], [0, 0, 1, 1], [], []>} : vector<2x64xf32>, vector<64x64xf32>, vector<2x64xf32> -> vector<2x64xf32>
    %185 = arith.addf %181, %184 : vector<2x64xf32>
    %c70 = arith.constant 70 : index
    %c0_168 = arith.constant 0 : index
    %186 = vector.load %arg15[%c70, %c0_168] : memref<134x64xf32, #tpu.memory_space<vmem>>, vector<2x64xf32>
    %c1664 = arith.constant 1664 : index
    %c0_169 = arith.constant 0 : index
    %187 = vector.load %arg8[%c1664, %c0_169] : memref<3136x64xf32, #tpu.memory_space<vmem>>, vector<64x64xf32>
    %cst_170 = arith.constant dense<0.000000e+00> : vector<2x64xf32>
    %188 = tpu.matmul %186, %187, %cst_170 {dimension_numbers = #tpu.dot_dimension_numbers<[1], [0], [0], [1], [0, 0, 1, 1], [], []>} : vector<2x64xf32>, vector<64x64xf32>, vector<2x64xf32> -> vector<2x64xf32>
    %189 = arith.addf %185, %188 : vector<2x64xf32>
    %c72 = arith.constant 72 : index
    %c0_171 = arith.constant 0 : index
    %190 = vector.load %arg15[%c72, %c0_171] : memref<134x64xf32, #tpu.memory_space<vmem>>, vector<2x64xf32>
    %c1728 = arith.constant 1728 : index
    %c0_172 = arith.constant 0 : index
    %191 = vector.load %arg8[%c1728, %c0_172] : memref<3136x64xf32, #tpu.memory_space<vmem>>, vector<64x64xf32>
    %cst_173 = arith.constant dense<0.000000e+00> : vector<2x64xf32>
    %192 = tpu.matmul %190, %191, %cst_173 {dimension_numbers = #tpu.dot_dimension_numbers<[1], [0], [0], [1], [0, 0, 1, 1], [], []>} : vector<2x64xf32>, vector<64x64xf32>, vector<2x64xf32> -> vector<2x64xf32>
    %193 = arith.addf %189, %192 : vector<2x64xf32>
    %c80 = arith.constant 80 : index
    %c0_174 = arith.constant 0 : index
    %194 = vector.load %arg15[%c80, %c0_174] : memref<134x64xf32, #tpu.memory_space<vmem>>, vector<2x64xf32>
    %c1792 = arith.constant 1792 : index
    %c0_175 = arith.constant 0 : index
    %195 = vector.load %arg8[%c1792, %c0_175] : memref<3136x64xf32, #tpu.memory_space<vmem>>, vector<64x64xf32>
    %cst_176 = arith.constant dense<0.000000e+00> : vector<2x64xf32>
    %196 = tpu.matmul %194, %195, %cst_176 {dimension_numbers = #tpu.dot_dimension_numbers<[1], [0], [0], [1], [0, 0, 1, 1], [], []>} : vector<2x64xf32>, vector<64x64xf32>, vector<2x64xf32> -> vector<2x64xf32>
    %197 = arith.addf %193, %196 : vector<2x64xf32>
    %c82 = arith.constant 82 : index
    %c0_177 = arith.constant 0 : index
    %198 = vector.load %arg15[%c82, %c0_177] : memref<134x64xf32, #tpu.memory_space<vmem>>, vector<2x64xf32>
    %c1856 = arith.constant 1856 : index
    %c0_178 = arith.constant 0 : index
    %199 = vector.load %arg8[%c1856, %c0_178] : memref<3136x64xf32, #tpu.memory_space<vmem>>, vector<64x64xf32>
    %cst_179 = arith.constant dense<0.000000e+00> : vector<2x64xf32>
    %200 = tpu.matmul %198, %199, %cst_179 {dimension_numbers = #tpu.dot_dimension_numbers<[1], [0], [0], [1], [0, 0, 1, 1], [], []>} : vector<2x64xf32>, vector<64x64xf32>, vector<2x64xf32> -> vector<2x64xf32>
    %201 = arith.addf %197, %200 : vector<2x64xf32>
    %c84 = arith.constant 84 : index
    %c0_180 = arith.constant 0 : index
    %202 = vector.load %arg15[%c84, %c0_180] : memref<134x64xf32, #tpu.memory_space<vmem>>, vector<2x64xf32>
    %c1920 = arith.constant 1920 : index
    %c0_181 = arith.constant 0 : index
    %203 = vector.load %arg8[%c1920, %c0_181] : memref<3136x64xf32, #tpu.memory_space<vmem>>, vector<64x64xf32>
    %cst_182 = arith.constant dense<0.000000e+00> : vector<2x64xf32>
    %204 = tpu.matmul %202, %203, %cst_182 {dimension_numbers = #tpu.dot_dimension_numbers<[1], [0], [0], [1], [0, 0, 1, 1], [], []>} : vector<2x64xf32>, vector<64x64xf32>, vector<2x64xf32> -> vector<2x64xf32>
    %205 = arith.addf %201, %204 : vector<2x64xf32>
    %c86 = arith.constant 86 : index
    %c0_183 = arith.constant 0 : index
    %206 = vector.load %arg15[%c86, %c0_183] : memref<134x64xf32, #tpu.memory_space<vmem>>, vector<2x64xf32>
    %c1984 = arith.constant 1984 : index
    %c0_184 = arith.constant 0 : index
    %207 = vector.load %arg8[%c1984, %c0_184] : memref<3136x64xf32, #tpu.memory_space<vmem>>, vector<64x64xf32>
    %cst_185 = arith.constant dense<0.000000e+00> : vector<2x64xf32>
    %208 = tpu.matmul %206, %207, %cst_185 {dimension_numbers = #tpu.dot_dimension_numbers<[1], [0], [0], [1], [0, 0, 1, 1], [], []>} : vector<2x64xf32>, vector<64x64xf32>, vector<2x64xf32> -> vector<2x64xf32>
    %209 = arith.addf %205, %208 : vector<2x64xf32>
    %c88 = arith.constant 88 : index
    %c0_186 = arith.constant 0 : index
    %210 = vector.load %arg15[%c88, %c0_186] : memref<134x64xf32, #tpu.memory_space<vmem>>, vector<2x64xf32>
    %c2048 = arith.constant 2048 : index
    %c0_187 = arith.constant 0 : index
    %211 = vector.load %arg8[%c2048, %c0_187] : memref<3136x64xf32, #tpu.memory_space<vmem>>, vector<64x64xf32>
    %cst_188 = arith.constant dense<0.000000e+00> : vector<2x64xf32>
    %212 = tpu.matmul %210, %211, %cst_188 {dimension_numbers = #tpu.dot_dimension_numbers<[1], [0], [0], [1], [0, 0, 1, 1], [], []>} : vector<2x64xf32>, vector<64x64xf32>, vector<2x64xf32> -> vector<2x64xf32>
    %213 = arith.addf %209, %212 : vector<2x64xf32>
    %c90 = arith.constant 90 : index
    %c0_189 = arith.constant 0 : index
    %214 = vector.load %arg15[%c90, %c0_189] : memref<134x64xf32, #tpu.memory_space<vmem>>, vector<2x64xf32>
    %c2112 = arith.constant 2112 : index
    %c0_190 = arith.constant 0 : index
    %215 = vector.load %arg8[%c2112, %c0_190] : memref<3136x64xf32, #tpu.memory_space<vmem>>, vector<64x64xf32>
    %cst_191 = arith.constant dense<0.000000e+00> : vector<2x64xf32>
    %216 = tpu.matmul %214, %215, %cst_191 {dimension_numbers = #tpu.dot_dimension_numbers<[1], [0], [0], [1], [0, 0, 1, 1], [], []>} : vector<2x64xf32>, vector<64x64xf32>, vector<2x64xf32> -> vector<2x64xf32>
    %217 = arith.addf %213, %216 : vector<2x64xf32>
    %c92 = arith.constant 92 : index
    %c0_192 = arith.constant 0 : index
    %218 = vector.load %arg15[%c92, %c0_192] : memref<134x64xf32, #tpu.memory_space<vmem>>, vector<2x64xf32>
    %c2176 = arith.constant 2176 : index
    %c0_193 = arith.constant 0 : index
    %219 = vector.load %arg8[%c2176, %c0_193] : memref<3136x64xf32, #tpu.memory_space<vmem>>, vector<64x64xf32>
    %cst_194 = arith.constant dense<0.000000e+00> : vector<2x64xf32>
    %220 = tpu.matmul %218, %219, %cst_194 {dimension_numbers = #tpu.dot_dimension_numbers<[1], [0], [0], [1], [0, 0, 1, 1], [], []>} : vector<2x64xf32>, vector<64x64xf32>, vector<2x64xf32> -> vector<2x64xf32>
    %221 = arith.addf %217, %220 : vector<2x64xf32>
    %c100 = arith.constant 100 : index
    %c0_195 = arith.constant 0 : index
    %222 = vector.load %arg15[%c100, %c0_195] : memref<134x64xf32, #tpu.memory_space<vmem>>, vector<2x64xf32>
    %c2240 = arith.constant 2240 : index
    %c0_196 = arith.constant 0 : index
    %223 = vector.load %arg8[%c2240, %c0_196] : memref<3136x64xf32, #tpu.memory_space<vmem>>, vector<64x64xf32>
    %cst_197 = arith.constant dense<0.000000e+00> : vector<2x64xf32>
    %224 = tpu.matmul %222, %223, %cst_197 {dimension_numbers = #tpu.dot_dimension_numbers<[1], [0], [0], [1], [0, 0, 1, 1], [], []>} : vector<2x64xf32>, vector<64x64xf32>, vector<2x64xf32> -> vector<2x64xf32>
    %225 = arith.addf %221, %224 : vector<2x64xf32>
    %c102 = arith.constant 102 : index
    %c0_198 = arith.constant 0 : index
    %226 = vector.load %arg15[%c102, %c0_198] : memref<134x64xf32, #tpu.memory_space<vmem>>, vector<2x64xf32>
    %c2304 = arith.constant 2304 : index
    %c0_199 = arith.constant 0 : index
    %227 = vector.load %arg8[%c2304, %c0_199] : memref<3136x64xf32, #tpu.memory_space<vmem>>, vector<64x64xf32>
    %cst_200 = arith.constant dense<0.000000e+00> : vector<2x64xf32>
    %228 = tpu.matmul %226, %227, %cst_200 {dimension_numbers = #tpu.dot_dimension_numbers<[1], [0], [0], [1], [0, 0, 1, 1], [], []>} : vector<2x64xf32>, vector<64x64xf32>, vector<2x64xf32> -> vector<2x64xf32>
    %229 = arith.addf %225, %228 : vector<2x64xf32>
    %c104 = arith.constant 104 : index
    %c0_201 = arith.constant 0 : index
    %230 = vector.load %arg15[%c104, %c0_201] : memref<134x64xf32, #tpu.memory_space<vmem>>, vector<2x64xf32>
    %c2368 = arith.constant 2368 : index
    %c0_202 = arith.constant 0 : index
    %231 = vector.load %arg8[%c2368, %c0_202] : memref<3136x64xf32, #tpu.memory_space<vmem>>, vector<64x64xf32>
    %cst_203 = arith.constant dense<0.000000e+00> : vector<2x64xf32>
    %232 = tpu.matmul %230, %231, %cst_203 {dimension_numbers = #tpu.dot_dimension_numbers<[1], [0], [0], [1], [0, 0, 1, 1], [], []>} : vector<2x64xf32>, vector<64x64xf32>, vector<2x64xf32> -> vector<2x64xf32>
    %233 = arith.addf %229, %232 : vector<2x64xf32>
    %c106 = arith.constant 106 : index
    %c0_204 = arith.constant 0 : index
    %234 = vector.load %arg15[%c106, %c0_204] : memref<134x64xf32, #tpu.memory_space<vmem>>, vector<2x64xf32>
    %c2432 = arith.constant 2432 : index
    %c0_205 = arith.constant 0 : index
    %235 = vector.load %arg8[%c2432, %c0_205] : memref<3136x64xf32, #tpu.memory_space<vmem>>, vector<64x64xf32>
    %cst_206 = arith.constant dense<0.000000e+00> : vector<2x64xf32>
    %236 = tpu.matmul %234, %235, %cst_206 {dimension_numbers = #tpu.dot_dimension_numbers<[1], [0], [0], [1], [0, 0, 1, 1], [], []>} : vector<2x64xf32>, vector<64x64xf32>, vector<2x64xf32> -> vector<2x64xf32>
    %237 = arith.addf %233, %236 : vector<2x64xf32>
    %c108 = arith.constant 108 : index
    %c0_207 = arith.constant 0 : index
    %238 = vector.load %arg15[%c108, %c0_207] : memref<134x64xf32, #tpu.memory_space<vmem>>, vector<2x64xf32>
    %c2496 = arith.constant 2496 : index
    %c0_208 = arith.constant 0 : index
    %239 = vector.load %arg8[%c2496, %c0_208] : memref<3136x64xf32, #tpu.memory_space<vmem>>, vector<64x64xf32>
    %cst_209 = arith.constant dense<0.000000e+00> : vector<2x64xf32>
    %240 = tpu.matmul %238, %239, %cst_209 {dimension_numbers = #tpu.dot_dimension_numbers<[1], [0], [0], [1], [0, 0, 1, 1], [], []>} : vector<2x64xf32>, vector<64x64xf32>, vector<2x64xf32> -> vector<2x64xf32>
    %241 = arith.addf %237, %240 : vector<2x64xf32>
    %c110 = arith.constant 110 : index
    %c0_210 = arith.constant 0 : index
    %242 = vector.load %arg15[%c110, %c0_210] : memref<134x64xf32, #tpu.memory_space<vmem>>, vector<2x64xf32>
    %c2560 = arith.constant 2560 : index
    %c0_211 = arith.constant 0 : index
    %243 = vector.load %arg8[%c2560, %c0_211] : memref<3136x64xf32, #tpu.memory_space<vmem>>, vector<64x64xf32>
    %cst_212 = arith.constant dense<0.000000e+00> : vector<2x64xf32>
    %244 = tpu.matmul %242, %243, %cst_212 {dimension_numbers = #tpu.dot_dimension_numbers<[1], [0], [0], [1], [0, 0, 1, 1], [], []>} : vector<2x64xf32>, vector<64x64xf32>, vector<2x64xf32> -> vector<2x64xf32>
    %245 = arith.addf %241, %244 : vector<2x64xf32>
    %c112 = arith.constant 112 : index
    %c0_213 = arith.constant 0 : index
    %246 = vector.load %arg15[%c112, %c0_213] : memref<134x64xf32, #tpu.memory_space<vmem>>, vector<2x64xf32>
    %c2624 = arith.constant 2624 : index
    %c0_214 = arith.constant 0 : index
    %247 = vector.load %arg8[%c2624, %c0_214] : memref<3136x64xf32, #tpu.memory_space<vmem>>, vector<64x64xf32>
    %cst_215 = arith.constant dense<0.000000e+00> : vector<2x64xf32>
    %248 = tpu.matmul %246, %247, %cst_215 {dimension_numbers = #tpu.dot_dimension_numbers<[1], [0], [0], [1], [0, 0, 1, 1], [], []>} : vector<2x64xf32>, vector<64x64xf32>, vector<2x64xf32> -> vector<2x64xf32>
    %249 = arith.addf %245, %248 : vector<2x64xf32>
    %c120 = arith.constant 120 : index
    %c0_216 = arith.constant 0 : index
    %250 = vector.load %arg15[%c120, %c0_216] : memref<134x64xf32, #tpu.memory_space<vmem>>, vector<2x64xf32>
    %c2688 = arith.constant 2688 : index
    %c0_217 = arith.constant 0 : index
    %251 = vector.load %arg8[%c2688, %c0_217] : memref<3136x64xf32, #tpu.memory_space<vmem>>, vector<64x64xf32>
    %cst_218 = arith.constant dense<0.000000e+00> : vector<2x64xf32>
    %252 = tpu.matmul %250, %251, %cst_218 {dimension_numbers = #tpu.dot_dimension_numbers<[1], [0], [0], [1], [0, 0, 1, 1], [], []>} : vector<2x64xf32>, vector<64x64xf32>, vector<2x64xf32> -> vector<2x64xf32>
    %253 = arith.addf %249, %252 : vector<2x64xf32>
    %c122 = arith.constant 122 : index
    %c0_219 = arith.constant 0 : index
    %254 = vector.load %arg15[%c122, %c0_219] : memref<134x64xf32, #tpu.memory_space<vmem>>, vector<2x64xf32>
    %c2752 = arith.constant 2752 : index
    %c0_220 = arith.constant 0 : index
    %255 = vector.load %arg8[%c2752, %c0_220] : memref<3136x64xf32, #tpu.memory_space<vmem>>, vector<64x64xf32>
    %cst_221 = arith.constant dense<0.000000e+00> : vector<2x64xf32>
    %256 = tpu.matmul %254, %255, %cst_221 {dimension_numbers = #tpu.dot_dimension_numbers<[1], [0], [0], [1], [0, 0, 1, 1], [], []>} : vector<2x64xf32>, vector<64x64xf32>, vector<2x64xf32> -> vector<2x64xf32>
    %257 = arith.addf %253, %256 : vector<2x64xf32>
    %c124 = arith.constant 124 : index
    %c0_222 = arith.constant 0 : index
    %258 = vector.load %arg15[%c124, %c0_222] : memref<134x64xf32, #tpu.memory_space<vmem>>, vector<2x64xf32>
    %c2816 = arith.constant 2816 : index
    %c0_223 = arith.constant 0 : index
    %259 = vector.load %arg8[%c2816, %c0_223] : memref<3136x64xf32, #tpu.memory_space<vmem>>, vector<64x64xf32>
    %cst_224 = arith.constant dense<0.000000e+00> : vector<2x64xf32>
    %260 = tpu.matmul %258, %259, %cst_224 {dimension_numbers = #tpu.dot_dimension_numbers<[1], [0], [0], [1], [0, 0, 1, 1], [], []>} : vector<2x64xf32>, vector<64x64xf32>, vector<2x64xf32> -> vector<2x64xf32>
    %261 = arith.addf %257, %260 : vector<2x64xf32>
    %c126 = arith.constant 126 : index
    %c0_225 = arith.constant 0 : index
    %262 = vector.load %arg15[%c126, %c0_225] : memref<134x64xf32, #tpu.memory_space<vmem>>, vector<2x64xf32>
    %c2880 = arith.constant 2880 : index
    %c0_226 = arith.constant 0 : index
    %263 = vector.load %arg8[%c2880, %c0_226] : memref<3136x64xf32, #tpu.memory_space<vmem>>, vector<64x64xf32>
    %cst_227 = arith.constant dense<0.000000e+00> : vector<2x64xf32>
    %264 = tpu.matmul %262, %263, %cst_227 {dimension_numbers = #tpu.dot_dimension_numbers<[1], [0], [0], [1], [0, 0, 1, 1], [], []>} : vector<2x64xf32>, vector<64x64xf32>, vector<2x64xf32> -> vector<2x64xf32>
    %265 = arith.addf %261, %264 : vector<2x64xf32>
    %c128_228 = arith.constant 128 : index
    %c0_229 = arith.constant 0 : index
    %266 = vector.load %arg15[%c128_228, %c0_229] : memref<134x64xf32, #tpu.memory_space<vmem>>, vector<2x64xf32>
    %c2944 = arith.constant 2944 : index
    %c0_230 = arith.constant 0 : index
    %267 = vector.load %arg8[%c2944, %c0_230] : memref<3136x64xf32, #tpu.memory_space<vmem>>, vector<64x64xf32>
    %cst_231 = arith.constant dense<0.000000e+00> : vector<2x64xf32>
    %268 = tpu.matmul %266, %267, %cst_231 {dimension_numbers = #tpu.dot_dimension_numbers<[1], [0], [0], [1], [0, 0, 1, 1], [], []>} : vector<2x64xf32>, vector<64x64xf32>, vector<2x64xf32> -> vector<2x64xf32>
    %269 = arith.addf %265, %268 : vector<2x64xf32>
    %c130 = arith.constant 130 : index
    %c0_232 = arith.constant 0 : index
    %270 = vector.load %arg15[%c130, %c0_232] : memref<134x64xf32, #tpu.memory_space<vmem>>, vector<2x64xf32>
    %c3008 = arith.constant 3008 : index
    %c0_233 = arith.constant 0 : index
    %271 = vector.load %arg8[%c3008, %c0_233] : memref<3136x64xf32, #tpu.memory_space<vmem>>, vector<64x64xf32>
    %cst_234 = arith.constant dense<0.000000e+00> : vector<2x64xf32>
    %272 = tpu.matmul %270, %271, %cst_234 {dimension_numbers = #tpu.dot_dimension_numbers<[1], [0], [0], [1], [0, 0, 1, 1], [], []>} : vector<2x64xf32>, vector<64x64xf32>, vector<2x64xf32> -> vector<2x64xf32>
    %273 = arith.addf %269, %272 : vector<2x64xf32>
    %c132 = arith.constant 132 : index
    %c0_235 = arith.constant 0 : index
    %274 = vector.load %arg15[%c132, %c0_235] : memref<134x64xf32, #tpu.memory_space<vmem>>, vector<2x64xf32>
    %c3072 = arith.constant 3072 : index
    %c0_236 = arith.constant 0 : index
    %275 = vector.load %arg8[%c3072, %c0_236] : memref<3136x64xf32, #tpu.memory_space<vmem>>, vector<64x64xf32>
    %cst_237 = arith.constant dense<0.000000e+00> : vector<2x64xf32>
    %276 = tpu.matmul %274, %275, %cst_237 {dimension_numbers = #tpu.dot_dimension_numbers<[1], [0], [0], [1], [0, 0, 1, 1], [], []>} : vector<2x64xf32>, vector<64x64xf32>, vector<2x64xf32> -> vector<2x64xf32>
    %277 = arith.addf %273, %276 : vector<2x64xf32>
    %c0_238 = arith.constant 0 : index
    %c0_239 = arith.constant 0 : index
    %278 = vector.load %arg9[%c0_238, %c0_239] : memref<1x64xf32, #tpu.memory_space<vmem>>, vector<1x64xf32>
    %279 = vector.broadcast %278 : vector<1x64xf32> to vector<2x64xf32>
    %280 = arith.addf %277, %279 : vector<2x64xf32>
    %cst_240 = arith.constant 0.000000e+00 : f32
    %281 = vector.broadcast %cst_240 : f32 to vector<2x64xf32>
    %282 = arith.maximumf %280, %281 : vector<2x64xf32>
    %c0_241 = arith.constant 0 : index
    %c0_242 = arith.constant 0 : index
    %283 = vector.load %arg10[%c0_241, %c0_242] : memref<64x14xf32, #tpu.memory_space<vmem>>, vector<64x14xf32>
    %cst_243 = arith.constant dense<0.000000e+00> : vector<2x14xf32>
    %284 = tpu.matmul %282, %283, %cst_243 {dimension_numbers = #tpu.dot_dimension_numbers<[1], [0], [0], [1], [0, 0, 1, 1], [], []>} : vector<2x64xf32>, vector<64x14xf32>, vector<2x14xf32> -> vector<2x14xf32>
    %c0_244 = arith.constant 0 : index
    %c0_245 = arith.constant 0 : index
    %285 = vector.load %arg11[%c0_244, %c0_245] : memref<1x14xf32, #tpu.memory_space<vmem>>, vector<1x14xf32>
    %286 = vector.broadcast %285 : vector<1x14xf32> to vector<2x14xf32>
    %287 = arith.addf %284, %286 : vector<2x14xf32>
    %c0_246 = arith.constant 0 : index
    %c0_247 = arith.constant 0 : index
    %288 = vector.load %arg12[%c0_246, %c0_247] : memref<2x14xf32, #tpu.memory_space<vmem>>, vector<2x14xf32>
    tpu.vector_store %arg12[%c0_246, %c0_247], %287 {strides = array<i32>} : memref<2x14xf32, #tpu.memory_space<vmem>>, vector<2x14xf32>,
    return
  }
  func.func @transform_0(%arg0: i32) -> (i32, i32) {
    %c0_i32 = arith.constant 0 : i32
    %c0_i32_0 = arith.constant 0 : i32
    %c0_i32_1 = arith.constant 0 : i32
    return %c0_i32, %c0_i32_0 : i32, i32
  }
  func.func @transform_1(%arg0: i32) -> (i32, i32, i32) {
    %c0_i32 = arith.constant 0 : i32
    %c0_i32_0 = arith.constant 0 : i32
    %c0_i32_1 = arith.constant 0 : i32
    %c0_i32_2 = arith.constant 0 : i32
    return %c0_i32, %c0_i32_0, %c0_i32_1 : i32, i32, i32
  }
  func.func @transform_2(%arg0: i32) -> (i32, i32) {
    %c0_i32 = arith.constant 0 : i32
    %c0_i32_0 = arith.constant 0 : i32
    %c0_i32_1 = arith.constant 0 : i32
    return %c0_i32, %c0_i32_0 : i32, i32
  }
  func.func @transform_3(%arg0: i32) -> (i32, i32, i32) {
    %c0_i32 = arith.constant 0 : i32
    %c0_i32_0 = arith.constant 0 : i32
    %c0_i32_1 = arith.constant 0 : i32
    %c0_i32_2 = arith.constant 0 : i32
    return %c0_i32, %c0_i32_0, %c0_i32_1 : i32, i32, i32
  }
  func.func @transform_4(%arg0: i32) -> (i32, i32) {
    %c0_i32 = arith.constant 0 : i32
    %c0_i32_0 = arith.constant 0 : i32
    %c0_i32_1 = arith.constant 0 : i32
    return %c0_i32, %c0_i32_0 : i32, i32
  }
  func.func @transform_5(%arg0: i32) -> (i32, i32, i32) {
    %c0_i32 = arith.constant 0 : i32
    %c0_i32_0 = arith.constant 0 : i32
    %c0_i32_1 = arith.constant 0 : i32
    %c0_i32_2 = arith.constant 0 : i32
    return %c0_i32, %c0_i32_0, %c0_i32_1 : i32, i32, i32
  }
  func.func @transform_6(%arg0: i32) -> (i32, i32) {
    %c0_i32 = arith.constant 0 : i32
    %c0_i32_0 = arith.constant 0 : i32
    %c0_i32_1 = arith.constant 0 : i32
    return %c0_i32, %c0_i32_0 : i32, i32
  }
  func.func @transform_7(%arg0: i32) -> (i32, i32) {
    %c0_i32 = arith.constant 0 : i32
    %c0_i32_0 = arith.constant 0 : i32
    %c0_i32_1 = arith.constant 0 : i32
    return %c0_i32, %c0_i32_0 : i32, i32
  }
  func.func @transform_8(%arg0: i32) -> (i32, i32) {
    %c0_i32 = arith.constant 0 : i32
    %c0_i32_0 = arith.constant 0 : i32
    %c0_i32_1 = arith.constant 0 : i32
    return %c0_i32, %c0_i32_0 : i32, i32
  }
  func.func @transform_9(%arg0: i32) -> (i32, i32) {
    %c0_i32 = arith.constant 0 : i32
    %c0_i32_0 = arith.constant 0 : i32
    %c0_i32_1 = arith.constant 0 : i32
    return %c0_i32, %c0_i32_0 : i32, i32
  }
  func.func @transform_10(%arg0: i32) -> (i32, i32) {
    %c0_i32 = arith.constant 0 : i32
    %c0_i32_0 = arith.constant 0 : i32
    %c0_i32_1 = arith.constant 0 : i32
    return %c0_i32, %c0_i32_0 : i32, i32
  }
  func.func @transform_11(%arg0: i32) -> (i32, i32) {
    %c0_i32 = arith.constant 0 : i32
    %c0_i32_0 = arith.constant 0 : i32
    %c0_i32_1 = arith.constant 0 : i32
    return %c0_i32, %c0_i32_0 : i32, i32
  }
}

</mosaic_0001>

<llo_original>
// kernel: adversarial_pursuit_forward.1
$region0: #{adversarial_pursuit_forward.1}
  #allocation0 [shape = 'u32[]', space=smem, size = 0x4, offset = 0x4, fixed_abs, tag = 'smem constant byte address 0x4 - core index']
  #allocation1 [shape = 'u32[144,128]{1,0:T(1,128)}', space=vmem, size = 0x12000, scoped, tag = 'internal scratch']
  #allocation2 [shape = 'f32[178,32]{1,0:T(8,128)}', space=vmem, size = 0x17000, scoped, tag = 'scratch operand']
  #allocation3 [shape = 'f32[156,64]{1,0:T(8,128)}', space=vmem, size = 0x14000, scoped, tag = 'scratch operand']
  #allocation4 [shape = 'f32[134,64]{1,0:T(8,128)}', space=vmem, size = 0x11000, scoped, tag = 'scratch operand']
  %s0 = inlined_call_operand.vmem [shape: f32[200,5], index: 0, kind: input, shape index: {}]
  %s1 = inlined_call_operand.vmem [shape: f32[4,5,32], index: 1, kind: input, shape index: {}]
  %s2 = inlined_call_operand.vmem [shape: f32[1,32], index: 2, kind: input, shape index: {}]
  %s3 = inlined_call_operand.vmem [shape: f32[4,32,64], index: 3, kind: input, shape index: {}]
  %s4 = inlined_call_operand.vmem [shape: f32[1,64], index: 4, kind: input, shape index: {}]
  %s5 = inlined_call_operand.vmem [shape: f32[4,64,64], index: 5, kind: input, shape index: {}]
  %s6 = inlined_call_operand.vmem [shape: f32[1,64], index: 6, kind: input, shape index: {}]
  %s7 = inlined_call_operand.vmem [shape: f32[3136,64], index: 7, kind: input, shape index: {}]
  %s8 = inlined_call_operand.vmem [shape: f32[1,64], index: 8, kind: input, shape index: {}]
  %s9 = inlined_call_operand.vmem [shape: f32[64,14], index: 9, kind: input, shape index: {}]
  %s10 = inlined_call_operand.vmem [shape: f32[1,14], index: 10, kind: input, shape index: {}]
  %s11 = inlined_call_operand.vmem [shape: f32[2,14], index: 11, kind: output, shape index: {}]
  %s12 = sld [smem:[#allocation0]]
  $region54: #{adversarial_pursuit_forward.1} parent=0
    _
  %s14 = ssub.s32 1, %s12
  %s15 = scalar_select 0, %s14, %s12
  // Predicated region
  $region2: #{adversarial_pursuit_forward.1} parent=0 // pred_check
    _
  $region3: #{adversarial_pursuit_forward.1} parent=0 // pred_check_branch
    %17 = sbr.rel (0) target = $region5
  $region4: #{adversarial_pursuit_forward.1} parent=0 // pred_region
    _
  $region5: #{adversarial_pursuit_forward.1} parent=0 // pred_fallthru
    _
  // Predicated region
  $region6: #{adversarial_pursuit_forward.1} parent=0 // pred_check
    _
  $region7: #{adversarial_pursuit_forward.1} parent=0 // pred_check_branch
    %19 = sbr.rel (0) target = $region9
  $region8: #{adversarial_pursuit_forward.1} parent=0 // pred_region
    _
  $region9: #{adversarial_pursuit_forward.1} parent=0 // pred_fallthru
    _
  // Predicated region
  $region10: #{adversarial_pursuit_forward.1} parent=0 // pred_check
    _
  $region11: #{adversarial_pursuit_forward.1} parent=0 // pred_check_branch
    %21 = sbr.rel (0) target = $region13
  $region12: #{adversarial_pursuit_forward.1} parent=0 // pred_region
    _
  $region13: #{adversarial_pursuit_forward.1} parent=0 // pred_fallthru
    _
  // Predicated region
  $region14: #{adversarial_pursuit_forward.1} parent=0 // pred_check
    _
  $region15: #{adversarial_pursuit_forward.1} parent=0 // pred_check_branch
    %23 = sbr.rel (0) target = $region17
  $region16: #{adversarial_pursuit_forward.1} parent=0 // pred_region
    _
  $region17: #{adversarial_pursuit_forward.1} parent=0 // pred_fallthru
    _
  // Predicated region
  $region18: #{adversarial_pursuit_forward.1} parent=0 // pred_check
    _
  $region19: #{adversarial_pursuit_forward.1} parent=0 // pred_check_branch
    %25 = sbr.rel (0) target = $region21
  $region20: #{adversarial_pursuit_forward.1} parent=0 // pred_region
    _
  $region21: #{adversarial_pursuit_forward.1} parent=0 // pred_fallthru
    _
  // Predicated region
  $region22: #{adversarial_pursuit_forward.1} parent=0 // pred_check
    _
  $region23: #{adversarial_pursuit_forward.1} parent=0 // pred_check_branch
    %27 = sbr.rel (0) target = $region25
  $region24: #{adversarial_pursuit_forward.1} parent=0 // pred_region
    _
  $region25: #{adversarial_pursuit_forward.1} parent=0 // pred_fallthru
    _
  // Predicated region
  $region26: #{adversarial_pursuit_forward.1} parent=0 // pred_check
    _
  $region27: #{adversarial_pursuit_forward.1} parent=0 // pred_check_branch
    %29 = sbr.rel (0) target = $region29
  $region28: #{adversarial_pursuit_forward.1} parent=0 // pred_region
    _
  $region29: #{adversarial_pursuit_forward.1} parent=0 // pred_fallthru
    _
  // Predicated region
  $region30: #{adversarial_pursuit_forward.1} parent=0 // pred_check
    _
  $region31: #{adversarial_pursuit_forward.1} parent=0 // pred_check_branch
    %31 = sbr.rel (0) target = $region33
  $region32: #{adversarial_pursuit_forward.1} parent=0 // pred_region
    _
  $region33: #{adversarial_pursuit_forward.1} parent=0 // pred_fallthru
    _
  // Predicated region
  $region34: #{adversarial_pursuit_forward.1} parent=0 // pred_check
    _
  $region35: #{adversarial_pursuit_forward.1} parent=0 // pred_check_branch
    %33 = sbr.rel (0) target = $region37
  $region36: #{adversarial_pursuit_forward.1} parent=0 // pred_region
    _
  $region37: #{adversarial_pursuit_forward.1} parent=0 // pred_fallthru
    _
  // Predicated region
  $region38: #{adversarial_pursuit_forward.1} parent=0 // pred_check
    _
  $region39: #{adversarial_pursuit_forward.1} parent=0 // pred_check_branch
    %35 = sbr.rel (0) target = $region41
  $region40: #{adversarial_pursuit_forward.1} parent=0 // pred_region
    _
  $region41: #{adversarial_pursuit_forward.1} parent=0 // pred_fallthru
    _
  // Predicated region
  $region42: #{adversarial_pursuit_forward.1} parent=0 // pred_check
    _
  $region43: #{adversarial_pursuit_forward.1} parent=0 // pred_check_branch
    %37 = sbr.rel (0) target = $region45
  $region44: #{adversarial_pursuit_forward.1} parent=0 // pred_region
    _
  $region45: #{adversarial_pursuit_forward.1} parent=0 // pred_fallthru
    _
  %v38 = vld [vmem:[%s0] sm:$0xff]
  %v39 = vld [vmem:[%s0 + $0x8] sm:$0xff]
  %v40 = vld [vmem:[%s0 + $0x10] sm:$0xff]
  %v41 = vld [vmem:[%s0 + $0x18] sm:$0xff]
  %v42 = vld [vmem:[%s0 + $0x20] sm:$0xff]
  %v43 = vld [vmem:[%s0 + $0x28] sm:$0xff]
  %v44 = vld [vmem:[%s0 + $0x30] sm:$0xff]
  %v45 = vld [vmem:[%s0 + $0x38] sm:$0xff]
  %v46 = vld [vmem:[%s0 + $0x40] sm:$0xff]
  %v47 = vld [vmem:[%s0 + $0x48] sm:$0xff]
  %v48 = vld [vmem:[%s0 + $0x50] sm:$0xff]
  %v49 = vld [vmem:[%s0 + $0x58] sm:$0xff]
  %v50 = vld [vmem:[%s0 + $0x60] sm:$0xff]
  %v51 = vld [vmem:[%s0 + $0x68] sm:$0xff]
  %v52 = vld [vmem:[%s0 + $0x70] sm:$0xff]
  %v53 = vld [vmem:[%s0 + $0x78] sm:$0xff]
  %v54 = vld [vmem:[%s0 + $0x80] sm:$0xff]
  %v55 = vld [vmem:[%s0 + $0x88] sm:$0xff]
  %v56 = vld [vmem:[%s0 + $0x90] sm:$0xff]
  %v57 = vld [vmem:[%s0 + $0x98] sm:$0xff]
  %v58 = vld [vmem:[%s0 + $0xa0] sm:$0xff]
  %v59 = vld [vmem:[%s0 + $0xa8] sm:$0xff]
  %v60 = vld [vmem:[%s0 + $0xb0] sm:$0x3]
  %v61 = vld [vmem:[%s1] sm:$0x1f]
  %v62 = vld [vmem:[%s0 + $0x2] sm:$0xff]
  %v63 = vld [vmem:[%s0 + $0xa] sm:$0xff]
  %v64 = vld [vmem:[%s0 + $0x12] sm:$0xff]
  %v65 = vld [vmem:[%s0 + $0x1a] sm:$0xff]
  %v66 = vld [vmem:[%s0 + $0x22] sm:$0xff]
  %v67 = vld [vmem:[%s0 + $0x2a] sm:$0xff]
  %v68 = vld [vmem:[%s0 + $0x32] sm:$0xff]
  %v69 = vld [vmem:[%s0 + $0x3a] sm:$0xff]
  %v70 = vld [vmem:[%s0 + $0x42] sm:$0xff]
  %v71 = vld [vmem:[%s0 + $0x4a] sm:$0xff]
  %v72 = vld [vmem:[%s0 + $0x52] sm:$0xff]
  %v73 = vld [vmem:[%s0 + $0x5a] sm:$0xff]
  %v74 = vld [vmem:[%s0 + $0x62] sm:$0xff]
  %v75 = vld [vmem:[%s0 + $0x6a] sm:$0xff]
  %v76 = vld [vmem:[%s0 + $0x72] sm:$0xff]
  %v77 = vld [vmem:[%s0 + $0x7a] sm:$0xff]
  %v78 = vld [vmem:[%s0 + $0x82] sm:$0xff]
  %v79 = vld [vmem:[%s0 + $0x8a] sm:$0xff]
  %v80 = vld [vmem:[%s0 + $0x92] sm:$0xff]
  %v81 = vld [vmem:[%s0 + $0x9a] sm:$0xff]
  %v82 = vld [vmem:[%s0 + $0xa2] sm:$0xff]
  %v83 = vld [vmem:[%s0 + $0xaa] sm:$0xff]
  %v84 = vld [vmem:[%s0 + $0xb2] sm:$0x3]
  %s85 = scalar_lea.vmem %s1, 8
  %v86 = vld [vmem:[%s85] sm:$0x1f]
  %vm87 = vcmask 39936
  %v89 = vsel %vm87, %v62, 0
  %v92 = vsel %vm87, %v63, 0
  %v95 = vsel %vm87, %v64, 0
  %v98 = vsel %vm87, %v65, 0
  %v101 = vsel %vm87, %v66, 0
  %v104 = vsel %vm87, %v67, 0
  %v107 = vsel %vm87, %v68, 0
  %v110 = vsel %vm87, %v69, 0
  %v113 = vsel %vm87, %v70, 0
  %v116 = vsel %vm87, %v71, 0
  %v119 = vsel %vm87, %v72, 0
  %v122 = vsel %vm87, %v73, 0
  %v125 = vsel %vm87, %v74, 0
  %v128 = vsel %vm87, %v75, 0
  %v131 = vsel %vm87, %v76, 0
  %v134 = vsel %vm87, %v77, 0
  %v137 = vsel %vm87, %v78, 0
  %v140 = vsel %vm87, %v79, 0
  %v143 = vsel %vm87, %v80, 0
  %v146 = vsel %vm87, %v81, 0
  %v149 = vsel %vm87, %v82, 0
  %v152 = vsel %vm87, %v83, 0
  %v155 = vsel %vm87, %v84, 0
  %vm157 = vcmask 1044480
  %v159 = vsel %vm157, %v86, 0
  %161 = vmatprep.subr.mxu0 0.0
  %162 = vmatpush1.msra.mxu0 %v159
  %163 = vmatprep.subr.mxu0 0.0
  %164 = vmatpush1.msra.mxu0 0.0
  %165 = vmatprep.subr.mxu0 0.0
  %166 = vmatpush1.msra.mxu0 0.0
  %167 = vmatprep.subr.mxu0 0.0
  %168 = vmatpush1.msra.mxu0 0.0
  %169 = vmatprep.subr.mxu0 0.0
  %170 = vmatpush1.msra.mxu0 0.0
  %171 = vmatprep.subr.mxu0 0.0
  %172 = vmatpush1.msra.mxu0 0.0
  %173 = vmatprep.subr.mxu0 0.0
  %174 = vmatpush1.msra.mxu0 0.0
  %175 = vmatprep.subr.mxu0 0.0
  %176 = vmatpush1.msra.mxu0 0.0
  %177 = vmatprep.subr.mxu0 0.0
  %178 = vmatpush1.msra.mxu0 0.0
  %179 = vmatprep.subr.mxu0 0.0
  %180 = vmatpush1.msra.mxu0 0.0
  %181 = vmatprep.subr.mxu0 0.0
  %182 = vmatpush1.msra.mxu0 0.0
  %183 = vmatprep.subr.mxu0 0.0
  %184 = vmatpush1.msra.mxu0 0.0
  %185 = vmatprep.subr.mxu0 0.0
  %186 = vmatpush1.msra.mxu0 0.0
  %187 = vmatprep.subr.mxu0 0.0
  %188 = vmatpush1.msra.mxu0 0.0
  %189 = vmatprep.subr.mxu0 0.0
  %190 = vmatpush1.msra.mxu0 0.0
  %191 = vmatprep.subr.mxu0 0.0
  %192 = vmatpush1.msra.mxu0 0.0
  %193 = vmatprep.subr.mxu0 0.0
  %194 = vmatpush1.msra.mxu0 0.0
  %195 = vmatprep.subr.mxu0 0.0
  %196 = vmatpush1.msra.mxu0 0.0
  %197 = vmatprep.subr.mxu0 0.0
  %198 = vmatpush1.msra.mxu0 0.0
  %199 = vmatprep.subr.mxu0 0.0
  %200 = vmatpush1.msra.mxu0 0.0
  %201 = vmatprep.subr.mxu0 0.0
  %202 = vmatpush1.msra.mxu0 0.0
  %203 = vmatprep.subr.mxu0 0.0
  %204 = vmatpush1.msra.mxu0 0.0
  %205 = vmatprep.subr.mxu0 0.0
  %206 = vmatpush1.msra.mxu0 0.0
  %207 = vmatprep.subr.mxu0 0.0
  %208 = vmatpush1.msra.mxu0 0.0
  %209 = vmatprep.subr.mxu0 0.0
  %210 = vmatpush1.msra.mxu0 0.0
  %211 = vmatprep.subr.mxu0 0.0
  %212 = vmatpush1.msra.mxu0 0.0
  %213 = vmatprep.subr.mxu0 0.0
  %214 = vmatpush1.msra.mxu0 0.0
  %215 = vmatprep.subr.mxu0 0.0
  %216 = vmatpush1.msra.mxu0 0.0
  %217 = vmatprep.subr.mxu0 0.0
  %218 = vmatpush1.msra.mxu0 0.0
  %219 = vmatprep.subr.mxu0 0.0
  %220 = vmatpush1.msra.mxu0 0.0
  %221 = vmatprep.subr.mxu0 0.0
  %222 = vmatpush1.msra.mxu0 0.0
  %223 = vmatprep.subr.mxu0 0.0
  %224 = vmatpush1.msra.mxu0 0.0
  %225 = vmatprep.mubr.f32.mxu0 0.0
  %226 = vmatmul.mubr.f32.gmra.mrb[0].mxu0 %v89
  %v227 = vpop.f32.mrb[0].mxu0
  %v228 = vadd.f32 0.0, %v227
  %v229 = vpop.f32.mrb[0].mxu0
  %230 = vmatprep.mubr.f32.mxu0 0.0
  %231 = vmatmul.mubr.f32.gmra.mrb[0].mxu0 %v92
  %v232 = vpop.f32.mrb[0].mxu0
  %v233 = vadd.f32 0.0, %v232
  %v234 = vpop.f32.mrb[0].mxu0
  %235 = vmatprep.mubr.f32.mxu0 0.0
  %236 = vmatmul.mubr.f32.gmra.mrb[0].mxu0 %v95
  %v237 = vpop.f32.mrb[0].mxu0
  %v238 = vadd.f32 0.0, %v237
  %v239 = vpop.f32.mrb[0].mxu0
  %240 = vmatprep.mubr.f32.mxu0 0.0
  %241 = vmatmul.mubr.f32.gmra.mrb[0].mxu0 %v98
  %v242 = vpop.f32.mrb[0].mxu0
  %v243 = vadd.f32 0.0, %v242
  %v244 = vpop.f32.mrb[0].mxu0
  %245 = vmatprep.mubr.f32.mxu0 0.0
  %246 = vmatmul.mubr.f32.gmra.mrb[0].mxu0 %v101
  %v247 = vpop.f32.mrb[0].mxu0
  %v248 = vadd.f32 0.0, %v247
  %v249 = vpop.f32.mrb[0].mxu0
  %250 = vmatprep.mubr.f32.mxu0 0.0
  %251 = vmatmul.mubr.f32.gmra.mrb[0].mxu0 %v104
  %v252 = vpop.f32.mrb[0].mxu0
  %v253 = vadd.f32 0.0, %v252
  %v254 = vpop.f32.mrb[0].mxu0
  %255 = vmatprep.mubr.f32.mxu0 0.0
  %256 = vmatmul.mubr.f32.gmra.mrb[0].mxu0 %v107
  %v257 = vpop.f32.mrb[0].mxu0
  %v258 = vadd.f32 0.0, %v257
  %v259 = vpop.f32.mrb[0].mxu0
  %260 = vmatprep.mubr.f32.mxu0 0.0
  %261 = vmatmul.mubr.f32.gmra.mrb[0].mxu0 %v110
  %v262 = vpop.f32.mrb[0].mxu0
  %v263 = vadd.f32 0.0, %v262
  %v264 = vpop.f32.mrb[0].mxu0
  %265 = vmatprep.mubr.f32.mxu0 0.0
  %266 = vmatmul.mubr.f32.gmra.mrb[0].mxu0 %v113
  %v267 = vpop.f32.mrb[0].mxu0
  %v268 = vadd.f32 0.0, %v267
  %v269 = vpop.f32.mrb[0].mxu0
  %270 = vmatprep.mubr.f32.mxu0 0.0
  %271 = vmatmul.mubr.f32.gmra.mrb[0].mxu0 %v116
  %v272 = vpop.f32.mrb[0].mxu0
  %v273 = vadd.f32 0.0, %v272
  %v274 = vpop.f32.mrb[0].mxu0
  %275 = vmatprep.mubr.f32.mxu0 0.0
  %276 = vmatmul.mubr.f32.gmra.mrb[0].mxu0 %v119
  %v277 = vpop.f32.mrb[0].mxu0
  %v278 = vadd.f32 0.0, %v277
  %v279 = vpop.f32.mrb[0].mxu0
  %280 = vmatprep.mubr.f32.mxu0 0.0
  %281 = vmatmul.mubr.f32.gmra.mrb[0].mxu0 %v122
  %v282 = vpop.f32.mrb[0].mxu0
  %v283 = vadd.f32 0.0, %v282
  %v284 = vpop.f32.mrb[0].mxu0
  %285 = vmatprep.mubr.f32.mxu0 0.0
  %286 = vmatmul.mubr.f32.gmra.mrb[0].mxu0 %v125
  %v287 = vpop.f32.mrb[0].mxu0
  %v288 = vadd.f32 0.0, %v287
  %v289 = vpop.f32.mrb[0].mxu0
  %290 = vmatprep.mubr.f32.mxu0 0.0
  %291 = vmatmul.mubr.f32.gmra.mrb[0].mxu0 %v128
  %v292 = vpop.f32.mrb[0].mxu0
  %v293 = vadd.f32 0.0, %v292
  %v294 = vpop.f32.mrb[0].mxu0
  %295 = vmatprep.mubr.f32.mxu0 0.0
  %296 = vmatmul.mubr.f32.gmra.mrb[0].mxu0 %v131
  %v297 = vpop.f32.mrb[0].mxu0
  %v298 = vadd.f32 0.0, %v297
  %v299 = vpop.f32.mrb[0].mxu0
  %300 = vmatprep.mubr.f32.mxu0 0.0
  %301 = vmatmul.mubr.f32.gmra.mrb[0].mxu0 %v134
  %v302 = vpop.f32.mrb[0].mxu0
  %v303 = vadd.f32 0.0, %v302
  %v304 = vpop.f32.mrb[0].mxu0
  %305 = vmatprep.mubr.f32.mxu0 0.0
  %306 = vmatmul.mubr.f32.gmra.mrb[0].mxu0 %v137
  %v307 = vpop.f32.mrb[0].mxu0
  %v308 = vadd.f32 0.0, %v307
  %v309 = vpop.f32.mrb[0].mxu0
  %310 = vmatprep.mubr.f32.mxu0 0.0
  %311 = vmatmul.mubr.f32.gmra.mrb[0].mxu0 %v140
  %v312 = vpop.f32.mrb[0].mxu0
  %v313 = vadd.f32 0.0, %v312
  %v314 = vpop.f32.mrb[0].mxu0
  %315 = vmatprep.mubr.f32.mxu0 0.0
  %316 = vmatmul.mubr.f32.gmra.mrb[0].mxu0 %v143
  %v317 = vpop.f32.mrb[0].mxu0
  %v318 = vadd.f32 0.0, %v317
  %v319 = vpop.f32.mrb[0].mxu0
  %320 = vmatprep.mubr.f32.mxu0 0.0
  %321 = vmatmul.mubr.f32.gmra.mrb[0].mxu0 %v146
  %v322 = vpop.f32.mrb[0].mxu0
  %v323 = vadd.f32 0.0, %v322
  %v324 = vpop.f32.mrb[0].mxu0
  %325 = vmatprep.mubr.f32.mxu0 0.0
  %326 = vmatmul.mubr.f32.gmra.mrb[0].mxu0 %v149
  %v327 = vpop.f32.mrb[0].mxu0
  %v328 = vadd.f32 0.0, %v327
  %v329 = vpop.f32.mrb[0].mxu0
  %330 = vmatprep.mubr.f32.mxu0 0.0
  %331 = vmatmul.mubr.f32.gmra.mrb[0].mxu0 %v152
  %v332 = vpop.f32.mrb[0].mxu0
  %v333 = vadd.f32 0.0, %v332
  %v334 = vpop.f32.mrb[0].mxu0
  %335 = vmatprep.mubr.f32.mxu0 0.0
  %336 = vmatmul.mubr.f32.gmra.mrb[0].mxu0 %v155
  %v337 = vpop.f32.mrb[0].mxu0
  %v338 = vadd.f32 0.0, %v337
  %v339 = vpop.f32.mrb[0].mxu0
  %340 = vdwg.mxu0
  %v342 = vsel %vm87, %v38, 0
  %v345 = vsel %vm87, %v39, 0
  %v348 = vsel %vm87, %v40, 0
  %v351 = vsel %vm87, %v41, 0
  %v354 = vsel %vm87, %v42, 0
  %v357 = vsel %vm87, %v43, 0
  %v360 = vsel %vm87, %v44, 0
  %v363 = vsel %vm87, %v45, 0
  %v366 = vsel %vm87, %v46, 0
  %v369 = vsel %vm87, %v47, 0
  %v372 = vsel %vm87, %v48, 0
  %v375 = vsel %vm87, %v49, 0
  %v378 = vsel %vm87, %v50, 0
  %v381 = vsel %vm87, %v51, 0
  %v384 = vsel %vm87, %v52, 0
  %v387 = vsel %vm87, %v53, 0
  %v390 = vsel %vm87, %v54, 0
  %v393 = vsel %vm87, %v55, 0
  %v396 = vsel %vm87, %v56, 0
  %v399 = vsel %vm87, %v57, 0
  %v402 = vsel %vm87, %v58, 0
  %v405 = vsel %vm87, %v59, 0
  %v408 = vsel %vm87, %v60, 0
  %v411 = vsel %vm157, %v61, 0
  %413 = vmatprep.subr.mxu0 0.0
  %414 = vmatpush1.msra.mxu0 %v411
  %415 = vmatprep.subr.mxu0 0.0
  %416 = vmatpush1.msra.mxu0 0.0
  %417 = vmatprep.subr.mxu0 0.0
  %418 = vmatpush1.msra.mxu0 0.0
  %419 = vmatprep.subr.mxu0 0.0
  %420 = vmatpush1.msra.mxu0 0.0
  %421 = vmatprep.subr.mxu0 0.0
  %422 = vmatpush1.msra.mxu0 0.0
  %423 = vmatprep.subr.mxu0 0.0
  %424 = vmatpush1.msra.mxu0 0.0
  %425 = vmatprep.subr.mxu0 0.0
  %426 = vmatpush1.msra.mxu0 0.0
  %427 = vmatprep.subr.mxu0 0.0
  %428 = vmatpush1.msra.mxu0 0.0
  %429 = vmatprep.subr.mxu0 0.0
  %430 = vmatpush1.msra.mxu0 0.0
  %431 = vmatprep.subr.mxu0 0.0
  %432 = vmatpush1.msra.mxu0 0.0
  %433 = vmatprep.subr.mxu0 0.0
  %434 = vmatpush1.msra.mxu0 0.0
  %435 = vmatprep.subr.mxu0 0.0
  %436 = vmatpush1.msra.mxu0 0.0
  %437 = vmatprep.subr.mxu0 0.0
  %438 = vmatpush1.msra.mxu0 0.0
  %439 = vmatprep.subr.mxu0 0.0
  %440 = vmatpush1.msra.mxu0 0.0
  %441 = vmatprep.subr.mxu0 0.0
  %442 = vmatpush1.msra.mxu0 0.0
  %443 = vmatprep.subr.mxu0 0.0
  %444 = vmatpush1.msra.mxu0 0.0
  %445 = vmatprep.subr.mxu0 0.0
  %446 = vmatpush1.msra.mxu0 0.0
  %447 = vmatprep.subr.mxu0 0.0
  %448 = vmatpush1.msra.mxu0 0.0
  %449 = vmatprep.subr.mxu0 0.0
  %450 = vmatpush1.msra.mxu0 0.0
  %451 = vmatprep.subr.mxu0 0.0
  %452 = vmatpush1.msra.mxu0 0.0
  %453 = vmatprep.subr.mxu0 0.0
  %454 = vmatpush1.msra.mxu0 0.0
  %455 = vmatprep.subr.mxu0 0.0
  %456 = vmatpush1.msra.mxu0 0.0
  %457 = vmatprep.subr.mxu0 0.0
  %458 = vmatpush1.msra.mxu0 0.0
  %459 = vmatprep.subr.mxu0 0.0
  %460 = vmatpush1.msra.mxu0 0.0
  %461 = vmatprep.subr.mxu0 0.0
  %462 = vmatpush1.msra.mxu0 0.0
  %463 = vmatprep.subr.mxu0 0.0
  %464 = vmatpush1.msra.mxu0 0.0
  %465 = vmatprep.subr.mxu0 0.0
  %466 = vmatpush1.msra.mxu0 0.0
  %467 = vmatprep.subr.mxu0 0.0
  %468 = vmatpush1.msra.mxu0 0.0
  %469 = vmatprep.subr.mxu0 0.0
  %470 = vmatpush1.msra.mxu0 0.0
  %471 = vmatprep.subr.mxu0 0.0
  %472 = vmatpush1.msra.mxu0 0.0
  %473 = vmatprep.subr.mxu0 0.0
  %474 = vmatpush1.msra.mxu0 0.0
  %475 = vmatprep.subr.mxu0 0.0
  %476 = vmatpush1.msra.mxu0 0.0
  %477 = vmatprep.mubr.f32.mxu0 0.0
  %478 = vmatmul.mubr.f32.gmra.mrb[0].mxu0 %v342
  %v479 = vpop.f32.mrb[0].mxu0
  %v480 = vadd.f32 %v228, %v479
  %v481 = vpop.f32.mrb[0].mxu0
  %482 = vmatprep.mubr.f32.mxu0 0.0
  %483 = vmatmul.mubr.f32.gmra.mrb[0].mxu0 %v345
  %v484 = vpop.f32.mrb[0].mxu0
  %v485 = vadd.f32 %v233, %v484
  %v486 = vpop.f32.mrb[0].mxu0
  %487 = vmatprep.mubr.f32.mxu0 0.0
  %488 = vmatmul.mubr.f32.gmra.mrb[0].mxu0 %v348
  %v489 = vpop.f32.mrb[0].mxu0
  %v490 = vadd.f32 %v238, %v489
  %v491 = vpop.f32.mrb[0].mxu0
  %492 = vmatprep.mubr.f32.mxu0 0.0
  %493 = vmatmul.mubr.f32.gmra.mrb[0].mxu0 %v351
  %v494 = vpop.f32.mrb[0].mxu0
  %v495 = vadd.f32 %v243, %v494
  %v496 = vpop.f32.mrb[0].mxu0
  %497 = vmatprep.mubr.f32.mxu0 0.0
  %498 = vmatmul.mubr.f32.gmra.mrb[0].mxu0 %v354
  %v499 = vpop.f32.mrb[0].mxu0
  %v500 = vadd.f32 %v248, %v499
  %v501 = vpop.f32.mrb[0].mxu0
  %502 = vmatprep.mubr.f32.mxu0 0.0
  %503 = vmatmul.mubr.f32.gmra.mrb[0].mxu0 %v357
  %v504 = vpop.f32.mrb[0].mxu0
  %v505 = vadd.f32 %v253, %v504
  %v506 = vpop.f32.mrb[0].mxu0
  %507 = vmatprep.mubr.f32.mxu0 0.0
  %508 = vmatmul.mubr.f32.gmra.mrb[0].mxu0 %v360
  %v509 = vpop.f32.mrb[0].mxu0
  %v510 = vadd.f32 %v258, %v509
  %v511 = vpop.f32.mrb[0].mxu0
  %512 = vmatprep.mubr.f32.mxu0 0.0
  %513 = vmatmul.mubr.f32.gmra.mrb[0].mxu0 %v363
  %v514 = vpop.f32.mrb[0].mxu0
  %v515 = vadd.f32 %v263, %v514
  %v516 = vpop.f32.mrb[0].mxu0
  %517 = vmatprep.mubr.f32.mxu0 0.0
  %518 = vmatmul.mubr.f32.gmra.mrb[0].mxu0 %v366
  %v519 = vpop.f32.mrb[0].mxu0
  %v520 = vadd.f32 %v268, %v519
  %v521 = vpop.f32.mrb[0].mxu0
  %522 = vmatprep.mubr.f32.mxu0 0.0
  %523 = vmatmul.mubr.f32.gmra.mrb[0].mxu0 %v369
  %v524 = vpop.f32.mrb[0].mxu0
  %v525 = vadd.f32 %v273, %v524
  %v526 = vpop.f32.mrb[0].mxu0
  %527 = vmatprep.mubr.f32.mxu0 0.0
  %528 = vmatmul.mubr.f32.gmra.mrb[0].mxu0 %v372
  %v529 = vpop.f32.mrb[0].mxu0
  %v530 = vadd.f32 %v278, %v529
  %v531 = vpop.f32.mrb[0].mxu0
  %532 = vmatprep.mubr.f32.mxu0 0.0
  %533 = vmatmul.mubr.f32.gmra.mrb[0].mxu0 %v375
  %v534 = vpop.f32.mrb[0].mxu0
  %v535 = vadd.f32 %v283, %v534
  %v536 = vpop.f32.mrb[0].mxu0
  %537 = vmatprep.mubr.f32.mxu0 0.0
  %538 = vmatmul.mubr.f32.gmra.mrb[0].mxu0 %v378
  %v539 = vpop.f32.mrb[0].mxu0
  %v540 = vadd.f32 %v288, %v539
  %v541 = vpop.f32.mrb[0].mxu0
  %542 = vmatprep.mubr.f32.mxu0 0.0
  %543 = vmatmul.mubr.f32.gmra.mrb[0].mxu0 %v381
  %v544 = vpop.f32.mrb[0].mxu0
  %v545 = vadd.f32 %v293, %v544
  %v546 = vpop.f32.mrb[0].mxu0
  %547 = vmatprep.mubr.f32.mxu0 0.0
  %548 = vmatmul.mubr.f32.gmra.mrb[0].mxu0 %v384
  %v549 = vpop.f32.mrb[0].mxu0
  %v550 = vadd.f32 %v298, %v549
  %v551 = vpop.f32.mrb[0].mxu0
  %552 = vmatprep.mubr.f32.mxu0 0.0
  %553 = vmatmul.mubr.f32.gmra.mrb[0].mxu0 %v387
  %v554 = vpop.f32.mrb[0].mxu0
  %v555 = vadd.f32 %v303, %v554
  %v556 = vpop.f32.mrb[0].mxu0
  %557 = vmatprep.mubr.f32.mxu0 0.0
  %558 = vmatmul.mubr.f32.gmra.mrb[0].mxu0 %v390
  %v559 = vpop.f32.mrb[0].mxu0
  %v560 = vadd.f32 %v308, %v559
  %v561 = vpop.f32.mrb[0].mxu0
  %562 = vmatprep.mubr.f32.mxu0 0.0
  %563 = vmatmul.mubr.f32.gmra.mrb[0].mxu0 %v393
  %v564 = vpop.f32.mrb[0].mxu0
  %v565 = vadd.f32 %v313, %v564
  %v566 = vpop.f32.mrb[0].mxu0
  %567 = vmatprep.mubr.f32.mxu0 0.0
  %568 = vmatmul.mubr.f32.gmra.mrb[0].mxu0 %v396
  %v569 = vpop.f32.mrb[0].mxu0
  %v570 = vadd.f32 %v318, %v569
  %v571 = vpop.f32.mrb[0].mxu0
  %572 = vmatprep.mubr.f32.mxu0 0.0
  %573 = vmatmul.mubr.f32.gmra.mrb[0].mxu0 %v399
  %v574 = vpop.f32.mrb[0].mxu0
  %v575 = vadd.f32 %v323, %v574
  %v576 = vpop.f32.mrb[0].mxu0
  %577 = vmatprep.mubr.f32.mxu0 0.0
  %578 = vmatmul.mubr.f32.gmra.mrb[0].mxu0 %v402
  %v579 = vpop.f32.mrb[0].mxu0
  %v580 = vadd.f32 %v328, %v579
  %v581 = vpop.f32.mrb[0].mxu0
  %582 = vmatprep.mubr.f32.mxu0 0.0
  %583 = vmatmul.mubr.f32.gmra.mrb[0].mxu0 %v405
  %v584 = vpop.f32.mrb[0].mxu0
  %v585 = vadd.f32 %v333, %v584
  %v586 = vpop.f32.mrb[0].mxu0
  %587 = vmatprep.mubr.f32.mxu0 0.0
  %588 = vmatmul.mubr.f32.gmra.mrb[0].mxu0 %v408
  %v589 = vpop.f32.mrb[0].mxu0
  %v590 = vadd.f32 %v338, %v589
  %v591 = vpop.f32.mrb[0].mxu0
  %592 = vdwg.mxu0
  %v593 = vld [vmem:[%s0 + $0x14] sm:$0xff]
  %v594 = vld [vmem:[%s0 + $0x1c] sm:$0xff]
  %v595 = vld [vmem:[%s0 + $0x24] sm:$0xff]
  %v596 = vld [vmem:[%s0 + $0x2c] sm:$0xff]
  %v597 = vld [vmem:[%s0 + $0x34] sm:$0xff]
  %v598 = vld [vmem:[%s0 + $0x3c] sm:$0xff]
  %v599 = vld [vmem:[%s0 + $0x44] sm:$0xff]
  %v600 = vld [vmem:[%s0 + $0x4c] sm:$0xff]
  %v601 = vld [vmem:[%s0 + $0x54] sm:$0xff]
  %v602 = vld [vmem:[%s0 + $0x5c] sm:$0xff]
  %v603 = vld [vmem:[%s0 + $0x64] sm:$0xff]
  %v604 = vld [vmem:[%s0 + $0x6c] sm:$0xff]
  %v605 = vld [vmem:[%s0 + $0x74] sm:$0xff]
  %v606 = vld [vmem:[%s0 + $0x7c] sm:$0xff]
  %v607 = vld [vmem:[%s0 + $0x84] sm:$0xff]
  %v608 = vld [vmem:[%s0 + $0x8c] sm:$0xff]
  %v609 = vld [vmem:[%s0 + $0x94] sm:$0xff]
  %v610 = vld [vmem:[%s0 + $0x9c] sm:$0xff]
  %v611 = vld [vmem:[%s0 + $0xa4] sm:$0xff]
  %v612 = vld [vmem:[%s0 + $0xac] sm:$0xff]
  %v613 = vld [vmem:[%s0 + $0xb4] sm:$0xff]
  %v614 = vld [vmem:[%s0 + $0xbc] sm:$0xff]
  %v615 = vld [vmem:[%s0 + $0xc4] sm:$0x3]
  %s616 = scalar_lea.vmem %s1, 16
  %v617 = vld [vmem:[%s616] sm:$0x1f]
  %v619 = vsel %vm87, %v593, 0
  %v622 = vsel %vm87, %v594, 0
  %v625 = vsel %vm87, %v595, 0
  %v628 = vsel %vm87, %v596, 0
  %v631 = vsel %vm87, %v597, 0
  %v634 = vsel %vm87, %v598, 0
  %v637 = vsel %vm87, %v599, 0
  %v640 = vsel %vm87, %v600, 0
  %v643 = vsel %vm87, %v601, 0
  %v646 = vsel %vm87, %v602, 0
  %v649 = vsel %vm87, %v603, 0
  %v652 = vsel %vm87, %v604, 0
  %v655 = vsel %vm87, %v605, 0
  %v658 = vsel %vm87, %v606, 0
  %v661 = vsel %vm87, %v607, 0
  %v664 = vsel %vm87, %v608, 0
  %v667 = vsel %vm87, %v609, 0
  %v670 = vsel %vm87, %v610, 0
  %v673 = vsel %vm87, %v611, 0
  %v676 = vsel %vm87, %v612, 0
  %v679 = vsel %vm87, %v613, 0
  %v682 = vsel %vm87, %v614, 0
  %v685 = vsel %vm87, %v615, 0
  %v688 = vsel %vm157, %v617, 0
  %690 = vmatprep.subr.mxu0 0.0
  %691 = vmatpush1.msra.mxu0 %v688
  %692 = vmatprep.subr.mxu0 0.0
  %693 = vmatpush1.msra.mxu0 0.0
  %694 = vmatprep.subr.mxu0 0.0
  %695 = vmatpush1.msra.mxu0 0.0
  %696 = vmatprep.subr.mxu0 0.0
  %697 = vmatpush1.msra.mxu0 0.0
  %698 = vmatprep.subr.mxu0 0.0
  %699 = vmatpush1.msra.mxu0 0.0
  %700 = vmatprep.subr.mxu0 0.0
  %701 = vmatpush1.msra.mxu0 0.0
  %702 = vmatprep.subr.mxu0 0.0
  %703 = vmatpush1.msra.mxu0 0.0
  %704 = vmatprep.subr.mxu0 0.0
  %705 = vmatpush1.msra.mxu0 0.0
  %706 = vmatprep.subr.mxu0 0.0
  %707 = vmatpush1.msra.mxu0 0.0
  %708 = vmatprep.subr.mxu0 0.0
  %709 = vmatpush1.msra.mxu0 0.0
  %710 = vmatprep.subr.mxu0 0.0
  %711 = vmatpush1.msra.mxu0 0.0
  %712 = vmatprep.subr.mxu0 0.0
  %713 = vmatpush1.msra.mxu0 0.0
  %714 = vmatprep.subr.mxu0 0.0
  %715 = vmatpush1.msra.mxu0 0.0
  %716 = vmatprep.subr.mxu0 0.0
  %717 = vmatpush1.msra.mxu0 0.0
  %718 = vmatprep.subr.mxu0 0.0
  %719 = vmatpush1.msra.mxu0 0.0
  %720 = vmatprep.subr.mxu0 0.0
  %721 = vmatpush1.msra.mxu0 0.0
  %722 = vmatprep.subr.mxu0 0.0
  %723 = vmatpush1.msra.mxu0 0.0
  %724 = vmatprep.subr.mxu0 0.0
  %725 = vmatpush1.msra.mxu0 0.0
  %726 = vmatprep.subr.mxu0 0.0
  %727 = vmatpush1.msra.mxu0 0.0
  %728 = vmatprep.subr.mxu0 0.0
  %729 = vmatpush1.msra.mxu0 0.0
  %730 = vmatprep.subr.mxu0 0.0
  %731 = vmatpush1.msra.mxu0 0.0
  %732 = vmatprep.subr.mxu0 0.0
  %733 = vmatpush1.msra.mxu0 0.0
  %734 = vmatprep.subr.mxu0 0.0
  %735 = vmatpush1.msra.mxu0 0.0
  %736 = vmatprep.subr.mxu0 0.0
  %737 = vmatpush1.msra.mxu0 0.0
  %738 = vmatprep.subr.mxu0 0.0
  %739 = vmatpush1.msra.mxu0 0.0
  %740 = vmatprep.subr.mxu0 0.0
  %741 = vmatpush1.msra.mxu0 0.0
  %742 = vmatprep.subr.mxu0 0.0
  %743 = vmatpush1.msra.mxu0 0.0
  %744 = vmatprep.subr.mxu0 0.0
  %745 = vmatpush1.msra.mxu0 0.0
  %746 = vmatprep.subr.mxu0 0.0
  %747 = vmatpush1.msra.mxu0 0.0
  %748 = vmatprep.subr.mxu0 0.0
  %749 = vmatpush1.msra.mxu0 0.0
  %750 = vmatprep.subr.mxu0 0.0
  %751 = vmatpush1.msra.mxu0 0.0
  %752 = vmatprep.subr.mxu0 0.0
  %753 = vmatpush1.msra.mxu0 0.0
  %754 = vmatprep.mubr.f32.mxu0 0.0
  %755 = vmatmul.mubr.f32.gmra.mrb[0].mxu0 %v619
  %v756 = vpop.f32.mrb[0].mxu0
  %v757 = vadd.f32 0.0, %v756
  %v758 = vpop.f32.mrb[0].mxu0
  %759 = vmatprep.mubr.f32.mxu0 0.0
  %760 = vmatmul.mubr.f32.gmra.mrb[0].mxu0 %v622
  %v761 = vpop.f32.mrb[0].mxu0
  %v762 = vadd.f32 0.0, %v761
  %v763 = vpop.f32.mrb[0].mxu0
  %764 = vmatprep.mubr.f32.mxu0 0.0
  %765 = vmatmul.mubr.f32.gmra.mrb[0].mxu0 %v625
  %v766 = vpop.f32.mrb[0].mxu0
  %v767 = vadd.f32 0.0, %v766
  %v768 = vpop.f32.mrb[0].mxu0
  %769 = vmatprep.mubr.f32.mxu0 0.0
  %770 = vmatmul.mubr.f32.gmra.mrb[0].mxu0 %v628
  %v771 = vpop.f32.mrb[0].mxu0
  %v772 = vadd.f32 0.0, %v771
  %v773 = vpop.f32.mrb[0].mxu0
  %774 = vmatprep.mubr.f32.mxu0 0.0
  %775 = vmatmul.mubr.f32.gmra.mrb[0].mxu0 %v631
  %v776 = vpop.f32.mrb[0].mxu0
  %v777 = vadd.f32 0.0, %v776
  %v778 = vpop.f32.mrb[0].mxu0
  %779 = vmatprep.mubr.f32.mxu0 0.0
  %780 = vmatmul.mubr.f32.gmra.mrb[0].mxu0 %v634
  %v781 = vpop.f32.mrb[0].mxu0
  %v782 = vadd.f32 0.0, %v781
  %v783 = vpop.f32.mrb[0].mxu0
  %784 = vmatprep.mubr.f32.mxu0 0.0
  %785 = vmatmul.mubr.f32.gmra.mrb[0].mxu0 %v637
  %v786 = vpop.f32.mrb[0].mxu0
  %v787 = vadd.f32 0.0, %v786
  %v788 = vpop.f32.mrb[0].mxu0
  %789 = vmatprep.mubr.f32.mxu0 0.0
  %790 = vmatmul.mubr.f32.gmra.mrb[0].mxu0 %v640
  %v791 = vpop.f32.mrb[0].mxu0
  %v792 = vadd.f32 0.0, %v791
  %v793 = vpop.f32.mrb[0].mxu0
  %794 = vmatprep.mubr.f32.mxu0 0.0
  %795 = vmatmul.mubr.f32.gmra.mrb[0].mxu0 %v643
  %v796 = vpop.f32.mrb[0].mxu0
  %v797 = vadd.f32 0.0, %v796
  %v798 = vpop.f32.mrb[0].mxu0
  %799 = vmatprep.mubr.f32.mxu0 0.0
  %800 = vmatmul.mubr.f32.gmra.mrb[0].mxu0 %v646
  %v801 = vpop.f32.mrb[0].mxu0
  %v802 = vadd.f32 0.0, %v801
  %v803 = vpop.f32.mrb[0].mxu0
  %804 = vmatprep.mubr.f32.mxu0 0.0
  %805 = vmatmul.mubr.f32.gmra.mrb[0].mxu0 %v649
  %v806 = vpop.f32.mrb[0].mxu0
  %v807 = vadd.f32 0.0, %v806
  %v808 = vpop.f32.mrb[0].mxu0
  %809 = vmatprep.mubr.f32.mxu0 0.0
  %810 = vmatmul.mubr.f32.gmra.mrb[0].mxu0 %v652
  %v811 = vpop.f32.mrb[0].mxu0
  %v812 = vadd.f32 0.0, %v811
  %v813 = vpop.f32.mrb[0].mxu0
  %814 = vmatprep.mubr.f32.mxu0 0.0
  %815 = vmatmul.mubr.f32.gmra.mrb[0].mxu0 %v655
  %v816 = vpop.f32.mrb[0].mxu0
  %v817 = vadd.f32 0.0, %v816
  %v818 = vpop.f32.mrb[0].mxu0
  %819 = vmatprep.mubr.f32.mxu0 0.0
  %820 = vmatmul.mubr.f32.gmra.mrb[0].mxu0 %v658
  %v821 = vpop.f32.mrb[0].mxu0
  %v822 = vadd.f32 0.0, %v821
  %v823 = vpop.f32.mrb[0].mxu0
  %824 = vmatprep.mubr.f32.mxu0 0.0
  %825 = vmatmul.mubr.f32.gmra.mrb[0].mxu0 %v661
  %v826 = vpop.f32.mrb[0].mxu0
  %v827 = vadd.f32 0.0, %v826
  %v828 = vpop.f32.mrb[0].mxu0
  %829 = vmatprep.mubr.f32.mxu0 0.0
  %830 = vmatmul.mubr.f32.gmra.mrb[0].mxu0 %v664
  %v831 = vpop.f32.mrb[0].mxu0
  %v832 = vadd.f32 0.0, %v831
  %v833 = vpop.f32.mrb[0].mxu0
  %834 = vmatprep.mubr.f32.mxu0 0.0
  %835 = vmatmul.mubr.f32.gmra.mrb[0].mxu0 %v667
  %v836 = vpop.f32.mrb[0].mxu0
  %v837 = vadd.f32 0.0, %v836
  %v838 = vpop.f32.mrb[0].mxu0
  %839 = vmatprep.mubr.f32.mxu0 0.0
  %840 = vmatmul.mubr.f32.gmra.mrb[0].mxu0 %v670
  %v841 = vpop.f32.mrb[0].mxu0
  %v842 = vadd.f32 0.0, %v841
  %v843 = vpop.f32.mrb[0].mxu0
  %844 = vmatprep.mubr.f32.mxu0 0.0
  %845 = vmatmul.mubr.f32.gmra.mrb[0].mxu0 %v673
  %v846 = vpop.f32.mrb[0].mxu0
  %v847 = vadd.f32 0.0, %v846
  %v848 = vpop.f32.mrb[0].mxu0
  %849 = vmatprep.mubr.f32.mxu0 0.0
  %850 = vmatmul.mubr.f32.gmra.mrb[0].mxu0 %v676
  %v851 = vpop.f32.mrb[0].mxu0
  %v852 = vadd.f32 0.0, %v851
  %v853 = vpop.f32.mrb[0].mxu0
  %854 = vmatprep.mubr.f32.mxu0 0.0
  %855 = vmatmul.mubr.f32.gmra.mrb[0].mxu0 %v679
  %v856 = vpop.f32.mrb[0].mxu0
  %v857 = vadd.f32 0.0, %v856
  %v858 = vpop.f32.mrb[0].mxu0
  %859 = vmatprep.mubr.f32.mxu0 0.0
  %860 = vmatmul.mubr.f32.gmra.mrb[0].mxu0 %v682
  %v861 = vpop.f32.mrb[0].mxu0
  %v862 = vadd.f32 0.0, %v861
  %v863 = vpop.f32.mrb[0].mxu0
  %864 = vmatprep.mubr.f32.mxu0 0.0
  %865 = vmatmul.mubr.f32.gmra.mrb[0].mxu0 %v685
  %v866 = vpop.f32.mrb[0].mxu0
  %v867 = vadd.f32 0.0, %v866
  %v868 = vpop.f32.mrb[0].mxu0
  %869 = vdwg.mxu0
  %v870 = vadd.f32 %v480, %v757
  %v871 = vadd.f32 %v485, %v762
  %v872 = vadd.f32 %v490, %v767
  %v873 = vadd.f32 %v495, %v772
  %v874 = vadd.f32 %v500, %v777
  %v875 = vadd.f32 %v505, %v782
  %v876 = vadd.f32 %v510, %v787
  %v877 = vadd.f32 %v515, %v792
  %v878 = vadd.f32 %v520, %v797
  %v879 = vadd.f32 %v525, %v802
  %v880 = vadd.f32 %v530, %v807
  %v881 = vadd.f32 %v535, %v812
  %v882 = vadd.f32 %v540, %v817
  %v883 = vadd.f32 %v545, %v822
  %v884 = vadd.f32 %v550, %v827
  %v885 = vadd.f32 %v555, %v832
  %v886 = vadd.f32 %v560, %v837
  %v887 = vadd.f32 %v565, %v842
  %v888 = vadd.f32 %v570, %v847
  %v889 = vadd.f32 %v575, %v852
  %v890 = vadd.f32 %v580, %v857
  %v891 = vadd.f32 %v585, %v862
  %v892 = vadd.f32 %v590, %v867
  %v893 = vld [vmem:[%s0 + $0x16] sm:$0xff]
  %v894 = vld [vmem:[%s0 + $0x1e] sm:$0xff]
  %v895 = vld [vmem:[%s0 + $0x26] sm:$0xff]
  %v896 = vld [vmem:[%s0 + $0x2e] sm:$0xff]
  %v897 = vld [vmem:[%s0 + $0x36] sm:$0xff]
  %v898 = vld [vmem:[%s0 + $0x3e] sm:$0xff]
  %v899 = vld [vmem:[%s0 + $0x46] sm:$0xff]
  %v900 = vld [vmem:[%s0 + $0x4e] sm:$0xff]
  %v901 = vld [vmem:[%s0 + $0x56] sm:$0xff]
  %v902 = vld [vmem:[%s0 + $0x5e] sm:$0xff]
  %v903 = vld [vmem:[%s0 + $0x66] sm:$0xff]
  %v904 = vld [vmem:[%s0 + $0x6e] sm:$0xff]
  %v905 = vld [vmem:[%s0 + $0x76] sm:$0xff]
  %v906 = vld [vmem:[%s0 + $0x7e] sm:$0xff]
  %v907 = vld [vmem:[%s0 + $0x86] sm:$0xff]
  %v908 = vld [vmem:[%s0 + $0x8e] sm:$0xff]
  %v909 = vld [vmem:[%s0 + $0x96] sm:$0xff]
  %v910 = vld [vmem:[%s0 + $0x9e] sm:$0xff]
  %v911 = vld [vmem:[%s0 + $0xa6] sm:$0xff]
  %v912 = vld [vmem:[%s0 + $0xae] sm:$0xff]
  %v913 = vld [vmem:[%s0 + $0xb6] sm:$0xff]
  %v914 = vld [vmem:[%s0 + $0xbe] sm:$0xff]
  %v915 = vld [vmem:[%s0 + $0xc6] sm:$0x3]
  %s916 = scalar_lea.vmem %s1, 24
  %v917 = vld [vmem:[%s916] sm:$0x1f]
  %v919 = vsel %vm87, %v893, 0
  %v922 = vsel %vm87, %v894, 0
  %v925 = vsel %vm87, %v895, 0
  %v928 = vsel %vm87, %v896, 0
  %v931 = vsel %vm87, %v897, 0
  %v934 = vsel %vm87, %v898, 0
  %v937 = vsel %vm87, %v899, 0
  %v940 = vsel %vm87, %v900, 0
  %v943 = vsel %vm87, %v901, 0
  %v946 = vsel %vm87, %v902, 0
  %v949 = vsel %vm87, %v903, 0
  %v952 = vsel %vm87, %v904, 0
  %v955 = vsel %vm87, %v905, 0
  %v958 = vsel %vm87, %v906, 0
  %v961 = vsel %vm87, %v907, 0
  %v964 = vsel %vm87, %v908, 0
  %v967 = vsel %vm87, %v909, 0
  %v970 = vsel %vm87, %v910, 0
  %v973 = vsel %vm87, %v911, 0
  %v976 = vsel %vm87, %v912, 0
  %v979 = vsel %vm87, %v913, 0
  %v982 = vsel %vm87, %v914, 0
  %v985 = vsel %vm87, %v915, 0
  %v988 = vsel %vm157, %v917, 0
  %990 = vmatprep.subr.mxu0 0.0
  %991 = vmatpush1.msra.mxu0 %v988
  %992 = vmatprep.subr.mxu0 0.0
  %993 = vmatpush1.msra.mxu0 0.0
  %994 = vmatprep.subr.mxu0 0.0
  %995 = vmatpush1.msra.mxu0 0.0
  %996 = vmatprep.subr.mxu0 0.0
  %997 = vmatpush1.msra.mxu0 0.0
  %998 = vmatprep.subr.mxu0 0.0
  %999 = vmatpush1.msra.mxu0 0.0
  %1000 = vmatprep.subr.mxu0 0.0
  %1001 = vmatpush1.msra.mxu0 0.0
  %1002 = vmatprep.subr.mxu0 0.0
  %1003 = vmatpush1.msra.mxu0 0.0
  %1004 = vmatprep.subr.mxu0 0.0
  %1005 = vmatpush1.msra.mxu0 0.0
  %1006 = vmatprep.subr.mxu0 0.0
  %1007 = vmatpush1.msra.mxu0 0.0
  %1008 = vmatprep.subr.mxu0 0.0
  %1009 = vmatpush1.msra.mxu0 0.0
  %1010 = vmatprep.subr.mxu0 0.0
  %1011 = vmatpush1.msra.mxu0 0.0
  %1012 = vmatprep.subr.mxu0 0.0
  %1013 = vmatpush1.msra.mxu0 0.0
  %1014 = vmatprep.subr.mxu0 0.0
  %1015 = vmatpush1.msra.mxu0 0.0
  %1016 = vmatprep.subr.mxu0 0.0
  %1017 = vmatpush1.msra.mxu0 0.0
  %1018 = vmatprep.subr.mxu0 0.0
  %1019 = vmatpush1.msra.mxu0 0.0
  %1020 = vmatprep.subr.mxu0 0.0
  %1021 = vmatpush1.msra.mxu0 0.0
  %1022 = vmatprep.subr.mxu0 0.0
  %1023 = vmatpush1.msra.mxu0 0.0
  %1024 = vmatprep.subr.mxu0 0.0
  %1025 = vmatpush1.msra.mxu0 0.0
  %1026 = vmatprep.subr.mxu0 0.0
  %1027 = vmatpush1.msra.mxu0 0.0
  %1028 = vmatprep.subr.mxu0 0.0
  %1029 = vmatpush1.msra.mxu0 0.0
  %1030 = vmatprep.subr.mxu0 0.0
  %1031 = vmatpush1.msra.mxu0 0.0
  %1032 = vmatprep.subr.mxu0 0.0
  %1033 = vmatpush1.msra.mxu0 0.0
  %1034 = vmatprep.subr.mxu0 0.0
  %1035 = vmatpush1.msra.mxu0 0.0
  %1036 = vmatprep.subr.mxu0 0.0
  %1037 = vmatpush1.msra.mxu0 0.0
  %1038 = vmatprep.subr.mxu0 0.0
  %1039 = vmatpush1.msra.mxu0 0.0
  %1040 = vmatprep.subr.mxu0 0.0
  %1041 = vmatpush1.msra.mxu0 0.0
  %1042 = vmatprep.subr.mxu0 0.0
  %1043 = vmatpush1.msra.mxu0 0.0
  %1044 = vmatprep.subr.mxu0 0.0
  %1045 = vmatpush1.msra.mxu0 0.0
  %1046 = vmatprep.subr.mxu0 0.0
  %1047 = vmatpush1.msra.mxu0 0.0
  %1048 = vmatprep.subr.mxu0 0.0
  %1049 = vmatpush1.msra.mxu0 0.0
  %1050 = vmatprep.subr.mxu0 0.0
  %1051 = vmatpush1.msra.mxu0 0.0
  %1052 = vmatprep.subr.mxu0 0.0
  %1053 = vmatpush1.msra.mxu0 0.0
  %1054 = vmatprep.mubr.f32.mxu0 0.0
  %1055 = vmatmul.mubr.f32.gmra.mrb[0].mxu0 %v919
  %v1056 = vpop.f32.mrb[0].mxu0
  %v1057 = vadd.f32 0.0, %v1056
  %v1058 = vpop.f32.mrb[0].mxu0
  %1059 = vmatprep.mubr.f32.mxu0 0.0
  %1060 = vmatmul.mubr.f32.gmra.mrb[0].mxu0 %v922
  %v1061 = vpop.f32.mrb[0].mxu0
  %v1062 = vadd.f32 0.0, %v1061
  %v1063 = vpop.f32.mrb[0].mxu0
  %1064 = vmatprep.mubr.f32.mxu0 0.0
  %1065 = vmatmul.mubr.f32.gmra.mrb[0].mxu0 %v925
  %v1066 = vpop.f32.mrb[0].mxu0
  %v1067 = vadd.f32 0.0, %v1066
  %v1068 = vpop.f32.mrb[0].mxu0
  %1069 = vmatprep.mubr.f32.mxu0 0.0
  %1070 = vmatmul.mubr.f32.gmra.mrb[0].mxu0 %v928
  %v1071 = vpop.f32.mrb[0].mxu0
  %v1072 = vadd.f32 0.0, %v1071
  %v1073 = vpop.f32.mrb[0].mxu0
  %1074 = vmatprep.mubr.f32.mxu0 0.0
  %1075 = vmatmul.mubr.f32.gmra.mrb[0].mxu0 %v931
  %v1076 = vpop.f32.mrb[0].mxu0
  %v1077 = vadd.f32 0.0, %v1076
  %v1078 = vpop.f32.mrb[0].mxu0
  %1079 = vmatprep.mubr.f32.mxu0 0.0
  %1080 = vmatmul.mubr.f32.gmra.mrb[0].mxu0 %v934
  %v1081 = vpop.f32.mrb[0].mxu0
  %v1082 = vadd.f32 0.0, %v1081
  %v1083 = vpop.f32.mrb[0].mxu0
  %1084 = vmatprep.mubr.f32.mxu0 0.0
  %1085 = vmatmul.mubr.f32.gmra.mrb[0].mxu0 %v937
  %v1086 = vpop.f32.mrb[0].mxu0
  %v1087 = vadd.f32 0.0, %v1086
  %v1088 = vpop.f32.mrb[0].mxu0
  %1089 = vmatprep.mubr.f32.mxu0 0.0
  %1090 = vmatmul.mubr.f32.gmra.mrb[0].mxu0 %v940
  %v1091 = vpop.f32.mrb[0].mxu0
  %v1092 = vadd.f32 0.0, %v1091
  %v1093 = vpop.f32.mrb[0].mxu0
  %1094 = vmatprep.mubr.f32.mxu0 0.0
  %1095 = vmatmul.mubr.f32.gmra.mrb[0].mxu0 %v943
  %v1096 = vpop.f32.mrb[0].mxu0
  %v1097 = vadd.f32 0.0, %v1096
  %v1098 = vpop.f32.mrb[0].mxu0
  %1099 = vmatprep.mubr.f32.mxu0 0.0
  %1100 = vmatmul.mubr.f32.gmra.mrb[0].mxu0 %v946
  %v1101 = vpop.f32.mrb[0].mxu0
  %v1102 = vadd.f32 0.0, %v1101
  %v1103 = vpop.f32.mrb[0].mxu0
  %1104 = vmatprep.mubr.f32.mxu0 0.0
  %1105 = vmatmul.mubr.f32.gmra.mrb[0].mxu0 %v949
  %v1106 = vpop.f32.mrb[0].mxu0
  %v1107 = vadd.f32 0.0, %v1106
  %v1108 = vpop.f32.mrb[0].mxu0
  %1109 = vmatprep.mubr.f32.mxu0 0.0
  %1110 = vmatmul.mubr.f32.gmra.mrb[0].mxu0 %v952
  %v1111 = vpop.f32.mrb[0].mxu0
  %v1112 = vadd.f32 0.0, %v1111
  %v1113 = vpop.f32.mrb[0].mxu0
  %1114 = vmatprep.mubr.f32.mxu0 0.0
  %1115 = vmatmul.mubr.f32.gmra.mrb[0].mxu0 %v955
  %v1116 = vpop.f32.mrb[0].mxu0
  %v1117 = vadd.f32 0.0, %v1116
  %v1118 = vpop.f32.mrb[0].mxu0
  %1119 = vmatprep.mubr.f32.mxu0 0.0
  %1120 = vmatmul.mubr.f32.gmra.mrb[0].mxu0 %v958
  %v1121 = vpop.f32.mrb[0].mxu0
  %v1122 = vadd.f32 0.0, %v1121
  %v1123 = vpop.f32.mrb[0].mxu0
  %1124 = vmatprep.mubr.f32.mxu0 0.0
  %1125 = vmatmul.mubr.f32.gmra.mrb[0].mxu0 %v961
  %v1126 = vpop.f32.mrb[0].mxu0
  %v1127 = vadd.f32 0.0, %v1126
  %v1128 = vpop.f32.mrb[0].mxu0
  %1129 = vmatprep.mubr.f32.mxu0 0.0
  %1130 = vmatmul.mubr.f32.gmra.mrb[0].mxu0 %v964
  %v1131 = vpop.f32.mrb[0].mxu0
  %v1132 = vadd.f32 0.0, %v1131
  %v1133 = vpop.f32.mrb[0].mxu0
  %1134 = vmatprep.mubr.f32.mxu0 0.0
  %1135 = vmatmul.mubr.f32.gmra.mrb[0].mxu0 %v967
  %v1136 = vpop.f32.mrb[0].mxu0
  %v1137 = vadd.f32 0.0, %v1136
  %v1138 = vpop.f32.mrb[0].mxu0
  %1139 = vmatprep.mubr.f32.mxu0 0.0
  %1140 = vmatmul.mubr.f32.gmra.mrb[0].mxu0 %v970
  %v1141 = vpop.f32.mrb[0].mxu0
  %v1142 = vadd.f32 0.0, %v1141
  %v1143 = vpop.f32.mrb[0].mxu0
  %1144 = vmatprep.mubr.f32.mxu0 0.0
  %1145 = vmatmul.mubr.f32.gmra.mrb[0].mxu0 %v973
  %v1146 = vpop.f32.mrb[0].mxu0
  %v1147 = vadd.f32 0.0, %v1146
  %v1148 = vpop.f32.mrb[0].mxu0
  %1149 = vmatprep.mubr.f32.mxu0 0.0
  %1150 = vmatmul.mubr.f32.gmra.mrb[0].mxu0 %v976
  %v1151 = vpop.f32.mrb[0].mxu0
  %v1152 = vadd.f32 0.0, %v1151
  %v1153 = vpop.f32.mrb[0].mxu0
  %1154 = vmatprep.mubr.f32.mxu0 0.0
  %1155 = vmatmul.mubr.f32.gmra.mrb[0].mxu0 %v979
  %v1156 = vpop.f32.mrb[0].mxu0
  %v1157 = vadd.f32 0.0, %v1156
  %v1158 = vpop.f32.mrb[0].mxu0
  %1159 = vmatprep.mubr.f32.mxu0 0.0
  %1160 = vmatmul.mubr.f32.gmra.mrb[0].mxu0 %v982
  %v1161 = vpop.f32.mrb[0].mxu0
  %v1162 = vadd.f32 0.0, %v1161
  %v1163 = vpop.f32.mrb[0].mxu0
  %1164 = vmatprep.mubr.f32.mxu0 0.0
  %1165 = vmatmul.mubr.f32.gmra.mrb[0].mxu0 %v985
  %v1166 = vpop.f32.mrb[0].mxu0
  %v1167 = vadd.f32 0.0, %v1166
  %v1168 = vpop.f32.mrb[0].mxu0
  %1169 = vdwg.mxu0
  %v1170 = vadd.f32 %v870, %v1057
  %v1171 = vadd.f32 %v871, %v1062
  %v1172 = vadd.f32 %v872, %v1067
  %v1173 = vadd.f32 %v873, %v1072
  %v1174 = vadd.f32 %v874, %v1077
  %v1175 = vadd.f32 %v875, %v1082
  %v1176 = vadd.f32 %v876, %v1087
  %v1177 = vadd.f32 %v877, %v1092
  %v1178 = vadd.f32 %v878, %v1097
  %v1179 = vadd.f32 %v879, %v1102
  %v1180 = vadd.f32 %v880, %v1107
  %v1181 = vadd.f32 %v881, %v1112
  %v1182 = vadd.f32 %v882, %v1117
  %v1183 = vadd.f32 %v883, %v1122
  %v1184 = vadd.f32 %v884, %v1127
  %v1185 = vadd.f32 %v885, %v1132
  %v1186 = vadd.f32 %v886, %v1137
  %v1187 = vadd.f32 %v887, %v1142
  %v1188 = vadd.f32 %v888, %v1147
  %v1189 = vadd.f32 %v889, %v1152
  %v1190 = vadd.f32 %v890, %v1157
  %v1191 = vadd.f32 %v891, %v1162
  %v1192 = vadd.f32 %v892, %v1167
  %v1193 = vld [vmem:[%s2] sm:$0x1]
  %v1195 = vlaneseq
  %v1196 = vshrl.u32 %v1195, 7
  %v1197 = vsub.s32 0, %v1196
  %v1198 = vrot.slane %v1193, %v1197
  %v1200 = vadd.f32 %v1170, %v1198
  %v1201 = vadd.f32 %v1171, %v1198
  %v1202 = vadd.f32 %v1172, %v1198
  %v1203 = vadd.f32 %v1173, %v1198
  %v1204 = vadd.f32 %v1174, %v1198
  %v1205 = vadd.f32 %v1175, %v1198
  %v1206 = vadd.f32 %v1176, %v1198
  %v1207 = vadd.f32 %v1177, %v1198
  %v1208 = vadd.f32 %v1178, %v1198
  %v1209 = vadd.f32 %v1179, %v1198
  %v1210 = vadd.f32 %v1180, %v1198
  %v1211 = vadd.f32 %v1181, %v1198
  %v1212 = vadd.f32 %v1182, %v1198
  %v1213 = vadd.f32 %v1183, %v1198
  %v1214 = vadd.f32 %v1184, %v1198
  %v1215 = vadd.f32 %v1185, %v1198
  %v1216 = vadd.f32 %v1186, %v1198
  %v1217 = vadd.f32 %v1187, %v1198
  %v1218 = vadd.f32 %v1188, %v1198
  %v1219 = vadd.f32 %v1189, %v1198
  %v1220 = vadd.f32 %v1190, %v1198
  %v1221 = vadd.f32 %v1191, %v1198
  %v1222 = vadd.f32 %v1192, %v1198
  %v1223 = vmax.f32 %v1200, 0.0
  %v1224 = vmax.f32 %v1201, 0.0
  %v1225 = vmax.f32 %v1202, 0.0
  %v1226 = vmax.f32 %v1203, 0.0
  %v1227 = vmax.f32 %v1204, 0.0
  %v1228 = vmax.f32 %v1205, 0.0
  %v1229 = vmax.f32 %v1206, 0.0
  %v1230 = vmax.f32 %v1207, 0.0
  %v1231 = vmax.f32 %v1208, 0.0
  %v1232 = vmax.f32 %v1209, 0.0
  %v1233 = vmax.f32 %v1210, 0.0
  %v1234 = vmax.f32 %v1211, 0.0
  %v1235 = vmax.f32 %v1212, 0.0
  %v1236 = vmax.f32 %v1213, 0.0
  %v1237 = vmax.f32 %v1214, 0.0
  %v1238 = vmax.f32 %v1215, 0.0
  %v1239 = vmax.f32 %v1216, 0.0
  %v1240 = vmax.f32 %v1217, 0.0
  %v1241 = vmax.f32 %v1218, 0.0
  %v1242 = vmax.f32 %v1219, 0.0
  %v1243 = vmax.f32 %v1220, 0.0
  %v1244 = vmax.f32 %v1221, 0.0
  %v1245 = vmax.f32 %v1222, 0.0
  %vm1246 = vcmask 261120
  %1247 = vst.msk [vmem:[#allocation2] sm:$0xff] %vm1246, %v1223
  %1248 = vst.msk [vmem:[#allocation2 + $0x8] sm:$0xff] %vm1246, %v1224
  %1249 = vst.msk [vmem:[#allocation2 + $0x10] sm:$0xff] %vm1246, %v1225
  %1250 = vst.msk [vmem:[#allocation2 + $0x18] sm:$0xff] %vm1246, %v1226
  %1251 = vst.msk [vmem:[#allocation2 + $0x20] sm:$0xff] %vm1246, %v1227
  %1252 = vst.msk [vmem:[#allocation2 + $0x28] sm:$0xff] %vm1246, %v1228
  %1253 = vst.msk [vmem:[#allocation2 + $0x30] sm:$0xff] %vm1246, %v1229
  %1254 = vst.msk [vmem:[#allocation2 + $0x38] sm:$0xff] %vm1246, %v1230
  %1255 = vst.msk [vmem:[#allocation2 + $0x40] sm:$0xff] %vm1246, %v1231
  %1256 = vst.msk [vmem:[#allocation2 + $0x48] sm:$0xff] %vm1246, %v1232
  %1257 = vst.msk [vmem:[#allocation2 + $0x50] sm:$0xff] %vm1246, %v1233
  %1258 = vst.msk [vmem:[#allocation2 + $0x58] sm:$0xff] %vm1246, %v1234
  %1259 = vst.msk [vmem:[#allocation2 + $0x60] sm:$0xff] %vm1246, %v1235
  %1260 = vst.msk [vmem:[#allocation2 + $0x68] sm:$0xff] %vm1246, %v1236
  %1261 = vst.msk [vmem:[#allocation2 + $0x70] sm:$0xff] %vm1246, %v1237
  %1262 = vst.msk [vmem:[#allocation2 + $0x78] sm:$0xff] %vm1246, %v1238
  %1263 = vst.msk [vmem:[#allocation2 + $0x80] sm:$0xff] %vm1246, %v1239
  %1264 = vst.msk [vmem:[#allocation2 + $0x88] sm:$0xff] %vm1246, %v1240
  %1265 = vst.msk [vmem:[#allocation2 + $0x90] sm:$0xff] %vm1246, %v1241
  %1266 = vst.msk [vmem:[#allocation2 + $0x98] sm:$0xff] %vm1246, %v1242
  %1267 = vst.msk [vmem:[#allocation2 + $0xa0] sm:$0xff] %vm1246, %v1243
  %1268 = vst.msk [vmem:[#allocation2 + $0xa8] sm:$0xff] %vm1246, %v1244
  %vm1269 = vcmask 254976
  %1270 = vst.msk [vmem:[#allocation2 + $0xb0] sm:$0x3] %vm1269, %v1245
  %v1271 = vld [vmem:[#allocation2] sm:$0xff]
  %v1272 = vld [vmem:[#allocation2 + $0x8] sm:$0xff]
  %v1273 = vld [vmem:[#allocation2 + $0x10] sm:$0xff]
  %v1274 = vld [vmem:[#allocation2 + $0x18] sm:$0xff]
  %v1275 = vld [vmem:[#allocation2 + $0x20] sm:$0xff]
  %v1276 = vld [vmem:[#allocation2 + $0x28] sm:$0xff]
  %v1277 = vld [vmem:[#allocation2 + $0x30] sm:$0xff]
  %v1278 = vld [vmem:[#allocation2 + $0x38] sm:$0xff]
  %v1279 = vld [vmem:[#allocation2 + $0x40] sm:$0xff]
  %v1280 = vld [vmem:[#allocation2 + $0x48] sm:$0xff]
  %v1281 = vld [vmem:[#allocation2 + $0x50] sm:$0xff]
  %v1282 = vld [vmem:[#allocation2 + $0x58] sm:$0xff]
  %v1283 = vld [vmem:[#allocation2 + $0x60] sm:$0xff]
  %v1284 = vld [vmem:[#allocation2 + $0x68] sm:$0xff]
  %v1285 = vld [vmem:[#allocation2 + $0x70] sm:$0xff]
  %v1286 = vld [vmem:[#allocation2 + $0x78] sm:$0xff]
  %v1287 = vld [vmem:[#allocation2 + $0x80] sm:$0xff]
  %v1288 = vld [vmem:[#allocation2 + $0x88] sm:$0xff]
  %v1289 = vld [vmem:[#allocation2 + $0x90] sm:$0xff]
  %v1290 = vld [vmem:[#allocation2 + $0x98] sm:$0xf]
  %v1291 = vld [vmem:[%s3] sm:$0xff]
  %v1292 = vld [vmem:[%s3 + $0x8] sm:$0xff]
  %v1293 = vld [vmem:[%s3 + $0x10] sm:$0xff]
  %v1294 = vld [vmem:[%s3 + $0x18] sm:$0xff]
  %v1295 = vld [vmem:[#allocation2 + $0x2] sm:$0xff]
  %v1296 = vld [vmem:[#allocation2 + $0xa] sm:$0xff]
  %v1297 = vld [vmem:[#allocation2 + $0x12] sm:$0xff]
  %v1298 = vld [vmem:[#allocation2 + $0x1a] sm:$0xff]
  %v1299 = vld [vmem:[#allocation2 + $0x22] sm:$0xff]
  %v1300 = vld [vmem:[#allocation2 + $0x2a] sm:$0xff]
  %v1301 = vld [vmem:[#allocation2 + $0x32] sm:$0xff]
  %v1302 = vld [vmem:[#allocation2 + $0x3a] sm:$0xff]
  %v1303 = vld [vmem:[#allocation2 + $0x42] sm:$0xff]
  %v1304 = vld [vmem:[#allocation2 + $0x4a] sm:$0xff]
  %v1305 = vld [vmem:[#allocation2 + $0x52] sm:$0xff]
  %v1306 = vld [vmem:[#allocation2 + $0x5a] sm:$0xff]
  %v1307 = vld [vmem:[#allocation2 + $0x62] sm:$0xff]
  %v1308 = vld [vmem:[#allocation2 + $0x6a] sm:$0xff]
  %v1309 = vld [vmem:[#allocation2 + $0x72] sm:$0xff]
  %v1310 = vld [vmem:[#allocation2 + $0x7a] sm:$0xff]
  %v1311 = vld [vmem:[#allocation2 + $0x82] sm:$0xff]
  %v1312 = vld [vmem:[#allocation2 + $0x8a] sm:$0xff]
  %v1313 = vld [vmem:[#allocation2 + $0x92] sm:$0xff]
  %v1314 = vld [vmem:[#allocation2 + $0x9a] sm:$0xf]
  %s1315 = scalar_lea.vmem %s3, 32
  %v1316 = vld [vmem:[%s1315] sm:$0xff]
  %v1317 = vld [vmem:[%s1315 + $0x8] sm:$0xff]
  %v1318 = vld [vmem:[%s1315 + $0x10] sm:$0xff]
  %v1319 = vld [vmem:[%s1315 + $0x18] sm:$0xff]
  %v1321 = vsel %vm1246, %v1295, 0
  %v1324 = vsel %vm1246, %v1296, 0
  %v1327 = vsel %vm1246, %v1297, 0
  %v1330 = vsel %vm1246, %v1298, 0
  %v1333 = vsel %vm1246, %v1299, 0
  %v1336 = vsel %vm1246, %v1300, 0
  %v1339 = vsel %vm1246, %v1301, 0
  %v1342 = vsel %vm1246, %v1302, 0
  %v1345 = vsel %vm1246, %v1303, 0
  %v1348 = vsel %vm1246, %v1304, 0
  %v1351 = vsel %vm1246, %v1305, 0
  %v1354 = vsel %vm1246, %v1306, 0
  %v1357 = vsel %vm1246, %v1307, 0
  %v1360 = vsel %vm1246, %v1308, 0
  %v1363 = vsel %vm1246, %v1309, 0
  %v1366 = vsel %vm1246, %v1310, 0
  %v1369 = vsel %vm1246, %v1311, 0
  %v1372 = vsel %vm1246, %v1312, 0
  %v1375 = vsel %vm1246, %v1313, 0
  %v1378 = vsel %vm1246, %v1314, 0
  %1380 = vmatprep.subr.mxu0 0.0
  %1381 = vmatpush1.msra.mxu0 %v1316
  %1382 = vmatprep.subr.mxu0 0.0
  %1383 = vmatpush1.msra.mxu0 %v1317
  %1384 = vmatprep.subr.mxu0 0.0
  %1385 = vmatpush1.msra.mxu0 %v1318
  %1386 = vmatprep.subr.mxu0 0.0
  %1387 = vmatpush1.msra.mxu0 %v1319
  %1388 = vmatprep.subr.mxu0 0.0
  %1389 = vmatpush1.msra.mxu0 0.0
  %1390 = vmatprep.subr.mxu0 0.0
  %1391 = vmatpush1.msra.mxu0 0.0
  %1392 = vmatprep.subr.mxu0 0.0
  %1393 = vmatpush1.msra.mxu0 0.0
  %1394 = vmatprep.subr.mxu0 0.0
  %1395 = vmatpush1.msra.mxu0 0.0
  %1396 = vmatprep.subr.mxu0 0.0
  %1397 = vmatpush1.msra.mxu0 0.0
  %1398 = vmatprep.subr.mxu0 0.0
  %1399 = vmatpush1.msra.mxu0 0.0
  %1400 = vmatprep.subr.mxu0 0.0
  %1401 = vmatpush1.msra.mxu0 0.0
  %1402 = vmatprep.subr.mxu0 0.0
  %1403 = vmatpush1.msra.mxu0 0.0
  %1404 = vmatprep.subr.mxu0 0.0
  %1405 = vmatpush1.msra.mxu0 0.0
  %1406 = vmatprep.subr.mxu0 0.0
  %1407 = vmatpush1.msra.mxu0 0.0
  %1408 = vmatprep.subr.mxu0 0.0
  %1409 = vmatpush1.msra.mxu0 0.0
  %1410 = vmatprep.subr.mxu0 0.0
  %1411 = vmatpush1.msra.mxu0 0.0
  %1412 = vmatprep.subr.mxu0 0.0
  %1413 = vmatpush1.msra.mxu0 0.0
  %1414 = vmatprep.subr.mxu0 0.0
  %1415 = vmatpush1.msra.mxu0 0.0
  %1416 = vmatprep.subr.mxu0 0.0
  %1417 = vmatpush1.msra.mxu0 0.0
  %1418 = vmatprep.subr.mxu0 0.0
  %1419 = vmatpush1.msra.mxu0 0.0
  %1420 = vmatprep.subr.mxu0 0.0
  %1421 = vmatpush1.msra.mxu0 0.0
  %1422 = vmatprep.subr.mxu0 0.0
  %1423 = vmatpush1.msra.mxu0 0.0
  %1424 = vmatprep.subr.mxu0 0.0
  %1425 = vmatpush1.msra.mxu0 0.0
  %1426 = vmatprep.subr.mxu0 0.0
  %1427 = vmatpush1.msra.mxu0 0.0
  %1428 = vmatprep.subr.mxu0 0.0
  %1429 = vmatpush1.msra.mxu0 0.0
  %1430 = vmatprep.subr.mxu0 0.0
  %1431 = vmatpush1.msra.mxu0 0.0
  %1432 = vmatprep.subr.mxu0 0.0
  %1433 = vmatpush1.msra.mxu0 0.0
  %1434 = vmatprep.subr.mxu0 0.0
  %1435 = vmatpush1.msra.mxu0 0.0
  %1436 = vmatprep.subr.mxu0 0.0
  %1437 = vmatpush1.msra.mxu0 0.0
  %1438 = vmatprep.subr.mxu0 0.0
  %1439 = vmatpush1.msra.mxu0 0.0
  %1440 = vmatprep.subr.mxu0 0.0
  %1441 = vmatpush1.msra.mxu0 0.0
  %1442 = vmatprep.subr.mxu0 0.0
  %1443 = vmatpush1.msra.mxu0 0.0
  %1444 = vmatprep.mubr.f32.mxu0 0.0
  %1445 = vmatmul.mubr.f32.gmra.mrb[0].mxu0 %v1321
  %v1446 = vpop.f32.mrb[0].mxu0
  %v1447 = vadd.f32 0.0, %v1446
  %v1448 = vpop.f32.mrb[0].mxu0
  %1449 = vmatprep.mubr.f32.mxu0 0.0
  %1450 = vmatmul.mubr.f32.gmra.mrb[0].mxu0 %v1324
  %v1451 = vpop.f32.mrb[0].mxu0
  %v1452 = vadd.f32 0.0, %v1451
  %v1453 = vpop.f32.mrb[0].mxu0
  %1454 = vmatprep.mubr.f32.mxu0 0.0
  %1455 = vmatmul.mubr.f32.gmra.mrb[0].mxu0 %v1327
  %v1456 = vpop.f32.mrb[0].mxu0
  %v1457 = vadd.f32 0.0, %v1456
  %v1458 = vpop.f32.mrb[0].mxu0
  %1459 = vmatprep.mubr.f32.mxu0 0.0
  %1460 = vmatmul.mubr.f32.gmra.mrb[0].mxu0 %v1330
  %v1461 = vpop.f32.mrb[0].mxu0
  %v1462 = vadd.f32 0.0, %v1461
  %v1463 = vpop.f32.mrb[0].mxu0
  %1464 = vmatprep.mubr.f32.mxu0 0.0
  %1465 = vmatmul.mubr.f32.gmra.mrb[0].mxu0 %v1333
  %v1466 = vpop.f32.mrb[0].mxu0
  %v1467 = vadd.f32 0.0, %v1466
  %v1468 = vpop.f32.mrb[0].mxu0
  %1469 = vmatprep.mubr.f32.mxu0 0.0
  %1470 = vmatmul.mubr.f32.gmra.mrb[0].mxu0 %v1336
  %v1471 = vpop.f32.mrb[0].mxu0
  %v1472 = vadd.f32 0.0, %v1471
  %v1473 = vpop.f32.mrb[0].mxu0
  %1474 = vmatprep.mubr.f32.mxu0 0.0
  %1475 = vmatmul.mubr.f32.gmra.mrb[0].mxu0 %v1339
  %v1476 = vpop.f32.mrb[0].mxu0
  %v1477 = vadd.f32 0.0, %v1476
  %v1478 = vpop.f32.mrb[0].mxu0
  %1479 = vmatprep.mubr.f32.mxu0 0.0
  %1480 = vmatmul.mubr.f32.gmra.mrb[0].mxu0 %v1342
  %v1481 = vpop.f32.mrb[0].mxu0
  %v1482 = vadd.f32 0.0, %v1481
  %v1483 = vpop.f32.mrb[0].mxu0
  %1484 = vmatprep.mubr.f32.mxu0 0.0
  %1485 = vmatmul.mubr.f32.gmra.mrb[0].mxu0 %v1345
  %v1486 = vpop.f32.mrb[0].mxu0
  %v1487 = vadd.f32 0.0, %v1486
  %v1488 = vpop.f32.mrb[0].mxu0
  %1489 = vmatprep.mubr.f32.mxu0 0.0
  %1490 = vmatmul.mubr.f32.gmra.mrb[0].mxu0 %v1348
  %v1491 = vpop.f32.mrb[0].mxu0
  %v1492 = vadd.f32 0.0, %v1491
  %v1493 = vpop.f32.mrb[0].mxu0
  %1494 = vmatprep.mubr.f32.mxu0 0.0
  %1495 = vmatmul.mubr.f32.gmra.mrb[0].mxu0 %v1351
  %v1496 = vpop.f32.mrb[0].mxu0
  %v1497 = vadd.f32 0.0, %v1496
  %v1498 = vpop.f32.mrb[0].mxu0
  %1499 = vmatprep.mubr.f32.mxu0 0.0
  %1500 = vmatmul.mubr.f32.gmra.mrb[0].mxu0 %v1354
  %v1501 = vpop.f32.mrb[0].mxu0
  %v1502 = vadd.f32 0.0, %v1501
  %v1503 = vpop.f32.mrb[0].mxu0
  %1504 = vmatprep.mubr.f32.mxu0 0.0
  %1505 = vmatmul.mubr.f32.gmra.mrb[0].mxu0 %v1357
  %v1506 = vpop.f32.mrb[0].mxu0
  %v1507 = vadd.f32 0.0, %v1506
  %v1508 = vpop.f32.mrb[0].mxu0
  %1509 = vmatprep.mubr.f32.mxu0 0.0
  %1510 = vmatmul.mubr.f32.gmra.mrb[0].mxu0 %v1360
  %v1511 = vpop.f32.mrb[0].mxu0
  %v1512 = vadd.f32 0.0, %v1511
  %v1513 = vpop.f32.mrb[0].mxu0
  %1514 = vmatprep.mubr.f32.mxu0 0.0
  %1515 = vmatmul.mubr.f32.gmra.mrb[0].mxu0 %v1363
  %v1516 = vpop.f32.mrb[0].mxu0
  %v1517 = vadd.f32 0.0, %v1516
  %v1518 = vpop.f32.mrb[0].mxu0
  %1519 = vmatprep.mubr.f32.mxu0 0.0
  %1520 = vmatmul.mubr.f32.gmra.mrb[0].mxu0 %v1366
  %v1521 = vpop.f32.mrb[0].mxu0
  %v1522 = vadd.f32 0.0, %v1521
  %v1523 = vpop.f32.mrb[0].mxu0
  %1524 = vmatprep.mubr.f32.mxu0 0.0
  %1525 = vmatmul.mubr.f32.gmra.mrb[0].mxu0 %v1369
  %v1526 = vpop.f32.mrb[0].mxu0
  %v1527 = vadd.f32 0.0, %v1526
  %v1528 = vpop.f32.mrb[0].mxu0
  %1529 = vmatprep.mubr.f32.mxu0 0.0
  %1530 = vmatmul.mubr.f32.gmra.mrb[0].mxu0 %v1372
  %v1531 = vpop.f32.mrb[0].mxu0
  %v1532 = vadd.f32 0.0, %v1531
  %v1533 = vpop.f32.mrb[0].mxu0
  %1534 = vmatprep.mubr.f32.mxu0 0.0
  %1535 = vmatmul.mubr.f32.gmra.mrb[0].mxu0 %v1375
  %v1536 = vpop.f32.mrb[0].mxu0
  %v1537 = vadd.f32 0.0, %v1536
  %v1538 = vpop.f32.mrb[0].mxu0
  %1539 = vmatprep.mubr.f32.mxu0 0.0
  %1540 = vmatmul.mubr.f32.gmra.mrb[0].mxu0 %v1378
  %v1541 = vpop.f32.mrb[0].mxu0
  %v1542 = vadd.f32 0.0, %v1541
  %v1543 = vpop.f32.mrb[0].mxu0
  %1544 = vdwg.mxu0
  %v1546 = vsel %vm1246, %v1271, 0
  %v1549 = vsel %vm1246, %v1272, 0
  %v1552 = vsel %vm1246, %v1273, 0
  %v1555 = vsel %vm1246, %v1274, 0
  %v1558 = vsel %vm1246, %v1275, 0
  %v1561 = vsel %vm1246, %v1276, 0
  %v1564 = vsel %vm1246, %v1277, 0
  %v1567 = vsel %vm1246, %v1278, 0
  %v1570 = vsel %vm1246, %v1279, 0
  %v1573 = vsel %vm1246, %v1280, 0
  %v1576 = vsel %vm1246, %v1281, 0
  %v1579 = vsel %vm1246, %v1282, 0
  %v1582 = vsel %vm1246, %v1283, 0
  %v1585 = vsel %vm1246, %v1284, 0
  %v1588 = vsel %vm1246, %v1285, 0
  %v1591 = vsel %vm1246, %v1286, 0
  %v1594 = vsel %vm1246, %v1287, 0
  %v1597 = vsel %vm1246, %v1288, 0
  %v1600 = vsel %vm1246, %v1289, 0
  %v1603 = vsel %vm1246, %v1290, 0
  %1605 = vmatprep.subr.mxu0 0.0
  %1606 = vmatpush1.msra.mxu0 %v1291
  %1607 = vmatprep.subr.mxu0 0.0
  %1608 = vmatpush1.msra.mxu0 %v1292
  %1609 = vmatprep.subr.mxu0 0.0
  %1610 = vmatpush1.msra.mxu0 %v1293
  %1611 = vmatprep.subr.mxu0 0.0
  %1612 = vmatpush1.msra.mxu0 %v1294
  %1613 = vmatprep.subr.mxu0 0.0
  %1614 = vmatpush1.msra.mxu0 0.0
  %1615 = vmatprep.subr.mxu0 0.0
  %1616 = vmatpush1.msra.mxu0 0.0
  %1617 = vmatprep.subr.mxu0 0.0
  %1618 = vmatpush1.msra.mxu0 0.0
  %1619 = vmatprep.subr.mxu0 0.0
  %1620 = vmatpush1.msra.mxu0 0.0
  %1621 = vmatprep.subr.mxu0 0.0
  %1622 = vmatpush1.msra.mxu0 0.0
  %1623 = vmatprep.subr.mxu0 0.0
  %1624 = vmatpush1.msra.mxu0 0.0
  %1625 = vmatprep.subr.mxu0 0.0
  %1626 = vmatpush1.msra.mxu0 0.0
  %1627 = vmatprep.subr.mxu0 0.0
  %1628 = vmatpush1.msra.mxu0 0.0
  %1629 = vmatprep.subr.mxu0 0.0
  %1630 = vmatpush1.msra.mxu0 0.0
  %1631 = vmatprep.subr.mxu0 0.0
  %1632 = vmatpush1.msra.mxu0 0.0
  %1633 = vmatprep.subr.mxu0 0.0
  %1634 = vmatpush1.msra.mxu0 0.0
  %1635 = vmatprep.subr.mxu0 0.0
  %1636 = vmatpush1.msra.mxu0 0.0
  %1637 = vmatprep.subr.mxu0 0.0
  %1638 = vmatpush1.msra.mxu0 0.0
  %1639 = vmatprep.subr.mxu0 0.0
  %1640 = vmatpush1.msra.mxu0 0.0
  %1641 = vmatprep.subr.mxu0 0.0
  %1642 = vmatpush1.msra.mxu0 0.0
  %1643 = vmatprep.subr.mxu0 0.0
  %1644 = vmatpush1.msra.mxu0 0.0
  %1645 = vmatprep.subr.mxu0 0.0
  %1646 = vmatpush1.msra.mxu0 0.0
  %1647 = vmatprep.subr.mxu0 0.0
  %1648 = vmatpush1.msra.mxu0 0.0
  %1649 = vmatprep.subr.mxu0 0.0
  %1650 = vmatpush1.msra.mxu0 0.0
  %1651 = vmatprep.subr.mxu0 0.0
  %1652 = vmatpush1.msra.mxu0 0.0
  %1653 = vmatprep.subr.mxu0 0.0
  %1654 = vmatpush1.msra.mxu0 0.0
  %1655 = vmatprep.subr.mxu0 0.0
  %1656 = vmatpush1.msra.mxu0 0.0
  %1657 = vmatprep.subr.mxu0 0.0
  %1658 = vmatpush1.msra.mxu0 0.0
  %1659 = vmatprep.subr.mxu0 0.0
  %1660 = vmatpush1.msra.mxu0 0.0
  %1661 = vmatprep.subr.mxu0 0.0
  %1662 = vmatpush1.msra.mxu0 0.0
  %1663 = vmatprep.subr.mxu0 0.0
  %1664 = vmatpush1.msra.mxu0 0.0
  %1665 = vmatprep.subr.mxu0 0.0
  %1666 = vmatpush1.msra.mxu0 0.0
  %1667 = vmatprep.subr.mxu0 0.0
  %1668 = vmatpush1.msra.mxu0 0.0
  %1669 = vmatprep.mubr.f32.mxu0 0.0
  %1670 = vmatmul.mubr.f32.gmra.mrb[0].mxu0 %v1546
  %v1671 = vpop.f32.mrb[0].mxu0
  %v1672 = vadd.f32 %v1447, %v1671
  %v1673 = vpop.f32.mrb[0].mxu0
  %1674 = vmatprep.mubr.f32.mxu0 0.0
  %1675 = vmatmul.mubr.f32.gmra.mrb[0].mxu0 %v1549
  %v1676 = vpop.f32.mrb[0].mxu0
  %v1677 = vadd.f32 %v1452, %v1676
  %v1678 = vpop.f32.mrb[0].mxu0
  %1679 = vmatprep.mubr.f32.mxu0 0.0
  %1680 = vmatmul.mubr.f32.gmra.mrb[0].mxu0 %v1552
  %v1681 = vpop.f32.mrb[0].mxu0
  %v1682 = vadd.f32 %v1457, %v1681
  %v1683 = vpop.f32.mrb[0].mxu0
  %1684 = vmatprep.mubr.f32.mxu0 0.0
  %1685 = vmatmul.mubr.f32.gmra.mrb[0].mxu0 %v1555
  %v1686 = vpop.f32.mrb[0].mxu0
  %v1687 = vadd.f32 %v1462, %v1686
  %v1688 = vpop.f32.mrb[0].mxu0
  %1689 = vmatprep.mubr.f32.mxu0 0.0
  %1690 = vmatmul.mubr.f32.gmra.mrb[0].mxu0 %v1558
  %v1691 = vpop.f32.mrb[0].mxu0
  %v1692 = vadd.f32 %v1467, %v1691
  %v1693 = vpop.f32.mrb[0].mxu0
  %1694 = vmatprep.mubr.f32.mxu0 0.0
  %1695 = vmatmul.mubr.f32.gmra.mrb[0].mxu0 %v1561
  %v1696 = vpop.f32.mrb[0].mxu0
  %v1697 = vadd.f32 %v1472, %v1696
  %v1698 = vpop.f32.mrb[0].mxu0
  %1699 = vmatprep.mubr.f32.mxu0 0.0
  %1700 = vmatmul.mubr.f32.gmra.mrb[0].mxu0 %v1564
  %v1701 = vpop.f32.mrb[0].mxu0
  %v1702 = vadd.f32 %v1477, %v1701
  %v1703 = vpop.f32.mrb[0].mxu0
  %1704 = vmatprep.mubr.f32.mxu0 0.0
  %1705 = vmatmul.mubr.f32.gmra.mrb[0].mxu0 %v1567
  %v1706 = vpop.f32.mrb[0].mxu0
  %v1707 = vadd.f32 %v1482, %v1706
  %v1708 = vpop.f32.mrb[0].mxu0
  %1709 = vmatprep.mubr.f32.mxu0 0.0
  %1710 = vmatmul.mubr.f32.gmra.mrb[0].mxu0 %v1570
  %v1711 = vpop.f32.mrb[0].mxu0
  %v1712 = vadd.f32 %v1487, %v1711
  %v1713 = vpop.f32.mrb[0].mxu0
  %1714 = vmatprep.mubr.f32.mxu0 0.0
  %1715 = vmatmul.mubr.f32.gmra.mrb[0].mxu0 %v1573
  %v1716 = vpop.f32.mrb[0].mxu0
  %v1717 = vadd.f32 %v1492, %v1716
  %v1718 = vpop.f32.mrb[0].mxu0
  %1719 = vmatprep.mubr.f32.mxu0 0.0
  %1720 = vmatmul.mubr.f32.gmra.mrb[0].mxu0 %v1576
  %v1721 = vpop.f32.mrb[0].mxu0
  %v1722 = vadd.f32 %v1497, %v1721
  %v1723 = vpop.f32.mrb[0].mxu0
  %1724 = vmatprep.mubr.f32.mxu0 0.0
  %1725 = vmatmul.mubr.f32.gmra.mrb[0].mxu0 %v1579
  %v1726 = vpop.f32.mrb[0].mxu0
  %v1727 = vadd.f32 %v1502, %v1726
  %v1728 = vpop.f32.mrb[0].mxu0
  %1729 = vmatprep.mubr.f32.mxu0 0.0
  %1730 = vmatmul.mubr.f32.gmra.mrb[0].mxu0 %v1582
  %v1731 = vpop.f32.mrb[0].mxu0
  %v1732 = vadd.f32 %v1507, %v1731
  %v1733 = vpop.f32.mrb[0].mxu0
  %1734 = vmatprep.mubr.f32.mxu0 0.0
  %1735 = vmatmul.mubr.f32.gmra.mrb[0].mxu0 %v1585
  %v1736 = vpop.f32.mrb[0].mxu0
  %v1737 = vadd.f32 %v1512, %v1736
  %v1738 = vpop.f32.mrb[0].mxu0
  %1739 = vmatprep.mubr.f32.mxu0 0.0
  %1740 = vmatmul.mubr.f32.gmra.mrb[0].mxu0 %v1588
  %v1741 = vpop.f32.mrb[0].mxu0
  %v1742 = vadd.f32 %v1517, %v1741
  %v1743 = vpop.f32.mrb[0].mxu0
  %1744 = vmatprep.mubr.f32.mxu0 0.0
  %1745 = vmatmul.mubr.f32.gmra.mrb[0].mxu0 %v1591
  %v1746 = vpop.f32.mrb[0].mxu0
  %v1747 = vadd.f32 %v1522, %v1746
  %v1748 = vpop.f32.mrb[0].mxu0
  %1749 = vmatprep.mubr.f32.mxu0 0.0
  %1750 = vmatmul.mubr.f32.gmra.mrb[0].mxu0 %v1594
  %v1751 = vpop.f32.mrb[0].mxu0
  %v1752 = vadd.f32 %v1527, %v1751
  %v1753 = vpop.f32.mrb[0].mxu0
  %1754 = vmatprep.mubr.f32.mxu0 0.0
  %1755 = vmatmul.mubr.f32.gmra.mrb[0].mxu0 %v1597
  %v1756 = vpop.f32.mrb[0].mxu0
  %v1757 = vadd.f32 %v1532, %v1756
  %v1758 = vpop.f32.mrb[0].mxu0
  %1759 = vmatprep.mubr.f32.mxu0 0.0
  %1760 = vmatmul.mubr.f32.gmra.mrb[0].mxu0 %v1600
  %v1761 = vpop.f32.mrb[0].mxu0
  %v1762 = vadd.f32 %v1537, %v1761
  %v1763 = vpop.f32.mrb[0].mxu0
  %1764 = vmatprep.mubr.f32.mxu0 0.0
  %1765 = vmatmul.mubr.f32.gmra.mrb[0].mxu0 %v1603
  %v1766 = vpop.f32.mrb[0].mxu0
  %v1767 = vadd.f32 %v1542, %v1766
  %v1768 = vpop.f32.mrb[0].mxu0
  %1769 = vdwg.mxu0
  %v1770 = vld [vmem:[#allocation2 + $0x14] sm:$0xff]
  %v1771 = vld [vmem:[#allocation2 + $0x1c] sm:$0xff]
  %v1772 = vld [vmem:[#allocation2 + $0x24] sm:$0xff]
  %v1773 = vld [vmem:[#allocation2 + $0x2c] sm:$0xff]
  %v1774 = vld [vmem:[#allocation2 + $0x34] sm:$0xff]
  %v1775 = vld [vmem:[#allocation2 + $0x3c] sm:$0xff]
  %v1776 = vld [vmem:[#allocation2 + $0x44] sm:$0xff]
  %v1777 = vld [vmem:[#allocation2 + $0x4c] sm:$0xff]
  %v1778 = vld [vmem:[#allocation2 + $0x54] sm:$0xff]
  %v1779 = vld [vmem:[#allocation2 + $0x5c] sm:$0xff]
  %v1780 = vld [vmem:[#allocation2 + $0x64] sm:$0xff]
  %v1781 = vld [vmem:[#allocation2 + $0x6c] sm:$0xff]
  %v1782 = vld [vmem:[#allocation2 + $0x74] sm:$0xff]
  %v1783 = vld [vmem:[#allocation2 + $0x7c] sm:$0xff]
  %v1784 = vld [vmem:[#allocation2 + $0x84] sm:$0xff]
  %v1785 = vld [vmem:[#allocation2 + $0x8c] sm:$0xff]
  %v1786 = vld [vmem:[#allocation2 + $0x94] sm:$0xff]
  %v1787 = vld [vmem:[#allocation2 + $0x9c] sm:$0xff]
  %v1788 = vld [vmem:[#allocation2 + $0xa4] sm:$0xff]
  %v1789 = vld [vmem:[#allocation2 + $0xac] sm:$0xf]
  %s1790 = scalar_lea.vmem %s3, 64
  %v1791 = vld [vmem:[%s1790] sm:$0xff]
  %v1792 = vld [vmem:[%s1790 + $0x8] sm:$0xff]
  %v1793 = vld [vmem:[%s1790 + $0x10] sm:$0xff]
  %v1794 = vld [vmem:[%s1790 + $0x18] sm:$0xff]
  %v1796 = vsel %vm1246, %v1770, 0
  %v1799 = vsel %vm1246, %v1771, 0
  %v1802 = vsel %vm1246, %v1772, 0
  %v1805 = vsel %vm1246, %v1773, 0
  %v1808 = vsel %vm1246, %v1774, 0
  %v1811 = vsel %vm1246, %v1775, 0
  %v1814 = vsel %vm1246, %v1776, 0
  %v1817 = vsel %vm1246, %v1777, 0
  %v1820 = vsel %vm1246, %v1778, 0
  %v1823 = vsel %vm1246, %v1779, 0
  %v1826 = vsel %vm1246, %v1780, 0
  %v1829 = vsel %vm1246, %v1781, 0
  %v1832 = vsel %vm1246, %v1782, 0
  %v1835 = vsel %vm1246, %v1783, 0
  %v1838 = vsel %vm1246, %v1784, 0
  %v1841 = vsel %vm1246, %v1785, 0
  %v1844 = vsel %vm1246, %v1786, 0
  %v1847 = vsel %vm1246, %v1787, 0
  %v1850 = vsel %vm1246, %v1788, 0
  %v1853 = vsel %vm1246, %v1789, 0
  %1855 = vmatprep.subr.mxu0 0.0
  %1856 = vmatpush1.msra.mxu0 %v1791
  %1857 = vmatprep.subr.mxu0 0.0
  %1858 = vmatpush1.msra.mxu0 %v1792
  %1859 = vmatprep.subr.mxu0 0.0
  %1860 = vmatpush1.msra.mxu0 %v1793
  %1861 = vmatprep.subr.mxu0 0.0
  %1862 = vmatpush1.msra.mxu0 %v1794
  %1863 = vmatprep.subr.mxu0 0.0
  %1864 = vmatpush1.msra.mxu0 0.0
  %1865 = vmatprep.subr.mxu0 0.0
  %1866 = vmatpush1.msra.mxu0 0.0
  %1867 = vmatprep.subr.mxu0 0.0
  %1868 = vmatpush1.msra.mxu0 0.0
  %1869 = vmatprep.subr.mxu0 0.0
  %1870 = vmatpush1.msra.mxu0 0.0
  %1871 = vmatprep.subr.mxu0 0.0
  %1872 = vmatpush1.msra.mxu0 0.0
  %1873 = vmatprep.subr.mxu0 0.0
  %1874 = vmatpush1.msra.mxu0 0.0
  %1875 = vmatprep.subr.mxu0 0.0
  %1876 = vmatpush1.msra.mxu0 0.0
  %1877 = vmatprep.subr.mxu0 0.0
  %1878 = vmatpush1.msra.mxu0 0.0
  %1879 = vmatprep.subr.mxu0 0.0
  %1880 = vmatpush1.msra.mxu0 0.0
  %1881 = vmatprep.subr.mxu0 0.0
  %1882 = vmatpush1.msra.mxu0 0.0
  %1883 = vmatprep.subr.mxu0 0.0
  %1884 = vmatpush1.msra.mxu0 0.0
  %1885 = vmatprep.subr.mxu0 0.0
  %1886 = vmatpush1.msra.mxu0 0.0
  %1887 = vmatprep.subr.mxu0 0.0
  %1888 = vmatpush1.msra.mxu0 0.0
  %1889 = vmatprep.subr.mxu0 0.0
  %1890 = vmatpush1.msra.mxu0 0.0
  %1891 = vmatprep.subr.mxu0 0.0
  %1892 = vmatpush1.msra.mxu0 0.0
  %1893 = vmatprep.subr.mxu0 0.0
  %1894 = vmatpush1.msra.mxu0 0.0
  %1895 = vmatprep.subr.mxu0 0.0
  %1896 = vmatpush1.msra.mxu0 0.0
  %1897 = vmatprep.subr.mxu0 0.0
  %1898 = vmatpush1.msra.mxu0 0.0
  %1899 = vmatprep.subr.mxu0 0.0
  %1900 = vmatpush1.msra.mxu0 0.0
  %1901 = vmatprep.subr.mxu0 0.0
  %1902 = vmatpush1.msra.mxu0 0.0
  %1903 = vmatprep.subr.mxu0 0.0
  %1904 = vmatpush1.msra.mxu0 0.0
  %1905 = vmatprep.subr.mxu0 0.0
  %1906 = vmatpush1.msra.mxu0 0.0
  %1907 = vmatprep.subr.mxu0 0.0
  %1908 = vmatpush1.msra.mxu0 0.0
  %1909 = vmatprep.subr.mxu0 0.0
  %1910 = vmatpush1.msra.mxu0 0.0
  %1911 = vmatprep.subr.mxu0 0.0
  %1912 = vmatpush1.msra.mxu0 0.0
  %1913 = vmatprep.subr.mxu0 0.0
  %1914 = vmatpush1.msra.mxu0 0.0
  %1915 = vmatprep.subr.mxu0 0.0
  %1916 = vmatpush1.msra.mxu0 0.0
  %1917 = vmatprep.subr.mxu0 0.0
  %1918 = vmatpush1.msra.mxu0 0.0
  %1919 = vmatprep.mubr.f32.mxu0 0.0
  %1920 = vmatmul.mubr.f32.gmra.mrb[0].mxu0 %v1796
  %v1921 = vpop.f32.mrb[0].mxu0
  %v1922 = vadd.f32 0.0, %v1921
  %v1923 = vpop.f32.mrb[0].mxu0
  %1924 = vmatprep.mubr.f32.mxu0 0.0
  %1925 = vmatmul.mubr.f32.gmra.mrb[0].mxu0 %v1799
  %v1926 = vpop.f32.mrb[0].mxu0
  %v1927 = vadd.f32 0.0, %v1926
  %v1928 = vpop.f32.mrb[0].mxu0
  %1929 = vmatprep.mubr.f32.mxu0 0.0
  %1930 = vmatmul.mubr.f32.gmra.mrb[0].mxu0 %v1802
  %v1931 = vpop.f32.mrb[0].mxu0
  %v1932 = vadd.f32 0.0, %v1931
  %v1933 = vpop.f32.mrb[0].mxu0
  %1934 = vmatprep.mubr.f32.mxu0 0.0
  %1935 = vmatmul.mubr.f32.gmra.mrb[0].mxu0 %v1805
  %v1936 = vpop.f32.mrb[0].mxu0
  %v1937 = vadd.f32 0.0, %v1936
  %v1938 = vpop.f32.mrb[0].mxu0
  %1939 = vmatprep.mubr.f32.mxu0 0.0
  %1940 = vmatmul.mubr.f32.gmra.mrb[0].mxu0 %v1808
  %v1941 = vpop.f32.mrb[0].mxu0
  %v1942 = vadd.f32 0.0, %v1941
  %v1943 = vpop.f32.mrb[0].mxu0
  %1944 = vmatprep.mubr.f32.mxu0 0.0
  %1945 = vmatmul.mubr.f32.gmra.mrb[0].mxu0 %v1811
  %v1946 = vpop.f32.mrb[0].mxu0
  %v1947 = vadd.f32 0.0, %v1946
  %v1948 = vpop.f32.mrb[0].mxu0
  %1949 = vmatprep.mubr.f32.mxu0 0.0
  %1950 = vmatmul.mubr.f32.gmra.mrb[0].mxu0 %v1814
  %v1951 = vpop.f32.mrb[0].mxu0
  %v1952 = vadd.f32 0.0, %v1951
  %v1953 = vpop.f32.mrb[0].mxu0
  %1954 = vmatprep.mubr.f32.mxu0 0.0
  %1955 = vmatmul.mubr.f32.gmra.mrb[0].mxu0 %v1817
  %v1956 = vpop.f32.mrb[0].mxu0
  %v1957 = vadd.f32 0.0, %v1956
  %v1958 = vpop.f32.mrb[0].mxu0
  %1959 = vmatprep.mubr.f32.mxu0 0.0
  %1960 = vmatmul.mubr.f32.gmra.mrb[0].mxu0 %v1820
  %v1961 = vpop.f32.mrb[0].mxu0
  %v1962 = vadd.f32 0.0, %v1961
  %v1963 = vpop.f32.mrb[0].mxu0
  %1964 = vmatprep.mubr.f32.mxu0 0.0
  %1965 = vmatmul.mubr.f32.gmra.mrb[0].mxu0 %v1823
  %v1966 = vpop.f32.mrb[0].mxu0
  %v1967 = vadd.f32 0.0, %v1966
  %v1968 = vpop.f32.mrb[0].mxu0
  %1969 = vmatprep.mubr.f32.mxu0 0.0
  %1970 = vmatmul.mubr.f32.gmra.mrb[0].mxu0 %v1826
  %v1971 = vpop.f32.mrb[0].mxu0
  %v1972 = vadd.f32 0.0, %v1971
  %v1973 = vpop.f32.mrb[0].mxu0
  %1974 = vmatprep.mubr.f32.mxu0 0.0
  %1975 = vmatmul.mubr.f32.gmra.mrb[0].mxu0 %v1829
  %v1976 = vpop.f32.mrb[0].mxu0
  %v1977 = vadd.f32 0.0, %v1976
  %v1978 = vpop.f32.mrb[0].mxu0
  %1979 = vmatprep.mubr.f32.mxu0 0.0
  %1980 = vmatmul.mubr.f32.gmra.mrb[0].mxu0 %v1832
  %v1981 = vpop.f32.mrb[0].mxu0
  %v1982 = vadd.f32 0.0, %v1981
  %v1983 = vpop.f32.mrb[0].mxu0
  %1984 = vmatprep.mubr.f32.mxu0 0.0
  %1985 = vmatmul.mubr.f32.gmra.mrb[0].mxu0 %v1835
  %v1986 = vpop.f32.mrb[0].mxu0
  %v1987 = vadd.f32 0.0, %v1986
  %v1988 = vpop.f32.mrb[0].mxu0
  %1989 = vmatprep.mubr.f32.mxu0 0.0
  %1990 = vmatmul.mubr.f32.gmra.mrb[0].mxu0 %v1838
  %v1991 = vpop.f32.mrb[0].mxu0
  %v1992 = vadd.f32 0.0, %v1991
  %v1993 = vpop.f32.mrb[0].mxu0
  %1994 = vmatprep.mubr.f32.mxu0 0.0
  %1995 = vmatmul.mubr.f32.gmra.mrb[0].mxu0 %v1841
  %v1996 = vpop.f32.mrb[0].mxu0
  %v1997 = vadd.f32 0.0, %v1996
  %v1998 = vpop.f32.mrb[0].mxu0
  %1999 = vmatprep.mubr.f32.mxu0 0.0
  %2000 = vmatmul.mubr.f32.gmra.mrb[0].mxu0 %v1844
  %v2001 = vpop.f32.mrb[0].mxu0
  %v2002 = vadd.f32 0.0, %v2001
  %v2003 = vpop.f32.mrb[0].mxu0
  %2004 = vmatprep.mubr.f32.mxu0 0.0
  %2005 = vmatmul.mubr.f32.gmra.mrb[0].mxu0 %v1847
  %v2006 = vpop.f32.mrb[0].mxu0
  %v2007 = vadd.f32 0.0, %v2006
  %v2008 = vpop.f32.mrb[0].mxu0
  %2009 = vmatprep.mubr.f32.mxu0 0.0
  %2010 = vmatmul.mubr.f32.gmra.mrb[0].mxu0 %v1850
  %v2011 = vpop.f32.mrb[0].mxu0
  %v2012 = vadd.f32 0.0, %v2011
  %v2013 = vpop.f32.mrb[0].mxu0
  %2014 = vmatprep.mubr.f32.mxu0 0.0
  %2015 = vmatmul.mubr.f32.gmra.mrb[0].mxu0 %v1853
  %v2016 = vpop.f32.mrb[0].mxu0
  %v2017 = vadd.f32 0.0, %v2016
  %v2018 = vpop.f32.mrb[0].mxu0
  %2019 = vdwg.mxu0
  %v2020 = vadd.f32 %v1672, %v1922
  %v2021 = vadd.f32 %v1677, %v1927
  %v2022 = vadd.f32 %v1682, %v1932
  %v2023 = vadd.f32 %v1687, %v1937
  %v2024 = vadd.f32 %v1692, %v1942
  %v2025 = vadd.f32 %v1697, %v1947
  %v2026 = vadd.f32 %v1702, %v1952
  %v2027 = vadd.f32 %v1707, %v1957
  %v2028 = vadd.f32 %v1712, %v1962
  %v2029 = vadd.f32 %v1717, %v1967
  %v2030 = vadd.f32 %v1722, %v1972
  %v2031 = vadd.f32 %v1727, %v1977
  %v2032 = vadd.f32 %v1732, %v1982
  %v2033 = vadd.f32 %v1737, %v1987
  %v2034 = vadd.f32 %v1742, %v1992
  %v2035 = vadd.f32 %v1747, %v1997
  %v2036 = vadd.f32 %v1752, %v2002
  %v2037 = vadd.f32 %v1757, %v2007
  %v2038 = vadd.f32 %v1762, %v2012
  %v2039 = vadd.f32 %v1767, %v2017
  %v2040 = vld [vmem:[#allocation2 + $0x16] sm:$0xff]
  %v2041 = vld [vmem:[#allocation2 + $0x1e] sm:$0xff]
  %v2042 = vld [vmem:[#allocation2 + $0x26] sm:$0xff]
  %v2043 = vld [vmem:[#allocation2 + $0x2e] sm:$0xff]
  %v2044 = vld [vmem:[#allocation2 + $0x36] sm:$0xff]
  %v2045 = vld [vmem:[#allocation2 + $0x3e] sm:$0xff]
  %v2046 = vld [vmem:[#allocation2 + $0x46] sm:$0xff]
  %v2047 = vld [vmem:[#allocation2 + $0x4e] sm:$0xff]
  %v2048 = vld [vmem:[#allocation2 + $0x56] sm:$0xff]
  %v2049 = vld [vmem:[#allocation2 + $0x5e] sm:$0xff]
  %v2050 = vld [vmem:[#allocation2 + $0x66] sm:$0xff]
  %v2051 = vld [vmem:[#allocation2 + $0x6e] sm:$0xff]
  %v2052 = vld [vmem:[#allocation2 + $0x76] sm:$0xff]
  %v2053 = vld [vmem:[#allocation2 + $0x7e] sm:$0xff]
  %v2054 = vld [vmem:[#allocation2 + $0x86] sm:$0xff]
  %v2055 = vld [vmem:[#allocation2 + $0x8e] sm:$0xff]
  %v2056 = vld [vmem:[#allocation2 + $0x96] sm:$0xff]
  %v2057 = vld [vmem:[#allocation2 + $0x9e] sm:$0xff]
  %v2058 = vld [vmem:[#allocation2 + $0xa6] sm:$0xff]
  %v2059 = vld [vmem:[#allocation2 + $0xae] sm:$0xf]
  %s2060 = scalar_lea.vmem %s3, 96
  %v2061 = vld [vmem:[%s2060] sm:$0xff]
  %v2062 = vld [vmem:[%s2060 + $0x8] sm:$0xff]
  %v2063 = vld [vmem:[%s2060 + $0x10] sm:$0xff]
  %v2064 = vld [vmem:[%s2060 + $0x18] sm:$0xff]
  %v2066 = vsel %vm1246, %v2040, 0
  %v2069 = vsel %vm1246, %v2041, 0
  %v2072 = vsel %vm1246, %v2042, 0
  %v2075 = vsel %vm1246, %v2043, 0
  %v2078 = vsel %vm1246, %v2044, 0
  %v2081 = vsel %vm1246, %v2045, 0
  %v2084 = vsel %vm1246, %v2046, 0
  %v2087 = vsel %vm1246, %v2047, 0
  %v2090 = vsel %vm1246, %v2048, 0
  %v2093 = vsel %vm1246, %v2049, 0
  %v2096 = vsel %vm1246, %v2050, 0
  %v2099 = vsel %vm1246, %v2051, 0
  %v2102 = vsel %vm1246, %v2052, 0
  %v2105 = vsel %vm1246, %v2053, 0
  %v2108 = vsel %vm1246, %v2054, 0
  %v2111 = vsel %vm1246, %v2055, 0
  %v2114 = vsel %vm1246, %v2056, 0
  %v2117 = vsel %vm1246, %v2057, 0
  %v2120 = vsel %vm1246, %v2058, 0
  %v2123 = vsel %vm1246, %v2059, 0
  %2125 = vmatprep.subr.mxu0 0.0
  %2126 = vmatpush1.msra.mxu0 %v2061
  %2127 = vmatprep.subr.mxu0 0.0
  %2128 = vmatpush1.msra.mxu0 %v2062
  %2129 = vmatprep.subr.mxu0 0.0
  %2130 = vmatpush1.msra.mxu0 %v2063
  %2131 = vmatprep.subr.mxu0 0.0
  %2132 = vmatpush1.msra.mxu0 %v2064
  %2133 = vmatprep.subr.mxu0 0.0
  %2134 = vmatpush1.msra.mxu0 0.0
  %2135 = vmatprep.subr.mxu0 0.0
  %2136 = vmatpush1.msra.mxu0 0.0
  %2137 = vmatprep.subr.mxu0 0.0
  %2138 = vmatpush1.msra.mxu0 0.0
  %2139 = vmatprep.subr.mxu0 0.0
  %2140 = vmatpush1.msra.mxu0 0.0
  %2141 = vmatprep.subr.mxu0 0.0
  %2142 = vmatpush1.msra.mxu0 0.0
  %2143 = vmatprep.subr.mxu0 0.0
  %2144 = vmatpush1.msra.mxu0 0.0
  %2145 = vmatprep.subr.mxu0 0.0
  %2146 = vmatpush1.msra.mxu0 0.0
  %2147 = vmatprep.subr.mxu0 0.0
  %2148 = vmatpush1.msra.mxu0 0.0
  %2149 = vmatprep.subr.mxu0 0.0
  %2150 = vmatpush1.msra.mxu0 0.0
  %2151 = vmatprep.subr.mxu0 0.0
  %2152 = vmatpush1.msra.mxu0 0.0
  %2153 = vmatprep.subr.mxu0 0.0
  %2154 = vmatpush1.msra.mxu0 0.0
  %2155 = vmatprep.subr.mxu0 0.0
  %2156 = vmatpush1.msra.mxu0 0.0
  %2157 = vmatprep.subr.mxu0 0.0
  %2158 = vmatpush1.msra.mxu0 0.0
  %2159 = vmatprep.subr.mxu0 0.0
  %2160 = vmatpush1.msra.mxu0 0.0
  %2161 = vmatprep.subr.mxu0 0.0
  %2162 = vmatpush1.msra.mxu0 0.0
  %2163 = vmatprep.subr.mxu0 0.0
  %2164 = vmatpush1.msra.mxu0 0.0
  %2165 = vmatprep.subr.mxu0 0.0
  %2166 = vmatpush1.msra.mxu0 0.0
  %2167 = vmatprep.subr.mxu0 0.0
  %2168 = vmatpush1.msra.mxu0 0.0
  %2169 = vmatprep.subr.mxu0 0.0
  %2170 = vmatpush1.msra.mxu0 0.0
  %2171 = vmatprep.subr.mxu0 0.0
  %2172 = vmatpush1.msra.mxu0 0.0
  %2173 = vmatprep.subr.mxu0 0.0
  %2174 = vmatpush1.msra.mxu0 0.0
  %2175 = vmatprep.subr.mxu0 0.0
  %2176 = vmatpush1.msra.mxu0 0.0
  %2177 = vmatprep.subr.mxu0 0.0
  %2178 = vmatpush1.msra.mxu0 0.0
  %2179 = vmatprep.subr.mxu0 0.0
  %2180 = vmatpush1.msra.mxu0 0.0
  %2181 = vmatprep.subr.mxu0 0.0
  %2182 = vmatpush1.msra.mxu0 0.0
  %2183 = vmatprep.subr.mxu0 0.0
  %2184 = vmatpush1.msra.mxu0 0.0
  %2185 = vmatprep.subr.mxu0 0.0
  %2186 = vmatpush1.msra.mxu0 0.0
  %2187 = vmatprep.subr.mxu0 0.0
  %2188 = vmatpush1.msra.mxu0 0.0
  %2189 = vmatprep.mubr.f32.mxu0 0.0
  %2190 = vmatmul.mubr.f32.gmra.mrb[0].mxu0 %v2066
  %v2191 = vpop.f32.mrb[0].mxu0
  %v2192 = vadd.f32 0.0, %v2191
  %v2193 = vpop.f32.mrb[0].mxu0
  %2194 = vmatprep.mubr.f32.mxu0 0.0
  %2195 = vmatmul.mubr.f32.gmra.mrb[0].mxu0 %v2069
  %v2196 = vpop.f32.mrb[0].mxu0
  %v2197 = vadd.f32 0.0, %v2196
  %v2198 = vpop.f32.mrb[0].mxu0
  %2199 = vmatprep.mubr.f32.mxu0 0.0
  %2200 = vmatmul.mubr.f32.gmra.mrb[0].mxu0 %v2072
  %v2201 = vpop.f32.mrb[0].mxu0
  %v2202 = vadd.f32 0.0, %v2201
  %v2203 = vpop.f32.mrb[0].mxu0
  %2204 = vmatprep.mubr.f32.mxu0 0.0
  %2205 = vmatmul.mubr.f32.gmra.mrb[0].mxu0 %v2075
  %v2206 = vpop.f32.mrb[0].mxu0
  %v2207 = vadd.f32 0.0, %v2206
  %v2208 = vpop.f32.mrb[0].mxu0
  %2209 = vmatprep.mubr.f32.mxu0 0.0
  %2210 = vmatmul.mubr.f32.gmra.mrb[0].mxu0 %v2078
  %v2211 = vpop.f32.mrb[0].mxu0
  %v2212 = vadd.f32 0.0, %v2211
  %v2213 = vpop.f32.mrb[0].mxu0
  %2214 = vmatprep.mubr.f32.mxu0 0.0
  %2215 = vmatmul.mubr.f32.gmra.mrb[0].mxu0 %v2081
  %v2216 = vpop.f32.mrb[0].mxu0
  %v2217 = vadd.f32 0.0, %v2216
  %v2218 = vpop.f32.mrb[0].mxu0
  %2219 = vmatprep.mubr.f32.mxu0 0.0
  %2220 = vmatmul.mubr.f32.gmra.mrb[0].mxu0 %v2084
  %v2221 = vpop.f32.mrb[0].mxu0
  %v2222 = vadd.f32 0.0, %v2221
  %v2223 = vpop.f32.mrb[0].mxu0
  %2224 = vmatprep.mubr.f32.mxu0 0.0
  %2225 = vmatmul.mubr.f32.gmra.mrb[0].mxu0 %v2087
  %v2226 = vpop.f32.mrb[0].mxu0
  %v2227 = vadd.f32 0.0, %v2226
  %v2228 = vpop.f32.mrb[0].mxu0
  %2229 = vmatprep.mubr.f32.mxu0 0.0
  %2230 = vmatmul.mubr.f32.gmra.mrb[0].mxu0 %v2090
  %v2231 = vpop.f32.mrb[0].mxu0
  %v2232 = vadd.f32 0.0, %v2231
  %v2233 = vpop.f32.mrb[0].mxu0
  %2234 = vmatprep.mubr.f32.mxu0 0.0
  %2235 = vmatmul.mubr.f32.gmra.mrb[0].mxu0 %v2093
  %v2236 = vpop.f32.mrb[0].mxu0
  %v2237 = vadd.f32 0.0, %v2236
  %v2238 = vpop.f32.mrb[0].mxu0
  %2239 = vmatprep.mubr.f32.mxu0 0.0
  %2240 = vmatmul.mubr.f32.gmra.mrb[0].mxu0 %v2096
  %v2241 = vpop.f32.mrb[0].mxu0
  %v2242 = vadd.f32 0.0, %v2241
  %v2243 = vpop.f32.mrb[0].mxu0
  %2244 = vmatprep.mubr.f32.mxu0 0.0
  %2245 = vmatmul.mubr.f32.gmra.mrb[0].mxu0 %v2099
  %v2246 = vpop.f32.mrb[0].mxu0
  %v2247 = vadd.f32 0.0, %v2246
  %v2248 = vpop.f32.mrb[0].mxu0
  %2249 = vmatprep.mubr.f32.mxu0 0.0
  %2250 = vmatmul.mubr.f32.gmra.mrb[0].mxu0 %v2102
  %v2251 = vpop.f32.mrb[0].mxu0
  %v2252 = vadd.f32 0.0, %v2251
  %v2253 = vpop.f32.mrb[0].mxu0
  %2254 = vmatprep.mubr.f32.mxu0 0.0
  %2255 = vmatmul.mubr.f32.gmra.mrb[0].mxu0 %v2105
  %v2256 = vpop.f32.mrb[0].mxu0
  %v2257 = vadd.f32 0.0, %v2256
  %v2258 = vpop.f32.mrb[0].mxu0
  %2259 = vmatprep.mubr.f32.mxu0 0.0
  %2260 = vmatmul.mubr.f32.gmra.mrb[0].mxu0 %v2108
  %v2261 = vpop.f32.mrb[0].mxu0
  %v2262 = vadd.f32 0.0, %v2261
  %v2263 = vpop.f32.mrb[0].mxu0
  %2264 = vmatprep.mubr.f32.mxu0 0.0
  %2265 = vmatmul.mubr.f32.gmra.mrb[0].mxu0 %v2111
  %v2266 = vpop.f32.mrb[0].mxu0
  %v2267 = vadd.f32 0.0, %v2266
  %v2268 = vpop.f32.mrb[0].mxu0
  %2269 = vmatprep.mubr.f32.mxu0 0.0
  %2270 = vmatmul.mubr.f32.gmra.mrb[0].mxu0 %v2114
  %v2271 = vpop.f32.mrb[0].mxu0
  %v2272 = vadd.f32 0.0, %v2271
  %v2273 = vpop.f32.mrb[0].mxu0
  %2274 = vmatprep.mubr.f32.mxu0 0.0
  %2275 = vmatmul.mubr.f32.gmra.mrb[0].mxu0 %v2117
  %v2276 = vpop.f32.mrb[0].mxu0
  %v2277 = vadd.f32 0.0, %v2276
  %v2278 = vpop.f32.mrb[0].mxu0
  %2279 = vmatprep.mubr.f32.mxu0 0.0
  %2280 = vmatmul.mubr.f32.gmra.mrb[0].mxu0 %v2120
  %v2281 = vpop.f32.mrb[0].mxu0
  %v2282 = vadd.f32 0.0, %v2281
  %v2283 = vpop.f32.mrb[0].mxu0
  %2284 = vmatprep.mubr.f32.mxu0 0.0
  %2285 = vmatmul.mubr.f32.gmra.mrb[0].mxu0 %v2123
  %v2286 = vpop.f32.mrb[0].mxu0
  %v2287 = vadd.f32 0.0, %v2286
  %v2288 = vpop.f32.mrb[0].mxu0
  %2289 = vdwg.mxu0
  %v2290 = vadd.f32 %v2020, %v2192
  %v2291 = vadd.f32 %v2021, %v2197
  %v2292 = vadd.f32 %v2022, %v2202
  %v2293 = vadd.f32 %v2023, %v2207
  %v2294 = vadd.f32 %v2024, %v2212
  %v2295 = vadd.f32 %v2025, %v2217
  %v2296 = vadd.f32 %v2026, %v2222
  %v2297 = vadd.f32 %v2027, %v2227
  %v2298 = vadd.f32 %v2028, %v2232
  %v2299 = vadd.f32 %v2029, %v2237
  %v2300 = vadd.f32 %v2030, %v2242
  %v2301 = vadd.f32 %v2031, %v2247
  %v2302 = vadd.f32 %v2032, %v2252
  %v2303 = vadd.f32 %v2033, %v2257
  %v2304 = vadd.f32 %v2034, %v2262
  %v2305 = vadd.f32 %v2035, %v2267
  %v2306 = vadd.f32 %v2036, %v2272
  %v2307 = vadd.f32 %v2037, %v2277
  %v2308 = vadd.f32 %v2038, %v2282
  %v2309 = vadd.f32 %v2039, %v2287
  %v2310 = vld [vmem:[%s4] sm:$0x1]
  %v2312 = vlaneseq
  %v2313 = vshrl.u32 %v2312, 7
  %v2314 = vsub.s32 0, %v2313
  %v2315 = vrot.slane %v2310, %v2314
  %v2317 = vadd.f32 %v2290, %v2315
  %v2318 = vadd.f32 %v2291, %v2315
  %v2319 = vadd.f32 %v2292, %v2315
  %v2320 = vadd.f32 %v2293, %v2315
  %v2321 = vadd.f32 %v2294, %v2315
  %v2322 = vadd.f32 %v2295, %v2315
  %v2323 = vadd.f32 %v2296, %v2315
  %v2324 = vadd.f32 %v2297, %v2315
  %v2325 = vadd.f32 %v2298, %v2315
  %v2326 = vadd.f32 %v2299, %v2315
  %v2327 = vadd.f32 %v2300, %v2315
  %v2328 = vadd.f32 %v2301, %v2315
  %v2329 = vadd.f32 %v2302, %v2315
  %v2330 = vadd.f32 %v2303, %v2315
  %v2331 = vadd.f32 %v2304, %v2315
  %v2332 = vadd.f32 %v2305, %v2315
  %v2333 = vadd.f32 %v2306, %v2315
  %v2334 = vadd.f32 %v2307, %v2315
  %v2335 = vadd.f32 %v2308, %v2315
  %v2336 = vadd.f32 %v2309, %v2315
  %v2337 = vmax.f32 %v2317, 0.0
  %v2338 = vmax.f32 %v2318, 0.0
  %v2339 = vmax.f32 %v2319, 0.0
  %v2340 = vmax.f32 %v2320, 0.0
  %v2341 = vmax.f32 %v2321, 0.0
  %v2342 = vmax.f32 %v2322, 0.0
  %v2343 = vmax.f32 %v2323, 0.0
  %v2344 = vmax.f32 %v2324, 0.0
  %v2345 = vmax.f32 %v2325, 0.0
  %v2346 = vmax.f32 %v2326, 0.0
  %v2347 = vmax.f32 %v2327, 0.0
  %v2348 = vmax.f32 %v2328, 0.0
  %v2349 = vmax.f32 %v2329, 0.0
  %v2350 = vmax.f32 %v2330, 0.0
  %v2351 = vmax.f32 %v2331, 0.0
  %v2352 = vmax.f32 %v2332, 0.0
  %v2353 = vmax.f32 %v2333, 0.0
  %v2354 = vmax.f32 %v2334, 0.0
  %v2355 = vmax.f32 %v2335, 0.0
  %v2356 = vmax.f32 %v2336, 0.0
  %vm2357 = vcmask 523264
  %2358 = vst.msk [vmem:[#allocation3] sm:$0xff] %vm2357, %v2337
  %2359 = vst.msk [vmem:[#allocation3 + $0x8] sm:$0xff] %vm2357, %v2338
  %2360 = vst.msk [vmem:[#allocation3 + $0x10] sm:$0xff] %vm2357, %v2339
  %2361 = vst.msk [vmem:[#allocation3 + $0x18] sm:$0xff] %vm2357, %v2340
  %2362 = vst.msk [vmem:[#allocation3 + $0x20] sm:$0xff] %vm2357, %v2341
  %2363 = vst.msk [vmem:[#allocation3 + $0x28] sm:$0xff] %vm2357, %v2342
  %2364 = vst.msk [vmem:[#allocation3 + $0x30] sm:$0xff] %vm2357, %v2343
  %2365 = vst.msk [vmem:[#allocation3 + $0x38] sm:$0xff] %vm2357, %v2344
  %2366 = vst.msk [vmem:[#allocation3 + $0x40] sm:$0xff] %vm2357, %v2345
  %2367 = vst.msk [vmem:[#allocation3 + $0x48] sm:$0xff] %vm2357, %v2346
  %2368 = vst.msk [vmem:[#allocation3 + $0x50] sm:$0xff] %vm2357, %v2347
  %2369 = vst.msk [vmem:[#allocation3 + $0x58] sm:$0xff] %vm2357, %v2348
  %2370 = vst.msk [vmem:[#allocation3 + $0x60] sm:$0xff] %vm2357, %v2349
  %2371 = vst.msk [vmem:[#allocation3 + $0x68] sm:$0xff] %vm2357, %v2350
  %2372 = vst.msk [vmem:[#allocation3 + $0x70] sm:$0xff] %vm2357, %v2351
  %2373 = vst.msk [vmem:[#allocation3 + $0x78] sm:$0xff] %vm2357, %v2352
  %2374 = vst.msk [vmem:[#allocation3 + $0x80] sm:$0xff] %vm2357, %v2353
  %2375 = vst.msk [vmem:[#allocation3 + $0x88] sm:$0xff] %vm2357, %v2354
  %2376 = vst.msk [vmem:[#allocation3 + $0x90] sm:$0xff] %vm2357, %v2355
  %vm2377 = vcmask 519168
  %2378 = vst.msk [vmem:[#allocation3 + $0x98] sm:$0xf] %vm2377, %v2356
  %v2379 = vld [vmem:[#allocation3] sm:$0xff]
  %v2380 = vld [vmem:[#allocation3 + $0x8] sm:$0xff]
  %v2381 = vld [vmem:[#allocation3 + $0x10] sm:$0xff]
  %v2382 = vld [vmem:[#allocation3 + $0x18] sm:$0xff]
  %v2383 = vld [vmem:[#allocation3 + $0x20] sm:$0xff]
  %v2384 = vld [vmem:[#allocation3 + $0x28] sm:$0xff]
  %v2385 = vld [vmem:[#allocation3 + $0x30] sm:$0xff]
  %v2386 = vld [vmem:[#allocation3 + $0x38] sm:$0xff]
  %v2387 = vld [vmem:[#allocation3 + $0x40] sm:$0xff]
  %v2388 = vld [vmem:[#allocation3 + $0x48] sm:$0xff]
  %v2389 = vld [vmem:[#allocation3 + $0x50] sm:$0xff]
  %v2390 = vld [vmem:[#allocation3 + $0x58] sm:$0xff]
  %v2391 = vld [vmem:[#allocation3 + $0x60] sm:$0xff]
  %v2392 = vld [vmem:[#allocation3 + $0x68] sm:$0xff]
  %v2393 = vld [vmem:[#allocation3 + $0x70] sm:$0xff]
  %v2394 = vld [vmem:[#allocation3 + $0x78] sm:$0xff]
  %v2395 = vld [vmem:[#allocation3 + $0x80] sm:$0x3f]
  %v2396 = vld [vmem:[%s5] sm:$0xff]
  %v2397 = vld [vmem:[%s5 + $0x8] sm:$0xff]
  %v2398 = vld [vmem:[%s5 + $0x10] sm:$0xff]
  %v2399 = vld [vmem:[%s5 + $0x18] sm:$0xff]
  %v2400 = vld [vmem:[%s5 + $0x20] sm:$0xff]
  %v2401 = vld [vmem:[%s5 + $0x28] sm:$0xff]
  %v2402 = vld [vmem:[%s5 + $0x30] sm:$0xff]
  %v2403 = vld [vmem:[%s5 + $0x38] sm:$0xff]
  %v2404 = vld [vmem:[#allocation3 + $0x2] sm:$0xff]
  %v2405 = vld [vmem:[#allocation3 + $0xa] sm:$0xff]
  %v2406 = vld [vmem:[#allocation3 + $0x12] sm:$0xff]
  %v2407 = vld [vmem:[#allocation3 + $0x1a] sm:$0xff]
  %v2408 = vld [vmem:[#allocation3 + $0x22] sm:$0xff]
  %v2409 = vld [vmem:[#allocation3 + $0x2a] sm:$0xff]
  %v2410 = vld [vmem:[#allocation3 + $0x32] sm:$0xff]
  %v2411 = vld [vmem:[#allocation3 + $0x3a] sm:$0xff]
  %v2412 = vld [vmem:[#allocation3 + $0x42] sm:$0xff]
  %v2413 = vld [vmem:[#allocation3 + $0x4a] sm:$0xff]
  %v2414 = vld [vmem:[#allocation3 + $0x52] sm:$0xff]
  %v2415 = vld [vmem:[#allocation3 + $0x5a] sm:$0xff]
  %v2416 = vld [vmem:[#allocation3 + $0x62] sm:$0xff]
  %v2417 = vld [vmem:[#allocation3 + $0x6a] sm:$0xff]
  %v2418 = vld [vmem:[#allocation3 + $0x72] sm:$0xff]
  %v2419 = vld [vmem:[#allocation3 + $0x7a] sm:$0xff]
  %v2420 = vld [vmem:[#allocation3 + $0x82] sm:$0x3f]
  %s2421 = scalar_lea.vmem %s5, 64
  %v2422 = vld [vmem:[%s2421] sm:$0xff]
  %v2423 = vld [vmem:[%s2421 + $0x8] sm:$0xff]
  %v2424 = vld [vmem:[%s2421 + $0x10] sm:$0xff]
  %v2425 = vld [vmem:[%s2421 + $0x18] sm:$0xff]
  %v2426 = vld [vmem:[%s2421 + $0x20] sm:$0xff]
  %v2427 = vld [vmem:[%s2421 + $0x28] sm:$0xff]
  %v2428 = vld [vmem:[%s2421 + $0x30] sm:$0xff]
  %v2429 = vld [vmem:[%s2421 + $0x38] sm:$0xff]
  %v2431 = vsel %vm2357, %v2404, 0
  %v2434 = vsel %vm2357, %v2405, 0
  %v2437 = vsel %vm2357, %v2406, 0
  %v2440 = vsel %vm2357, %v2407, 0
  %v2443 = vsel %vm2357, %v2408, 0
  %v2446 = vsel %vm2357, %v2409, 0
  %v2449 = vsel %vm2357, %v2410, 0
  %v2452 = vsel %vm2357, %v2411, 0
  %v2455 = vsel %vm2357, %v2412, 0
  %v2458 = vsel %vm2357, %v2413, 0
  %v2461 = vsel %vm2357, %v2414, 0
  %v2464 = vsel %vm2357, %v2415, 0
  %v2467 = vsel %vm2357, %v2416, 0
  %v2470 = vsel %vm2357, %v2417, 0
  %v2473 = vsel %vm2357, %v2418, 0
  %v2476 = vsel %vm2357, %v2419, 0
  %v2479 = vsel %vm2357, %v2420, 0
  %2481 = vmatprep.subr.mxu0 0.0
  %2482 = vmatpush1.msra.mxu0 %v2422
  %2483 = vmatprep.subr.mxu0 0.0
  %2484 = vmatpush1.msra.mxu0 %v2423
  %2485 = vmatprep.subr.mxu0 0.0
  %2486 = vmatpush1.msra.mxu0 %v2424
  %2487 = vmatprep.subr.mxu0 0.0
  %2488 = vmatpush1.msra.mxu0 %v2425
  %2489 = vmatprep.subr.mxu0 0.0
  %2490 = vmatpush1.msra.mxu0 %v2426
  %2491 = vmatprep.subr.mxu0 0.0
  %2492 = vmatpush1.msra.mxu0 %v2427
  %2493 = vmatprep.subr.mxu0 0.0
  %2494 = vmatpush1.msra.mxu0 %v2428
  %2495 = vmatprep.subr.mxu0 0.0
  %2496 = vmatpush1.msra.mxu0 %v2429
  %2497 = vmatprep.subr.mxu0 0.0
  %2498 = vmatpush1.msra.mxu0 0.0
  %2499 = vmatprep.subr.mxu0 0.0
  %2500 = vmatpush1.msra.mxu0 0.0
  %2501 = vmatprep.subr.mxu0 0.0
  %2502 = vmatpush1.msra.mxu0 0.0
  %2503 = vmatprep.subr.mxu0 0.0
  %2504 = vmatpush1.msra.mxu0 0.0
  %2505 = vmatprep.subr.mxu0 0.0
  %2506 = vmatpush1.msra.mxu0 0.0
  %2507 = vmatprep.subr.mxu0 0.0
  %2508 = vmatpush1.msra.mxu0 0.0
  %2509 = vmatprep.subr.mxu0 0.0
  %2510 = vmatpush1.msra.mxu0 0.0
  %2511 = vmatprep.subr.mxu0 0.0
  %2512 = vmatpush1.msra.mxu0 0.0
  %2513 = vmatprep.subr.mxu0 0.0
  %2514 = vmatpush1.msra.mxu0 0.0
  %2515 = vmatprep.subr.mxu0 0.0
  %2516 = vmatpush1.msra.mxu0 0.0
  %2517 = vmatprep.subr.mxu0 0.0
  %2518 = vmatpush1.msra.mxu0 0.0
  %2519 = vmatprep.subr.mxu0 0.0
  %2520 = vmatpush1.msra.mxu0 0.0
  %2521 = vmatprep.subr.mxu0 0.0
  %2522 = vmatpush1.msra.mxu0 0.0
  %2523 = vmatprep.subr.mxu0 0.0
  %2524 = vmatpush1.msra.mxu0 0.0
  %2525 = vmatprep.subr.mxu0 0.0
  %2526 = vmatpush1.msra.mxu0 0.0
  %2527 = vmatprep.subr.mxu0 0.0
  %2528 = vmatpush1.msra.mxu0 0.0
  %2529 = vmatprep.subr.mxu0 0.0
  %2530 = vmatpush1.msra.mxu0 0.0
  %2531 = vmatprep.subr.mxu0 0.0
  %2532 = vmatpush1.msra.mxu0 0.0
  %2533 = vmatprep.subr.mxu0 0.0
  %2534 = vmatpush1.msra.mxu0 0.0
  %2535 = vmatprep.subr.mxu0 0.0
  %2536 = vmatpush1.msra.mxu0 0.0
  %2537 = vmatprep.subr.mxu0 0.0
  %2538 = vmatpush1.msra.mxu0 0.0
  %2539 = vmatprep.subr.mxu0 0.0
  %2540 = vmatpush1.msra.mxu0 0.0
  %2541 = vmatprep.subr.mxu0 0.0
  %2542 = vmatpush1.msra.mxu0 0.0
  %2543 = vmatprep.subr.mxu0 0.0
  %2544 = vmatpush1.msra.mxu0 0.0
  %2545 = vmatprep.mubr.f32.mxu0 0.0
  %2546 = vmatmul.mubr.f32.gmra.mrb[0].mxu0 %v2431
  %v2547 = vpop.f32.mrb[0].mxu0
  %v2548 = vadd.f32 0.0, %v2547
  %v2549 = vpop.f32.mrb[0].mxu0
  %2550 = vmatprep.mubr.f32.mxu0 0.0
  %2551 = vmatmul.mubr.f32.gmra.mrb[0].mxu0 %v2434
  %v2552 = vpop.f32.mrb[0].mxu0
  %v2553 = vadd.f32 0.0, %v2552
  %v2554 = vpop.f32.mrb[0].mxu0
  %2555 = vmatprep.mubr.f32.mxu0 0.0
  %2556 = vmatmul.mubr.f32.gmra.mrb[0].mxu0 %v2437
  %v2557 = vpop.f32.mrb[0].mxu0
  %v2558 = vadd.f32 0.0, %v2557
  %v2559 = vpop.f32.mrb[0].mxu0
  %2560 = vmatprep.mubr.f32.mxu0 0.0
  %2561 = vmatmul.mubr.f32.gmra.mrb[0].mxu0 %v2440
  %v2562 = vpop.f32.mrb[0].mxu0
  %v2563 = vadd.f32 0.0, %v2562
  %v2564 = vpop.f32.mrb[0].mxu0
  %2565 = vmatprep.mubr.f32.mxu0 0.0
  %2566 = vmatmul.mubr.f32.gmra.mrb[0].mxu0 %v2443
  %v2567 = vpop.f32.mrb[0].mxu0
  %v2568 = vadd.f32 0.0, %v2567
  %v2569 = vpop.f32.mrb[0].mxu0
  %2570 = vmatprep.mubr.f32.mxu0 0.0
  %2571 = vmatmul.mubr.f32.gmra.mrb[0].mxu0 %v2446
  %v2572 = vpop.f32.mrb[0].mxu0
  %v2573 = vadd.f32 0.0, %v2572
  %v2574 = vpop.f32.mrb[0].mxu0
  %2575 = vmatprep.mubr.f32.mxu0 0.0
  %2576 = vmatmul.mubr.f32.gmra.mrb[0].mxu0 %v2449
  %v2577 = vpop.f32.mrb[0].mxu0
  %v2578 = vadd.f32 0.0, %v2577
  %v2579 = vpop.f32.mrb[0].mxu0
  %2580 = vmatprep.mubr.f32.mxu0 0.0
  %2581 = vmatmul.mubr.f32.gmra.mrb[0].mxu0 %v2452
  %v2582 = vpop.f32.mrb[0].mxu0
  %v2583 = vadd.f32 0.0, %v2582
  %v2584 = vpop.f32.mrb[0].mxu0
  %2585 = vmatprep.mubr.f32.mxu0 0.0
  %2586 = vmatmul.mubr.f32.gmra.mrb[0].mxu0 %v2455
  %v2587 = vpop.f32.mrb[0].mxu0
  %v2588 = vadd.f32 0.0, %v2587
  %v2589 = vpop.f32.mrb[0].mxu0
  %2590 = vmatprep.mubr.f32.mxu0 0.0
  %2591 = vmatmul.mubr.f32.gmra.mrb[0].mxu0 %v2458
  %v2592 = vpop.f32.mrb[0].mxu0
  %v2593 = vadd.f32 0.0, %v2592
  %v2594 = vpop.f32.mrb[0].mxu0
  %2595 = vmatprep.mubr.f32.mxu0 0.0
  %2596 = vmatmul.mubr.f32.gmra.mrb[0].mxu0 %v2461
  %v2597 = vpop.f32.mrb[0].mxu0
  %v2598 = vadd.f32 0.0, %v2597
  %v2599 = vpop.f32.mrb[0].mxu0
  %2600 = vmatprep.mubr.f32.mxu0 0.0
  %2601 = vmatmul.mubr.f32.gmra.mrb[0].mxu0 %v2464
  %v2602 = vpop.f32.mrb[0].mxu0
  %v2603 = vadd.f32 0.0, %v2602
  %v2604 = vpop.f32.mrb[0].mxu0
  %2605 = vmatprep.mubr.f32.mxu0 0.0
  %2606 = vmatmul.mubr.f32.gmra.mrb[0].mxu0 %v2467
  %v2607 = vpop.f32.mrb[0].mxu0
  %v2608 = vadd.f32 0.0, %v2607
  %v2609 = vpop.f32.mrb[0].mxu0
  %2610 = vmatprep.mubr.f32.mxu0 0.0
  %2611 = vmatmul.mubr.f32.gmra.mrb[0].mxu0 %v2470
  %v2612 = vpop.f32.mrb[0].mxu0
  %v2613 = vadd.f32 0.0, %v2612
  %v2614 = vpop.f32.mrb[0].mxu0
  %2615 = vmatprep.mubr.f32.mxu0 0.0
  %2616 = vmatmul.mubr.f32.gmra.mrb[0].mxu0 %v2473
  %v2617 = vpop.f32.mrb[0].mxu0
  %v2618 = vadd.f32 0.0, %v2617
  %v2619 = vpop.f32.mrb[0].mxu0
  %2620 = vmatprep.mubr.f32.mxu0 0.0
  %2621 = vmatmul.mubr.f32.gmra.mrb[0].mxu0 %v2476
  %v2622 = vpop.f32.mrb[0].mxu0
  %v2623 = vadd.f32 0.0, %v2622
  %v2624 = vpop.f32.mrb[0].mxu0
  %2625 = vmatprep.mubr.f32.mxu0 0.0
  %2626 = vmatmul.mubr.f32.gmra.mrb[0].mxu0 %v2479
  %v2627 = vpop.f32.mrb[0].mxu0
  %v2628 = vadd.f32 0.0, %v2627
  %v2629 = vpop.f32.mrb[0].mxu0
  %2630 = vdwg.mxu0
  %v2632 = vsel %vm2357, %v2379, 0
  %v2635 = vsel %vm2357, %v2380, 0
  %v2638 = vsel %vm2357, %v2381, 0
  %v2641 = vsel %vm2357, %v2382, 0
  %v2644 = vsel %vm2357, %v2383, 0
  %v2647 = vsel %vm2357, %v2384, 0
  %v2650 = vsel %vm2357, %v2385, 0
  %v2653 = vsel %vm2357, %v2386, 0
  %v2656 = vsel %vm2357, %v2387, 0
  %v2659 = vsel %vm2357, %v2388, 0
  %v2662 = vsel %vm2357, %v2389, 0
  %v2665 = vsel %vm2357, %v2390, 0
  %v2668 = vsel %vm2357, %v2391, 0
  %v2671 = vsel %vm2357, %v2392, 0
  %v2674 = vsel %vm2357, %v2393, 0
  %v2677 = vsel %vm2357, %v2394, 0
  %v2680 = vsel %vm2357, %v2395, 0
  %2682 = vmatprep.subr.mxu0 0.0
  %2683 = vmatpush1.msra.mxu0 %v2396
  %2684 = vmatprep.subr.mxu0 0.0
  %2685 = vmatpush1.msra.mxu0 %v2397
  %2686 = vmatprep.subr.mxu0 0.0
  %2687 = vmatpush1.msra.mxu0 %v2398
  %2688 = vmatprep.subr.mxu0 0.0
  %2689 = vmatpush1.msra.mxu0 %v2399
  %2690 = vmatprep.subr.mxu0 0.0
  %2691 = vmatpush1.msra.mxu0 %v2400
  %2692 = vmatprep.subr.mxu0 0.0
  %2693 = vmatpush1.msra.mxu0 %v2401
  %2694 = vmatprep.subr.mxu0 0.0
  %2695 = vmatpush1.msra.mxu0 %v2402
  %2696 = vmatprep.subr.mxu0 0.0
  %2697 = vmatpush1.msra.mxu0 %v2403
  %2698 = vmatprep.subr.mxu0 0.0
  %2699 = vmatpush1.msra.mxu0 0.0
  %2700 = vmatprep.subr.mxu0 0.0
  %2701 = vmatpush1.msra.mxu0 0.0
  %2702 = vmatprep.subr.mxu0 0.0
  %2703 = vmatpush1.msra.mxu0 0.0
  %2704 = vmatprep.subr.mxu0 0.0
  %2705 = vmatpush1.msra.mxu0 0.0
  %2706 = vmatprep.subr.mxu0 0.0
  %2707 = vmatpush1.msra.mxu0 0.0
  %2708 = vmatprep.subr.mxu0 0.0
  %2709 = vmatpush1.msra.mxu0 0.0
  %2710 = vmatprep.subr.mxu0 0.0
  %2711 = vmatpush1.msra.mxu0 0.0
  %2712 = vmatprep.subr.mxu0 0.0
  %2713 = vmatpush1.msra.mxu0 0.0
  %2714 = vmatprep.subr.mxu0 0.0
  %2715 = vmatpush1.msra.mxu0 0.0
  %2716 = vmatprep.subr.mxu0 0.0
  %2717 = vmatpush1.msra.mxu0 0.0
  %2718 = vmatprep.subr.mxu0 0.0
  %2719 = vmatpush1.msra.mxu0 0.0
  %2720 = vmatprep.subr.mxu0 0.0
  %2721 = vmatpush1.msra.mxu0 0.0
  %2722 = vmatprep.subr.mxu0 0.0
  %2723 = vmatpush1.msra.mxu0 0.0
  %2724 = vmatprep.subr.mxu0 0.0
  %2725 = vmatpush1.msra.mxu0 0.0
  %2726 = vmatprep.subr.mxu0 0.0
  %2727 = vmatpush1.msra.mxu0 0.0
  %2728 = vmatprep.subr.mxu0 0.0
  %2729 = vmatpush1.msra.mxu0 0.0
  %2730 = vmatprep.subr.mxu0 0.0
  %2731 = vmatpush1.msra.mxu0 0.0
  %2732 = vmatprep.subr.mxu0 0.0
  %2733 = vmatpush1.msra.mxu0 0.0
  %2734 = vmatprep.subr.mxu0 0.0
  %2735 = vmatpush1.msra.mxu0 0.0
  %2736 = vmatprep.subr.mxu0 0.0
  %2737 = vmatpush1.msra.mxu0 0.0
  %2738 = vmatprep.subr.mxu0 0.0
  %2739 = vmatpush1.msra.mxu0 0.0
  %2740 = vmatprep.subr.mxu0 0.0
  %2741 = vmatpush1.msra.mxu0 0.0
  %2742 = vmatprep.subr.mxu0 0.0
  %2743 = vmatpush1.msra.mxu0 0.0
  %2744 = vmatprep.subr.mxu0 0.0
  %2745 = vmatpush1.msra.mxu0 0.0
  %2746 = vmatprep.mubr.f32.mxu0 0.0
  %2747 = vmatmul.mubr.f32.gmra.mrb[0].mxu0 %v2632
  %v2748 = vpop.f32.mrb[0].mxu0
  %v2749 = vadd.f32 %v2548, %v2748
  %v2750 = vpop.f32.mrb[0].mxu0
  %2751 = vmatprep.mubr.f32.mxu0 0.0
  %2752 = vmatmul.mubr.f32.gmra.mrb[0].mxu0 %v2635
  %v2753 = vpop.f32.mrb[0].mxu0
  %v2754 = vadd.f32 %v2553, %v2753
  %v2755 = vpop.f32.mrb[0].mxu0
  %2756 = vmatprep.mubr.f32.mxu0 0.0
  %2757 = vmatmul.mubr.f32.gmra.mrb[0].mxu0 %v2638
  %v2758 = vpop.f32.mrb[0].mxu0
  %v2759 = vadd.f32 %v2558, %v2758
  %v2760 = vpop.f32.mrb[0].mxu0
  %2761 = vmatprep.mubr.f32.mxu0 0.0
  %2762 = vmatmul.mubr.f32.gmra.mrb[0].mxu0 %v2641
  %v2763 = vpop.f32.mrb[0].mxu0
  %v2764 = vadd.f32 %v2563, %v2763
  %v2765 = vpop.f32.mrb[0].mxu0
  %2766 = vmatprep.mubr.f32.mxu0 0.0
  %2767 = vmatmul.mubr.f32.gmra.mrb[0].mxu0 %v2644
  %v2768 = vpop.f32.mrb[0].mxu0
  %v2769 = vadd.f32 %v2568, %v2768
  %v2770 = vpop.f32.mrb[0].mxu0
  %2771 = vmatprep.mubr.f32.mxu0 0.0
  %2772 = vmatmul.mubr.f32.gmra.mrb[0].mxu0 %v2647
  %v2773 = vpop.f32.mrb[0].mxu0
  %v2774 = vadd.f32 %v2573, %v2773
  %v2775 = vpop.f32.mrb[0].mxu0
  %2776 = vmatprep.mubr.f32.mxu0 0.0
  %2777 = vmatmul.mubr.f32.gmra.mrb[0].mxu0 %v2650
  %v2778 = vpop.f32.mrb[0].mxu0
  %v2779 = vadd.f32 %v2578, %v2778
  %v2780 = vpop.f32.mrb[0].mxu0
  %2781 = vmatprep.mubr.f32.mxu0 0.0
  %2782 = vmatmul.mubr.f32.gmra.mrb[0].mxu0 %v2653
  %v2783 = vpop.f32.mrb[0].mxu0
  %v2784 = vadd.f32 %v2583, %v2783
  %v2785 = vpop.f32.mrb[0].mxu0
  %2786 = vmatprep.mubr.f32.mxu0 0.0
  %2787 = vmatmul.mubr.f32.gmra.mrb[0].mxu0 %v2656
  %v2788 = vpop.f32.mrb[0].mxu0
  %v2789 = vadd.f32 %v2588, %v2788
  %v2790 = vpop.f32.mrb[0].mxu0
  %2791 = vmatprep.mubr.f32.mxu0 0.0
  %2792 = vmatmul.mubr.f32.gmra.mrb[0].mxu0 %v2659
  %v2793 = vpop.f32.mrb[0].mxu0
  %v2794 = vadd.f32 %v2593, %v2793
  %v2795 = vpop.f32.mrb[0].mxu0
  %2796 = vmatprep.mubr.f32.mxu0 0.0
  %2797 = vmatmul.mubr.f32.gmra.mrb[0].mxu0 %v2662
  %v2798 = vpop.f32.mrb[0].mxu0
  %v2799 = vadd.f32 %v2598, %v2798
  %v2800 = vpop.f32.mrb[0].mxu0
  %2801 = vmatprep.mubr.f32.mxu0 0.0
  %2802 = vmatmul.mubr.f32.gmra.mrb[0].mxu0 %v2665
  %v2803 = vpop.f32.mrb[0].mxu0
  %v2804 = vadd.f32 %v2603, %v2803
  %v2805 = vpop.f32.mrb[0].mxu0
  %2806 = vmatprep.mubr.f32.mxu0 0.0
  %2807 = vmatmul.mubr.f32.gmra.mrb[0].mxu0 %v2668
  %v2808 = vpop.f32.mrb[0].mxu0
  %v2809 = vadd.f32 %v2608, %v2808
  %v2810 = vpop.f32.mrb[0].mxu0
  %2811 = vmatprep.mubr.f32.mxu0 0.0
  %2812 = vmatmul.mubr.f32.gmra.mrb[0].mxu0 %v2671
  %v2813 = vpop.f32.mrb[0].mxu0
  %v2814 = vadd.f32 %v2613, %v2813
  %v2815 = vpop.f32.mrb[0].mxu0
  %2816 = vmatprep.mubr.f32.mxu0 0.0
  %2817 = vmatmul.mubr.f32.gmra.mrb[0].mxu0 %v2674
  %v2818 = vpop.f32.mrb[0].mxu0
  %v2819 = vadd.f32 %v2618, %v2818
  %v2820 = vpop.f32.mrb[0].mxu0
  %2821 = vmatprep.mubr.f32.mxu0 0.0
  %2822 = vmatmul.mubr.f32.gmra.mrb[0].mxu0 %v2677
  %v2823 = vpop.f32.mrb[0].mxu0
  %v2824 = vadd.f32 %v2623, %v2823
  %v2825 = vpop.f32.mrb[0].mxu0
  %2826 = vmatprep.mubr.f32.mxu0 0.0
  %2827 = vmatmul.mubr.f32.gmra.mrb[0].mxu0 %v2680
  %v2828 = vpop.f32.mrb[0].mxu0
  %v2829 = vadd.f32 %v2628, %v2828
  %v2830 = vpop.f32.mrb[0].mxu0
  %2831 = vdwg.mxu0
  %v2832 = vld [vmem:[#allocation3 + $0x14] sm:$0xff]
  %v2833 = vld [vmem:[#allocation3 + $0x1c] sm:$0xff]
  %v2834 = vld [vmem:[#allocation3 + $0x24] sm:$0xff]
  %v2835 = vld [vmem:[#allocation3 + $0x2c] sm:$0xff]
  %v2836 = vld [vmem:[#allocation3 + $0x34] sm:$0xff]
  %v2837 = vld [vmem:[#allocation3 + $0x3c] sm:$0xff]
  %v2838 = vld [vmem:[#allocation3 + $0x44] sm:$0xff]
  %v2839 = vld [vmem:[#allocation3 + $0x4c] sm:$0xff]
  %v2840 = vld [vmem:[#allocation3 + $0x54] sm:$0xff]
  %v2841 = vld [vmem:[#allocation3 + $0x5c] sm:$0xff]
  %v2842 = vld [vmem:[#allocation3 + $0x64] sm:$0xff]
  %v2843 = vld [vmem:[#allocation3 + $0x6c] sm:$0xff]
  %v2844 = vld [vmem:[#allocation3 + $0x74] sm:$0xff]
  %v2845 = vld [vmem:[#allocation3 + $0x7c] sm:$0xff]
  %v2846 = vld [vmem:[#allocation3 + $0x84] sm:$0xff]
  %v2847 = vld [vmem:[#allocation3 + $0x8c] sm:$0xff]
  %v2848 = vld [vmem:[#allocation3 + $0x94] sm:$0x3f]
  %s2849 = scalar_lea.vmem %s5, 128
  %v2850 = vld [vmem:[%s2849] sm:$0xff]
  %v2851 = vld [vmem:[%s2849 + $0x8] sm:$0xff]
  %v2852 = vld [vmem:[%s2849 + $0x10] sm:$0xff]
  %v2853 = vld [vmem:[%s2849 + $0x18] sm:$0xff]
  %v2854 = vld [vmem:[%s2849 + $0x20] sm:$0xff]
  %v2855 = vld [vmem:[%s2849 + $0x28] sm:$0xff]
  %v2856 = vld [vmem:[%s2849 + $0x30] sm:$0xff]
  %v2857 = vld [vmem:[%s2849 + $0x38] sm:$0xff]
  %v2859 = vsel %vm2357, %v2832, 0
  %v2862 = vsel %vm2357, %v2833, 0
  %v2865 = vsel %vm2357, %v2834, 0
  %v2868 = vsel %vm2357, %v2835, 0
  %v2871 = vsel %vm2357, %v2836, 0
  %v2874 = vsel %vm2357, %v2837, 0
  %v2877 = vsel %vm2357, %v2838, 0
  %v2880 = vsel %vm2357, %v2839, 0
  %v2883 = vsel %vm2357, %v2840, 0
  %v2886 = vsel %vm2357, %v2841, 0
  %v2889 = vsel %vm2357, %v2842, 0
  %v2892 = vsel %vm2357, %v2843, 0
  %v2895 = vsel %vm2357, %v2844, 0
  %v2898 = vsel %vm2357, %v2845, 0
  %v2901 = vsel %vm2357, %v2846, 0
  %v2904 = vsel %vm2357, %v2847, 0
  %v2907 = vsel %vm2357, %v2848, 0
  %2909 = vmatprep.subr.mxu0 0.0
  %2910 = vmatpush1.msra.mxu0 %v2850
  %2911 = vmatprep.subr.mxu0 0.0
  %2912 = vmatpush1.msra.mxu0 %v2851
  %2913 = vmatprep.subr.mxu0 0.0
  %2914 = vmatpush1.msra.mxu0 %v2852
  %2915 = vmatprep.subr.mxu0 0.0
  %2916 = vmatpush1.msra.mxu0 %v2853
  %2917 = vmatprep.subr.mxu0 0.0
  %2918 = vmatpush1.msra.mxu0 %v2854
  %2919 = vmatprep.subr.mxu0 0.0
  %2920 = vmatpush1.msra.mxu0 %v2855
  %2921 = vmatprep.subr.mxu0 0.0
  %2922 = vmatpush1.msra.mxu0 %v2856
  %2923 = vmatprep.subr.mxu0 0.0
  %2924 = vmatpush1.msra.mxu0 %v2857
  %2925 = vmatprep.subr.mxu0 0.0
  %2926 = vmatpush1.msra.mxu0 0.0
  %2927 = vmatprep.subr.mxu0 0.0
  %2928 = vmatpush1.msra.mxu0 0.0
  %2929 = vmatprep.subr.mxu0 0.0
  %2930 = vmatpush1.msra.mxu0 0.0
  %2931 = vmatprep.subr.mxu0 0.0
  %2932 = vmatpush1.msra.mxu0 0.0
  %2933 = vmatprep.subr.mxu0 0.0
  %2934 = vmatpush1.msra.mxu0 0.0
  %2935 = vmatprep.subr.mxu0 0.0
  %2936 = vmatpush1.msra.mxu0 0.0
  %2937 = vmatprep.subr.mxu0 0.0
  %2938 = vmatpush1.msra.mxu0 0.0
  %2939 = vmatprep.subr.mxu0 0.0
  %2940 = vmatpush1.msra.mxu0 0.0
  %2941 = vmatprep.subr.mxu0 0.0
  %2942 = vmatpush1.msra.mxu0 0.0
  %2943 = vmatprep.subr.mxu0 0.0
  %2944 = vmatpush1.msra.mxu0 0.0
  %2945 = vmatprep.subr.mxu0 0.0
  %2946 = vmatpush1.msra.mxu0 0.0
  %2947 = vmatprep.subr.mxu0 0.0
  %2948 = vmatpush1.msra.mxu0 0.0
  %2949 = vmatprep.subr.mxu0 0.0
  %2950 = vmatpush1.msra.mxu0 0.0
  %2951 = vmatprep.subr.mxu0 0.0
  %2952 = vmatpush1.msra.mxu0 0.0
  %2953 = vmatprep.subr.mxu0 0.0
  %2954 = vmatpush1.msra.mxu0 0.0
  %2955 = vmatprep.subr.mxu0 0.0
  %2956 = vmatpush1.msra.mxu0 0.0
  %2957 = vmatprep.subr.mxu0 0.0
  %2958 = vmatpush1.msra.mxu0 0.0
  %2959 = vmatprep.subr.mxu0 0.0
  %2960 = vmatpush1.msra.mxu0 0.0
  %2961 = vmatprep.subr.mxu0 0.0
  %2962 = vmatpush1.msra.mxu0 0.0
  %2963 = vmatprep.subr.mxu0 0.0
  %2964 = vmatpush1.msra.mxu0 0.0
  %2965 = vmatprep.subr.mxu0 0.0
  %2966 = vmatpush1.msra.mxu0 0.0
  %2967 = vmatprep.subr.mxu0 0.0
  %2968 = vmatpush1.msra.mxu0 0.0
  %2969 = vmatprep.subr.mxu0 0.0
  %2970 = vmatpush1.msra.mxu0 0.0
  %2971 = vmatprep.subr.mxu0 0.0
  %2972 = vmatpush1.msra.mxu0 0.0
  %2973 = vmatprep.mubr.f32.mxu0 0.0
  %2974 = vmatmul.mubr.f32.gmra.mrb[0].mxu0 %v2859
  %v2975 = vpop.f32.mrb[0].mxu0
  %v2976 = vadd.f32 0.0, %v2975
  %v2977 = vpop.f32.mrb[0].mxu0
  %2978 = vmatprep.mubr.f32.mxu0 0.0
  %2979 = vmatmul.mubr.f32.gmra.mrb[0].mxu0 %v2862
  %v2980 = vpop.f32.mrb[0].mxu0
  %v2981 = vadd.f32 0.0, %v2980
  %v2982 = vpop.f32.mrb[0].mxu0
  %2983 = vmatprep.mubr.f32.mxu0 0.0
  %2984 = vmatmul.mubr.f32.gmra.mrb[0].mxu0 %v2865
  %v2985 = vpop.f32.mrb[0].mxu0
  %v2986 = vadd.f32 0.0, %v2985
  %v2987 = vpop.f32.mrb[0].mxu0
  %2988 = vmatprep.mubr.f32.mxu0 0.0
  %2989 = vmatmul.mubr.f32.gmra.mrb[0].mxu0 %v2868
  %v2990 = vpop.f32.mrb[0].mxu0
  %v2991 = vadd.f32 0.0, %v2990
  %v2992 = vpop.f32.mrb[0].mxu0
  %2993 = vmatprep.mubr.f32.mxu0 0.0
  %2994 = vmatmul.mubr.f32.gmra.mrb[0].mxu0 %v2871
  %v2995 = vpop.f32.mrb[0].mxu0
  %v2996 = vadd.f32 0.0, %v2995
  %v2997 = vpop.f32.mrb[0].mxu0
  %2998 = vmatprep.mubr.f32.mxu0 0.0
  %2999 = vmatmul.mubr.f32.gmra.mrb[0].mxu0 %v2874
  %v3000 = vpop.f32.mrb[0].mxu0
  %v3001 = vadd.f32 0.0, %v3000
  %v3002 = vpop.f32.mrb[0].mxu0
  %3003 = vmatprep.mubr.f32.mxu0 0.0
  %3004 = vmatmul.mubr.f32.gmra.mrb[0].mxu0 %v2877
  %v3005 = vpop.f32.mrb[0].mxu0
  %v3006 = vadd.f32 0.0, %v3005
  %v3007 = vpop.f32.mrb[0].mxu0
  %3008 = vmatprep.mubr.f32.mxu0 0.0
  %3009 = vmatmul.mubr.f32.gmra.mrb[0].mxu0 %v2880
  %v3010 = vpop.f32.mrb[0].mxu0
  %v3011 = vadd.f32 0.0, %v3010
  %v3012 = vpop.f32.mrb[0].mxu0
  %3013 = vmatprep.mubr.f32.mxu0 0.0
  %3014 = vmatmul.mubr.f32.gmra.mrb[0].mxu0 %v2883
  %v3015 = vpop.f32.mrb[0].mxu0
  %v3016 = vadd.f32 0.0, %v3015
  %v3017 = vpop.f32.mrb[0].mxu0
  %3018 = vmatprep.mubr.f32.mxu0 0.0
  %3019 = vmatmul.mubr.f32.gmra.mrb[0].mxu0 %v2886
  %v3020 = vpop.f32.mrb[0].mxu0
  %v3021 = vadd.f32 0.0, %v3020
  %v3022 = vpop.f32.mrb[0].mxu0
  %3023 = vmatprep.mubr.f32.mxu0 0.0
  %3024 = vmatmul.mubr.f32.gmra.mrb[0].mxu0 %v2889
  %v3025 = vpop.f32.mrb[0].mxu0
  %v3026 = vadd.f32 0.0, %v3025
  %v3027 = vpop.f32.mrb[0].mxu0
  %3028 = vmatprep.mubr.f32.mxu0 0.0
  %3029 = vmatmul.mubr.f32.gmra.mrb[0].mxu0 %v2892
  %v3030 = vpop.f32.mrb[0].mxu0
  %v3031 = vadd.f32 0.0, %v3030
  %v3032 = vpop.f32.mrb[0].mxu0
  %3033 = vmatprep.mubr.f32.mxu0 0.0
  %3034 = vmatmul.mubr.f32.gmra.mrb[0].mxu0 %v2895
  %v3035 = vpop.f32.mrb[0].mxu0
  %v3036 = vadd.f32 0.0, %v3035
  %v3037 = vpop.f32.mrb[0].mxu0
  %3038 = vmatprep.mubr.f32.mxu0 0.0
  %3039 = vmatmul.mubr.f32.gmra.mrb[0].mxu0 %v2898
  %v3040 = vpop.f32.mrb[0].mxu0
  %v3041 = vadd.f32 0.0, %v3040
  %v3042 = vpop.f32.mrb[0].mxu0
  %3043 = vmatprep.mubr.f32.mxu0 0.0
  %3044 = vmatmul.mubr.f32.gmra.mrb[0].mxu0 %v2901
  %v3045 = vpop.f32.mrb[0].mxu0
  %v3046 = vadd.f32 0.0, %v3045
  %v3047 = vpop.f32.mrb[0].mxu0
  %3048 = vmatprep.mubr.f32.mxu0 0.0
  %3049 = vmatmul.mubr.f32.gmra.mrb[0].mxu0 %v2904
  %v3050 = vpop.f32.mrb[0].mxu0
  %v3051 = vadd.f32 0.0, %v3050
  %v3052 = vpop.f32.mrb[0].mxu0
  %3053 = vmatprep.mubr.f32.mxu0 0.0
  %3054 = vmatmul.mubr.f32.gmra.mrb[0].mxu0 %v2907
  %v3055 = vpop.f32.mrb[0].mxu0
  %v3056 = vadd.f32 0.0, %v3055
  %v3057 = vpop.f32.mrb[0].mxu0
  %3058 = vdwg.mxu0
  %v3059 = vadd.f32 %v2749, %v2976
  %v3060 = vadd.f32 %v2754, %v2981
  %v3061 = vadd.f32 %v2759, %v2986
  %v3062 = vadd.f32 %v2764, %v2991
  %v3063 = vadd.f32 %v2769, %v2996
  %v3064 = vadd.f32 %v2774, %v3001
  %v3065 = vadd.f32 %v2779, %v3006
  %v3066 = vadd.f32 %v2784, %v3011
  %v3067 = vadd.f32 %v2789, %v3016
  %v3068 = vadd.f32 %v2794, %v3021
  %v3069 = vadd.f32 %v2799, %v3026
  %v3070 = vadd.f32 %v2804, %v3031
  %v3071 = vadd.f32 %v2809, %v3036
  %v3072 = vadd.f32 %v2814, %v3041
  %v3073 = vadd.f32 %v2819, %v3046
  %v3074 = vadd.f32 %v2824, %v3051
  %v3075 = vadd.f32 %v2829, %v3056
  %v3076 = vld [vmem:[#allocation3 + $0x16] sm:$0xff]
  %v3077 = vld [vmem:[#allocation3 + $0x1e] sm:$0xff]
  %v3078 = vld [vmem:[#allocation3 + $0x26] sm:$0xff]
  %v3079 = vld [vmem:[#allocation3 + $0x2e] sm:$0xff]
  %v3080 = vld [vmem:[#allocation3 + $0x36] sm:$0xff]
  %v3081 = vld [vmem:[#allocation3 + $0x3e] sm:$0xff]
  %v3082 = vld [vmem:[#allocation3 + $0x46] sm:$0xff]
  %v3083 = vld [vmem:[#allocation3 + $0x4e] sm:$0xff]
  %v3084 = vld [vmem:[#allocation3 + $0x56] sm:$0xff]
  %v3085 = vld [vmem:[#allocation3 + $0x5e] sm:$0xff]
  %v3086 = vld [vmem:[#allocation3 + $0x66] sm:$0xff]
  %v3087 = vld [vmem:[#allocation3 + $0x6e] sm:$0xff]
  %v3088 = vld [vmem:[#allocation3 + $0x76] sm:$0xff]
  %v3089 = vld [vmem:[#allocation3 + $0x7e] sm:$0xff]
  %v3090 = vld [vmem:[#allocation3 + $0x86] sm:$0xff]
  %v3091 = vld [vmem:[#allocation3 + $0x8e] sm:$0xff]
  %v3092 = vld [vmem:[#allocation3 + $0x96] sm:$0x3f]
  %s3093 = scalar_lea.vmem %s5, 192
  %v3094 = vld [vmem:[%s3093] sm:$0xff]
  %v3095 = vld [vmem:[%s3093 + $0x8] sm:$0xff]
  %v3096 = vld [vmem:[%s3093 + $0x10] sm:$0xff]
  %v3097 = vld [vmem:[%s3093 + $0x18] sm:$0xff]
  %v3098 = vld [vmem:[%s3093 + $0x20] sm:$0xff]
  %v3099 = vld [vmem:[%s3093 + $0x28] sm:$0xff]
  %v3100 = vld [vmem:[%s3093 + $0x30] sm:$0xff]
  %v3101 = vld [vmem:[%s3093 + $0x38] sm:$0xff]
  %v3103 = vsel %vm2357, %v3076, 0
  %v3106 = vsel %vm2357, %v3077, 0
  %v3109 = vsel %vm2357, %v3078, 0
  %v3112 = vsel %vm2357, %v3079, 0
  %v3115 = vsel %vm2357, %v3080, 0
  %v3118 = vsel %vm2357, %v3081, 0
  %v3121 = vsel %vm2357, %v3082, 0
  %v3124 = vsel %vm2357, %v3083, 0
  %v3127 = vsel %vm2357, %v3084, 0
  %v3130 = vsel %vm2357, %v3085, 0
  %v3133 = vsel %vm2357, %v3086, 0
  %v3136 = vsel %vm2357, %v3087, 0
  %v3139 = vsel %vm2357, %v3088, 0
  %v3142 = vsel %vm2357, %v3089, 0
  %v3145 = vsel %vm2357, %v3090, 0
  %v3148 = vsel %vm2357, %v3091, 0
  %v3151 = vsel %vm2357, %v3092, 0
  %3153 = vmatprep.subr.mxu0 0.0
  %3154 = vmatpush1.msra.mxu0 %v3094
  %3155 = vmatprep.subr.mxu0 0.0
  %3156 = vmatpush1.msra.mxu0 %v3095
  %3157 = vmatprep.subr.mxu0 0.0
  %3158 = vmatpush1.msra.mxu0 %v3096
  %3159 = vmatprep.subr.mxu0 0.0
  %3160 = vmatpush1.msra.mxu0 %v3097
  %3161 = vmatprep.subr.mxu0 0.0
  %3162 = vmatpush1.msra.mxu0 %v3098
  %3163 = vmatprep.subr.mxu0 0.0
  %3164 = vmatpush1.msra.mxu0 %v3099
  %3165 = vmatprep.subr.mxu0 0.0
  %3166 = vmatpush1.msra.mxu0 %v3100
  %3167 = vmatprep.subr.mxu0 0.0
  %3168 = vmatpush1.msra.mxu0 %v3101
  %3169 = vmatprep.subr.mxu0 0.0
  %3170 = vmatpush1.msra.mxu0 0.0
  %3171 = vmatprep.subr.mxu0 0.0
  %3172 = vmatpush1.msra.mxu0 0.0
  %3173 = vmatprep.subr.mxu0 0.0
  %3174 = vmatpush1.msra.mxu0 0.0
  %3175 = vmatprep.subr.mxu0 0.0
  %3176 = vmatpush1.msra.mxu0 0.0
  %3177 = vmatprep.subr.mxu0 0.0
  %3178 = vmatpush1.msra.mxu0 0.0
  %3179 = vmatprep.subr.mxu0 0.0
  %3180 = vmatpush1.msra.mxu0 0.0
  %3181 = vmatprep.subr.mxu0 0.0
  %3182 = vmatpush1.msra.mxu0 0.0
  %3183 = vmatprep.subr.mxu0 0.0
  %3184 = vmatpush1.msra.mxu0 0.0
  %3185 = vmatprep.subr.mxu0 0.0
  %3186 = vmatpush1.msra.mxu0 0.0
  %3187 = vmatprep.subr.mxu0 0.0
  %3188 = vmatpush1.msra.mxu0 0.0
  %3189 = vmatprep.subr.mxu0 0.0
  %3190 = vmatpush1.msra.mxu0 0.0
  %3191 = vmatprep.subr.mxu0 0.0
  %3192 = vmatpush1.msra.mxu0 0.0
  %3193 = vmatprep.subr.mxu0 0.0
  %3194 = vmatpush1.msra.mxu0 0.0
  %3195 = vmatprep.subr.mxu0 0.0
  %3196 = vmatpush1.msra.mxu0 0.0
  %3197 = vmatprep.subr.mxu0 0.0
  %3198 = vmatpush1.msra.mxu0 0.0
  %3199 = vmatprep.subr.mxu0 0.0
  %3200 = vmatpush1.msra.mxu0 0.0
  %3201 = vmatprep.subr.mxu0 0.0
  %3202 = vmatpush1.msra.mxu0 0.0
  %3203 = vmatprep.subr.mxu0 0.0
  %3204 = vmatpush1.msra.mxu0 0.0
  %3205 = vmatprep.subr.mxu0 0.0
  %3206 = vmatpush1.msra.mxu0 0.0
  %3207 = vmatprep.subr.mxu0 0.0
  %3208 = vmatpush1.msra.mxu0 0.0
  %3209 = vmatprep.subr.mxu0 0.0
  %3210 = vmatpush1.msra.mxu0 0.0
  %3211 = vmatprep.subr.mxu0 0.0
  %3212 = vmatpush1.msra.mxu0 0.0
  %3213 = vmatprep.subr.mxu0 0.0
  %3214 = vmatpush1.msra.mxu0 0.0
  %3215 = vmatprep.subr.mxu0 0.0
  %3216 = vmatpush1.msra.mxu0 0.0
  %3217 = vmatprep.mubr.f32.mxu0 0.0
  %3218 = vmatmul.mubr.f32.gmra.mrb[0].mxu0 %v3103
  %v3219 = vpop.f32.mrb[0].mxu0
  %v3220 = vadd.f32 0.0, %v3219
  %v3221 = vpop.f32.mrb[0].mxu0
  %3222 = vmatprep.mubr.f32.mxu0 0.0
  %3223 = vmatmul.mubr.f32.gmra.mrb[0].mxu0 %v3106
  %v3224 = vpop.f32.mrb[0].mxu0
  %v3225 = vadd.f32 0.0, %v3224
  %v3226 = vpop.f32.mrb[0].mxu0
  %3227 = vmatprep.mubr.f32.mxu0 0.0
  %3228 = vmatmul.mubr.f32.gmra.mrb[0].mxu0 %v3109
  %v3229 = vpop.f32.mrb[0].mxu0
  %v3230 = vadd.f32 0.0, %v3229
  %v3231 = vpop.f32.mrb[0].mxu0
  %3232 = vmatprep.mubr.f32.mxu0 0.0
  %3233 = vmatmul.mubr.f32.gmra.mrb[0].mxu0 %v3112
  %v3234 = vpop.f32.mrb[0].mxu0
  %v3235 = vadd.f32 0.0, %v3234
  %v3236 = vpop.f32.mrb[0].mxu0
  %3237 = vmatprep.mubr.f32.mxu0 0.0
  %3238 = vmatmul.mubr.f32.gmra.mrb[0].mxu0 %v3115
  %v3239 = vpop.f32.mrb[0].mxu0
  %v3240 = vadd.f32 0.0, %v3239
  %v3241 = vpop.f32.mrb[0].mxu0
  %3242 = vmatprep.mubr.f32.mxu0 0.0
  %3243 = vmatmul.mubr.f32.gmra.mrb[0].mxu0 %v3118
  %v3244 = vpop.f32.mrb[0].mxu0
  %v3245 = vadd.f32 0.0, %v3244
  %v3246 = vpop.f32.mrb[0].mxu0
  %3247 = vmatprep.mubr.f32.mxu0 0.0
  %3248 = vmatmul.mubr.f32.gmra.mrb[0].mxu0 %v3121
  %v3249 = vpop.f32.mrb[0].mxu0
  %v3250 = vadd.f32 0.0, %v3249
  %v3251 = vpop.f32.mrb[0].mxu0
  %3252 = vmatprep.mubr.f32.mxu0 0.0
  %3253 = vmatmul.mubr.f32.gmra.mrb[0].mxu0 %v3124
  %v3254 = vpop.f32.mrb[0].mxu0
  %v3255 = vadd.f32 0.0, %v3254
  %v3256 = vpop.f32.mrb[0].mxu0
  %3257 = vmatprep.mubr.f32.mxu0 0.0
  %3258 = vmatmul.mubr.f32.gmra.mrb[0].mxu0 %v3127
  %v3259 = vpop.f32.mrb[0].mxu0
  %v3260 = vadd.f32 0.0, %v3259
  %v3261 = vpop.f32.mrb[0].mxu0
  %3262 = vmatprep.mubr.f32.mxu0 0.0
  %3263 = vmatmul.mubr.f32.gmra.mrb[0].mxu0 %v3130
  %v3264 = vpop.f32.mrb[0].mxu0
  %v3265 = vadd.f32 0.0, %v3264
  %v3266 = vpop.f32.mrb[0].mxu0
  %3267 = vmatprep.mubr.f32.mxu0 0.0
  %3268 = vmatmul.mubr.f32.gmra.mrb[0].mxu0 %v3133
  %v3269 = vpop.f32.mrb[0].mxu0
  %v3270 = vadd.f32 0.0, %v3269
  %v3271 = vpop.f32.mrb[0].mxu0
  %3272 = vmatprep.mubr.f32.mxu0 0.0
  %3273 = vmatmul.mubr.f32.gmra.mrb[0].mxu0 %v3136
  %v3274 = vpop.f32.mrb[0].mxu0
  %v3275 = vadd.f32 0.0, %v3274
  %v3276 = vpop.f32.mrb[0].mxu0
  %3277 = vmatprep.mubr.f32.mxu0 0.0
  %3278 = vmatmul.mubr.f32.gmra.mrb[0].mxu0 %v3139
  %v3279 = vpop.f32.mrb[0].mxu0
  %v3280 = vadd.f32 0.0, %v3279
  %v3281 = vpop.f32.mrb[0].mxu0
  %3282 = vmatprep.mubr.f32.mxu0 0.0
  %3283 = vmatmul.mubr.f32.gmra.mrb[0].mxu0 %v3142
  %v3284 = vpop.f32.mrb[0].mxu0
  %v3285 = vadd.f32 0.0, %v3284
  %v3286 = vpop.f32.mrb[0].mxu0
  %3287 = vmatprep.mubr.f32.mxu0 0.0
  %3288 = vmatmul.mubr.f32.gmra.mrb[0].mxu0 %v3145
  %v3289 = vpop.f32.mrb[0].mxu0
  %v3290 = vadd.f32 0.0, %v3289
  %v3291 = vpop.f32.mrb[0].mxu0
  %3292 = vmatprep.mubr.f32.mxu0 0.0
  %3293 = vmatmul.mubr.f32.gmra.mrb[0].mxu0 %v3148
  %v3294 = vpop.f32.mrb[0].mxu0
  %v3295 = vadd.f32 0.0, %v3294
  %v3296 = vpop.f32.mrb[0].mxu0
  %3297 = vmatprep.mubr.f32.mxu0 0.0
  %3298 = vmatmul.mubr.f32.gmra.mrb[0].mxu0 %v3151
  %v3299 = vpop.f32.mrb[0].mxu0
  %v3300 = vadd.f32 0.0, %v3299
  %v3301 = vpop.f32.mrb[0].mxu0
  %3302 = vdwg.mxu0
  %v3303 = vadd.f32 %v3059, %v3220
  %v3304 = vadd.f32 %v3060, %v3225
  %v3305 = vadd.f32 %v3061, %v3230
  %v3306 = vadd.f32 %v3062, %v3235
  %v3307 = vadd.f32 %v3063, %v3240
  %v3308 = vadd.f32 %v3064, %v3245
  %v3309 = vadd.f32 %v3065, %v3250
  %v3310 = vadd.f32 %v3066, %v3255
  %v3311 = vadd.f32 %v3067, %v3260
  %v3312 = vadd.f32 %v3068, %v3265
  %v3313 = vadd.f32 %v3069, %v3270
  %v3314 = vadd.f32 %v3070, %v3275
  %v3315 = vadd.f32 %v3071, %v3280
  %v3316 = vadd.f32 %v3072, %v3285
  %v3317 = vadd.f32 %v3073, %v3290
  %v3318 = vadd.f32 %v3074, %v3295
  %v3319 = vadd.f32 %v3075, %v3300
  %v3320 = vld [vmem:[%s6] sm:$0x1]
  %v3322 = vlaneseq
  %v3323 = vshrl.u32 %v3322, 7
  %v3324 = vsub.s32 0, %v3323
  %v3325 = vrot.slane %v3320, %v3324
  %v3327 = vadd.f32 %v3303, %v3325
  %v3328 = vadd.f32 %v3304, %v3325
  %v3329 = vadd.f32 %v3305, %v3325
  %v3330 = vadd.f32 %v3306, %v3325
  %v3331 = vadd.f32 %v3307, %v3325
  %v3332 = vadd.f32 %v3308, %v3325
  %v3333 = vadd.f32 %v3309, %v3325
  %v3334 = vadd.f32 %v3310, %v3325
  %v3335 = vadd.f32 %v3311, %v3325
  %v3336 = vadd.f32 %v3312, %v3325
  %v3337 = vadd.f32 %v3313, %v3325
  %v3338 = vadd.f32 %v3314, %v3325
  %v3339 = vadd.f32 %v3315, %v3325
  %v3340 = vadd.f32 %v3316, %v3325
  %v3341 = vadd.f32 %v3317, %v3325
  %v3342 = vadd.f32 %v3318, %v3325
  %v3343 = vadd.f32 %v3319, %v3325
  %v3344 = vmax.f32 %v3327, 0.0
  %v3345 = vmax.f32 %v3328, 0.0
  %v3346 = vmax.f32 %v3329, 0.0
  %v3347 = vmax.f32 %v3330, 0.0
  %v3348 = vmax.f32 %v3331, 0.0
  %v3349 = vmax.f32 %v3332, 0.0
  %v3350 = vmax.f32 %v3333, 0.0
  %v3351 = vmax.f32 %v3334, 0.0
  %v3352 = vmax.f32 %v3335, 0.0
  %v3353 = vmax.f32 %v3336, 0.0
  %v3354 = vmax.f32 %v3337, 0.0
  %v3355 = vmax.f32 %v3338, 0.0
  %v3356 = vmax.f32 %v3339, 0.0
  %v3357 = vmax.f32 %v3340, 0.0
  %v3358 = vmax.f32 %v3341, 0.0
  %v3359 = vmax.f32 %v3342, 0.0
  %v3360 = vmax.f32 %v3343, 0.0
  %3361 = vst.msk [vmem:[#allocation4] sm:$0xff] %vm2357, %v3344
  %3362 = vst.msk [vmem:[#allocation4 + $0x8] sm:$0xff] %vm2357, %v3345
  %3363 = vst.msk [vmem:[#allocation4 + $0x10] sm:$0xff] %vm2357, %v3346
  %3364 = vst.msk [vmem:[#allocation4 + $0x18] sm:$0xff] %vm2357, %v3347
  %3365 = vst.msk [vmem:[#allocation4 + $0x20] sm:$0xff] %vm2357, %v3348
  %3366 = vst.msk [vmem:[#allocation4 + $0x28] sm:$0xff] %vm2357, %v3349
  %3367 = vst.msk [vmem:[#allocation4 + $0x30] sm:$0xff] %vm2357, %v3350
  %3368 = vst.msk [vmem:[#allocation4 + $0x38] sm:$0xff] %vm2357, %v3351
  %3369 = vst.msk [vmem:[#allocation4 + $0x40] sm:$0xff] %vm2357, %v3352
  %3370 = vst.msk [vmem:[#allocation4 + $0x48] sm:$0xff] %vm2357, %v3353
  %3371 = vst.msk [vmem:[#allocation4 + $0x50] sm:$0xff] %vm2357, %v3354
  %3372 = vst.msk [vmem:[#allocation4 + $0x58] sm:$0xff] %vm2357, %v3355
  %3373 = vst.msk [vmem:[#allocation4 + $0x60] sm:$0xff] %vm2357, %v3356
  %3374 = vst.msk [vmem:[#allocation4 + $0x68] sm:$0xff] %vm2357, %v3357
  %3375 = vst.msk [vmem:[#allocation4 + $0x70] sm:$0xff] %vm2357, %v3358
  %3376 = vst.msk [vmem:[#allocation4 + $0x78] sm:$0xff] %vm2357, %v3359
  %vm3377 = vcmask 521216
  %3378 = vst.msk [vmem:[#allocation4 + $0x80] sm:$0x3f] %vm3377, %v3360
  %v3379 = vld [vmem:[#allocation4] sm:$0x3]
  %v3380 = vld [vmem:[%s7] sm:$0xff]
  %v3381 = vld [vmem:[%s7 + $0x8] sm:$0xff]
  %v3382 = vld [vmem:[%s7 + $0x10] sm:$0xff]
  %v3383 = vld [vmem:[%s7 + $0x18] sm:$0xff]
  %v3384 = vld [vmem:[%s7 + $0x20] sm:$0xff]
  %v3385 = vld [vmem:[%s7 + $0x28] sm:$0xff]
  %v3386 = vld [vmem:[%s7 + $0x30] sm:$0xff]
  %v3387 = vld [vmem:[%s7 + $0x38] sm:$0xff]
  %v3388 = vld [vmem:[#allocation4 + $0x2] sm:$0x3]
  %v3389 = vld [vmem:[%s7 + $0x40] sm:$0xff]
  %v3390 = vld [vmem:[%s7 + $0x48] sm:$0xff]
  %v3391 = vld [vmem:[%s7 + $0x50] sm:$0xff]
  %v3392 = vld [vmem:[%s7 + $0x58] sm:$0xff]
  %v3393 = vld [vmem:[%s7 + $0x60] sm:$0xff]
  %v3394 = vld [vmem:[%s7 + $0x68] sm:$0xff]
  %v3395 = vld [vmem:[%s7 + $0x70] sm:$0xff]
  %v3396 = vld [vmem:[%s7 + $0x78] sm:$0xff]
  %v3398 = vsel %vm2357, %v3388, 0
  %3400 = vmatprep.subr.mxu0 0.0
  %3401 = vmatpush1.msra.mxu0 %v3389
  %3402 = vmatprep.subr.mxu0 0.0
  %3403 = vmatpush1.msra.mxu0 %v3390
  %3404 = vmatprep.subr.mxu0 0.0
  %3405 = vmatpush1.msra.mxu0 %v3391
  %3406 = vmatprep.subr.mxu0 0.0
  %3407 = vmatpush1.msra.mxu0 %v3392
  %3408 = vmatprep.subr.mxu0 0.0
  %3409 = vmatpush1.msra.mxu0 %v3393
  %3410 = vmatprep.subr.mxu0 0.0
  %3411 = vmatpush1.msra.mxu0 %v3394
  %3412 = vmatprep.subr.mxu0 0.0
  %3413 = vmatpush1.msra.mxu0 %v3395
  %3414 = vmatprep.subr.mxu0 0.0
  %3415 = vmatpush1.msra.mxu0 %v3396
  %3416 = vmatprep.subr.mxu0 0.0
  %3417 = vmatpush1.msra.mxu0 0.0
  %3418 = vmatprep.subr.mxu0 0.0
  %3419 = vmatpush1.msra.mxu0 0.0
  %3420 = vmatprep.subr.mxu0 0.0
  %3421 = vmatpush1.msra.mxu0 0.0
  %3422 = vmatprep.subr.mxu0 0.0
  %3423 = vmatpush1.msra.mxu0 0.0
  %3424 = vmatprep.subr.mxu0 0.0
  %3425 = vmatpush1.msra.mxu0 0.0
  %3426 = vmatprep.subr.mxu0 0.0
  %3427 = vmatpush1.msra.mxu0 0.0
  %3428 = vmatprep.subr.mxu0 0.0
  %3429 = vmatpush1.msra.mxu0 0.0
  %3430 = vmatprep.subr.mxu0 0.0
  %3431 = vmatpush1.msra.mxu0 0.0
  %3432 = vmatprep.subr.mxu0 0.0
  %3433 = vmatpush1.msra.mxu0 0.0
  %3434 = vmatprep.subr.mxu0 0.0
  %3435 = vmatpush1.msra.mxu0 0.0
  %3436 = vmatprep.subr.mxu0 0.0
  %3437 = vmatpush1.msra.mxu0 0.0
  %3438 = vmatprep.subr.mxu0 0.0
  %3439 = vmatpush1.msra.mxu0 0.0
  %3440 = vmatprep.subr.mxu0 0.0
  %3441 = vmatpush1.msra.mxu0 0.0
  %3442 = vmatprep.subr.mxu0 0.0
  %3443 = vmatpush1.msra.mxu0 0.0
  %3444 = vmatprep.subr.mxu0 0.0
  %3445 = vmatpush1.msra.mxu0 0.0
  %3446 = vmatprep.subr.mxu0 0.0
  %3447 = vmatpush1.msra.mxu0 0.0
  %3448 = vmatprep.subr.mxu0 0.0
  %3449 = vmatpush1.msra.mxu0 0.0
  %3450 = vmatprep.subr.mxu0 0.0
  %3451 = vmatpush1.msra.mxu0 0.0
  %3452 = vmatprep.subr.mxu0 0.0
  %3453 = vmatpush1.msra.mxu0 0.0
  %3454 = vmatprep.subr.mxu0 0.0
  %3455 = vmatpush1.msra.mxu0 0.0
  %3456 = vmatprep.subr.mxu0 0.0
  %3457 = vmatpush1.msra.mxu0 0.0
  %3458 = vmatprep.subr.mxu0 0.0
  %3459 = vmatpush1.msra.mxu0 0.0
  %3460 = vmatprep.subr.mxu0 0.0
  %3461 = vmatpush1.msra.mxu0 0.0
  %3462 = vmatprep.subr.mxu0 0.0
  %3463 = vmatpush1.msra.mxu0 0.0
  %3464 = vmatprep.mubr.f32.mxu0 0.0
  %3465 = vmatmul.mubr.f32.gmra.mrb[0].mxu0 %v3398
  %v3466 = vpop.f32.mrb[0].mxu0
  %v3467 = vadd.f32 0.0, %v3466
  %v3468 = vpop.f32.mrb[0].mxu0
  %3469 = vdwg.mxu0
  %v3471 = vsel %vm2357, %v3379, 0
  %3473 = vmatprep.subr.mxu0 0.0
  %3474 = vmatpush1.msra.mxu0 %v3380
  %3475 = vmatprep.subr.mxu0 0.0
  %3476 = vmatpush1.msra.mxu0 %v3381
  %3477 = vmatprep.subr.mxu0 0.0
  %3478 = vmatpush1.msra.mxu0 %v3382
  %3479 = vmatprep.subr.mxu0 0.0
  %3480 = vmatpush1.msra.mxu0 %v3383
  %3481 = vmatprep.subr.mxu0 0.0
  %3482 = vmatpush1.msra.mxu0 %v3384
  %3483 = vmatprep.subr.mxu0 0.0
  %3484 = vmatpush1.msra.mxu0 %v3385
  %3485 = vmatprep.subr.mxu0 0.0
  %3486 = vmatpush1.msra.mxu0 %v3386
  %3487 = vmatprep.subr.mxu0 0.0
  %3488 = vmatpush1.msra.mxu0 %v3387
  %3489 = vmatprep.subr.mxu0 0.0
  %3490 = vmatpush1.msra.mxu0 0.0
  %3491 = vmatprep.subr.mxu0 0.0
  %3492 = vmatpush1.msra.mxu0 0.0
  %3493 = vmatprep.subr.mxu0 0.0
  %3494 = vmatpush1.msra.mxu0 0.0
  %3495 = vmatprep.subr.mxu0 0.0
  %3496 = vmatpush1.msra.mxu0 0.0
  %3497 = vmatprep.subr.mxu0 0.0
  %3498 = vmatpush1.msra.mxu0 0.0
  %3499 = vmatprep.subr.mxu0 0.0
  %3500 = vmatpush1.msra.mxu0 0.0
  %3501 = vmatprep.subr.mxu0 0.0
  %3502 = vmatpush1.msra.mxu0 0.0
  %3503 = vmatprep.subr.mxu0 0.0
  %3504 = vmatpush1.msra.mxu0 0.0
  %3505 = vmatprep.subr.mxu0 0.0
  %3506 = vmatpush1.msra.mxu0 0.0
  %3507 = vmatprep.subr.mxu0 0.0
  %3508 = vmatpush1.msra.mxu0 0.0
  %3509 = vmatprep.subr.mxu0 0.0
  %3510 = vmatpush1.msra.mxu0 0.0
  %3511 = vmatprep.subr.mxu0 0.0
  %3512 = vmatpush1.msra.mxu0 0.0
  %3513 = vmatprep.subr.mxu0 0.0
  %3514 = vmatpush1.msra.mxu0 0.0
  %3515 = vmatprep.subr.mxu0 0.0
  %3516 = vmatpush1.msra.mxu0 0.0
  %3517 = vmatprep.subr.mxu0 0.0
  %3518 = vmatpush1.msra.mxu0 0.0
  %3519 = vmatprep.subr.mxu0 0.0
  %3520 = vmatpush1.msra.mxu0 0.0
  %3521 = vmatprep.subr.mxu0 0.0
  %3522 = vmatpush1.msra.mxu0 0.0
  %3523 = vmatprep.subr.mxu0 0.0
  %3524 = vmatpush1.msra.mxu0 0.0
  %3525 = vmatprep.subr.mxu0 0.0
  %3526 = vmatpush1.msra.mxu0 0.0
  %3527 = vmatprep.subr.mxu0 0.0
  %3528 = vmatpush1.msra.mxu0 0.0
  %3529 = vmatprep.subr.mxu0 0.0
  %3530 = vmatpush1.msra.mxu0 0.0
  %3531 = vmatprep.subr.mxu0 0.0
  %3532 = vmatpush1.msra.mxu0 0.0
  %3533 = vmatprep.subr.mxu0 0.0
  %3534 = vmatpush1.msra.mxu0 0.0
  %3535 = vmatprep.subr.mxu0 0.0
  %3536 = vmatpush1.msra.mxu0 0.0
  %3537 = vmatprep.mubr.f32.mxu0 0.0
  %3538 = vmatmul.mubr.f32.gmra.mrb[0].mxu0 %v3471
  %v3539 = vpop.f32.mrb[0].mxu0
  %v3540 = vadd.f32 %v3467, %v3539
  %v3541 = vpop.f32.mrb[0].mxu0
  %3542 = vdwg.mxu0
  %v3543 = vld [vmem:[#allocation4 + $0x4] sm:$0x3]
  %v3544 = vld [vmem:[%s7 + $0x80] sm:$0xff]
  %v3545 = vld [vmem:[%s7 + $0x88] sm:$0xff]
  %v3546 = vld [vmem:[%s7 + $0x90] sm:$0xff]
  %v3547 = vld [vmem:[%s7 + $0x98] sm:$0xff]
  %v3548 = vld [vmem:[%s7 + $0xa0] sm:$0xff]
  %v3549 = vld [vmem:[%s7 + $0xa8] sm:$0xff]
  %v3550 = vld [vmem:[%s7 + $0xb0] sm:$0xff]
  %v3551 = vld [vmem:[%s7 + $0xb8] sm:$0xff]
  %v3553 = vsel %vm2357, %v3543, 0
  %3555 = vmatprep.subr.mxu0 0.0
  %3556 = vmatpush1.msra.mxu0 %v3544
  %3557 = vmatprep.subr.mxu0 0.0
  %3558 = vmatpush1.msra.mxu0 %v3545
  %3559 = vmatprep.subr.mxu0 0.0
  %3560 = vmatpush1.msra.mxu0 %v3546
  %3561 = vmatprep.subr.mxu0 0.0
  %3562 = vmatpush1.msra.mxu0 %v3547
  %3563 = vmatprep.subr.mxu0 0.0
  %3564 = vmatpush1.msra.mxu0 %v3548
  %3565 = vmatprep.subr.mxu0 0.0
  %3566 = vmatpush1.msra.mxu0 %v3549
  %3567 = vmatprep.subr.mxu0 0.0
  %3568 = vmatpush1.msra.mxu0 %v3550
  %3569 = vmatprep.subr.mxu0 0.0
  %3570 = vmatpush1.msra.mxu0 %v3551
  %3571 = vmatprep.subr.mxu0 0.0
  %3572 = vmatpush1.msra.mxu0 0.0
  %3573 = vmatprep.subr.mxu0 0.0
  %3574 = vmatpush1.msra.mxu0 0.0
  %3575 = vmatprep.subr.mxu0 0.0
  %3576 = vmatpush1.msra.mxu0 0.0
  %3577 = vmatprep.subr.mxu0 0.0
  %3578 = vmatpush1.msra.mxu0 0.0
  %3579 = vmatprep.subr.mxu0 0.0
  %3580 = vmatpush1.msra.mxu0 0.0
  %3581 = vmatprep.subr.mxu0 0.0
  %3582 = vmatpush1.msra.mxu0 0.0
  %3583 = vmatprep.subr.mxu0 0.0
  %3584 = vmatpush1.msra.mxu0 0.0
  %3585 = vmatprep.subr.mxu0 0.0
  %3586 = vmatpush1.msra.mxu0 0.0
  %3587 = vmatprep.subr.mxu0 0.0
  %3588 = vmatpush1.msra.mxu0 0.0
  %3589 = vmatprep.subr.mxu0 0.0
  %3590 = vmatpush1.msra.mxu0 0.0
  %3591 = vmatprep.subr.mxu0 0.0
  %3592 = vmatpush1.msra.mxu0 0.0
  %3593 = vmatprep.subr.mxu0 0.0
  %3594 = vmatpush1.msra.mxu0 0.0
  %3595 = vmatprep.subr.mxu0 0.0
  %3596 = vmatpush1.msra.mxu0 0.0
  %3597 = vmatprep.subr.mxu0 0.0
  %3598 = vmatpush1.msra.mxu0 0.0
  %3599 = vmatprep.subr.mxu0 0.0
  %3600 = vmatpush1.msra.mxu0 0.0
  %3601 = vmatprep.subr.mxu0 0.0
  %3602 = vmatpush1.msra.mxu0 0.0
  %3603 = vmatprep.subr.mxu0 0.0
  %3604 = vmatpush1.msra.mxu0 0.0
  %3605 = vmatprep.subr.mxu0 0.0
  %3606 = vmatpush1.msra.mxu0 0.0
  %3607 = vmatprep.subr.mxu0 0.0
  %3608 = vmatpush1.msra.mxu0 0.0
  %3609 = vmatprep.subr.mxu0 0.0
  %3610 = vmatpush1.msra.mxu0 0.0
  %3611 = vmatprep.subr.mxu0 0.0
  %3612 = vmatpush1.msra.mxu0 0.0
  %3613 = vmatprep.subr.mxu0 0.0
  %3614 = vmatpush1.msra.mxu0 0.0
  %3615 = vmatprep.subr.mxu0 0.0
  %3616 = vmatpush1.msra.mxu0 0.0
  %3617 = vmatprep.subr.mxu0 0.0
  %3618 = vmatpush1.msra.mxu0 0.0
  %3619 = vmatprep.mubr.f32.mxu0 0.0
  %3620 = vmatmul.mubr.f32.gmra.mrb[0].mxu0 %v3553
  %v3621 = vpop.f32.mrb[0].mxu0
  %v3622 = vadd.f32 0.0, %v3621
  %v3623 = vpop.f32.mrb[0].mxu0
  %3624 = vdwg.mxu0
  %v3625 = vadd.f32 %v3540, %v3622
  %v3626 = vld [vmem:[#allocation4 + $0x6] sm:$0x3]
  %v3627 = vld [vmem:[%s7 + $0xc0] sm:$0xff]
  %v3628 = vld [vmem:[%s7 + $0xc8] sm:$0xff]
  %v3629 = vld [vmem:[%s7 + $0xd0] sm:$0xff]
  %v3630 = vld [vmem:[%s7 + $0xd8] sm:$0xff]
  %v3631 = vld [vmem:[%s7 + $0xe0] sm:$0xff]
  %v3632 = vld [vmem:[%s7 + $0xe8] sm:$0xff]
  %v3633 = vld [vmem:[%s7 + $0xf0] sm:$0xff]
  %v3634 = vld [vmem:[%s7 + $0xf8] sm:$0xff]
  %v3636 = vsel %vm2357, %v3626, 0
  %3638 = vmatprep.subr.mxu0 0.0
  %3639 = vmatpush1.msra.mxu0 %v3627
  %3640 = vmatprep.subr.mxu0 0.0
  %3641 = vmatpush1.msra.mxu0 %v3628
  %3642 = vmatprep.subr.mxu0 0.0
  %3643 = vmatpush1.msra.mxu0 %v3629
  %3644 = vmatprep.subr.mxu0 0.0
  %3645 = vmatpush1.msra.mxu0 %v3630
  %3646 = vmatprep.subr.mxu0 0.0
  %3647 = vmatpush1.msra.mxu0 %v3631
  %3648 = vmatprep.subr.mxu0 0.0
  %3649 = vmatpush1.msra.mxu0 %v3632
  %3650 = vmatprep.subr.mxu0 0.0
  %3651 = vmatpush1.msra.mxu0 %v3633
  %3652 = vmatprep.subr.mxu0 0.0
  %3653 = vmatpush1.msra.mxu0 %v3634
  %3654 = vmatprep.subr.mxu0 0.0
  %3655 = vmatpush1.msra.mxu0 0.0
  %3656 = vmatprep.subr.mxu0 0.0
  %3657 = vmatpush1.msra.mxu0 0.0
  %3658 = vmatprep.subr.mxu0 0.0
  %3659 = vmatpush1.msra.mxu0 0.0
  %3660 = vmatprep.subr.mxu0 0.0
  %3661 = vmatpush1.msra.mxu0 0.0
  %3662 = vmatprep.subr.mxu0 0.0
  %3663 = vmatpush1.msra.mxu0 0.0
  %3664 = vmatprep.subr.mxu0 0.0
  %3665 = vmatpush1.msra.mxu0 0.0
  %3666 = vmatprep.subr.mxu0 0.0
  %3667 = vmatpush1.msra.mxu0 0.0
  %3668 = vmatprep.subr.mxu0 0.0
  %3669 = vmatpush1.msra.mxu0 0.0
  %3670 = vmatprep.subr.mxu0 0.0
  %3671 = vmatpush1.msra.mxu0 0.0
  %3672 = vmatprep.subr.mxu0 0.0
  %3673 = vmatpush1.msra.mxu0 0.0
  %3674 = vmatprep.subr.mxu0 0.0
  %3675 = vmatpush1.msra.mxu0 0.0
  %3676 = vmatprep.subr.mxu0 0.0
  %3677 = vmatpush1.msra.mxu0 0.0
  %3678 = vmatprep.subr.mxu0 0.0
  %3679 = vmatpush1.msra.mxu0 0.0
  %3680 = vmatprep.subr.mxu0 0.0
  %3681 = vmatpush1.msra.mxu0 0.0
  %3682 = vmatprep.subr.mxu0 0.0
  %3683 = vmatpush1.msra.mxu0 0.0
  %3684 = vmatprep.subr.mxu0 0.0
  %3685 = vmatpush1.msra.mxu0 0.0
  %3686 = vmatprep.subr.mxu0 0.0
  %3687 = vmatpush1.msra.mxu0 0.0
  %3688 = vmatprep.subr.mxu0 0.0
  %3689 = vmatpush1.msra.mxu0 0.0
  %3690 = vmatprep.subr.mxu0 0.0
  %3691 = vmatpush1.msra.mxu0 0.0
  %3692 = vmatprep.subr.mxu0 0.0
  %3693 = vmatpush1.msra.mxu0 0.0
  %3694 = vmatprep.subr.mxu0 0.0
  %3695 = vmatpush1.msra.mxu0 0.0
  %3696 = vmatprep.subr.mxu0 0.0
  %3697 = vmatpush1.msra.mxu0 0.0
  %3698 = vmatprep.subr.mxu0 0.0
  %3699 = vmatpush1.msra.mxu0 0.0
  %3700 = vmatprep.subr.mxu0 0.0
  %3701 = vmatpush1.msra.mxu0 0.0
  %3702 = vmatprep.mubr.f32.mxu0 0.0
  %3703 = vmatmul.mubr.f32.gmra.mrb[0].mxu0 %v3636
  %v3704 = vpop.f32.mrb[0].mxu0
  %v3705 = vadd.f32 0.0, %v3704
  %v3706 = vpop.f32.mrb[0].mxu0
  %3707 = vdwg.mxu0
  %v3708 = vadd.f32 %v3625, %v3705
  %v3709 = vld [vmem:[#allocation4 + $0x8] sm:$0x3]
  %v3710 = vld [vmem:[%s7 + $0x100] sm:$0xff]
  %v3711 = vld [vmem:[%s7 + $0x108] sm:$0xff]
  %v3712 = vld [vmem:[%s7 + $0x110] sm:$0xff]
  %v3713 = vld [vmem:[%s7 + $0x118] sm:$0xff]
  %v3714 = vld [vmem:[%s7 + $0x120] sm:$0xff]
  %v3715 = vld [vmem:[%s7 + $0x128] sm:$0xff]
  %v3716 = vld [vmem:[%s7 + $0x130] sm:$0xff]
  %v3717 = vld [vmem:[%s7 + $0x138] sm:$0xff]
  %v3719 = vsel %vm2357, %v3709, 0
  %3721 = vmatprep.subr.mxu0 0.0
  %3722 = vmatpush1.msra.mxu0 %v3710
  %3723 = vmatprep.subr.mxu0 0.0
  %3724 = vmatpush1.msra.mxu0 %v3711
  %3725 = vmatprep.subr.mxu0 0.0
  %3726 = vmatpush1.msra.mxu0 %v3712
  %3727 = vmatprep.subr.mxu0 0.0
  %3728 = vmatpush1.msra.mxu0 %v3713
  %3729 = vmatprep.subr.mxu0 0.0
  %3730 = vmatpush1.msra.mxu0 %v3714
  %3731 = vmatprep.subr.mxu0 0.0
  %3732 = vmatpush1.msra.mxu0 %v3715
  %3733 = vmatprep.subr.mxu0 0.0
  %3734 = vmatpush1.msra.mxu0 %v3716
  %3735 = vmatprep.subr.mxu0 0.0
  %3736 = vmatpush1.msra.mxu0 %v3717
  %3737 = vmatprep.subr.mxu0 0.0
  %3738 = vmatpush1.msra.mxu0 0.0
  %3739 = vmatprep.subr.mxu0 0.0
  %3740 = vmatpush1.msra.mxu0 0.0
  %3741 = vmatprep.subr.mxu0 0.0
  %3742 = vmatpush1.msra.mxu0 0.0
  %3743 = vmatprep.subr.mxu0 0.0
  %3744 = vmatpush1.msra.mxu0 0.0
  %3745 = vmatprep.subr.mxu0 0.0
  %3746 = vmatpush1.msra.mxu0 0.0
  %3747 = vmatprep.subr.mxu0 0.0
  %3748 = vmatpush1.msra.mxu0 0.0
  %3749 = vmatprep.subr.mxu0 0.0
  %3750 = vmatpush1.msra.mxu0 0.0
  %3751 = vmatprep.subr.mxu0 0.0
  %3752 = vmatpush1.msra.mxu0 0.0
  %3753 = vmatprep.subr.mxu0 0.0
  %3754 = vmatpush1.msra.mxu0 0.0
  %3755 = vmatprep.subr.mxu0 0.0
  %3756 = vmatpush1.msra.mxu0 0.0
  %3757 = vmatprep.subr.mxu0 0.0
  %3758 = vmatpush1.msra.mxu0 0.0
  %3759 = vmatprep.subr.mxu0 0.0
  %3760 = vmatpush1.msra.mxu0 0.0
  %3761 = vmatprep.subr.mxu0 0.0
  %3762 = vmatpush1.msra.mxu0 0.0
  %3763 = vmatprep.subr.mxu0 0.0
  %3764 = vmatpush1.msra.mxu0 0.0
  %3765 = vmatprep.subr.mxu0 0.0
  %3766 = vmatpush1.msra.mxu0 0.0
  %3767 = vmatprep.subr.mxu0 0.0
  %3768 = vmatpush1.msra.mxu0 0.0
  %3769 = vmatprep.subr.mxu0 0.0
  %3770 = vmatpush1.msra.mxu0 0.0
  %3771 = vmatprep.subr.mxu0 0.0
  %3772 = vmatpush1.msra.mxu0 0.0
  %3773 = vmatprep.subr.mxu0 0.0
  %3774 = vmatpush1.msra.mxu0 0.0
  %3775 = vmatprep.subr.mxu0 0.0
  %3776 = vmatpush1.msra.mxu0 0.0
  %3777 = vmatprep.subr.mxu0 0.0
  %3778 = vmatpush1.msra.mxu0 0.0
  %3779 = vmatprep.subr.mxu0 0.0
  %3780 = vmatpush1.msra.mxu0 0.0
  %3781 = vmatprep.subr.mxu0 0.0
  %3782 = vmatpush1.msra.mxu0 0.0
  %3783 = vmatprep.subr.mxu0 0.0
  %3784 = vmatpush1.msra.mxu0 0.0
  %3785 = vmatprep.mubr.f32.mxu0 0.0
  %3786 = vmatmul.mubr.f32.gmra.mrb[0].mxu0 %v3719
  %v3787 = vpop.f32.mrb[0].mxu0
  %v3788 = vadd.f32 0.0, %v3787
  %v3789 = vpop.f32.mrb[0].mxu0
  %3790 = vdwg.mxu0
  %v3791 = vadd.f32 %v3708, %v3788
  %v3792 = vld [vmem:[#allocation4 + $0xa] sm:$0x3]
  %v3793 = vld [vmem:[%s7 + $0x140] sm:$0xff]
  %v3794 = vld [vmem:[%s7 + $0x148] sm:$0xff]
  %v3795 = vld [vmem:[%s7 + $0x150] sm:$0xff]
  %v3796 = vld [vmem:[%s7 + $0x158] sm:$0xff]
  %v3797 = vld [vmem:[%s7 + $0x160] sm:$0xff]
  %v3798 = vld [vmem:[%s7 + $0x168] sm:$0xff]
  %v3799 = vld [vmem:[%s7 + $0x170] sm:$0xff]
  %v3800 = vld [vmem:[%s7 + $0x178] sm:$0xff]
  %v3802 = vsel %vm2357, %v3792, 0
  %3804 = vmatprep.subr.mxu0 0.0
  %3805 = vmatpush1.msra.mxu0 %v3793
  %3806 = vmatprep.subr.mxu0 0.0
  %3807 = vmatpush1.msra.mxu0 %v3794
  %3808 = vmatprep.subr.mxu0 0.0
  %3809 = vmatpush1.msra.mxu0 %v3795
  %3810 = vmatprep.subr.mxu0 0.0
  %3811 = vmatpush1.msra.mxu0 %v3796
  %3812 = vmatprep.subr.mxu0 0.0
  %3813 = vmatpush1.msra.mxu0 %v3797
  %3814 = vmatprep.subr.mxu0 0.0
  %3815 = vmatpush1.msra.mxu0 %v3798
  %3816 = vmatprep.subr.mxu0 0.0
  %3817 = vmatpush1.msra.mxu0 %v3799
  %3818 = vmatprep.subr.mxu0 0.0
  %3819 = vmatpush1.msra.mxu0 %v3800
  %3820 = vmatprep.subr.mxu0 0.0
  %3821 = vmatpush1.msra.mxu0 0.0
  %3822 = vmatprep.subr.mxu0 0.0
  %3823 = vmatpush1.msra.mxu0 0.0
  %3824 = vmatprep.subr.mxu0 0.0
  %3825 = vmatpush1.msra.mxu0 0.0
  %3826 = vmatprep.subr.mxu0 0.0
  %3827 = vmatpush1.msra.mxu0 0.0
  %3828 = vmatprep.subr.mxu0 0.0
  %3829 = vmatpush1.msra.mxu0 0.0
  %3830 = vmatprep.subr.mxu0 0.0
  %3831 = vmatpush1.msra.mxu0 0.0
  %3832 = vmatprep.subr.mxu0 0.0
  %3833 = vmatpush1.msra.mxu0 0.0
  %3834 = vmatprep.subr.mxu0 0.0
  %3835 = vmatpush1.msra.mxu0 0.0
  %3836 = vmatprep.subr.mxu0 0.0
  %3837 = vmatpush1.msra.mxu0 0.0
  %3838 = vmatprep.subr.mxu0 0.0
  %3839 = vmatpush1.msra.mxu0 0.0
  %3840 = vmatprep.subr.mxu0 0.0
  %3841 = vmatpush1.msra.mxu0 0.0
  %3842 = vmatprep.subr.mxu0 0.0
  %3843 = vmatpush1.msra.mxu0 0.0
  %3844 = vmatprep.subr.mxu0 0.0
  %3845 = vmatpush1.msra.mxu0 0.0
  %3846 = vmatprep.subr.mxu0 0.0
  %3847 = vmatpush1.msra.mxu0 0.0
  %3848 = vmatprep.subr.mxu0 0.0
  %3849 = vmatpush1.msra.mxu0 0.0
  %3850 = vmatprep.subr.mxu0 0.0
  %3851 = vmatpush1.msra.mxu0 0.0
  %3852 = vmatprep.subr.mxu0 0.0
  %3853 = vmatpush1.msra.mxu0 0.0
  %3854 = vmatprep.subr.mxu0 0.0
  %3855 = vmatpush1.msra.mxu0 0.0
  %3856 = vmatprep.subr.mxu0 0.0
  %3857 = vmatpush1.msra.mxu0 0.0
  %3858 = vmatprep.subr.mxu0 0.0
  %3859 = vmatpush1.msra.mxu0 0.0
  %3860 = vmatprep.subr.mxu0 0.0
  %3861 = vmatpush1.msra.mxu0 0.0
  %3862 = vmatprep.subr.mxu0 0.0
  %3863 = vmatpush1.msra.mxu0 0.0
  %3864 = vmatprep.subr.mxu0 0.0
  %3865 = vmatpush1.msra.mxu0 0.0
  %3866 = vmatprep.subr.mxu0 0.0
  %3867 = vmatpush1.msra.mxu0 0.0
  %3868 = vmatprep.mubr.f32.mxu0 0.0
  %3869 = vmatmul.mubr.f32.gmra.mrb[0].mxu0 %v3802
  %v3870 = vpop.f32.mrb[0].mxu0
  %v3871 = vadd.f32 0.0, %v3870
  %v3872 = vpop.f32.mrb[0].mxu0
  %3873 = vdwg.mxu0
  %v3874 = vadd.f32 %v3791, %v3871
  %v3875 = vld [vmem:[#allocation4 + $0xc] sm:$0x3]
  %v3876 = vld [vmem:[%s7 + $0x180] sm:$0xff]
  %v3877 = vld [vmem:[%s7 + $0x188] sm:$0xff]
  %v3878 = vld [vmem:[%s7 + $0x190] sm:$0xff]
  %v3879 = vld [vmem:[%s7 + $0x198] sm:$0xff]
  %v3880 = vld [vmem:[%s7 + $0x1a0] sm:$0xff]
  %v3881 = vld [vmem:[%s7 + $0x1a8] sm:$0xff]
  %v3882 = vld [vmem:[%s7 + $0x1b0] sm:$0xff]
  %v3883 = vld [vmem:[%s7 + $0x1b8] sm:$0xff]
  %v3885 = vsel %vm2357, %v3875, 0
  %3887 = vmatprep.subr.mxu0 0.0
  %3888 = vmatpush1.msra.mxu0 %v3876
  %3889 = vmatprep.subr.mxu0 0.0
  %3890 = vmatpush1.msra.mxu0 %v3877
  %3891 = vmatprep.subr.mxu0 0.0
  %3892 = vmatpush1.msra.mxu0 %v3878
  %3893 = vmatprep.subr.mxu0 0.0
  %3894 = vmatpush1.msra.mxu0 %v3879
  %3895 = vmatprep.subr.mxu0 0.0
  %3896 = vmatpush1.msra.mxu0 %v3880
  %3897 = vmatprep.subr.mxu0 0.0
  %3898 = vmatpush1.msra.mxu0 %v3881
  %3899 = vmatprep.subr.mxu0 0.0
  %3900 = vmatpush1.msra.mxu0 %v3882
  %3901 = vmatprep.subr.mxu0 0.0
  %3902 = vmatpush1.msra.mxu0 %v3883
  %3903 = vmatprep.subr.mxu0 0.0
  %3904 = vmatpush1.msra.mxu0 0.0
  %3905 = vmatprep.subr.mxu0 0.0
  %3906 = vmatpush1.msra.mxu0 0.0
  %3907 = vmatprep.subr.mxu0 0.0
  %3908 = vmatpush1.msra.mxu0 0.0
  %3909 = vmatprep.subr.mxu0 0.0
  %3910 = vmatpush1.msra.mxu0 0.0
  %3911 = vmatprep.subr.mxu0 0.0
  %3912 = vmatpush1.msra.mxu0 0.0
  %3913 = vmatprep.subr.mxu0 0.0
  %3914 = vmatpush1.msra.mxu0 0.0
  %3915 = vmatprep.subr.mxu0 0.0
  %3916 = vmatpush1.msra.mxu0 0.0
  %3917 = vmatprep.subr.mxu0 0.0
  %3918 = vmatpush1.msra.mxu0 0.0
  %3919 = vmatprep.subr.mxu0 0.0
  %3920 = vmatpush1.msra.mxu0 0.0
  %3921 = vmatprep.subr.mxu0 0.0
  %3922 = vmatpush1.msra.mxu0 0.0
  %3923 = vmatprep.subr.mxu0 0.0
  %3924 = vmatpush1.msra.mxu0 0.0
  %3925 = vmatprep.subr.mxu0 0.0
  %3926 = vmatpush1.msra.mxu0 0.0
  %3927 = vmatprep.subr.mxu0 0.0
  %3928 = vmatpush1.msra.mxu0 0.0
  %3929 = vmatprep.subr.mxu0 0.0
  %3930 = vmatpush1.msra.mxu0 0.0
  %3931 = vmatprep.subr.mxu0 0.0
  %3932 = vmatpush1.msra.mxu0 0.0
  %3933 = vmatprep.subr.mxu0 0.0
  %3934 = vmatpush1.msra.mxu0 0.0
  %3935 = vmatprep.subr.mxu0 0.0
  %3936 = vmatpush1.msra.mxu0 0.0
  %3937 = vmatprep.subr.mxu0 0.0
  %3938 = vmatpush1.msra.mxu0 0.0
  %3939 = vmatprep.subr.mxu0 0.0
  %3940 = vmatpush1.msra.mxu0 0.0
  %3941 = vmatprep.subr.mxu0 0.0
  %3942 = vmatpush1.msra.mxu0 0.0
  %3943 = vmatprep.subr.mxu0 0.0
  %3944 = vmatpush1.msra.mxu0 0.0
  %3945 = vmatprep.subr.mxu0 0.0
  %3946 = vmatpush1.msra.mxu0 0.0
  %3947 = vmatprep.subr.mxu0 0.0
  %3948 = vmatpush1.msra.mxu0 0.0
  %3949 = vmatprep.subr.mxu0 0.0
  %3950 = vmatpush1.msra.mxu0 0.0
  %3951 = vmatprep.mubr.f32.mxu0 0.0
  %3952 = vmatmul.mubr.f32.gmra.mrb[0].mxu0 %v3885
  %v3953 = vpop.f32.mrb[0].mxu0
  %v3954 = vadd.f32 0.0, %v3953
  %v3955 = vpop.f32.mrb[0].mxu0
  %3956 = vdwg.mxu0
  %v3957 = vadd.f32 %v3874, %v3954
  %v3958 = vld [vmem:[#allocation4 + $0x14] sm:$0x3]
  %v3959 = vld [vmem:[%s7 + $0x1c0] sm:$0xff]
  %v3960 = vld [vmem:[%s7 + $0x1c8] sm:$0xff]
  %v3961 = vld [vmem:[%s7 + $0x1d0] sm:$0xff]
  %v3962 = vld [vmem:[%s7 + $0x1d8] sm:$0xff]
  %v3963 = vld [vmem:[%s7 + $0x1e0] sm:$0xff]
  %v3964 = vld [vmem:[%s7 + $0x1e8] sm:$0xff]
  %v3965 = vld [vmem:[%s7 + $0x1f0] sm:$0xff]
  %v3966 = vld [vmem:[%s7 + $0x1f8] sm:$0xff]
  %v3968 = vsel %vm2357, %v3958, 0
  %3970 = vmatprep.subr.mxu0 0.0
  %3971 = vmatpush1.msra.mxu0 %v3959
  %3972 = vmatprep.subr.mxu0 0.0
  %3973 = vmatpush1.msra.mxu0 %v3960
  %3974 = vmatprep.subr.mxu0 0.0
  %3975 = vmatpush1.msra.mxu0 %v3961
  %3976 = vmatprep.subr.mxu0 0.0
  %3977 = vmatpush1.msra.mxu0 %v3962
  %3978 = vmatprep.subr.mxu0 0.0
  %3979 = vmatpush1.msra.mxu0 %v3963
  %3980 = vmatprep.subr.mxu0 0.0
  %3981 = vmatpush1.msra.mxu0 %v3964
  %3982 = vmatprep.subr.mxu0 0.0
  %3983 = vmatpush1.msra.mxu0 %v3965
  %3984 = vmatprep.subr.mxu0 0.0
  %3985 = vmatpush1.msra.mxu0 %v3966
  %3986 = vmatprep.subr.mxu0 0.0
  %3987 = vmatpush1.msra.mxu0 0.0
  %3988 = vmatprep.subr.mxu0 0.0
  %3989 = vmatpush1.msra.mxu0 0.0
  %3990 = vmatprep.subr.mxu0 0.0
  %3991 = vmatpush1.msra.mxu0 0.0
  %3992 = vmatprep.subr.mxu0 0.0
  %3993 = vmatpush1.msra.mxu0 0.0
  %3994 = vmatprep.subr.mxu0 0.0
  %3995 = vmatpush1.msra.mxu0 0.0
  %3996 = vmatprep.subr.mxu0 0.0
  %3997 = vmatpush1.msra.mxu0 0.0
  %3998 = vmatprep.subr.mxu0 0.0
  %3999 = vmatpush1.msra.mxu0 0.0
  %4000 = vmatprep.subr.mxu0 0.0
  %4001 = vmatpush1.msra.mxu0 0.0
  %4002 = vmatprep.subr.mxu0 0.0
  %4003 = vmatpush1.msra.mxu0 0.0
  %4004 = vmatprep.subr.mxu0 0.0
  %4005 = vmatpush1.msra.mxu0 0.0
  %4006 = vmatprep.subr.mxu0 0.0
  %4007 = vmatpush1.msra.mxu0 0.0
  %4008 = vmatprep.subr.mxu0 0.0
  %4009 = vmatpush1.msra.mxu0 0.0
  %4010 = vmatprep.subr.mxu0 0.0
  %4011 = vmatpush1.msra.mxu0 0.0
  %4012 = vmatprep.subr.mxu0 0.0
  %4013 = vmatpush1.msra.mxu0 0.0
  %4014 = vmatprep.subr.mxu0 0.0
  %4015 = vmatpush1.msra.mxu0 0.0
  %4016 = vmatprep.subr.mxu0 0.0
  %4017 = vmatpush1.msra.mxu0 0.0
  %4018 = vmatprep.subr.mxu0 0.0
  %4019 = vmatpush1.msra.mxu0 0.0
  %4020 = vmatprep.subr.mxu0 0.0
  %4021 = vmatpush1.msra.mxu0 0.0
  %4022 = vmatprep.subr.mxu0 0.0
  %4023 = vmatpush1.msra.mxu0 0.0
  %4024 = vmatprep.subr.mxu0 0.0
  %4025 = vmatpush1.msra.mxu0 0.0
  %4026 = vmatprep.subr.mxu0 0.0
  %4027 = vmatpush1.msra.mxu0 0.0
  %4028 = vmatprep.subr.mxu0 0.0
  %4029 = vmatpush1.msra.mxu0 0.0
  %4030 = vmatprep.subr.mxu0 0.0
  %4031 = vmatpush1.msra.mxu0 0.0
  %4032 = vmatprep.subr.mxu0 0.0
  %4033 = vmatpush1.msra.mxu0 0.0
  %4034 = vmatprep.mubr.f32.mxu0 0.0
  %4035 = vmatmul.mubr.f32.gmra.mrb[0].mxu0 %v3968
  %v4036 = vpop.f32.mrb[0].mxu0
  %v4037 = vadd.f32 0.0, %v4036
  %v4038 = vpop.f32.mrb[0].mxu0
  %4039 = vdwg.mxu0
  %v4040 = vadd.f32 %v3957, %v4037
  %v4041 = vld [vmem:[#allocation4 + $0x16] sm:$0x3]
  %v4042 = vld [vmem:[%s7 + $0x200] sm:$0xff]
  %v4043 = vld [vmem:[%s7 + $0x208] sm:$0xff]
  %v4044 = vld [vmem:[%s7 + $0x210] sm:$0xff]
  %v4045 = vld [vmem:[%s7 + $0x218] sm:$0xff]
  %v4046 = vld [vmem:[%s7 + $0x220] sm:$0xff]
  %v4047 = vld [vmem:[%s7 + $0x228] sm:$0xff]
  %v4048 = vld [vmem:[%s7 + $0x230] sm:$0xff]
  %v4049 = vld [vmem:[%s7 + $0x238] sm:$0xff]
  %v4051 = vsel %vm2357, %v4041, 0
  %4053 = vmatprep.subr.mxu0 0.0
  %4054 = vmatpush1.msra.mxu0 %v4042
  %4055 = vmatprep.subr.mxu0 0.0
  %4056 = vmatpush1.msra.mxu0 %v4043
  %4057 = vmatprep.subr.mxu0 0.0
  %4058 = vmatpush1.msra.mxu0 %v4044
  %4059 = vmatprep.subr.mxu0 0.0
  %4060 = vmatpush1.msra.mxu0 %v4045
  %4061 = vmatprep.subr.mxu0 0.0
  %4062 = vmatpush1.msra.mxu0 %v4046
  %4063 = vmatprep.subr.mxu0 0.0
  %4064 = vmatpush1.msra.mxu0 %v4047
  %4065 = vmatprep.subr.mxu0 0.0
  %4066 = vmatpush1.msra.mxu0 %v4048
  %4067 = vmatprep.subr.mxu0 0.0
  %4068 = vmatpush1.msra.mxu0 %v4049
  %4069 = vmatprep.subr.mxu0 0.0
  %4070 = vmatpush1.msra.mxu0 0.0
  %4071 = vmatprep.subr.mxu0 0.0
  %4072 = vmatpush1.msra.mxu0 0.0
  %4073 = vmatprep.subr.mxu0 0.0
  %4074 = vmatpush1.msra.mxu0 0.0
  %4075 = vmatprep.subr.mxu0 0.0
  %4076 = vmatpush1.msra.mxu0 0.0
  %4077 = vmatprep.subr.mxu0 0.0
  %4078 = vmatpush1.msra.mxu0 0.0
  %4079 = vmatprep.subr.mxu0 0.0
  %4080 = vmatpush1.msra.mxu0 0.0
  %4081 = vmatprep.subr.mxu0 0.0
  %4082 = vmatpush1.msra.mxu0 0.0
  %4083 = vmatprep.subr.mxu0 0.0
  %4084 = vmatpush1.msra.mxu0 0.0
  %4085 = vmatprep.subr.mxu0 0.0
  %4086 = vmatpush1.msra.mxu0 0.0
  %4087 = vmatprep.subr.mxu0 0.0
  %4088 = vmatpush1.msra.mxu0 0.0
  %4089 = vmatprep.subr.mxu0 0.0
  %4090 = vmatpush1.msra.mxu0 0.0
  %4091 = vmatprep.subr.mxu0 0.0
  %4092 = vmatpush1.msra.mxu0 0.0
  %4093 = vmatprep.subr.mxu0 0.0
  %4094 = vmatpush1.msra.mxu0 0.0
  %4095 = vmatprep.subr.mxu0 0.0
  %4096 = vmatpush1.msra.mxu0 0.0
  %4097 = vmatprep.subr.mxu0 0.0
  %4098 = vmatpush1.msra.mxu0 0.0
  %4099 = vmatprep.subr.mxu0 0.0
  %4100 = vmatpush1.msra.mxu0 0.0
  %4101 = vmatprep.subr.mxu0 0.0
  %4102 = vmatpush1.msra.mxu0 0.0
  %4103 = vmatprep.subr.mxu0 0.0
  %4104 = vmatpush1.msra.mxu0 0.0
  %4105 = vmatprep.subr.mxu0 0.0
  %4106 = vmatpush1.msra.mxu0 0.0
  %4107 = vmatprep.subr.mxu0 0.0
  %4108 = vmatpush1.msra.mxu0 0.0
  %4109 = vmatprep.subr.mxu0 0.0
  %4110 = vmatpush1.msra.mxu0 0.0
  %4111 = vmatprep.subr.mxu0 0.0
  %4112 = vmatpush1.msra.mxu0 0.0
  %4113 = vmatprep.subr.mxu0 0.0
  %4114 = vmatpush1.msra.mxu0 0.0
  %4115 = vmatprep.subr.mxu0 0.0
  %4116 = vmatpush1.msra.mxu0 0.0
  %4117 = vmatprep.mubr.f32.mxu0 0.0
  %4118 = vmatmul.mubr.f32.gmra.mrb[0].mxu0 %v4051
  %v4119 = vpop.f32.mrb[0].mxu0
  %v4120 = vadd.f32 0.0, %v4119
  %v4121 = vpop.f32.mrb[0].mxu0
  %4122 = vdwg.mxu0
  %v4123 = vadd.f32 %v4040, %v4120
  %v4124 = vld [vmem:[#allocation4 + $0x18] sm:$0x3]
  %v4125 = vld [vmem:[%s7 + $0x240] sm:$0xff]
  %v4126 = vld [vmem:[%s7 + $0x248] sm:$0xff]
  %v4127 = vld [vmem:[%s7 + $0x250] sm:$0xff]
  %v4128 = vld [vmem:[%s7 + $0x258] sm:$0xff]
  %v4129 = vld [vmem:[%s7 + $0x260] sm:$0xff]
  %v4130 = vld [vmem:[%s7 + $0x268] sm:$0xff]
  %v4131 = vld [vmem:[%s7 + $0x270] sm:$0xff]
  %v4132 = vld [vmem:[%s7 + $0x278] sm:$0xff]
  %v4134 = vsel %vm2357, %v4124, 0
  %4136 = vmatprep.subr.mxu0 0.0
  %4137 = vmatpush1.msra.mxu0 %v4125
  %4138 = vmatprep.subr.mxu0 0.0
  %4139 = vmatpush1.msra.mxu0 %v4126
  %4140 = vmatprep.subr.mxu0 0.0
  %4141 = vmatpush1.msra.mxu0 %v4127
  %4142 = vmatprep.subr.mxu0 0.0
  %4143 = vmatpush1.msra.mxu0 %v4128
  %4144 = vmatprep.subr.mxu0 0.0
  %4145 = vmatpush1.msra.mxu0 %v4129
  %4146 = vmatprep.subr.mxu0 0.0
  %4147 = vmatpush1.msra.mxu0 %v4130
  %4148 = vmatprep.subr.mxu0 0.0
  %4149 = vmatpush1.msra.mxu0 %v4131
  %4150 = vmatprep.subr.mxu0 0.0
  %4151 = vmatpush1.msra.mxu0 %v4132
  %4152 = vmatprep.subr.mxu0 0.0
  %4153 = vmatpush1.msra.mxu0 0.0
  %4154 = vmatprep.subr.mxu0 0.0
  %4155 = vmatpush1.msra.mxu0 0.0
  %4156 = vmatprep.subr.mxu0 0.0
  %4157 = vmatpush1.msra.mxu0 0.0
  %4158 = vmatprep.subr.mxu0 0.0
  %4159 = vmatpush1.msra.mxu0 0.0
  %4160 = vmatprep.subr.mxu0 0.0
  %4161 = vmatpush1.msra.mxu0 0.0
  %4162 = vmatprep.subr.mxu0 0.0
  %4163 = vmatpush1.msra.mxu0 0.0
  %4164 = vmatprep.subr.mxu0 0.0
  %4165 = vmatpush1.msra.mxu0 0.0
  %4166 = vmatprep.subr.mxu0 0.0
  %4167 = vmatpush1.msra.mxu0 0.0
  %4168 = vmatprep.subr.mxu0 0.0
  %4169 = vmatpush1.msra.mxu0 0.0
  %4170 = vmatprep.subr.mxu0 0.0
  %4171 = vmatpush1.msra.mxu0 0.0
  %4172 = vmatprep.subr.mxu0 0.0
  %4173 = vmatpush1.msra.mxu0 0.0
  %4174 = vmatprep.subr.mxu0 0.0
  %4175 = vmatpush1.msra.mxu0 0.0
  %4176 = vmatprep.subr.mxu0 0.0
  %4177 = vmatpush1.msra.mxu0 0.0
  %4178 = vmatprep.subr.mxu0 0.0
  %4179 = vmatpush1.msra.mxu0 0.0
  %4180 = vmatprep.subr.mxu0 0.0
  %4181 = vmatpush1.msra.mxu0 0.0
  %4182 = vmatprep.subr.mxu0 0.0
  %4183 = vmatpush1.msra.mxu0 0.0
  %4184 = vmatprep.subr.mxu0 0.0
  %4185 = vmatpush1.msra.mxu0 0.0
  %4186 = vmatprep.subr.mxu0 0.0
  %4187 = vmatpush1.msra.mxu0 0.0
  %4188 = vmatprep.subr.mxu0 0.0
  %4189 = vmatpush1.msra.mxu0 0.0
  %4190 = vmatprep.subr.mxu0 0.0
  %4191 = vmatpush1.msra.mxu0 0.0
  %4192 = vmatprep.subr.mxu0 0.0
  %4193 = vmatpush1.msra.mxu0 0.0
  %4194 = vmatprep.subr.mxu0 0.0
  %4195 = vmatpush1.msra.mxu0 0.0
  %4196 = vmatprep.subr.mxu0 0.0
  %4197 = vmatpush1.msra.mxu0 0.0
  %4198 = vmatprep.subr.mxu0 0.0
  %4199 = vmatpush1.msra.mxu0 0.0
  %4200 = vmatprep.mubr.f32.mxu0 0.0
  %4201 = vmatmul.mubr.f32.gmra.mrb[0].mxu0 %v4134
  %v4202 = vpop.f32.mrb[0].mxu0
  %v4203 = vadd.f32 0.0, %v4202
  %v4204 = vpop.f32.mrb[0].mxu0
  %4205 = vdwg.mxu0
  %v4206 = vadd.f32 %v4123, %v4203
  %v4207 = vld [vmem:[#allocation4 + $0x1a] sm:$0x3]
  %v4208 = vld [vmem:[%s7 + $0x280] sm:$0xff]
  %v4209 = vld [vmem:[%s7 + $0x288] sm:$0xff]
  %v4210 = vld [vmem:[%s7 + $0x290] sm:$0xff]
  %v4211 = vld [vmem:[%s7 + $0x298] sm:$0xff]
  %v4212 = vld [vmem:[%s7 + $0x2a0] sm:$0xff]
  %v4213 = vld [vmem:[%s7 + $0x2a8] sm:$0xff]
  %v4214 = vld [vmem:[%s7 + $0x2b0] sm:$0xff]
  %v4215 = vld [vmem:[%s7 + $0x2b8] sm:$0xff]
  %v4217 = vsel %vm2357, %v4207, 0
  %4219 = vmatprep.subr.mxu0 0.0
  %4220 = vmatpush1.msra.mxu0 %v4208
  %4221 = vmatprep.subr.mxu0 0.0
  %4222 = vmatpush1.msra.mxu0 %v4209
  %4223 = vmatprep.subr.mxu0 0.0
  %4224 = vmatpush1.msra.mxu0 %v4210
  %4225 = vmatprep.subr.mxu0 0.0
  %4226 = vmatpush1.msra.mxu0 %v4211
  %4227 = vmatprep.subr.mxu0 0.0
  %4228 = vmatpush1.msra.mxu0 %v4212
  %4229 = vmatprep.subr.mxu0 0.0
  %4230 = vmatpush1.msra.mxu0 %v4213
  %4231 = vmatprep.subr.mxu0 0.0
  %4232 = vmatpush1.msra.mxu0 %v4214
  %4233 = vmatprep.subr.mxu0 0.0
  %4234 = vmatpush1.msra.mxu0 %v4215
  %4235 = vmatprep.subr.mxu0 0.0
  %4236 = vmatpush1.msra.mxu0 0.0
  %4237 = vmatprep.subr.mxu0 0.0
  %4238 = vmatpush1.msra.mxu0 0.0
  %4239 = vmatprep.subr.mxu0 0.0
  %4240 = vmatpush1.msra.mxu0 0.0
  %4241 = vmatprep.subr.mxu0 0.0
  %4242 = vmatpush1.msra.mxu0 0.0
  %4243 = vmatprep.subr.mxu0 0.0
  %4244 = vmatpush1.msra.mxu0 0.0
  %4245 = vmatprep.subr.mxu0 0.0
  %4246 = vmatpush1.msra.mxu0 0.0
  %4247 = vmatprep.subr.mxu0 0.0
  %4248 = vmatpush1.msra.mxu0 0.0
  %4249 = vmatprep.subr.mxu0 0.0
  %4250 = vmatpush1.msra.mxu0 0.0
  %4251 = vmatprep.subr.mxu0 0.0
  %4252 = vmatpush1.msra.mxu0 0.0
  %4253 = vmatprep.subr.mxu0 0.0
  %4254 = vmatpush1.msra.mxu0 0.0
  %4255 = vmatprep.subr.mxu0 0.0
  %4256 = vmatpush1.msra.mxu0 0.0
  %4257 = vmatprep.subr.mxu0 0.0
  %4258 = vmatpush1.msra.mxu0 0.0
  %4259 = vmatprep.subr.mxu0 0.0
  %4260 = vmatpush1.msra.mxu0 0.0
  %4261 = vmatprep.subr.mxu0 0.0
  %4262 = vmatpush1.msra.mxu0 0.0
  %4263 = vmatprep.subr.mxu0 0.0
  %4264 = vmatpush1.msra.mxu0 0.0
  %4265 = vmatprep.subr.mxu0 0.0
  %4266 = vmatpush1.msra.mxu0 0.0
  %4267 = vmatprep.subr.mxu0 0.0
  %4268 = vmatpush1.msra.mxu0 0.0
  %4269 = vmatprep.subr.mxu0 0.0
  %4270 = vmatpush1.msra.mxu0 0.0
  %4271 = vmatprep.subr.mxu0 0.0
  %4272 = vmatpush1.msra.mxu0 0.0
  %4273 = vmatprep.subr.mxu0 0.0
  %4274 = vmatpush1.msra.mxu0 0.0
  %4275 = vmatprep.subr.mxu0 0.0
  %4276 = vmatpush1.msra.mxu0 0.0
  %4277 = vmatprep.subr.mxu0 0.0
  %4278 = vmatpush1.msra.mxu0 0.0
  %4279 = vmatprep.subr.mxu0 0.0
  %4280 = vmatpush1.msra.mxu0 0.0
  %4281 = vmatprep.subr.mxu0 0.0
  %4282 = vmatpush1.msra.mxu0 0.0
  %4283 = vmatprep.mubr.f32.mxu0 0.0
  %4284 = vmatmul.mubr.f32.gmra.mrb[0].mxu0 %v4217
  %v4285 = vpop.f32.mrb[0].mxu0
  %v4286 = vadd.f32 0.0, %v4285
  %v4287 = vpop.f32.mrb[0].mxu0
  %4288 = vdwg.mxu0
  %v4289 = vadd.f32 %v4206, %v4286
  %v4290 = vld [vmem:[#allocation4 + $0x1c] sm:$0x3]
  %v4291 = vld [vmem:[%s7 + $0x2c0] sm:$0xff]
  %v4292 = vld [vmem:[%s7 + $0x2c8] sm:$0xff]
  %v4293 = vld [vmem:[%s7 + $0x2d0] sm:$0xff]
  %v4294 = vld [vmem:[%s7 + $0x2d8] sm:$0xff]
  %v4295 = vld [vmem:[%s7 + $0x2e0] sm:$0xff]
  %v4296 = vld [vmem:[%s7 + $0x2e8] sm:$0xff]
  %v4297 = vld [vmem:[%s7 + $0x2f0] sm:$0xff]
  %v4298 = vld [vmem:[%s7 + $0x2f8] sm:$0xff]
  %v4300 = vsel %vm2357, %v4290, 0
  %4302 = vmatprep.subr.mxu0 0.0
  %4303 = vmatpush1.msra.mxu0 %v4291
  %4304 = vmatprep.subr.mxu0 0.0
  %4305 = vmatpush1.msra.mxu0 %v4292
  %4306 = vmatprep.subr.mxu0 0.0
  %4307 = vmatpush1.msra.mxu0 %v4293
  %4308 = vmatprep.subr.mxu0 0.0
  %4309 = vmatpush1.msra.mxu0 %v4294
  %4310 = vmatprep.subr.mxu0 0.0
  %4311 = vmatpush1.msra.mxu0 %v4295
  %4312 = vmatprep.subr.mxu0 0.0
  %4313 = vmatpush1.msra.mxu0 %v4296
  %4314 = vmatprep.subr.mxu0 0.0
  %4315 = vmatpush1.msra.mxu0 %v4297
  %4316 = vmatprep.subr.mxu0 0.0
  %4317 = vmatpush1.msra.mxu0 %v4298
  %4318 = vmatprep.subr.mxu0 0.0
  %4319 = vmatpush1.msra.mxu0 0.0
  %4320 = vmatprep.subr.mxu0 0.0
  %4321 = vmatpush1.msra.mxu0 0.0
  %4322 = vmatprep.subr.mxu0 0.0
  %4323 = vmatpush1.msra.mxu0 0.0
  %4324 = vmatprep.subr.mxu0 0.0
  %4325 = vmatpush1.msra.mxu0 0.0
  %4326 = vmatprep.subr.mxu0 0.0
  %4327 = vmatpush1.msra.mxu0 0.0
  %4328 = vmatprep.subr.mxu0 0.0
  %4329 = vmatpush1.msra.mxu0 0.0
  %4330 = vmatprep.subr.mxu0 0.0
  %4331 = vmatpush1.msra.mxu0 0.0
  %4332 = vmatprep.subr.mxu0 0.0
  %4333 = vmatpush1.msra.mxu0 0.0
  %4334 = vmatprep.subr.mxu0 0.0
  %4335 = vmatpush1.msra.mxu0 0.0
  %4336 = vmatprep.subr.mxu0 0.0
  %4337 = vmatpush1.msra.mxu0 0.0
  %4338 = vmatprep.subr.mxu0 0.0
  %4339 = vmatpush1.msra.mxu0 0.0
  %4340 = vmatprep.subr.mxu0 0.0
  %4341 = vmatpush1.msra.mxu0 0.0
  %4342 = vmatprep.subr.mxu0 0.0
  %4343 = vmatpush1.msra.mxu0 0.0
  %4344 = vmatprep.subr.mxu0 0.0
  %4345 = vmatpush1.msra.mxu0 0.0
  %4346 = vmatprep.subr.mxu0 0.0
  %4347 = vmatpush1.msra.mxu0 0.0
  %4348 = vmatprep.subr.mxu0 0.0
  %4349 = vmatpush1.msra.mxu0 0.0
  %4350 = vmatprep.subr.mxu0 0.0
  %4351 = vmatpush1.msra.mxu0 0.0
  %4352 = vmatprep.subr.mxu0 0.0
  %4353 = vmatpush1.msra.mxu0 0.0
  %4354 = vmatprep.subr.mxu0 0.0
  %4355 = vmatpush1.msra.mxu0 0.0
  %4356 = vmatprep.subr.mxu0 0.0
  %4357 = vmatpush1.msra.mxu0 0.0
  %4358 = vmatprep.subr.mxu0 0.0
  %4359 = vmatpush1.msra.mxu0 0.0
  %4360 = vmatprep.subr.mxu0 0.0
  %4361 = vmatpush1.msra.mxu0 0.0
  %4362 = vmatprep.subr.mxu0 0.0
  %4363 = vmatpush1.msra.mxu0 0.0
  %4364 = vmatprep.subr.mxu0 0.0
  %4365 = vmatpush1.msra.mxu0 0.0
  %4366 = vmatprep.mubr.f32.mxu0 0.0
  %4367 = vmatmul.mubr.f32.gmra.mrb[0].mxu0 %v4300
  %v4368 = vpop.f32.mrb[0].mxu0
  %v4369 = vadd.f32 0.0, %v4368
  %v4370 = vpop.f32.mrb[0].mxu0
  %4371 = vdwg.mxu0
  %v4372 = vadd.f32 %v4289, %v4369
  %v4373 = vld [vmem:[#allocation4 + $0x1e] sm:$0x3]
  %v4374 = vld [vmem:[%s7 + $0x300] sm:$0xff]
  %v4375 = vld [vmem:[%s7 + $0x308] sm:$0xff]
  %v4376 = vld [vmem:[%s7 + $0x310] sm:$0xff]
  %v4377 = vld [vmem:[%s7 + $0x318] sm:$0xff]
  %v4378 = vld [vmem:[%s7 + $0x320] sm:$0xff]
  %v4379 = vld [vmem:[%s7 + $0x328] sm:$0xff]
  %v4380 = vld [vmem:[%s7 + $0x330] sm:$0xff]
  %v4381 = vld [vmem:[%s7 + $0x338] sm:$0xff]
  %v4383 = vsel %vm2357, %v4373, 0
  %4385 = vmatprep.subr.mxu0 0.0
  %4386 = vmatpush1.msra.mxu0 %v4374
  %4387 = vmatprep.subr.mxu0 0.0
  %4388 = vmatpush1.msra.mxu0 %v4375
  %4389 = vmatprep.subr.mxu0 0.0
  %4390 = vmatpush1.msra.mxu0 %v4376
  %4391 = vmatprep.subr.mxu0 0.0
  %4392 = vmatpush1.msra.mxu0 %v4377
  %4393 = vmatprep.subr.mxu0 0.0
  %4394 = vmatpush1.msra.mxu0 %v4378
  %4395 = vmatprep.subr.mxu0 0.0
  %4396 = vmatpush1.msra.mxu0 %v4379
  %4397 = vmatprep.subr.mxu0 0.0
  %4398 = vmatpush1.msra.mxu0 %v4380
  %4399 = vmatprep.subr.mxu0 0.0
  %4400 = vmatpush1.msra.mxu0 %v4381
  %4401 = vmatprep.subr.mxu0 0.0
  %4402 = vmatpush1.msra.mxu0 0.0
  %4403 = vmatprep.subr.mxu0 0.0
  %4404 = vmatpush1.msra.mxu0 0.0
  %4405 = vmatprep.subr.mxu0 0.0
  %4406 = vmatpush1.msra.mxu0 0.0
  %4407 = vmatprep.subr.mxu0 0.0
  %4408 = vmatpush1.msra.mxu0 0.0
  %4409 = vmatprep.subr.mxu0 0.0
  %4410 = vmatpush1.msra.mxu0 0.0
  %4411 = vmatprep.subr.mxu0 0.0
  %4412 = vmatpush1.msra.mxu0 0.0
  %4413 = vmatprep.subr.mxu0 0.0
  %4414 = vmatpush1.msra.mxu0 0.0
  %4415 = vmatprep.subr.mxu0 0.0
  %4416 = vmatpush1.msra.mxu0 0.0
  %4417 = vmatprep.subr.mxu0 0.0
  %4418 = vmatpush1.msra.mxu0 0.0
  %4419 = vmatprep.subr.mxu0 0.0
  %4420 = vmatpush1.msra.mxu0 0.0
  %4421 = vmatprep.subr.mxu0 0.0
  %4422 = vmatpush1.msra.mxu0 0.0
  %4423 = vmatprep.subr.mxu0 0.0
  %4424 = vmatpush1.msra.mxu0 0.0
  %4425 = vmatprep.subr.mxu0 0.0
  %4426 = vmatpush1.msra.mxu0 0.0
  %4427 = vmatprep.subr.mxu0 0.0
  %4428 = vmatpush1.msra.mxu0 0.0
  %4429 = vmatprep.subr.mxu0 0.0
  %4430 = vmatpush1.msra.mxu0 0.0
  %4431 = vmatprep.subr.mxu0 0.0
  %4432 = vmatpush1.msra.mxu0 0.0
  %4433 = vmatprep.subr.mxu0 0.0
  %4434 = vmatpush1.msra.mxu0 0.0
  %4435 = vmatprep.subr.mxu0 0.0
  %4436 = vmatpush1.msra.mxu0 0.0
  %4437 = vmatprep.subr.mxu0 0.0
  %4438 = vmatpush1.msra.mxu0 0.0
  %4439 = vmatprep.subr.mxu0 0.0
  %4440 = vmatpush1.msra.mxu0 0.0
  %4441 = vmatprep.subr.mxu0 0.0
  %4442 = vmatpush1.msra.mxu0 0.0
  %4443 = vmatprep.subr.mxu0 0.0
  %4444 = vmatpush1.msra.mxu0 0.0
  %4445 = vmatprep.subr.mxu0 0.0
  %4446 = vmatpush1.msra.mxu0 0.0
  %4447 = vmatprep.subr.mxu0 0.0
  %4448 = vmatpush1.msra.mxu0 0.0
  %4449 = vmatprep.mubr.f32.mxu0 0.0
  %4450 = vmatmul.mubr.f32.gmra.mrb[0].mxu0 %v4383
  %v4451 = vpop.f32.mrb[0].mxu0
  %v4452 = vadd.f32 0.0, %v4451
  %v4453 = vpop.f32.mrb[0].mxu0
  %4454 = vdwg.mxu0
  %v4455 = vadd.f32 %v4372, %v4452
  %v4456 = vld [vmem:[#allocation4 + $0x20] sm:$0x3]
  %v4457 = vld [vmem:[%s7 + $0x340] sm:$0xff]
  %v4458 = vld [vmem:[%s7 + $0x348] sm:$0xff]
  %v4459 = vld [vmem:[%s7 + $0x350] sm:$0xff]
  %v4460 = vld [vmem:[%s7 + $0x358] sm:$0xff]
  %v4461 = vld [vmem:[%s7 + $0x360] sm:$0xff]
  %v4462 = vld [vmem:[%s7 + $0x368] sm:$0xff]
  %v4463 = vld [vmem:[%s7 + $0x370] sm:$0xff]
  %v4464 = vld [vmem:[%s7 + $0x378] sm:$0xff]
  %v4466 = vsel %vm2357, %v4456, 0
  %4468 = vmatprep.subr.mxu0 0.0
  %4469 = vmatpush1.msra.mxu0 %v4457
  %4470 = vmatprep.subr.mxu0 0.0
  %4471 = vmatpush1.msra.mxu0 %v4458
  %4472 = vmatprep.subr.mxu0 0.0
  %4473 = vmatpush1.msra.mxu0 %v4459
  %4474 = vmatprep.subr.mxu0 0.0
  %4475 = vmatpush1.msra.mxu0 %v4460
  %4476 = vmatprep.subr.mxu0 0.0
  %4477 = vmatpush1.msra.mxu0 %v4461
  %4478 = vmatprep.subr.mxu0 0.0
  %4479 = vmatpush1.msra.mxu0 %v4462
  %4480 = vmatprep.subr.mxu0 0.0
  %4481 = vmatpush1.msra.mxu0 %v4463
  %4482 = vmatprep.subr.mxu0 0.0
  %4483 = vmatpush1.msra.mxu0 %v4464
  %4484 = vmatprep.subr.mxu0 0.0
  %4485 = vmatpush1.msra.mxu0 0.0
  %4486 = vmatprep.subr.mxu0 0.0
  %4487 = vmatpush1.msra.mxu0 0.0
  %4488 = vmatprep.subr.mxu0 0.0
  %4489 = vmatpush1.msra.mxu0 0.0
  %4490 = vmatprep.subr.mxu0 0.0
  %4491 = vmatpush1.msra.mxu0 0.0
  %4492 = vmatprep.subr.mxu0 0.0
  %4493 = vmatpush1.msra.mxu0 0.0
  %4494 = vmatprep.subr.mxu0 0.0
  %4495 = vmatpush1.msra.mxu0 0.0
  %4496 = vmatprep.subr.mxu0 0.0
  %4497 = vmatpush1.msra.mxu0 0.0
  %4498 = vmatprep.subr.mxu0 0.0
  %4499 = vmatpush1.msra.mxu0 0.0
  %4500 = vmatprep.subr.mxu0 0.0
  %4501 = vmatpush1.msra.mxu0 0.0
  %4502 = vmatprep.subr.mxu0 0.0
  %4503 = vmatpush1.msra.mxu0 0.0
  %4504 = vmatprep.subr.mxu0 0.0
  %4505 = vmatpush1.msra.mxu0 0.0
  %4506 = vmatprep.subr.mxu0 0.0
  %4507 = vmatpush1.msra.mxu0 0.0
  %4508 = vmatprep.subr.mxu0 0.0
  %4509 = vmatpush1.msra.mxu0 0.0
  %4510 = vmatprep.subr.mxu0 0.0
  %4511 = vmatpush1.msra.mxu0 0.0
  %4512 = vmatprep.subr.mxu0 0.0
  %4513 = vmatpush1.msra.mxu0 0.0
  %4514 = vmatprep.subr.mxu0 0.0
  %4515 = vmatpush1.msra.mxu0 0.0
  %4516 = vmatprep.subr.mxu0 0.0
  %4517 = vmatpush1.msra.mxu0 0.0
  %4518 = vmatprep.subr.mxu0 0.0
  %4519 = vmatpush1.msra.mxu0 0.0
  %4520 = vmatprep.subr.mxu0 0.0
  %4521 = vmatpush1.msra.mxu0 0.0
  %4522 = vmatprep.subr.mxu0 0.0
  %4523 = vmatpush1.msra.mxu0 0.0
  %4524 = vmatprep.subr.mxu0 0.0
  %4525 = vmatpush1.msra.mxu0 0.0
  %4526 = vmatprep.subr.mxu0 0.0
  %4527 = vmatpush1.msra.mxu0 0.0
  %4528 = vmatprep.subr.mxu0 0.0
  %4529 = vmatpush1.msra.mxu0 0.0
  %4530 = vmatprep.subr.mxu0 0.0
  %4531 = vmatpush1.msra.mxu0 0.0
  %4532 = vmatprep.mubr.f32.mxu0 0.0
  %4533 = vmatmul.mubr.f32.gmra.mrb[0].mxu0 %v4466
  %v4534 = vpop.f32.mrb[0].mxu0
  %v4535 = vadd.f32 0.0, %v4534
  %v4536 = vpop.f32.mrb[0].mxu0
  %4537 = vdwg.mxu0
  %v4538 = vadd.f32 %v4455, %v4535
  %v4539 = vld [vmem:[#allocation4 + $0x28] sm:$0x3]
  %v4540 = vld [vmem:[%s7 + $0x380] sm:$0xff]
  %v4541 = vld [vmem:[%s7 + $0x388] sm:$0xff]
  %v4542 = vld [vmem:[%s7 + $0x390] sm:$0xff]
  %v4543 = vld [vmem:[%s7 + $0x398] sm:$0xff]
  %v4544 = vld [vmem:[%s7 + $0x3a0] sm:$0xff]
  %v4545 = vld [vmem:[%s7 + $0x3a8] sm:$0xff]
  %v4546 = vld [vmem:[%s7 + $0x3b0] sm:$0xff]
  %v4547 = vld [vmem:[%s7 + $0x3b8] sm:$0xff]
  %v4549 = vsel %vm2357, %v4539, 0
  %4551 = vmatprep.subr.mxu0 0.0
  %4552 = vmatpush1.msra.mxu0 %v4540
  %4553 = vmatprep.subr.mxu0 0.0
  %4554 = vmatpush1.msra.mxu0 %v4541
  %4555 = vmatprep.subr.mxu0 0.0
  %4556 = vmatpush1.msra.mxu0 %v4542
  %4557 = vmatprep.subr.mxu0 0.0
  %4558 = vmatpush1.msra.mxu0 %v4543
  %4559 = vmatprep.subr.mxu0 0.0
  %4560 = vmatpush1.msra.mxu0 %v4544
  %4561 = vmatprep.subr.mxu0 0.0
  %4562 = vmatpush1.msra.mxu0 %v4545
  %4563 = vmatprep.subr.mxu0 0.0
  %4564 = vmatpush1.msra.mxu0 %v4546
  %4565 = vmatprep.subr.mxu0 0.0
  %4566 = vmatpush1.msra.mxu0 %v4547
  %4567 = vmatprep.subr.mxu0 0.0
  %4568 = vmatpush1.msra.mxu0 0.0
  %4569 = vmatprep.subr.mxu0 0.0
  %4570 = vmatpush1.msra.mxu0 0.0
  %4571 = vmatprep.subr.mxu0 0.0
  %4572 = vmatpush1.msra.mxu0 0.0
  %4573 = vmatprep.subr.mxu0 0.0
  %4574 = vmatpush1.msra.mxu0 0.0
  %4575 = vmatprep.subr.mxu0 0.0
  %4576 = vmatpush1.msra.mxu0 0.0
  %4577 = vmatprep.subr.mxu0 0.0
  %4578 = vmatpush1.msra.mxu0 0.0
  %4579 = vmatprep.subr.mxu0 0.0
  %4580 = vmatpush1.msra.mxu0 0.0
  %4581 = vmatprep.subr.mxu0 0.0
  %4582 = vmatpush1.msra.mxu0 0.0
  %4583 = vmatprep.subr.mxu0 0.0
  %4584 = vmatpush1.msra.mxu0 0.0
  %4585 = vmatprep.subr.mxu0 0.0
  %4586 = vmatpush1.msra.mxu0 0.0
  %4587 = vmatprep.subr.mxu0 0.0
  %4588 = vmatpush1.msra.mxu0 0.0
  %4589 = vmatprep.subr.mxu0 0.0
  %4590 = vmatpush1.msra.mxu0 0.0
  %4591 = vmatprep.subr.mxu0 0.0
  %4592 = vmatpush1.msra.mxu0 0.0
  %4593 = vmatprep.subr.mxu0 0.0
  %4594 = vmatpush1.msra.mxu0 0.0
  %4595 = vmatprep.subr.mxu0 0.0
  %4596 = vmatpush1.msra.mxu0 0.0
  %4597 = vmatprep.subr.mxu0 0.0
  %4598 = vmatpush1.msra.mxu0 0.0
  %4599 = vmatprep.subr.mxu0 0.0
  %4600 = vmatpush1.msra.mxu0 0.0
  %4601 = vmatprep.subr.mxu0 0.0
  %4602 = vmatpush1.msra.mxu0 0.0
  %4603 = vmatprep.subr.mxu0 0.0
  %4604 = vmatpush1.msra.mxu0 0.0
  %4605 = vmatprep.subr.mxu0 0.0
  %4606 = vmatpush1.msra.mxu0 0.0
  %4607 = vmatprep.subr.mxu0 0.0
  %4608 = vmatpush1.msra.mxu0 0.0
  %4609 = vmatprep.subr.mxu0 0.0
  %4610 = vmatpush1.msra.mxu0 0.0
  %4611 = vmatprep.subr.mxu0 0.0
  %4612 = vmatpush1.msra.mxu0 0.0
  %4613 = vmatprep.subr.mxu0 0.0
  %4614 = vmatpush1.msra.mxu0 0.0
  %4615 = vmatprep.mubr.f32.mxu0 0.0
  %4616 = vmatmul.mubr.f32.gmra.mrb[0].mxu0 %v4549
  %v4617 = vpop.f32.mrb[0].mxu0
  %v4618 = vadd.f32 0.0, %v4617
  %v4619 = vpop.f32.mrb[0].mxu0
  %4620 = vdwg.mxu0
  %v4621 = vadd.f32 %v4538, %v4618
  %v4622 = vld [vmem:[#allocation4 + $0x2a] sm:$0x3]
  %v4623 = vld [vmem:[%s7 + $0x3c0] sm:$0xff]
  %v4624 = vld [vmem:[%s7 + $0x3c8] sm:$0xff]
  %v4625 = vld [vmem:[%s7 + $0x3d0] sm:$0xff]
  %v4626 = vld [vmem:[%s7 + $0x3d8] sm:$0xff]
  %v4627 = vld [vmem:[%s7 + $0x3e0] sm:$0xff]
  %v4628 = vld [vmem:[%s7 + $0x3e8] sm:$0xff]
  %v4629 = vld [vmem:[%s7 + $0x3f0] sm:$0xff]
  %v4630 = vld [vmem:[%s7 + $0x3f8] sm:$0xff]
  %v4632 = vsel %vm2357, %v4622, 0
  %4634 = vmatprep.subr.mxu0 0.0
  %4635 = vmatpush1.msra.mxu0 %v4623
  %4636 = vmatprep.subr.mxu0 0.0
  %4637 = vmatpush1.msra.mxu0 %v4624
  %4638 = vmatprep.subr.mxu0 0.0
  %4639 = vmatpush1.msra.mxu0 %v4625
  %4640 = vmatprep.subr.mxu0 0.0
  %4641 = vmatpush1.msra.mxu0 %v4626
  %4642 = vmatprep.subr.mxu0 0.0
  %4643 = vmatpush1.msra.mxu0 %v4627
  %4644 = vmatprep.subr.mxu0 0.0
  %4645 = vmatpush1.msra.mxu0 %v4628
  %4646 = vmatprep.subr.mxu0 0.0
  %4647 = vmatpush1.msra.mxu0 %v4629
  %4648 = vmatprep.subr.mxu0 0.0
  %4649 = vmatpush1.msra.mxu0 %v4630
  %4650 = vmatprep.subr.mxu0 0.0
  %4651 = vmatpush1.msra.mxu0 0.0
  %4652 = vmatprep.subr.mxu0 0.0
  %4653 = vmatpush1.msra.mxu0 0.0
  %4654 = vmatprep.subr.mxu0 0.0
  %4655 = vmatpush1.msra.mxu0 0.0
  %4656 = vmatprep.subr.mxu0 0.0
  %4657 = vmatpush1.msra.mxu0 0.0
  %4658 = vmatprep.subr.mxu0 0.0
  %4659 = vmatpush1.msra.mxu0 0.0
  %4660 = vmatprep.subr.mxu0 0.0
  %4661 = vmatpush1.msra.mxu0 0.0
  %4662 = vmatprep.subr.mxu0 0.0
  %4663 = vmatpush1.msra.mxu0 0.0
  %4664 = vmatprep.subr.mxu0 0.0
  %4665 = vmatpush1.msra.mxu0 0.0
  %4666 = vmatprep.subr.mxu0 0.0
  %4667 = vmatpush1.msra.mxu0 0.0
  %4668 = vmatprep.subr.mxu0 0.0
  %4669 = vmatpush1.msra.mxu0 0.0
  %4670 = vmatprep.subr.mxu0 0.0
  %4671 = vmatpush1.msra.mxu0 0.0
  %4672 = vmatprep.subr.mxu0 0.0
  %4673 = vmatpush1.msra.mxu0 0.0
  %4674 = vmatprep.subr.mxu0 0.0
  %4675 = vmatpush1.msra.mxu0 0.0
  %4676 = vmatprep.subr.mxu0 0.0
  %4677 = vmatpush1.msra.mxu0 0.0
  %4678 = vmatprep.subr.mxu0 0.0
  %4679 = vmatpush1.msra.mxu0 0.0
  %4680 = vmatprep.subr.mxu0 0.0
  %4681 = vmatpush1.msra.mxu0 0.0
  %4682 = vmatprep.subr.mxu0 0.0
  %4683 = vmatpush1.msra.mxu0 0.0
  %4684 = vmatprep.subr.mxu0 0.0
  %4685 = vmatpush1.msra.mxu0 0.0
  %4686 = vmatprep.subr.mxu0 0.0
  %4687 = vmatpush1.msra.mxu0 0.0
  %4688 = vmatprep.subr.mxu0 0.0
  %4689 = vmatpush1.msra.mxu0 0.0
  %4690 = vmatprep.subr.mxu0 0.0
  %4691 = vmatpush1.msra.mxu0 0.0
  %4692 = vmatprep.subr.mxu0 0.0
  %4693 = vmatpush1.msra.mxu0 0.0
  %4694 = vmatprep.subr.mxu0 0.0
  %4695 = vmatpush1.msra.mxu0 0.0
  %4696 = vmatprep.subr.mxu0 0.0
  %4697 = vmatpush1.msra.mxu0 0.0
  %4698 = vmatprep.mubr.f32.mxu0 0.0
  %4699 = vmatmul.mubr.f32.gmra.mrb[0].mxu0 %v4632
  %v4700 = vpop.f32.mrb[0].mxu0
  %v4701 = vadd.f32 0.0, %v4700
  %v4702 = vpop.f32.mrb[0].mxu0
  %4703 = vdwg.mxu0
  %v4704 = vadd.f32 %v4621, %v4701
  %v4705 = vld [vmem:[#allocation4 + $0x2c] sm:$0x3]
  %v4706 = vld [vmem:[%s7 + $0x400] sm:$0xff]
  %v4707 = vld [vmem:[%s7 + $0x408] sm:$0xff]
  %v4708 = vld [vmem:[%s7 + $0x410] sm:$0xff]
  %v4709 = vld [vmem:[%s7 + $0x418] sm:$0xff]
  %v4710 = vld [vmem:[%s7 + $0x420] sm:$0xff]
  %v4711 = vld [vmem:[%s7 + $0x428] sm:$0xff]
  %v4712 = vld [vmem:[%s7 + $0x430] sm:$0xff]
  %v4713 = vld [vmem:[%s7 + $0x438] sm:$0xff]
  %v4715 = vsel %vm2357, %v4705, 0
  %4717 = vmatprep.subr.mxu0 0.0
  %4718 = vmatpush1.msra.mxu0 %v4706
  %4719 = vmatprep.subr.mxu0 0.0
  %4720 = vmatpush1.msra.mxu0 %v4707
  %4721 = vmatprep.subr.mxu0 0.0
  %4722 = vmatpush1.msra.mxu0 %v4708
  %4723 = vmatprep.subr.mxu0 0.0
  %4724 = vmatpush1.msra.mxu0 %v4709
  %4725 = vmatprep.subr.mxu0 0.0
  %4726 = vmatpush1.msra.mxu0 %v4710
  %4727 = vmatprep.subr.mxu0 0.0
  %4728 = vmatpush1.msra.mxu0 %v4711
  %4729 = vmatprep.subr.mxu0 0.0
  %4730 = vmatpush1.msra.mxu0 %v4712
  %4731 = vmatprep.subr.mxu0 0.0
  %4732 = vmatpush1.msra.mxu0 %v4713
  %4733 = vmatprep.subr.mxu0 0.0
  %4734 = vmatpush1.msra.mxu0 0.0
  %4735 = vmatprep.subr.mxu0 0.0
  %4736 = vmatpush1.msra.mxu0 0.0
  %4737 = vmatprep.subr.mxu0 0.0
  %4738 = vmatpush1.msra.mxu0 0.0
  %4739 = vmatprep.subr.mxu0 0.0
  %4740 = vmatpush1.msra.mxu0 0.0
  %4741 = vmatprep.subr.mxu0 0.0
  %4742 = vmatpush1.msra.mxu0 0.0
  %4743 = vmatprep.subr.mxu0 0.0
  %4744 = vmatpush1.msra.mxu0 0.0
  %4745 = vmatprep.subr.mxu0 0.0
  %4746 = vmatpush1.msra.mxu0 0.0
  %4747 = vmatprep.subr.mxu0 0.0
  %4748 = vmatpush1.msra.mxu0 0.0
  %4749 = vmatprep.subr.mxu0 0.0
  %4750 = vmatpush1.msra.mxu0 0.0
  %4751 = vmatprep.subr.mxu0 0.0
  %4752 = vmatpush1.msra.mxu0 0.0
  %4753 = vmatprep.subr.mxu0 0.0
  %4754 = vmatpush1.msra.mxu0 0.0
  %4755 = vmatprep.subr.mxu0 0.0
  %4756 = vmatpush1.msra.mxu0 0.0
  %4757 = vmatprep.subr.mxu0 0.0
  %4758 = vmatpush1.msra.mxu0 0.0
  %4759 = vmatprep.subr.mxu0 0.0
  %4760 = vmatpush1.msra.mxu0 0.0
  %4761 = vmatprep.subr.mxu0 0.0
  %4762 = vmatpush1.msra.mxu0 0.0
  %4763 = vmatprep.subr.mxu0 0.0
  %4764 = vmatpush1.msra.mxu0 0.0
  %4765 = vmatprep.subr.mxu0 0.0
  %4766 = vmatpush1.msra.mxu0 0.0
  %4767 = vmatprep.subr.mxu0 0.0
  %4768 = vmatpush1.msra.mxu0 0.0
  %4769 = vmatprep.subr.mxu0 0.0
  %4770 = vmatpush1.msra.mxu0 0.0
  %4771 = vmatprep.subr.mxu0 0.0
  %4772 = vmatpush1.msra.mxu0 0.0
  %4773 = vmatprep.subr.mxu0 0.0
  %4774 = vmatpush1.msra.mxu0 0.0
  %4775 = vmatprep.subr.mxu0 0.0
  %4776 = vmatpush1.msra.mxu0 0.0
  %4777 = vmatprep.subr.mxu0 0.0
  %4778 = vmatpush1.msra.mxu0 0.0
  %4779 = vmatprep.subr.mxu0 0.0
  %4780 = vmatpush1.msra.mxu0 0.0
  %4781 = vmatprep.mubr.f32.mxu0 0.0
  %4782 = vmatmul.mubr.f32.gmra.mrb[0].mxu0 %v4715
  %v4783 = vpop.f32.mrb[0].mxu0
  %v4784 = vadd.f32 0.0, %v4783
  %v4785 = vpop.f32.mrb[0].mxu0
  %4786 = vdwg.mxu0
  %v4787 = vadd.f32 %v4704, %v4784
  %v4788 = vld [vmem:[#allocation4 + $0x2e] sm:$0x3]
  %v4789 = vld [vmem:[%s7 + $0x440] sm:$0xff]
  %v4790 = vld [vmem:[%s7 + $0x448] sm:$0xff]
  %v4791 = vld [vmem:[%s7 + $0x450] sm:$0xff]
  %v4792 = vld [vmem:[%s7 + $0x458] sm:$0xff]
  %v4793 = vld [vmem:[%s7 + $0x460] sm:$0xff]
  %v4794 = vld [vmem:[%s7 + $0x468] sm:$0xff]
  %v4795 = vld [vmem:[%s7 + $0x470] sm:$0xff]
  %v4796 = vld [vmem:[%s7 + $0x478] sm:$0xff]
  %v4798 = vsel %vm2357, %v4788, 0
  %4800 = vmatprep.subr.mxu0 0.0
  %4801 = vmatpush1.msra.mxu0 %v4789
  %4802 = vmatprep.subr.mxu0 0.0
  %4803 = vmatpush1.msra.mxu0 %v4790
  %4804 = vmatprep.subr.mxu0 0.0
  %4805 = vmatpush1.msra.mxu0 %v4791
  %4806 = vmatprep.subr.mxu0 0.0
  %4807 = vmatpush1.msra.mxu0 %v4792
  %4808 = vmatprep.subr.mxu0 0.0
  %4809 = vmatpush1.msra.mxu0 %v4793
  %4810 = vmatprep.subr.mxu0 0.0
  %4811 = vmatpush1.msra.mxu0 %v4794
  %4812 = vmatprep.subr.mxu0 0.0
  %4813 = vmatpush1.msra.mxu0 %v4795
  %4814 = vmatprep.subr.mxu0 0.0
  %4815 = vmatpush1.msra.mxu0 %v4796
  %4816 = vmatprep.subr.mxu0 0.0
  %4817 = vmatpush1.msra.mxu0 0.0
  %4818 = vmatprep.subr.mxu0 0.0
  %4819 = vmatpush1.msra.mxu0 0.0
  %4820 = vmatprep.subr.mxu0 0.0
  %4821 = vmatpush1.msra.mxu0 0.0
  %4822 = vmatprep.subr.mxu0 0.0
  %4823 = vmatpush1.msra.mxu0 0.0
  %4824 = vmatprep.subr.mxu0 0.0
  %4825 = vmatpush1.msra.mxu0 0.0
  %4826 = vmatprep.subr.mxu0 0.0
  %4827 = vmatpush1.msra.mxu0 0.0
  %4828 = vmatprep.subr.mxu0 0.0
  %4829 = vmatpush1.msra.mxu0 0.0
  %4830 = vmatprep.subr.mxu0 0.0
  %4831 = vmatpush1.msra.mxu0 0.0
  %4832 = vmatprep.subr.mxu0 0.0
  %4833 = vmatpush1.msra.mxu0 0.0
  %4834 = vmatprep.subr.mxu0 0.0
  %4835 = vmatpush1.msra.mxu0 0.0
  %4836 = vmatprep.subr.mxu0 0.0
  %4837 = vmatpush1.msra.mxu0 0.0
  %4838 = vmatprep.subr.mxu0 0.0
  %4839 = vmatpush1.msra.mxu0 0.0
  %4840 = vmatprep.subr.mxu0 0.0
  %4841 = vmatpush1.msra.mxu0 0.0
  %4842 = vmatprep.subr.mxu0 0.0
  %4843 = vmatpush1.msra.mxu0 0.0
  %4844 = vmatprep.subr.mxu0 0.0
  %4845 = vmatpush1.msra.mxu0 0.0
  %4846 = vmatprep.subr.mxu0 0.0
  %4847 = vmatpush1.msra.mxu0 0.0
  %4848 = vmatprep.subr.mxu0 0.0
  %4849 = vmatpush1.msra.mxu0 0.0
  %4850 = vmatprep.subr.mxu0 0.0
  %4851 = vmatpush1.msra.mxu0 0.0
  %4852 = vmatprep.subr.mxu0 0.0
  %4853 = vmatpush1.msra.mxu0 0.0
  %4854 = vmatprep.subr.mxu0 0.0
  %4855 = vmatpush1.msra.mxu0 0.0
  %4856 = vmatprep.subr.mxu0 0.0
  %4857 = vmatpush1.msra.mxu0 0.0
  %4858 = vmatprep.subr.mxu0 0.0
  %4859 = vmatpush1.msra.mxu0 0.0
  %4860 = vmatprep.subr.mxu0 0.0
  %4861 = vmatpush1.msra.mxu0 0.0
  %4862 = vmatprep.subr.mxu0 0.0
  %4863 = vmatpush1.msra.mxu0 0.0
  %4864 = vmatprep.mubr.f32.mxu0 0.0
  %4865 = vmatmul.mubr.f32.gmra.mrb[0].mxu0 %v4798
  %v4866 = vpop.f32.mrb[0].mxu0
  %v4867 = vadd.f32 0.0, %v4866
  %v4868 = vpop.f32.mrb[0].mxu0
  %4869 = vdwg.mxu0
  %v4870 = vadd.f32 %v4787, %v4867
  %v4871 = vld [vmem:[#allocation4 + $0x30] sm:$0x3]
  %v4872 = vld [vmem:[%s7 + $0x480] sm:$0xff]
  %v4873 = vld [vmem:[%s7 + $0x488] sm:$0xff]
  %v4874 = vld [vmem:[%s7 + $0x490] sm:$0xff]
  %v4875 = vld [vmem:[%s7 + $0x498] sm:$0xff]
  %v4876 = vld [vmem:[%s7 + $0x4a0] sm:$0xff]
  %v4877 = vld [vmem:[%s7 + $0x4a8] sm:$0xff]
  %v4878 = vld [vmem:[%s7 + $0x4b0] sm:$0xff]
  %v4879 = vld [vmem:[%s7 + $0x4b8] sm:$0xff]
  %v4881 = vsel %vm2357, %v4871, 0
  %4883 = vmatprep.subr.mxu0 0.0
  %4884 = vmatpush1.msra.mxu0 %v4872
  %4885 = vmatprep.subr.mxu0 0.0
  %4886 = vmatpush1.msra.mxu0 %v4873
  %4887 = vmatprep.subr.mxu0 0.0
  %4888 = vmatpush1.msra.mxu0 %v4874
  %4889 = vmatprep.subr.mxu0 0.0
  %4890 = vmatpush1.msra.mxu0 %v4875
  %4891 = vmatprep.subr.mxu0 0.0
  %4892 = vmatpush1.msra.mxu0 %v4876
  %4893 = vmatprep.subr.mxu0 0.0
  %4894 = vmatpush1.msra.mxu0 %v4877
  %4895 = vmatprep.subr.mxu0 0.0
  %4896 = vmatpush1.msra.mxu0 %v4878
  %4897 = vmatprep.subr.mxu0 0.0
  %4898 = vmatpush1.msra.mxu0 %v4879
  %4899 = vmatprep.subr.mxu0 0.0
  %4900 = vmatpush1.msra.mxu0 0.0
  %4901 = vmatprep.subr.mxu0 0.0
  %4902 = vmatpush1.msra.mxu0 0.0
  %4903 = vmatprep.subr.mxu0 0.0
  %4904 = vmatpush1.msra.mxu0 0.0
  %4905 = vmatprep.subr.mxu0 0.0
  %4906 = vmatpush1.msra.mxu0 0.0
  %4907 = vmatprep.subr.mxu0 0.0
  %4908 = vmatpush1.msra.mxu0 0.0
  %4909 = vmatprep.subr.mxu0 0.0
  %4910 = vmatpush1.msra.mxu0 0.0
  %4911 = vmatprep.subr.mxu0 0.0
  %4912 = vmatpush1.msra.mxu0 0.0
  %4913 = vmatprep.subr.mxu0 0.0
  %4914 = vmatpush1.msra.mxu0 0.0
  %4915 = vmatprep.subr.mxu0 0.0
  %4916 = vmatpush1.msra.mxu0 0.0
  %4917 = vmatprep.subr.mxu0 0.0
  %4918 = vmatpush1.msra.mxu0 0.0
  %4919 = vmatprep.subr.mxu0 0.0
  %4920 = vmatpush1.msra.mxu0 0.0
  %4921 = vmatprep.subr.mxu0 0.0
  %4922 = vmatpush1.msra.mxu0 0.0
  %4923 = vmatprep.subr.mxu0 0.0
  %4924 = vmatpush1.msra.mxu0 0.0
  %4925 = vmatprep.subr.mxu0 0.0
  %4926 = vmatpush1.msra.mxu0 0.0
  %4927 = vmatprep.subr.mxu0 0.0
  %4928 = vmatpush1.msra.mxu0 0.0
  %4929 = vmatprep.subr.mxu0 0.0
  %4930 = vmatpush1.msra.mxu0 0.0
  %4931 = vmatprep.subr.mxu0 0.0
  %4932 = vmatpush1.msra.mxu0 0.0
  %4933 = vmatprep.subr.mxu0 0.0
  %4934 = vmatpush1.msra.mxu0 0.0
  %4935 = vmatprep.subr.mxu0 0.0
  %4936 = vmatpush1.msra.mxu0 0.0
  %4937 = vmatprep.subr.mxu0 0.0
  %4938 = vmatpush1.msra.mxu0 0.0
  %4939 = vmatprep.subr.mxu0 0.0
  %4940 = vmatpush1.msra.mxu0 0.0
  %4941 = vmatprep.subr.mxu0 0.0
  %4942 = vmatpush1.msra.mxu0 0.0
  %4943 = vmatprep.subr.mxu0 0.0
  %4944 = vmatpush1.msra.mxu0 0.0
  %4945 = vmatprep.subr.mxu0 0.0
  %4946 = vmatpush1.msra.mxu0 0.0
  %4947 = vmatprep.mubr.f32.mxu0 0.0
  %4948 = vmatmul.mubr.f32.gmra.mrb[0].mxu0 %v4881
  %v4949 = vpop.f32.mrb[0].mxu0
  %v4950 = vadd.f32 0.0, %v4949
  %v4951 = vpop.f32.mrb[0].mxu0
  %4952 = vdwg.mxu0
  %v4953 = vadd.f32 %v4870, %v4950
  %v4954 = vld [vmem:[#allocation4 + $0x32] sm:$0x3]
  %v4955 = vld [vmem:[%s7 + $0x4c0] sm:$0xff]
  %v4956 = vld [vmem:[%s7 + $0x4c8] sm:$0xff]
  %v4957 = vld [vmem:[%s7 + $0x4d0] sm:$0xff]
  %v4958 = vld [vmem:[%s7 + $0x4d8] sm:$0xff]
  %v4959 = vld [vmem:[%s7 + $0x4e0] sm:$0xff]
  %v4960 = vld [vmem:[%s7 + $0x4e8] sm:$0xff]
  %v4961 = vld [vmem:[%s7 + $0x4f0] sm:$0xff]
  %v4962 = vld [vmem:[%s7 + $0x4f8] sm:$0xff]
  %v4964 = vsel %vm2357, %v4954, 0
  %4966 = vmatprep.subr.mxu0 0.0
  %4967 = vmatpush1.msra.mxu0 %v4955
  %4968 = vmatprep.subr.mxu0 0.0
  %4969 = vmatpush1.msra.mxu0 %v4956
  %4970 = vmatprep.subr.mxu0 0.0
  %4971 = vmatpush1.msra.mxu0 %v4957
  %4972 = vmatprep.subr.mxu0 0.0
  %4973 = vmatpush1.msra.mxu0 %v4958
  %4974 = vmatprep.subr.mxu0 0.0
  %4975 = vmatpush1.msra.mxu0 %v4959
  %4976 = vmatprep.subr.mxu0 0.0
  %4977 = vmatpush1.msra.mxu0 %v4960
  %4978 = vmatprep.subr.mxu0 0.0
  %4979 = vmatpush1.msra.mxu0 %v4961
  %4980 = vmatprep.subr.mxu0 0.0
  %4981 = vmatpush1.msra.mxu0 %v4962
  %4982 = vmatprep.subr.mxu0 0.0
  %4983 = vmatpush1.msra.mxu0 0.0
  %4984 = vmatprep.subr.mxu0 0.0
  %4985 = vmatpush1.msra.mxu0 0.0
  %4986 = vmatprep.subr.mxu0 0.0
  %4987 = vmatpush1.msra.mxu0 0.0
  %4988 = vmatprep.subr.mxu0 0.0
  %4989 = vmatpush1.msra.mxu0 0.0
  %4990 = vmatprep.subr.mxu0 0.0
  %4991 = vmatpush1.msra.mxu0 0.0
  %4992 = vmatprep.subr.mxu0 0.0
  %4993 = vmatpush1.msra.mxu0 0.0
  %4994 = vmatprep.subr.mxu0 0.0
  %4995 = vmatpush1.msra.mxu0 0.0
  %4996 = vmatprep.subr.mxu0 0.0
  %4997 = vmatpush1.msra.mxu0 0.0
  %4998 = vmatprep.subr.mxu0 0.0
  %4999 = vmatpush1.msra.mxu0 0.0
  %5000 = vmatprep.subr.mxu0 0.0
  %5001 = vmatpush1.msra.mxu0 0.0
  %5002 = vmatprep.subr.mxu0 0.0
  %5003 = vmatpush1.msra.mxu0 0.0
  %5004 = vmatprep.subr.mxu0 0.0
  %5005 = vmatpush1.msra.mxu0 0.0
  %5006 = vmatprep.subr.mxu0 0.0
  %5007 = vmatpush1.msra.mxu0 0.0
  %5008 = vmatprep.subr.mxu0 0.0
  %5009 = vmatpush1.msra.mxu0 0.0
  %5010 = vmatprep.subr.mxu0 0.0
  %5011 = vmatpush1.msra.mxu0 0.0
  %5012 = vmatprep.subr.mxu0 0.0
  %5013 = vmatpush1.msra.mxu0 0.0
  %5014 = vmatprep.subr.mxu0 0.0
  %5015 = vmatpush1.msra.mxu0 0.0
  %5016 = vmatprep.subr.mxu0 0.0
  %5017 = vmatpush1.msra.mxu0 0.0
  %5018 = vmatprep.subr.mxu0 0.0
  %5019 = vmatpush1.msra.mxu0 0.0
  %5020 = vmatprep.subr.mxu0 0.0
  %5021 = vmatpush1.msra.mxu0 0.0
  %5022 = vmatprep.subr.mxu0 0.0
  %5023 = vmatpush1.msra.mxu0 0.0
  %5024 = vmatprep.subr.mxu0 0.0
  %5025 = vmatpush1.msra.mxu0 0.0
  %5026 = vmatprep.subr.mxu0 0.0
  %5027 = vmatpush1.msra.mxu0 0.0
  %5028 = vmatprep.subr.mxu0 0.0
  %5029 = vmatpush1.msra.mxu0 0.0
  %5030 = vmatprep.mubr.f32.mxu0 0.0
  %5031 = vmatmul.mubr.f32.gmra.mrb[0].mxu0 %v4964
  %v5032 = vpop.f32.mrb[0].mxu0
  %v5033 = vadd.f32 0.0, %v5032
  %v5034 = vpop.f32.mrb[0].mxu0
  %5035 = vdwg.mxu0
  %v5036 = vadd.f32 %v4953, %v5033
  %v5037 = vld [vmem:[#allocation4 + $0x34] sm:$0x3]
  %v5038 = vld [vmem:[%s7 + $0x500] sm:$0xff]
  %v5039 = vld [vmem:[%s7 + $0x508] sm:$0xff]
  %v5040 = vld [vmem:[%s7 + $0x510] sm:$0xff]
  %v5041 = vld [vmem:[%s7 + $0x518] sm:$0xff]
  %v5042 = vld [vmem:[%s7 + $0x520] sm:$0xff]
  %v5043 = vld [vmem:[%s7 + $0x528] sm:$0xff]
  %v5044 = vld [vmem:[%s7 + $0x530] sm:$0xff]
  %v5045 = vld [vmem:[%s7 + $0x538] sm:$0xff]
  %v5047 = vsel %vm2357, %v5037, 0
  %5049 = vmatprep.subr.mxu0 0.0
  %5050 = vmatpush1.msra.mxu0 %v5038
  %5051 = vmatprep.subr.mxu0 0.0
  %5052 = vmatpush1.msra.mxu0 %v5039
  %5053 = vmatprep.subr.mxu0 0.0
  %5054 = vmatpush1.msra.mxu0 %v5040
  %5055 = vmatprep.subr.mxu0 0.0
  %5056 = vmatpush1.msra.mxu0 %v5041
  %5057 = vmatprep.subr.mxu0 0.0
  %5058 = vmatpush1.msra.mxu0 %v5042
  %5059 = vmatprep.subr.mxu0 0.0
  %5060 = vmatpush1.msra.mxu0 %v5043
  %5061 = vmatprep.subr.mxu0 0.0
  %5062 = vmatpush1.msra.mxu0 %v5044
  %5063 = vmatprep.subr.mxu0 0.0
  %5064 = vmatpush1.msra.mxu0 %v5045
  %5065 = vmatprep.subr.mxu0 0.0
  %5066 = vmatpush1.msra.mxu0 0.0
  %5067 = vmatprep.subr.mxu0 0.0
  %5068 = vmatpush1.msra.mxu0 0.0
  %5069 = vmatprep.subr.mxu0 0.0
  %5070 = vmatpush1.msra.mxu0 0.0
  %5071 = vmatprep.subr.mxu0 0.0
  %5072 = vmatpush1.msra.mxu0 0.0
  %5073 = vmatprep.subr.mxu0 0.0
  %5074 = vmatpush1.msra.mxu0 0.0
  %5075 = vmatprep.subr.mxu0 0.0
  %5076 = vmatpush1.msra.mxu0 0.0
  %5077 = vmatprep.subr.mxu0 0.0
  %5078 = vmatpush1.msra.mxu0 0.0
  %5079 = vmatprep.subr.mxu0 0.0
  %5080 = vmatpush1.msra.mxu0 0.0
  %5081 = vmatprep.subr.mxu0 0.0
  %5082 = vmatpush1.msra.mxu0 0.0
  %5083 = vmatprep.subr.mxu0 0.0
  %5084 = vmatpush1.msra.mxu0 0.0
  %5085 = vmatprep.subr.mxu0 0.0
  %5086 = vmatpush1.msra.mxu0 0.0
  %5087 = vmatprep.subr.mxu0 0.0
  %5088 = vmatpush1.msra.mxu0 0.0
  %5089 = vmatprep.subr.mxu0 0.0
  %5090 = vmatpush1.msra.mxu0 0.0
  %5091 = vmatprep.subr.mxu0 0.0
  %5092 = vmatpush1.msra.mxu0 0.0
  %5093 = vmatprep.subr.mxu0 0.0
  %5094 = vmatpush1.msra.mxu0 0.0
  %5095 = vmatprep.subr.mxu0 0.0
  %5096 = vmatpush1.msra.mxu0 0.0
  %5097 = vmatprep.subr.mxu0 0.0
  %5098 = vmatpush1.msra.mxu0 0.0
  %5099 = vmatprep.subr.mxu0 0.0
  %5100 = vmatpush1.msra.mxu0 0.0
  %5101 = vmatprep.subr.mxu0 0.0
  %5102 = vmatpush1.msra.mxu0 0.0
  %5103 = vmatprep.subr.mxu0 0.0
  %5104 = vmatpush1.msra.mxu0 0.0
  %5105 = vmatprep.subr.mxu0 0.0
  %5106 = vmatpush1.msra.mxu0 0.0
  %5107 = vmatprep.subr.mxu0 0.0
  %5108 = vmatpush1.msra.mxu0 0.0
  %5109 = vmatprep.subr.mxu0 0.0
  %5110 = vmatpush1.msra.mxu0 0.0
  %5111 = vmatprep.subr.mxu0 0.0
  %5112 = vmatpush1.msra.mxu0 0.0
  %5113 = vmatprep.mubr.f32.mxu0 0.0
  %5114 = vmatmul.mubr.f32.gmra.mrb[0].mxu0 %v5047
  %v5115 = vpop.f32.mrb[0].mxu0
  %v5116 = vadd.f32 0.0, %v5115
  %v5117 = vpop.f32.mrb[0].mxu0
  %5118 = vdwg.mxu0
  %v5119 = vadd.f32 %v5036, %v5116
  %v5120 = vld [vmem:[#allocation4 + $0x3c] sm:$0x3]
  %v5121 = vld [vmem:[%s7 + $0x540] sm:$0xff]
  %v5122 = vld [vmem:[%s7 + $0x548] sm:$0xff]
  %v5123 = vld [vmem:[%s7 + $0x550] sm:$0xff]
  %v5124 = vld [vmem:[%s7 + $0x558] sm:$0xff]
  %v5125 = vld [vmem:[%s7 + $0x560] sm:$0xff]
  %v5126 = vld [vmem:[%s7 + $0x568] sm:$0xff]
  %v5127 = vld [vmem:[%s7 + $0x570] sm:$0xff]
  %v5128 = vld [vmem:[%s7 + $0x578] sm:$0xff]
  %v5130 = vsel %vm2357, %v5120, 0
  %5132 = vmatprep.subr.mxu0 0.0
  %5133 = vmatpush1.msra.mxu0 %v5121
  %5134 = vmatprep.subr.mxu0 0.0
  %5135 = vmatpush1.msra.mxu0 %v5122
  %5136 = vmatprep.subr.mxu0 0.0
  %5137 = vmatpush1.msra.mxu0 %v5123
  %5138 = vmatprep.subr.mxu0 0.0
  %5139 = vmatpush1.msra.mxu0 %v5124
  %5140 = vmatprep.subr.mxu0 0.0
  %5141 = vmatpush1.msra.mxu0 %v5125
  %5142 = vmatprep.subr.mxu0 0.0
  %5143 = vmatpush1.msra.mxu0 %v5126
  %5144 = vmatprep.subr.mxu0 0.0
  %5145 = vmatpush1.msra.mxu0 %v5127
  %5146 = vmatprep.subr.mxu0 0.0
  %5147 = vmatpush1.msra.mxu0 %v5128
  %5148 = vmatprep.subr.mxu0 0.0
  %5149 = vmatpush1.msra.mxu0 0.0
  %5150 = vmatprep.subr.mxu0 0.0
  %5151 = vmatpush1.msra.mxu0 0.0
  %5152 = vmatprep.subr.mxu0 0.0
  %5153 = vmatpush1.msra.mxu0 0.0
  %5154 = vmatprep.subr.mxu0 0.0
  %5155 = vmatpush1.msra.mxu0 0.0
  %5156 = vmatprep.subr.mxu0 0.0
  %5157 = vmatpush1.msra.mxu0 0.0
  %5158 = vmatprep.subr.mxu0 0.0
  %5159 = vmatpush1.msra.mxu0 0.0
  %5160 = vmatprep.subr.mxu0 0.0
  %5161 = vmatpush1.msra.mxu0 0.0
  %5162 = vmatprep.subr.mxu0 0.0
  %5163 = vmatpush1.msra.mxu0 0.0
  %5164 = vmatprep.subr.mxu0 0.0
  %5165 = vmatpush1.msra.mxu0 0.0
  %5166 = vmatprep.subr.mxu0 0.0
  %5167 = vmatpush1.msra.mxu0 0.0
  %5168 = vmatprep.subr.mxu0 0.0
  %5169 = vmatpush1.msra.mxu0 0.0
  %5170 = vmatprep.subr.mxu0 0.0
  %5171 = vmatpush1.msra.mxu0 0.0
  %5172 = vmatprep.subr.mxu0 0.0
  %5173 = vmatpush1.msra.mxu0 0.0
  %5174 = vmatprep.subr.mxu0 0.0
  %5175 = vmatpush1.msra.mxu0 0.0
  %5176 = vmatprep.subr.mxu0 0.0
  %5177 = vmatpush1.msra.mxu0 0.0
  %5178 = vmatprep.subr.mxu0 0.0
  %5179 = vmatpush1.msra.mxu0 0.0
  %5180 = vmatprep.subr.mxu0 0.0
  %5181 = vmatpush1.msra.mxu0 0.0
  %5182 = vmatprep.subr.mxu0 0.0
  %5183 = vmatpush1.msra.mxu0 0.0
  %5184 = vmatprep.subr.mxu0 0.0
  %5185 = vmatpush1.msra.mxu0 0.0
  %5186 = vmatprep.subr.mxu0 0.0
  %5187 = vmatpush1.msra.mxu0 0.0
  %5188 = vmatprep.subr.mxu0 0.0
  %5189 = vmatpush1.msra.mxu0 0.0
  %5190 = vmatprep.subr.mxu0 0.0
  %5191 = vmatpush1.msra.mxu0 0.0
  %5192 = vmatprep.subr.mxu0 0.0
  %5193 = vmatpush1.msra.mxu0 0.0
  %5194 = vmatprep.subr.mxu0 0.0
  %5195 = vmatpush1.msra.mxu0 0.0
  %5196 = vmatprep.mubr.f32.mxu0 0.0
  %5197 = vmatmul.mubr.f32.gmra.mrb[0].mxu0 %v5130
  %v5198 = vpop.f32.mrb[0].mxu0
  %v5199 = vadd.f32 0.0, %v5198
  %v5200 = vpop.f32.mrb[0].mxu0
  %5201 = vdwg.mxu0
  %v5202 = vadd.f32 %v5119, %v5199
  %v5203 = vld [vmem:[#allocation4 + $0x3e] sm:$0x3]
  %v5204 = vld [vmem:[%s7 + $0x580] sm:$0xff]
  %v5205 = vld [vmem:[%s7 + $0x588] sm:$0xff]
  %v5206 = vld [vmem:[%s7 + $0x590] sm:$0xff]
  %v5207 = vld [vmem:[%s7 + $0x598] sm:$0xff]
  %v5208 = vld [vmem:[%s7 + $0x5a0] sm:$0xff]
  %v5209 = vld [vmem:[%s7 + $0x5a8] sm:$0xff]
  %v5210 = vld [vmem:[%s7 + $0x5b0] sm:$0xff]
  %v5211 = vld [vmem:[%s7 + $0x5b8] sm:$0xff]
  %v5213 = vsel %vm2357, %v5203, 0
  %5215 = vmatprep.subr.mxu0 0.0
  %5216 = vmatpush1.msra.mxu0 %v5204
  %5217 = vmatprep.subr.mxu0 0.0
  %5218 = vmatpush1.msra.mxu0 %v5205
  %5219 = vmatprep.subr.mxu0 0.0
  %5220 = vmatpush1.msra.mxu0 %v5206
  %5221 = vmatprep.subr.mxu0 0.0
  %5222 = vmatpush1.msra.mxu0 %v5207
  %5223 = vmatprep.subr.mxu0 0.0
  %5224 = vmatpush1.msra.mxu0 %v5208
  %5225 = vmatprep.subr.mxu0 0.0
  %5226 = vmatpush1.msra.mxu0 %v5209
  %5227 = vmatprep.subr.mxu0 0.0
  %5228 = vmatpush1.msra.mxu0 %v5210
  %5229 = vmatprep.subr.mxu0 0.0
  %5230 = vmatpush1.msra.mxu0 %v5211
  %5231 = vmatprep.subr.mxu0 0.0
  %5232 = vmatpush1.msra.mxu0 0.0
  %5233 = vmatprep.subr.mxu0 0.0
  %5234 = vmatpush1.msra.mxu0 0.0
  %5235 = vmatprep.subr.mxu0 0.0
  %5236 = vmatpush1.msra.mxu0 0.0
  %5237 = vmatprep.subr.mxu0 0.0
  %5238 = vmatpush1.msra.mxu0 0.0
  %5239 = vmatprep.subr.mxu0 0.0
  %5240 = vmatpush1.msra.mxu0 0.0
  %5241 = vmatprep.subr.mxu0 0.0
  %5242 = vmatpush1.msra.mxu0 0.0
  %5243 = vmatprep.subr.mxu0 0.0
  %5244 = vmatpush1.msra.mxu0 0.0
  %5245 = vmatprep.subr.mxu0 0.0
  %5246 = vmatpush1.msra.mxu0 0.0
  %5247 = vmatprep.subr.mxu0 0.0
  %5248 = vmatpush1.msra.mxu0 0.0
  %5249 = vmatprep.subr.mxu0 0.0
  %5250 = vmatpush1.msra.mxu0 0.0
  %5251 = vmatprep.subr.mxu0 0.0
  %5252 = vmatpush1.msra.mxu0 0.0
  %5253 = vmatprep.subr.mxu0 0.0
  %5254 = vmatpush1.msra.mxu0 0.0
  %5255 = vmatprep.subr.mxu0 0.0
  %5256 = vmatpush1.msra.mxu0 0.0
  %5257 = vmatprep.subr.mxu0 0.0
  %5258 = vmatpush1.msra.mxu0 0.0
  %5259 = vmatprep.subr.mxu0 0.0
  %5260 = vmatpush1.msra.mxu0 0.0
  %5261 = vmatprep.subr.mxu0 0.0
  %5262 = vmatpush1.msra.mxu0 0.0
  %5263 = vmatprep.subr.mxu0 0.0
  %5264 = vmatpush1.msra.mxu0 0.0
  %5265 = vmatprep.subr.mxu0 0.0
  %5266 = vmatpush1.msra.mxu0 0.0
  %5267 = vmatprep.subr.mxu0 0.0
  %5268 = vmatpush1.msra.mxu0 0.0
  %5269 = vmatprep.subr.mxu0 0.0
  %5270 = vmatpush1.msra.mxu0 0.0
  %5271 = vmatprep.subr.mxu0 0.0
  %5272 = vmatpush1.msra.mxu0 0.0
  %5273 = vmatprep.subr.mxu0 0.0
  %5274 = vmatpush1.msra.mxu0 0.0
  %5275 = vmatprep.subr.mxu0 0.0
  %5276 = vmatpush1.msra.mxu0 0.0
  %5277 = vmatprep.subr.mxu0 0.0
  %5278 = vmatpush1.msra.mxu0 0.0
  %5279 = vmatprep.mubr.f32.mxu0 0.0
  %5280 = vmatmul.mubr.f32.gmra.mrb[0].mxu0 %v5213
  %v5281 = vpop.f32.mrb[0].mxu0
  %v5282 = vadd.f32 0.0, %v5281
  %v5283 = vpop.f32.mrb[0].mxu0
  %5284 = vdwg.mxu0
  %v5285 = vadd.f32 %v5202, %v5282
  %v5286 = vld [vmem:[#allocation4 + $0x40] sm:$0x3]
  %v5287 = vld [vmem:[%s7 + $0x5c0] sm:$0xff]
  %v5288 = vld [vmem:[%s7 + $0x5c8] sm:$0xff]
  %v5289 = vld [vmem:[%s7 + $0x5d0] sm:$0xff]
  %v5290 = vld [vmem:[%s7 + $0x5d8] sm:$0xff]
  %v5291 = vld [vmem:[%s7 + $0x5e0] sm:$0xff]
  %v5292 = vld [vmem:[%s7 + $0x5e8] sm:$0xff]
  %v5293 = vld [vmem:[%s7 + $0x5f0] sm:$0xff]
  %v5294 = vld [vmem:[%s7 + $0x5f8] sm:$0xff]
  %v5296 = vsel %vm2357, %v5286, 0
  %5298 = vmatprep.subr.mxu0 0.0
  %5299 = vmatpush1.msra.mxu0 %v5287
  %5300 = vmatprep.subr.mxu0 0.0
  %5301 = vmatpush1.msra.mxu0 %v5288
  %5302 = vmatprep.subr.mxu0 0.0
  %5303 = vmatpush1.msra.mxu0 %v5289
  %5304 = vmatprep.subr.mxu0 0.0
  %5305 = vmatpush1.msra.mxu0 %v5290
  %5306 = vmatprep.subr.mxu0 0.0
  %5307 = vmatpush1.msra.mxu0 %v5291
  %5308 = vmatprep.subr.mxu0 0.0
  %5309 = vmatpush1.msra.mxu0 %v5292
  %5310 = vmatprep.subr.mxu0 0.0
  %5311 = vmatpush1.msra.mxu0 %v5293
  %5312 = vmatprep.subr.mxu0 0.0
  %5313 = vmatpush1.msra.mxu0 %v5294
  %5314 = vmatprep.subr.mxu0 0.0
  %5315 = vmatpush1.msra.mxu0 0.0
  %5316 = vmatprep.subr.mxu0 0.0
  %5317 = vmatpush1.msra.mxu0 0.0
  %5318 = vmatprep.subr.mxu0 0.0
  %5319 = vmatpush1.msra.mxu0 0.0
  %5320 = vmatprep.subr.mxu0 0.0
  %5321 = vmatpush1.msra.mxu0 0.0
  %5322 = vmatprep.subr.mxu0 0.0
  %5323 = vmatpush1.msra.mxu0 0.0
  %5324 = vmatprep.subr.mxu0 0.0
  %5325 = vmatpush1.msra.mxu0 0.0
  %5326 = vmatprep.subr.mxu0 0.0
  %5327 = vmatpush1.msra.mxu0 0.0
  %5328 = vmatprep.subr.mxu0 0.0
  %5329 = vmatpush1.msra.mxu0 0.0
  %5330 = vmatprep.subr.mxu0 0.0
  %5331 = vmatpush1.msra.mxu0 0.0
  %5332 = vmatprep.subr.mxu0 0.0
  %5333 = vmatpush1.msra.mxu0 0.0
  %5334 = vmatprep.subr.mxu0 0.0
  %5335 = vmatpush1.msra.mxu0 0.0
  %5336 = vmatprep.subr.mxu0 0.0
  %5337 = vmatpush1.msra.mxu0 0.0
  %5338 = vmatprep.subr.mxu0 0.0
  %5339 = vmatpush1.msra.mxu0 0.0
  %5340 = vmatprep.subr.mxu0 0.0
  %5341 = vmatpush1.msra.mxu0 0.0
  %5342 = vmatprep.subr.mxu0 0.0
  %5343 = vmatpush1.msra.mxu0 0.0
  %5344 = vmatprep.subr.mxu0 0.0
  %5345 = vmatpush1.msra.mxu0 0.0
  %5346 = vmatprep.subr.mxu0 0.0
  %5347 = vmatpush1.msra.mxu0 0.0
  %5348 = vmatprep.subr.mxu0 0.0
  %5349 = vmatpush1.msra.mxu0 0.0
  %5350 = vmatprep.subr.mxu0 0.0
  %5351 = vmatpush1.msra.mxu0 0.0
  %5352 = vmatprep.subr.mxu0 0.0
  %5353 = vmatpush1.msra.mxu0 0.0
  %5354 = vmatprep.subr.mxu0 0.0
  %5355 = vmatpush1.msra.mxu0 0.0
  %5356 = vmatprep.subr.mxu0 0.0
  %5357 = vmatpush1.msra.mxu0 0.0
  %5358 = vmatprep.subr.mxu0 0.0
  %5359 = vmatpush1.msra.mxu0 0.0
  %5360 = vmatprep.subr.mxu0 0.0
  %5361 = vmatpush1.msra.mxu0 0.0
  %5362 = vmatprep.mubr.f32.mxu0 0.0
  %5363 = vmatmul.mubr.f32.gmra.mrb[0].mxu0 %v5296
  %v5364 = vpop.f32.mrb[0].mxu0
  %v5365 = vadd.f32 0.0, %v5364
  %v5366 = vpop.f32.mrb[0].mxu0
  %5367 = vdwg.mxu0
  %v5368 = vadd.f32 %v5285, %v5365
  %v5369 = vld [vmem:[#allocation4 + $0x42] sm:$0x3]
  %v5370 = vld [vmem:[%s7 + $0x600] sm:$0xff]
  %v5371 = vld [vmem:[%s7 + $0x608] sm:$0xff]
  %v5372 = vld [vmem:[%s7 + $0x610] sm:$0xff]
  %v5373 = vld [vmem:[%s7 + $0x618] sm:$0xff]
  %v5374 = vld [vmem:[%s7 + $0x620] sm:$0xff]
  %v5375 = vld [vmem:[%s7 + $0x628] sm:$0xff]
  %v5376 = vld [vmem:[%s7 + $0x630] sm:$0xff]
  %v5377 = vld [vmem:[%s7 + $0x638] sm:$0xff]
  %v5379 = vsel %vm2357, %v5369, 0
  %5381 = vmatprep.subr.mxu0 0.0
  %5382 = vmatpush1.msra.mxu0 %v5370
  %5383 = vmatprep.subr.mxu0 0.0
  %5384 = vmatpush1.msra.mxu0 %v5371
  %5385 = vmatprep.subr.mxu0 0.0
  %5386 = vmatpush1.msra.mxu0 %v5372
  %5387 = vmatprep.subr.mxu0 0.0
  %5388 = vmatpush1.msra.mxu0 %v5373
  %5389 = vmatprep.subr.mxu0 0.0
  %5390 = vmatpush1.msra.mxu0 %v5374
  %5391 = vmatprep.subr.mxu0 0.0
  %5392 = vmatpush1.msra.mxu0 %v5375
  %5393 = vmatprep.subr.mxu0 0.0
  %5394 = vmatpush1.msra.mxu0 %v5376
  %5395 = vmatprep.subr.mxu0 0.0
  %5396 = vmatpush1.msra.mxu0 %v5377
  %5397 = vmatprep.subr.mxu0 0.0
  %5398 = vmatpush1.msra.mxu0 0.0
  %5399 = vmatprep.subr.mxu0 0.0
  %5400 = vmatpush1.msra.mxu0 0.0
  %5401 = vmatprep.subr.mxu0 0.0
  %5402 = vmatpush1.msra.mxu0 0.0
  %5403 = vmatprep.subr.mxu0 0.0
  %5404 = vmatpush1.msra.mxu0 0.0
  %5405 = vmatprep.subr.mxu0 0.0
  %5406 = vmatpush1.msra.mxu0 0.0
  %5407 = vmatprep.subr.mxu0 0.0
  %5408 = vmatpush1.msra.mxu0 0.0
  %5409 = vmatprep.subr.mxu0 0.0
  %5410 = vmatpush1.msra.mxu0 0.0
  %5411 = vmatprep.subr.mxu0 0.0
  %5412 = vmatpush1.msra.mxu0 0.0
  %5413 = vmatprep.subr.mxu0 0.0
  %5414 = vmatpush1.msra.mxu0 0.0
  %5415 = vmatprep.subr.mxu0 0.0
  %5416 = vmatpush1.msra.mxu0 0.0
  %5417 = vmatprep.subr.mxu0 0.0
  %5418 = vmatpush1.msra.mxu0 0.0
  %5419 = vmatprep.subr.mxu0 0.0
  %5420 = vmatpush1.msra.mxu0 0.0
  %5421 = vmatprep.subr.mxu0 0.0
  %5422 = vmatpush1.msra.mxu0 0.0
  %5423 = vmatprep.subr.mxu0 0.0
  %5424 = vmatpush1.msra.mxu0 0.0
  %5425 = vmatprep.subr.mxu0 0.0
  %5426 = vmatpush1.msra.mxu0 0.0
  %5427 = vmatprep.subr.mxu0 0.0
  %5428 = vmatpush1.msra.mxu0 0.0
  %5429 = vmatprep.subr.mxu0 0.0
  %5430 = vmatpush1.msra.mxu0 0.0
  %5431 = vmatprep.subr.mxu0 0.0
  %5432 = vmatpush1.msra.mxu0 0.0
  %5433 = vmatprep.subr.mxu0 0.0
  %5434 = vmatpush1.msra.mxu0 0.0
  %5435 = vmatprep.subr.mxu0 0.0
  %5436 = vmatpush1.msra.mxu0 0.0
  %5437 = vmatprep.subr.mxu0 0.0
  %5438 = vmatpush1.msra.mxu0 0.0
  %5439 = vmatprep.subr.mxu0 0.0
  %5440 = vmatpush1.msra.mxu0 0.0
  %5441 = vmatprep.subr.mxu0 0.0
  %5442 = vmatpush1.msra.mxu0 0.0
  %5443 = vmatprep.subr.mxu0 0.0
  %5444 = vmatpush1.msra.mxu0 0.0
  %5445 = vmatprep.mubr.f32.mxu0 0.0
  %5446 = vmatmul.mubr.f32.gmra.mrb[0].mxu0 %v5379
  %v5447 = vpop.f32.mrb[0].mxu0
  %v5448 = vadd.f32 0.0, %v5447
  %v5449 = vpop.f32.mrb[0].mxu0
  %5450 = vdwg.mxu0
  %v5451 = vadd.f32 %v5368, %v5448
  %v5452 = vld [vmem:[#allocation4 + $0x44] sm:$0x3]
  %v5453 = vld [vmem:[%s7 + $0x640] sm:$0xff]
  %v5454 = vld [vmem:[%s7 + $0x648] sm:$0xff]
  %v5455 = vld [vmem:[%s7 + $0x650] sm:$0xff]
  %v5456 = vld [vmem:[%s7 + $0x658] sm:$0xff]
  %v5457 = vld [vmem:[%s7 + $0x660] sm:$0xff]
  %v5458 = vld [vmem:[%s7 + $0x668] sm:$0xff]
  %v5459 = vld [vmem:[%s7 + $0x670] sm:$0xff]
  %v5460 = vld [vmem:[%s7 + $0x678] sm:$0xff]
  %v5462 = vsel %vm2357, %v5452, 0
  %5464 = vmatprep.subr.mxu0 0.0
  %5465 = vmatpush1.msra.mxu0 %v5453
  %5466 = vmatprep.subr.mxu0 0.0
  %5467 = vmatpush1.msra.mxu0 %v5454
  %5468 = vmatprep.subr.mxu0 0.0
  %5469 = vmatpush1.msra.mxu0 %v5455
  %5470 = vmatprep.subr.mxu0 0.0
  %5471 = vmatpush1.msra.mxu0 %v5456
  %5472 = vmatprep.subr.mxu0 0.0
  %5473 = vmatpush1.msra.mxu0 %v5457
  %5474 = vmatprep.subr.mxu0 0.0
  %5475 = vmatpush1.msra.mxu0 %v5458
  %5476 = vmatprep.subr.mxu0 0.0
  %5477 = vmatpush1.msra.mxu0 %v5459
  %5478 = vmatprep.subr.mxu0 0.0
  %5479 = vmatpush1.msra.mxu0 %v5460
  %5480 = vmatprep.subr.mxu0 0.0
  %5481 = vmatpush1.msra.mxu0 0.0
  %5482 = vmatprep.subr.mxu0 0.0
  %5483 = vmatpush1.msra.mxu0 0.0
  %5484 = vmatprep.subr.mxu0 0.0
  %5485 = vmatpush1.msra.mxu0 0.0
  %5486 = vmatprep.subr.mxu0 0.0
  %5487 = vmatpush1.msra.mxu0 0.0
  %5488 = vmatprep.subr.mxu0 0.0
  %5489 = vmatpush1.msra.mxu0 0.0
  %5490 = vmatprep.subr.mxu0 0.0
  %5491 = vmatpush1.msra.mxu0 0.0
  %5492 = vmatprep.subr.mxu0 0.0
  %5493 = vmatpush1.msra.mxu0 0.0
  %5494 = vmatprep.subr.mxu0 0.0
  %5495 = vmatpush1.msra.mxu0 0.0
  %5496 = vmatprep.subr.mxu0 0.0
  %5497 = vmatpush1.msra.mxu0 0.0
  %5498 = vmatprep.subr.mxu0 0.0
  %5499 = vmatpush1.msra.mxu0 0.0
  %5500 = vmatprep.subr.mxu0 0.0
  %5501 = vmatpush1.msra.mxu0 0.0
  %5502 = vmatprep.subr.mxu0 0.0
  %5503 = vmatpush1.msra.mxu0 0.0
  %5504 = vmatprep.subr.mxu0 0.0
  %5505 = vmatpush1.msra.mxu0 0.0
  %5506 = vmatprep.subr.mxu0 0.0
  %5507 = vmatpush1.msra.mxu0 0.0
  %5508 = vmatprep.subr.mxu0 0.0
  %5509 = vmatpush1.msra.mxu0 0.0
  %5510 = vmatprep.subr.mxu0 0.0
  %5511 = vmatpush1.msra.mxu0 0.0
  %5512 = vmatprep.subr.mxu0 0.0
  %5513 = vmatpush1.msra.mxu0 0.0
  %5514 = vmatprep.subr.mxu0 0.0
  %5515 = vmatpush1.msra.mxu0 0.0
  %5516 = vmatprep.subr.mxu0 0.0
  %5517 = vmatpush1.msra.mxu0 0.0
  %5518 = vmatprep.subr.mxu0 0.0
  %5519 = vmatpush1.msra.mxu0 0.0
  %5520 = vmatprep.subr.mxu0 0.0
  %5521 = vmatpush1.msra.mxu0 0.0
  %5522 = vmatprep.subr.mxu0 0.0
  %5523 = vmatpush1.msra.mxu0 0.0
  %5524 = vmatprep.subr.mxu0 0.0
  %5525 = vmatpush1.msra.mxu0 0.0
  %5526 = vmatprep.subr.mxu0 0.0
  %5527 = vmatpush1.msra.mxu0 0.0
  %5528 = vmatprep.mubr.f32.mxu0 0.0
  %5529 = vmatmul.mubr.f32.gmra.mrb[0].mxu0 %v5462
  %v5530 = vpop.f32.mrb[0].mxu0
  %v5531 = vadd.f32 0.0, %v5530
  %v5532 = vpop.f32.mrb[0].mxu0
  %5533 = vdwg.mxu0
  %v5534 = vadd.f32 %v5451, %v5531
  %v5535 = vld [vmem:[#allocation4 + $0x46] sm:$0x3]
  %v5536 = vld [vmem:[%s7 + $0x680] sm:$0xff]
  %v5537 = vld [vmem:[%s7 + $0x688] sm:$0xff]
  %v5538 = vld [vmem:[%s7 + $0x690] sm:$0xff]
  %v5539 = vld [vmem:[%s7 + $0x698] sm:$0xff]
  %v5540 = vld [vmem:[%s7 + $0x6a0] sm:$0xff]
  %v5541 = vld [vmem:[%s7 + $0x6a8] sm:$0xff]
  %v5542 = vld [vmem:[%s7 + $0x6b0] sm:$0xff]
  %v5543 = vld [vmem:[%s7 + $0x6b8] sm:$0xff]
  %v5545 = vsel %vm2357, %v5535, 0
  %5547 = vmatprep.subr.mxu0 0.0
  %5548 = vmatpush1.msra.mxu0 %v5536
  %5549 = vmatprep.subr.mxu0 0.0
  %5550 = vmatpush1.msra.mxu0 %v5537
  %5551 = vmatprep.subr.mxu0 0.0
  %5552 = vmatpush1.msra.mxu0 %v5538
  %5553 = vmatprep.subr.mxu0 0.0
  %5554 = vmatpush1.msra.mxu0 %v5539
  %5555 = vmatprep.subr.mxu0 0.0
  %5556 = vmatpush1.msra.mxu0 %v5540
  %5557 = vmatprep.subr.mxu0 0.0
  %5558 = vmatpush1.msra.mxu0 %v5541
  %5559 = vmatprep.subr.mxu0 0.0
  %5560 = vmatpush1.msra.mxu0 %v5542
  %5561 = vmatprep.subr.mxu0 0.0
  %5562 = vmatpush1.msra.mxu0 %v5543
  %5563 = vmatprep.subr.mxu0 0.0
  %5564 = vmatpush1.msra.mxu0 0.0
  %5565 = vmatprep.subr.mxu0 0.0
  %5566 = vmatpush1.msra.mxu0 0.0
  %5567 = vmatprep.subr.mxu0 0.0
  %5568 = vmatpush1.msra.mxu0 0.0
  %5569 = vmatprep.subr.mxu0 0.0
  %5570 = vmatpush1.msra.mxu0 0.0
  %5571 = vmatprep.subr.mxu0 0.0
  %5572 = vmatpush1.msra.mxu0 0.0
  %5573 = vmatprep.subr.mxu0 0.0
  %5574 = vmatpush1.msra.mxu0 0.0
  %5575 = vmatprep.subr.mxu0 0.0
  %5576 = vmatpush1.msra.mxu0 0.0
  %5577 = vmatprep.subr.mxu0 0.0
  %5578 = vmatpush1.msra.mxu0 0.0
  %5579 = vmatprep.subr.mxu0 0.0
  %5580 = vmatpush1.msra.mxu0 0.0
  %5581 = vmatprep.subr.mxu0 0.0
  %5582 = vmatpush1.msra.mxu0 0.0
  %5583 = vmatprep.subr.mxu0 0.0
  %5584 = vmatpush1.msra.mxu0 0.0
  %5585 = vmatprep.subr.mxu0 0.0
  %5586 = vmatpush1.msra.mxu0 0.0
  %5587 = vmatprep.subr.mxu0 0.0
  %5588 = vmatpush1.msra.mxu0 0.0
  %5589 = vmatprep.subr.mxu0 0.0
  %5590 = vmatpush1.msra.mxu0 0.0
  %5591 = vmatprep.subr.mxu0 0.0
  %5592 = vmatpush1.msra.mxu0 0.0
  %5593 = vmatprep.subr.mxu0 0.0
  %5594 = vmatpush1.msra.mxu0 0.0
  %5595 = vmatprep.subr.mxu0 0.0
  %5596 = vmatpush1.msra.mxu0 0.0
  %5597 = vmatprep.subr.mxu0 0.0
  %5598 = vmatpush1.msra.mxu0 0.0
  %5599 = vmatprep.subr.mxu0 0.0
  %5600 = vmatpush1.msra.mxu0 0.0
  %5601 = vmatprep.subr.mxu0 0.0
  %5602 = vmatpush1.msra.mxu0 0.0
  %5603 = vmatprep.subr.mxu0 0.0
  %5604 = vmatpush1.msra.mxu0 0.0
  %5605 = vmatprep.subr.mxu0 0.0
  %5606 = vmatpush1.msra.mxu0 0.0
  %5607 = vmatprep.subr.mxu0 0.0
  %5608 = vmatpush1.msra.mxu0 0.0
  %5609 = vmatprep.subr.mxu0 0.0
  %5610 = vmatpush1.msra.mxu0 0.0
  %5611 = vmatprep.mubr.f32.mxu0 0.0
  %5612 = vmatmul.mubr.f32.gmra.mrb[0].mxu0 %v5545
  %v5613 = vpop.f32.mrb[0].mxu0
  %v5614 = vadd.f32 0.0, %v5613
  %v5615 = vpop.f32.mrb[0].mxu0
  %5616 = vdwg.mxu0
  %v5617 = vadd.f32 %v5534, %v5614
  %v5618 = vld [vmem:[#allocation4 + $0x48] sm:$0x3]
  %v5619 = vld [vmem:[%s7 + $0x6c0] sm:$0xff]
  %v5620 = vld [vmem:[%s7 + $0x6c8] sm:$0xff]
  %v5621 = vld [vmem:[%s7 + $0x6d0] sm:$0xff]
  %v5622 = vld [vmem:[%s7 + $0x6d8] sm:$0xff]
  %v5623 = vld [vmem:[%s7 + $0x6e0] sm:$0xff]
  %v5624 = vld [vmem:[%s7 + $0x6e8] sm:$0xff]
  %v5625 = vld [vmem:[%s7 + $0x6f0] sm:$0xff]
  %v5626 = vld [vmem:[%s7 + $0x6f8] sm:$0xff]
  %v5628 = vsel %vm2357, %v5618, 0
  %5630 = vmatprep.subr.mxu0 0.0
  %5631 = vmatpush1.msra.mxu0 %v5619
  %5632 = vmatprep.subr.mxu0 0.0
  %5633 = vmatpush1.msra.mxu0 %v5620
  %5634 = vmatprep.subr.mxu0 0.0
  %5635 = vmatpush1.msra.mxu0 %v5621
  %5636 = vmatprep.subr.mxu0 0.0
  %5637 = vmatpush1.msra.mxu0 %v5622
  %5638 = vmatprep.subr.mxu0 0.0
  %5639 = vmatpush1.msra.mxu0 %v5623
  %5640 = vmatprep.subr.mxu0 0.0
  %5641 = vmatpush1.msra.mxu0 %v5624
  %5642 = vmatprep.subr.mxu0 0.0
  %5643 = vmatpush1.msra.mxu0 %v5625
  %5644 = vmatprep.subr.mxu0 0.0
  %5645 = vmatpush1.msra.mxu0 %v5626
  %5646 = vmatprep.subr.mxu0 0.0
  %5647 = vmatpush1.msra.mxu0 0.0
  %5648 = vmatprep.subr.mxu0 0.0
  %5649 = vmatpush1.msra.mxu0 0.0
  %5650 = vmatprep.subr.mxu0 0.0
  %5651 = vmatpush1.msra.mxu0 0.0
  %5652 = vmatprep.subr.mxu0 0.0
  %5653 = vmatpush1.msra.mxu0 0.0
  %5654 = vmatprep.subr.mxu0 0.0
  %5655 = vmatpush1.msra.mxu0 0.0
  %5656 = vmatprep.subr.mxu0 0.0
  %5657 = vmatpush1.msra.mxu0 0.0
  %5658 = vmatprep.subr.mxu0 0.0
  %5659 = vmatpush1.msra.mxu0 0.0
  %5660 = vmatprep.subr.mxu0 0.0
  %5661 = vmatpush1.msra.mxu0 0.0
  %5662 = vmatprep.subr.mxu0 0.0
  %5663 = vmatpush1.msra.mxu0 0.0
  %5664 = vmatprep.subr.mxu0 0.0
  %5665 = vmatpush1.msra.mxu0 0.0
  %5666 = vmatprep.subr.mxu0 0.0
  %5667 = vmatpush1.msra.mxu0 0.0
  %5668 = vmatprep.subr.mxu0 0.0
  %5669 = vmatpush1.msra.mxu0 0.0
  %5670 = vmatprep.subr.mxu0 0.0
  %5671 = vmatpush1.msra.mxu0 0.0
  %5672 = vmatprep.subr.mxu0 0.0
  %5673 = vmatpush1.msra.mxu0 0.0
  %5674 = vmatprep.subr.mxu0 0.0
  %5675 = vmatpush1.msra.mxu0 0.0
  %5676 = vmatprep.subr.mxu0 0.0
  %5677 = vmatpush1.msra.mxu0 0.0
  %5678 = vmatprep.subr.mxu0 0.0
  %5679 = vmatpush1.msra.mxu0 0.0
  %5680 = vmatprep.subr.mxu0 0.0
  %5681 = vmatpush1.msra.mxu0 0.0
  %5682 = vmatprep.subr.mxu0 0.0
  %5683 = vmatpush1.msra.mxu0 0.0
  %5684 = vmatprep.subr.mxu0 0.0
  %5685 = vmatpush1.msra.mxu0 0.0
  %5686 = vmatprep.subr.mxu0 0.0
  %5687 = vmatpush1.msra.mxu0 0.0
  %5688 = vmatprep.subr.mxu0 0.0
  %5689 = vmatpush1.msra.mxu0 0.0
  %5690 = vmatprep.subr.mxu0 0.0
  %5691 = vmatpush1.msra.mxu0 0.0
  %5692 = vmatprep.subr.mxu0 0.0
  %5693 = vmatpush1.msra.mxu0 0.0
  %5694 = vmatprep.mubr.f32.mxu0 0.0
  %5695 = vmatmul.mubr.f32.gmra.mrb[0].mxu0 %v5628
  %v5696 = vpop.f32.mrb[0].mxu0
  %v5697 = vadd.f32 0.0, %v5696
  %v5698 = vpop.f32.mrb[0].mxu0
  %5699 = vdwg.mxu0
  %v5700 = vadd.f32 %v5617, %v5697
  %v5701 = vld [vmem:[#allocation4 + $0x50] sm:$0x3]
  %v5702 = vld [vmem:[%s7 + $0x700] sm:$0xff]
  %v5703 = vld [vmem:[%s7 + $0x708] sm:$0xff]
  %v5704 = vld [vmem:[%s7 + $0x710] sm:$0xff]
  %v5705 = vld [vmem:[%s7 + $0x718] sm:$0xff]
  %v5706 = vld [vmem:[%s7 + $0x720] sm:$0xff]
  %v5707 = vld [vmem:[%s7 + $0x728] sm:$0xff]
  %v5708 = vld [vmem:[%s7 + $0x730] sm:$0xff]
  %v5709 = vld [vmem:[%s7 + $0x738] sm:$0xff]
  %v5711 = vsel %vm2357, %v5701, 0
  %5713 = vmatprep.subr.mxu0 0.0
  %5714 = vmatpush1.msra.mxu0 %v5702
  %5715 = vmatprep.subr.mxu0 0.0
  %5716 = vmatpush1.msra.mxu0 %v5703
  %5717 = vmatprep.subr.mxu0 0.0
  %5718 = vmatpush1.msra.mxu0 %v5704
  %5719 = vmatprep.subr.mxu0 0.0
  %5720 = vmatpush1.msra.mxu0 %v5705
  %5721 = vmatprep.subr.mxu0 0.0
  %5722 = vmatpush1.msra.mxu0 %v5706
  %5723 = vmatprep.subr.mxu0 0.0
  %5724 = vmatpush1.msra.mxu0 %v5707
  %5725 = vmatprep.subr.mxu0 0.0
  %5726 = vmatpush1.msra.mxu0 %v5708
  %5727 = vmatprep.subr.mxu0 0.0
  %5728 = vmatpush1.msra.mxu0 %v5709
  %5729 = vmatprep.subr.mxu0 0.0
  %5730 = vmatpush1.msra.mxu0 0.0
  %5731 = vmatprep.subr.mxu0 0.0
  %5732 = vmatpush1.msra.mxu0 0.0
  %5733 = vmatprep.subr.mxu0 0.0
  %5734 = vmatpush1.msra.mxu0 0.0
  %5735 = vmatprep.subr.mxu0 0.0
  %5736 = vmatpush1.msra.mxu0 0.0
  %5737 = vmatprep.subr.mxu0 0.0
  %5738 = vmatpush1.msra.mxu0 0.0
  %5739 = vmatprep.subr.mxu0 0.0
  %5740 = vmatpush1.msra.mxu0 0.0
  %5741 = vmatprep.subr.mxu0 0.0
  %5742 = vmatpush1.msra.mxu0 0.0
  %5743 = vmatprep.subr.mxu0 0.0
  %5744 = vmatpush1.msra.mxu0 0.0
  %5745 = vmatprep.subr.mxu0 0.0
  %5746 = vmatpush1.msra.mxu0 0.0
  %5747 = vmatprep.subr.mxu0 0.0
  %5748 = vmatpush1.msra.mxu0 0.0
  %5749 = vmatprep.subr.mxu0 0.0
  %5750 = vmatpush1.msra.mxu0 0.0
  %5751 = vmatprep.subr.mxu0 0.0
  %5752 = vmatpush1.msra.mxu0 0.0
  %5753 = vmatprep.subr.mxu0 0.0
  %5754 = vmatpush1.msra.mxu0 0.0
  %5755 = vmatprep.subr.mxu0 0.0
  %5756 = vmatpush1.msra.mxu0 0.0
  %5757 = vmatprep.subr.mxu0 0.0
  %5758 = vmatpush1.msra.mxu0 0.0
  %5759 = vmatprep.subr.mxu0 0.0
  %5760 = vmatpush1.msra.mxu0 0.0
  %5761 = vmatprep.subr.mxu0 0.0
  %5762 = vmatpush1.msra.mxu0 0.0
  %5763 = vmatprep.subr.mxu0 0.0
  %5764 = vmatpush1.msra.mxu0 0.0
  %5765 = vmatprep.subr.mxu0 0.0
  %5766 = vmatpush1.msra.mxu0 0.0
  %5767 = vmatprep.subr.mxu0 0.0
  %5768 = vmatpush1.msra.mxu0 0.0
  %5769 = vmatprep.subr.mxu0 0.0
  %5770 = vmatpush1.msra.mxu0 0.0
  %5771 = vmatprep.subr.mxu0 0.0
  %5772 = vmatpush1.msra.mxu0 0.0
  %5773 = vmatprep.subr.mxu0 0.0
  %5774 = vmatpush1.msra.mxu0 0.0
  %5775 = vmatprep.subr.mxu0 0.0
  %5776 = vmatpush1.msra.mxu0 0.0
  %5777 = vmatprep.mubr.f32.mxu0 0.0
  %5778 = vmatmul.mubr.f32.gmra.mrb[0].mxu0 %v5711
  %v5779 = vpop.f32.mrb[0].mxu0
  %v5780 = vadd.f32 0.0, %v5779
  %v5781 = vpop.f32.mrb[0].mxu0
  %5782 = vdwg.mxu0
  %v5783 = vadd.f32 %v5700, %v5780
  %v5784 = vld [vmem:[#allocation4 + $0x52] sm:$0x3]
  %v5785 = vld [vmem:[%s7 + $0x740] sm:$0xff]
  %v5786 = vld [vmem:[%s7 + $0x748] sm:$0xff]
  %v5787 = vld [vmem:[%s7 + $0x750] sm:$0xff]
  %v5788 = vld [vmem:[%s7 + $0x758] sm:$0xff]
  %v5789 = vld [vmem:[%s7 + $0x760] sm:$0xff]
  %v5790 = vld [vmem:[%s7 + $0x768] sm:$0xff]
  %v5791 = vld [vmem:[%s7 + $0x770] sm:$0xff]
  %v5792 = vld [vmem:[%s7 + $0x778] sm:$0xff]
  %v5794 = vsel %vm2357, %v5784, 0
  %5796 = vmatprep.subr.mxu0 0.0
  %5797 = vmatpush1.msra.mxu0 %v5785
  %5798 = vmatprep.subr.mxu0 0.0
  %5799 = vmatpush1.msra.mxu0 %v5786
  %5800 = vmatprep.subr.mxu0 0.0
  %5801 = vmatpush1.msra.mxu0 %v5787
  %5802 = vmatprep.subr.mxu0 0.0
  %5803 = vmatpush1.msra.mxu0 %v5788
  %5804 = vmatprep.subr.mxu0 0.0
  %5805 = vmatpush1.msra.mxu0 %v5789
  %5806 = vmatprep.subr.mxu0 0.0
  %5807 = vmatpush1.msra.mxu0 %v5790
  %5808 = vmatprep.subr.mxu0 0.0
  %5809 = vmatpush1.msra.mxu0 %v5791
  %5810 = vmatprep.subr.mxu0 0.0
  %5811 = vmatpush1.msra.mxu0 %v5792
  %5812 = vmatprep.subr.mxu0 0.0
  %5813 = vmatpush1.msra.mxu0 0.0
  %5814 = vmatprep.subr.mxu0 0.0
  %5815 = vmatpush1.msra.mxu0 0.0
  %5816 = vmatprep.subr.mxu0 0.0
  %5817 = vmatpush1.msra.mxu0 0.0
  %5818 = vmatprep.subr.mxu0 0.0
  %5819 = vmatpush1.msra.mxu0 0.0
  %5820 = vmatprep.subr.mxu0 0.0
  %5821 = vmatpush1.msra.mxu0 0.0
  %5822 = vmatprep.subr.mxu0 0.0
  %5823 = vmatpush1.msra.mxu0 0.0
  %5824 = vmatprep.subr.mxu0 0.0
  %5825 = vmatpush1.msra.mxu0 0.0
  %5826 = vmatprep.subr.mxu0 0.0
  %5827 = vmatpush1.msra.mxu0 0.0
  %5828 = vmatprep.subr.mxu0 0.0
  %5829 = vmatpush1.msra.mxu0 0.0
  %5830 = vmatprep.subr.mxu0 0.0
  %5831 = vmatpush1.msra.mxu0 0.0
  %5832 = vmatprep.subr.mxu0 0.0
  %5833 = vmatpush1.msra.mxu0 0.0
  %5834 = vmatprep.subr.mxu0 0.0
  %5835 = vmatpush1.msra.mxu0 0.0
  %5836 = vmatprep.subr.mxu0 0.0
  %5837 = vmatpush1.msra.mxu0 0.0
  %5838 = vmatprep.subr.mxu0 0.0
  %5839 = vmatpush1.msra.mxu0 0.0
  %5840 = vmatprep.subr.mxu0 0.0
  %5841 = vmatpush1.msra.mxu0 0.0
  %5842 = vmatprep.subr.mxu0 0.0
  %5843 = vmatpush1.msra.mxu0 0.0
  %5844 = vmatprep.subr.mxu0 0.0
  %5845 = vmatpush1.msra.mxu0 0.0
  %5846 = vmatprep.subr.mxu0 0.0
  %5847 = vmatpush1.msra.mxu0 0.0
  %5848 = vmatprep.subr.mxu0 0.0
  %5849 = vmatpush1.msra.mxu0 0.0
  %5850 = vmatprep.subr.mxu0 0.0
  %5851 = vmatpush1.msra.mxu0 0.0
  %5852 = vmatprep.subr.mxu0 0.0
  %5853 = vmatpush1.msra.mxu0 0.0
  %5854 = vmatprep.subr.mxu0 0.0
  %5855 = vmatpush1.msra.mxu0 0.0
  %5856 = vmatprep.subr.mxu0 0.0
  %5857 = vmatpush1.msra.mxu0 0.0
  %5858 = vmatprep.subr.mxu0 0.0
  %5859 = vmatpush1.msra.mxu0 0.0
  %5860 = vmatprep.mubr.f32.mxu0 0.0
  %5861 = vmatmul.mubr.f32.gmra.mrb[0].mxu0 %v5794
  %v5862 = vpop.f32.mrb[0].mxu0
  %v5863 = vadd.f32 0.0, %v5862
  %v5864 = vpop.f32.mrb[0].mxu0
  %5865 = vdwg.mxu0
  %v5866 = vadd.f32 %v5783, %v5863
  %v5867 = vld [vmem:[#allocation4 + $0x54] sm:$0x3]
  %v5868 = vld [vmem:[%s7 + $0x780] sm:$0xff]
  %v5869 = vld [vmem:[%s7 + $0x788] sm:$0xff]
  %v5870 = vld [vmem:[%s7 + $0x790] sm:$0xff]
  %v5871 = vld [vmem:[%s7 + $0x798] sm:$0xff]
  %v5872 = vld [vmem:[%s7 + $0x7a0] sm:$0xff]
  %v5873 = vld [vmem:[%s7 + $0x7a8] sm:$0xff]
  %v5874 = vld [vmem:[%s7 + $0x7b0] sm:$0xff]
  %v5875 = vld [vmem:[%s7 + $0x7b8] sm:$0xff]
  %v5877 = vsel %vm2357, %v5867, 0
  %5879 = vmatprep.subr.mxu0 0.0
  %5880 = vmatpush1.msra.mxu0 %v5868
  %5881 = vmatprep.subr.mxu0 0.0
  %5882 = vmatpush1.msra.mxu0 %v5869
  %5883 = vmatprep.subr.mxu0 0.0
  %5884 = vmatpush1.msra.mxu0 %v5870
  %5885 = vmatprep.subr.mxu0 0.0
  %5886 = vmatpush1.msra.mxu0 %v5871
  %5887 = vmatprep.subr.mxu0 0.0
  %5888 = vmatpush1.msra.mxu0 %v5872
  %5889 = vmatprep.subr.mxu0 0.0
  %5890 = vmatpush1.msra.mxu0 %v5873
  %5891 = vmatprep.subr.mxu0 0.0
  %5892 = vmatpush1.msra.mxu0 %v5874
  %5893 = vmatprep.subr.mxu0 0.0
  %5894 = vmatpush1.msra.mxu0 %v5875
  %5895 = vmatprep.subr.mxu0 0.0
  %5896 = vmatpush1.msra.mxu0 0.0
  %5897 = vmatprep.subr.mxu0 0.0
  %5898 = vmatpush1.msra.mxu0 0.0
  %5899 = vmatprep.subr.mxu0 0.0
  %5900 = vmatpush1.msra.mxu0 0.0
  %5901 = vmatprep.subr.mxu0 0.0
  %5902 = vmatpush1.msra.mxu0 0.0
  %5903 = vmatprep.subr.mxu0 0.0
  %5904 = vmatpush1.msra.mxu0 0.0
  %5905 = vmatprep.subr.mxu0 0.0
  %5906 = vmatpush1.msra.mxu0 0.0
  %5907 = vmatprep.subr.mxu0 0.0
  %5908 = vmatpush1.msra.mxu0 0.0
  %5909 = vmatprep.subr.mxu0 0.0
  %5910 = vmatpush1.msra.mxu0 0.0
  %5911 = vmatprep.subr.mxu0 0.0
  %5912 = vmatpush1.msra.mxu0 0.0
  %5913 = vmatprep.subr.mxu0 0.0
  %5914 = vmatpush1.msra.mxu0 0.0
  %5915 = vmatprep.subr.mxu0 0.0
  %5916 = vmatpush1.msra.mxu0 0.0
  %5917 = vmatprep.subr.mxu0 0.0
  %5918 = vmatpush1.msra.mxu0 0.0
  %5919 = vmatprep.subr.mxu0 0.0
  %5920 = vmatpush1.msra.mxu0 0.0
  %5921 = vmatprep.subr.mxu0 0.0
  %5922 = vmatpush1.msra.mxu0 0.0
  %5923 = vmatprep.subr.mxu0 0.0
  %5924 = vmatpush1.msra.mxu0 0.0
  %5925 = vmatprep.subr.mxu0 0.0
  %5926 = vmatpush1.msra.mxu0 0.0
  %5927 = vmatprep.subr.mxu0 0.0
  %5928 = vmatpush1.msra.mxu0 0.0
  %5929 = vmatprep.subr.mxu0 0.0
  %5930 = vmatpush1.msra.mxu0 0.0
  %5931 = vmatprep.subr.mxu0 0.0
  %5932 = vmatpush1.msra.mxu0 0.0
  %5933 = vmatprep.subr.mxu0 0.0
  %5934 = vmatpush1.msra.mxu0 0.0
  %5935 = vmatprep.subr.mxu0 0.0
  %5936 = vmatpush1.msra.mxu0 0.0
  %5937 = vmatprep.subr.mxu0 0.0
  %5938 = vmatpush1.msra.mxu0 0.0
  %5939 = vmatprep.subr.mxu0 0.0
  %5940 = vmatpush1.msra.mxu0 0.0
  %5941 = vmatprep.subr.mxu0 0.0
  %5942 = vmatpush1.msra.mxu0 0.0
  %5943 = vmatprep.mubr.f32.mxu0 0.0
  %5944 = vmatmul.mubr.f32.gmra.mrb[0].mxu0 %v5877
  %v5945 = vpop.f32.mrb[0].mxu0
  %v5946 = vadd.f32 0.0, %v5945
  %v5947 = vpop.f32.mrb[0].mxu0
  %5948 = vdwg.mxu0
  %v5949 = vadd.f32 %v5866, %v5946
  %v5950 = vld [vmem:[#allocation4 + $0x56] sm:$0x3]
  %v5951 = vld [vmem:[%s7 + $0x7c0] sm:$0xff]
  %v5952 = vld [vmem:[%s7 + $0x7c8] sm:$0xff]
  %v5953 = vld [vmem:[%s7 + $0x7d0] sm:$0xff]
  %v5954 = vld [vmem:[%s7 + $0x7d8] sm:$0xff]
  %v5955 = vld [vmem:[%s7 + $0x7e0] sm:$0xff]
  %v5956 = vld [vmem:[%s7 + $0x7e8] sm:$0xff]
  %v5957 = vld [vmem:[%s7 + $0x7f0] sm:$0xff]
  %v5958 = vld [vmem:[%s7 + $0x7f8] sm:$0xff]
  %v5960 = vsel %vm2357, %v5950, 0
  %5962 = vmatprep.subr.mxu0 0.0
  %5963 = vmatpush1.msra.mxu0 %v5951
  %5964 = vmatprep.subr.mxu0 0.0
  %5965 = vmatpush1.msra.mxu0 %v5952
  %5966 = vmatprep.subr.mxu0 0.0
  %5967 = vmatpush1.msra.mxu0 %v5953
  %5968 = vmatprep.subr.mxu0 0.0
  %5969 = vmatpush1.msra.mxu0 %v5954
  %5970 = vmatprep.subr.mxu0 0.0
  %5971 = vmatpush1.msra.mxu0 %v5955
  %5972 = vmatprep.subr.mxu0 0.0
  %5973 = vmatpush1.msra.mxu0 %v5956
  %5974 = vmatprep.subr.mxu0 0.0
  %5975 = vmatpush1.msra.mxu0 %v5957
  %5976 = vmatprep.subr.mxu0 0.0
  %5977 = vmatpush1.msra.mxu0 %v5958
  %5978 = vmatprep.subr.mxu0 0.0
  %5979 = vmatpush1.msra.mxu0 0.0
  %5980 = vmatprep.subr.mxu0 0.0
  %5981 = vmatpush1.msra.mxu0 0.0
  %5982 = vmatprep.subr.mxu0 0.0
  %5983 = vmatpush1.msra.mxu0 0.0
  %5984 = vmatprep.subr.mxu0 0.0
  %5985 = vmatpush1.msra.mxu0 0.0
  %5986 = vmatprep.subr.mxu0 0.0
  %5987 = vmatpush1.msra.mxu0 0.0
  %5988 = vmatprep.subr.mxu0 0.0
  %5989 = vmatpush1.msra.mxu0 0.0
  %5990 = vmatprep.subr.mxu0 0.0
  %5991 = vmatpush1.msra.mxu0 0.0
  %5992 = vmatprep.subr.mxu0 0.0
  %5993 = vmatpush1.msra.mxu0 0.0
  %5994 = vmatprep.subr.mxu0 0.0
  %5995 = vmatpush1.msra.mxu0 0.0
  %5996 = vmatprep.subr.mxu0 0.0
  %5997 = vmatpush1.msra.mxu0 0.0
  %5998 = vmatprep.subr.mxu0 0.0
  %5999 = vmatpush1.msra.mxu0 0.0
  %6000 = vmatprep.subr.mxu0 0.0
  %6001 = vmatpush1.msra.mxu0 0.0
  %6002 = vmatprep.subr.mxu0 0.0
  %6003 = vmatpush1.msra.mxu0 0.0
  %6004 = vmatprep.subr.mxu0 0.0
  %6005 = vmatpush1.msra.mxu0 0.0
  %6006 = vmatprep.subr.mxu0 0.0
  %6007 = vmatpush1.msra.mxu0 0.0
  %6008 = vmatprep.subr.mxu0 0.0
  %6009 = vmatpush1.msra.mxu0 0.0
  %6010 = vmatprep.subr.mxu0 0.0
  %6011 = vmatpush1.msra.mxu0 0.0
  %6012 = vmatprep.subr.mxu0 0.0
  %6013 = vmatpush1.msra.mxu0 0.0
  %6014 = vmatprep.subr.mxu0 0.0
  %6015 = vmatpush1.msra.mxu0 0.0
  %6016 = vmatprep.subr.mxu0 0.0
  %6017 = vmatpush1.msra.mxu0 0.0
  %6018 = vmatprep.subr.mxu0 0.0
  %6019 = vmatpush1.msra.mxu0 0.0
  %6020 = vmatprep.subr.mxu0 0.0
  %6021 = vmatpush1.msra.mxu0 0.0
  %6022 = vmatprep.subr.mxu0 0.0
  %6023 = vmatpush1.msra.mxu0 0.0
  %6024 = vmatprep.subr.mxu0 0.0
  %6025 = vmatpush1.msra.mxu0 0.0
  %6026 = vmatprep.mubr.f32.mxu0 0.0
  %6027 = vmatmul.mubr.f32.gmra.mrb[0].mxu0 %v5960
  %v6028 = vpop.f32.mrb[0].mxu0
  %v6029 = vadd.f32 0.0, %v6028
  %v6030 = vpop.f32.mrb[0].mxu0
  %6031 = vdwg.mxu0
  %v6032 = vadd.f32 %v5949, %v6029
  %v6033 = vld [vmem:[#allocation4 + $0x58] sm:$0x3]
  %v6034 = vld [vmem:[%s7 + $0x800] sm:$0xff]
  %v6035 = vld [vmem:[%s7 + $0x808] sm:$0xff]
  %v6036 = vld [vmem:[%s7 + $0x810] sm:$0xff]
  %v6037 = vld [vmem:[%s7 + $0x818] sm:$0xff]
  %v6038 = vld [vmem:[%s7 + $0x820] sm:$0xff]
  %v6039 = vld [vmem:[%s7 + $0x828] sm:$0xff]
  %v6040 = vld [vmem:[%s7 + $0x830] sm:$0xff]
  %v6041 = vld [vmem:[%s7 + $0x838] sm:$0xff]
  %v6043 = vsel %vm2357, %v6033, 0
  %6045 = vmatprep.subr.mxu0 0.0
  %6046 = vmatpush1.msra.mxu0 %v6034
  %6047 = vmatprep.subr.mxu0 0.0
  %6048 = vmatpush1.msra.mxu0 %v6035
  %6049 = vmatprep.subr.mxu0 0.0
  %6050 = vmatpush1.msra.mxu0 %v6036
  %6051 = vmatprep.subr.mxu0 0.0
  %6052 = vmatpush1.msra.mxu0 %v6037
  %6053 = vmatprep.subr.mxu0 0.0
  %6054 = vmatpush1.msra.mxu0 %v6038
  %6055 = vmatprep.subr.mxu0 0.0
  %6056 = vmatpush1.msra.mxu0 %v6039
  %6057 = vmatprep.subr.mxu0 0.0
  %6058 = vmatpush1.msra.mxu0 %v6040
  %6059 = vmatprep.subr.mxu0 0.0
  %6060 = vmatpush1.msra.mxu0 %v6041
  %6061 = vmatprep.subr.mxu0 0.0
  %6062 = vmatpush1.msra.mxu0 0.0
  %6063 = vmatprep.subr.mxu0 0.0
  %6064 = vmatpush1.msra.mxu0 0.0
  %6065 = vmatprep.subr.mxu0 0.0
  %6066 = vmatpush1.msra.mxu0 0.0
  %6067 = vmatprep.subr.mxu0 0.0
  %6068 = vmatpush1.msra.mxu0 0.0
  %6069 = vmatprep.subr.mxu0 0.0
  %6070 = vmatpush1.msra.mxu0 0.0
  %6071 = vmatprep.subr.mxu0 0.0
  %6072 = vmatpush1.msra.mxu0 0.0
  %6073 = vmatprep.subr.mxu0 0.0
  %6074 = vmatpush1.msra.mxu0 0.0
  %6075 = vmatprep.subr.mxu0 0.0
  %6076 = vmatpush1.msra.mxu0 0.0
  %6077 = vmatprep.subr.mxu0 0.0
  %6078 = vmatpush1.msra.mxu0 0.0
  %6079 = vmatprep.subr.mxu0 0.0
  %6080 = vmatpush1.msra.mxu0 0.0
  %6081 = vmatprep.subr.mxu0 0.0
  %6082 = vmatpush1.msra.mxu0 0.0
  %6083 = vmatprep.subr.mxu0 0.0
  %6084 = vmatpush1.msra.mxu0 0.0
  %6085 = vmatprep.subr.mxu0 0.0
  %6086 = vmatpush1.msra.mxu0 0.0
  %6087 = vmatprep.subr.mxu0 0.0
  %6088 = vmatpush1.msra.mxu0 0.0
  %6089 = vmatprep.subr.mxu0 0.0
  %6090 = vmatpush1.msra.mxu0 0.0
  %6091 = vmatprep.subr.mxu0 0.0
  %6092 = vmatpush1.msra.mxu0 0.0
  %6093 = vmatprep.subr.mxu0 0.0
  %6094 = vmatpush1.msra.mxu0 0.0
  %6095 = vmatprep.subr.mxu0 0.0
  %6096 = vmatpush1.msra.mxu0 0.0
  %6097 = vmatprep.subr.mxu0 0.0
  %6098 = vmatpush1.msra.mxu0 0.0
  %6099 = vmatprep.subr.mxu0 0.0
  %6100 = vmatpush1.msra.mxu0 0.0
  %6101 = vmatprep.subr.mxu0 0.0
  %6102 = vmatpush1.msra.mxu0 0.0
  %6103 = vmatprep.subr.mxu0 0.0
  %6104 = vmatpush1.msra.mxu0 0.0
  %6105 = vmatprep.subr.mxu0 0.0
  %6106 = vmatpush1.msra.mxu0 0.0
  %6107 = vmatprep.subr.mxu0 0.0
  %6108 = vmatpush1.msra.mxu0 0.0
  %6109 = vmatprep.mubr.f32.mxu0 0.0
  %6110 = vmatmul.mubr.f32.gmra.mrb[0].mxu0 %v6043
  %v6111 = vpop.f32.mrb[0].mxu0
  %v6112 = vadd.f32 0.0, %v6111
  %v6113 = vpop.f32.mrb[0].mxu0
  %6114 = vdwg.mxu0
  %v6115 = vadd.f32 %v6032, %v6112
  %v6116 = vld [vmem:[#allocation4 + $0x5a] sm:$0x3]
  %v6117 = vld [vmem:[%s7 + $0x840] sm:$0xff]
  %v6118 = vld [vmem:[%s7 + $0x848] sm:$0xff]
  %v6119 = vld [vmem:[%s7 + $0x850] sm:$0xff]
  %v6120 = vld [vmem:[%s7 + $0x858] sm:$0xff]
  %v6121 = vld [vmem:[%s7 + $0x860] sm:$0xff]
  %v6122 = vld [vmem:[%s7 + $0x868] sm:$0xff]
  %v6123 = vld [vmem:[%s7 + $0x870] sm:$0xff]
  %v6124 = vld [vmem:[%s7 + $0x878] sm:$0xff]
  %v6126 = vsel %vm2357, %v6116, 0
  %6128 = vmatprep.subr.mxu0 0.0
  %6129 = vmatpush1.msra.mxu0 %v6117
  %6130 = vmatprep.subr.mxu0 0.0
  %6131 = vmatpush1.msra.mxu0 %v6118
  %6132 = vmatprep.subr.mxu0 0.0
  %6133 = vmatpush1.msra.mxu0 %v6119
  %6134 = vmatprep.subr.mxu0 0.0
  %6135 = vmatpush1.msra.mxu0 %v6120
  %6136 = vmatprep.subr.mxu0 0.0
  %6137 = vmatpush1.msra.mxu0 %v6121
  %6138 = vmatprep.subr.mxu0 0.0
  %6139 = vmatpush1.msra.mxu0 %v6122
  %6140 = vmatprep.subr.mxu0 0.0
  %6141 = vmatpush1.msra.mxu0 %v6123
  %6142 = vmatprep.subr.mxu0 0.0
  %6143 = vmatpush1.msra.mxu0 %v6124
  %6144 = vmatprep.subr.mxu0 0.0
  %6145 = vmatpush1.msra.mxu0 0.0
  %6146 = vmatprep.subr.mxu0 0.0
  %6147 = vmatpush1.msra.mxu0 0.0
  %6148 = vmatprep.subr.mxu0 0.0
  %6149 = vmatpush1.msra.mxu0 0.0
  %6150 = vmatprep.subr.mxu0 0.0
  %6151 = vmatpush1.msra.mxu0 0.0
  %6152 = vmatprep.subr.mxu0 0.0
  %6153 = vmatpush1.msra.mxu0 0.0
  %6154 = vmatprep.subr.mxu0 0.0
  %6155 = vmatpush1.msra.mxu0 0.0
  %6156 = vmatprep.subr.mxu0 0.0
  %6157 = vmatpush1.msra.mxu0 0.0
  %6158 = vmatprep.subr.mxu0 0.0
  %6159 = vmatpush1.msra.mxu0 0.0
  %6160 = vmatprep.subr.mxu0 0.0
  %6161 = vmatpush1.msra.mxu0 0.0
  %6162 = vmatprep.subr.mxu0 0.0
  %6163 = vmatpush1.msra.mxu0 0.0
  %6164 = vmatprep.subr.mxu0 0.0
  %6165 = vmatpush1.msra.mxu0 0.0
  %6166 = vmatprep.subr.mxu0 0.0
  %6167 = vmatpush1.msra.mxu0 0.0
  %6168 = vmatprep.subr.mxu0 0.0
  %6169 = vmatpush1.msra.mxu0 0.0
  %6170 = vmatprep.subr.mxu0 0.0
  %6171 = vmatpush1.msra.mxu0 0.0
  %6172 = vmatprep.subr.mxu0 0.0
  %6173 = vmatpush1.msra.mxu0 0.0
  %6174 = vmatprep.subr.mxu0 0.0
  %6175 = vmatpush1.msra.mxu0 0.0
  %6176 = vmatprep.subr.mxu0 0.0
  %6177 = vmatpush1.msra.mxu0 0.0
  %6178 = vmatprep.subr.mxu0 0.0
  %6179 = vmatpush1.msra.mxu0 0.0
  %6180 = vmatprep.subr.mxu0 0.0
  %6181 = vmatpush1.msra.mxu0 0.0
  %6182 = vmatprep.subr.mxu0 0.0
  %6183 = vmatpush1.msra.mxu0 0.0
  %6184 = vmatprep.subr.mxu0 0.0
  %6185 = vmatpush1.msra.mxu0 0.0
  %6186 = vmatprep.subr.mxu0 0.0
  %6187 = vmatpush1.msra.mxu0 0.0
  %6188 = vmatprep.subr.mxu0 0.0
  %6189 = vmatpush1.msra.mxu0 0.0
  %6190 = vmatprep.subr.mxu0 0.0
  %6191 = vmatpush1.msra.mxu0 0.0
  %6192 = vmatprep.mubr.f32.mxu0 0.0
  %6193 = vmatmul.mubr.f32.gmra.mrb[0].mxu0 %v6126
  %v6194 = vpop.f32.mrb[0].mxu0
  %v6195 = vadd.f32 0.0, %v6194
  %v6196 = vpop.f32.mrb[0].mxu0
  %6197 = vdwg.mxu0
  %v6198 = vadd.f32 %v6115, %v6195
  %v6199 = vld [vmem:[#allocation4 + $0x5c] sm:$0x3]
  %v6200 = vld [vmem:[%s7 + $0x880] sm:$0xff]
  %v6201 = vld [vmem:[%s7 + $0x888] sm:$0xff]
  %v6202 = vld [vmem:[%s7 + $0x890] sm:$0xff]
  %v6203 = vld [vmem:[%s7 + $0x898] sm:$0xff]
  %v6204 = vld [vmem:[%s7 + $0x8a0] sm:$0xff]
  %v6205 = vld [vmem:[%s7 + $0x8a8] sm:$0xff]
  %v6206 = vld [vmem:[%s7 + $0x8b0] sm:$0xff]
  %v6207 = vld [vmem:[%s7 + $0x8b8] sm:$0xff]
  %v6209 = vsel %vm2357, %v6199, 0
  %6211 = vmatprep.subr.mxu0 0.0
  %6212 = vmatpush1.msra.mxu0 %v6200
  %6213 = vmatprep.subr.mxu0 0.0
  %6214 = vmatpush1.msra.mxu0 %v6201
  %6215 = vmatprep.subr.mxu0 0.0
  %6216 = vmatpush1.msra.mxu0 %v6202
  %6217 = vmatprep.subr.mxu0 0.0
  %6218 = vmatpush1.msra.mxu0 %v6203
  %6219 = vmatprep.subr.mxu0 0.0
  %6220 = vmatpush1.msra.mxu0 %v6204
  %6221 = vmatprep.subr.mxu0 0.0
  %6222 = vmatpush1.msra.mxu0 %v6205
  %6223 = vmatprep.subr.mxu0 0.0
  %6224 = vmatpush1.msra.mxu0 %v6206
  %6225 = vmatprep.subr.mxu0 0.0
  %6226 = vmatpush1.msra.mxu0 %v6207
  %6227 = vmatprep.subr.mxu0 0.0
  %6228 = vmatpush1.msra.mxu0 0.0
  %6229 = vmatprep.subr.mxu0 0.0
  %6230 = vmatpush1.msra.mxu0 0.0
  %6231 = vmatprep.subr.mxu0 0.0
  %6232 = vmatpush1.msra.mxu0 0.0
  %6233 = vmatprep.subr.mxu0 0.0
  %6234 = vmatpush1.msra.mxu0 0.0
  %6235 = vmatprep.subr.mxu0 0.0
  %6236 = vmatpush1.msra.mxu0 0.0
  %6237 = vmatprep.subr.mxu0 0.0
  %6238 = vmatpush1.msra.mxu0 0.0
  %6239 = vmatprep.subr.mxu0 0.0
  %6240 = vmatpush1.msra.mxu0 0.0
  %6241 = vmatprep.subr.mxu0 0.0
  %6242 = vmatpush1.msra.mxu0 0.0
  %6243 = vmatprep.subr.mxu0 0.0
  %6244 = vmatpush1.msra.mxu0 0.0
  %6245 = vmatprep.subr.mxu0 0.0
  %6246 = vmatpush1.msra.mxu0 0.0
  %6247 = vmatprep.subr.mxu0 0.0
  %6248 = vmatpush1.msra.mxu0 0.0
  %6249 = vmatprep.subr.mxu0 0.0
  %6250 = vmatpush1.msra.mxu0 0.0
  %6251 = vmatprep.subr.mxu0 0.0
  %6252 = vmatpush1.msra.mxu0 0.0
  %6253 = vmatprep.subr.mxu0 0.0
  %6254 = vmatpush1.msra.mxu0 0.0
  %6255 = vmatprep.subr.mxu0 0.0
  %6256 = vmatpush1.msra.mxu0 0.0
  %6257 = vmatprep.subr.mxu0 0.0
  %6258 = vmatpush1.msra.mxu0 0.0
  %6259 = vmatprep.subr.mxu0 0.0
  %6260 = vmatpush1.msra.mxu0 0.0
  %6261 = vmatprep.subr.mxu0 0.0
  %6262 = vmatpush1.msra.mxu0 0.0
  %6263 = vmatprep.subr.mxu0 0.0
  %6264 = vmatpush1.msra.mxu0 0.0
  %6265 = vmatprep.subr.mxu0 0.0
  %6266 = vmatpush1.msra.mxu0 0.0
  %6267 = vmatprep.subr.mxu0 0.0
  %6268 = vmatpush1.msra.mxu0 0.0
  %6269 = vmatprep.subr.mxu0 0.0
  %6270 = vmatpush1.msra.mxu0 0.0
  %6271 = vmatprep.subr.mxu0 0.0
  %6272 = vmatpush1.msra.mxu0 0.0
  %6273 = vmatprep.subr.mxu0 0.0
  %6274 = vmatpush1.msra.mxu0 0.0
  %6275 = vmatprep.mubr.f32.mxu0 0.0
  %6276 = vmatmul.mubr.f32.gmra.mrb[0].mxu0 %v6209
  %v6277 = vpop.f32.mrb[0].mxu0
  %v6278 = vadd.f32 0.0, %v6277
  %v6279 = vpop.f32.mrb[0].mxu0
  %6280 = vdwg.mxu0
  %v6281 = vadd.f32 %v6198, %v6278
  %v6282 = vld [vmem:[#allocation4 + $0x64] sm:$0x3]
  %v6283 = vld [vmem:[%s7 + $0x8c0] sm:$0xff]
  %v6284 = vld [vmem:[%s7 + $0x8c8] sm:$0xff]
  %v6285 = vld [vmem:[%s7 + $0x8d0] sm:$0xff]
  %v6286 = vld [vmem:[%s7 + $0x8d8] sm:$0xff]
  %v6287 = vld [vmem:[%s7 + $0x8e0] sm:$0xff]
  %v6288 = vld [vmem:[%s7 + $0x8e8] sm:$0xff]
  %v6289 = vld [vmem:[%s7 + $0x8f0] sm:$0xff]
  %v6290 = vld [vmem:[%s7 + $0x8f8] sm:$0xff]
  %v6292 = vsel %vm2357, %v6282, 0
  %6294 = vmatprep.subr.mxu0 0.0
  %6295 = vmatpush1.msra.mxu0 %v6283
  %6296 = vmatprep.subr.mxu0 0.0
  %6297 = vmatpush1.msra.mxu0 %v6284
  %6298 = vmatprep.subr.mxu0 0.0
  %6299 = vmatpush1.msra.mxu0 %v6285
  %6300 = vmatprep.subr.mxu0 0.0
  %6301 = vmatpush1.msra.mxu0 %v6286
  %6302 = vmatprep.subr.mxu0 0.0
  %6303 = vmatpush1.msra.mxu0 %v6287
  %6304 = vmatprep.subr.mxu0 0.0
  %6305 = vmatpush1.msra.mxu0 %v6288
  %6306 = vmatprep.subr.mxu0 0.0
  %6307 = vmatpush1.msra.mxu0 %v6289
  %6308 = vmatprep.subr.mxu0 0.0
  %6309 = vmatpush1.msra.mxu0 %v6290
  %6310 = vmatprep.subr.mxu0 0.0
  %6311 = vmatpush1.msra.mxu0 0.0
  %6312 = vmatprep.subr.mxu0 0.0
  %6313 = vmatpush1.msra.mxu0 0.0
  %6314 = vmatprep.subr.mxu0 0.0
  %6315 = vmatpush1.msra.mxu0 0.0
  %6316 = vmatprep.subr.mxu0 0.0
  %6317 = vmatpush1.msra.mxu0 0.0
  %6318 = vmatprep.subr.mxu0 0.0
  %6319 = vmatpush1.msra.mxu0 0.0
  %6320 = vmatprep.subr.mxu0 0.0
  %6321 = vmatpush1.msra.mxu0 0.0
  %6322 = vmatprep.subr.mxu0 0.0
  %6323 = vmatpush1.msra.mxu0 0.0
  %6324 = vmatprep.subr.mxu0 0.0
  %6325 = vmatpush1.msra.mxu0 0.0
  %6326 = vmatprep.subr.mxu0 0.0
  %6327 = vmatpush1.msra.mxu0 0.0
  %6328 = vmatprep.subr.mxu0 0.0
  %6329 = vmatpush1.msra.mxu0 0.0
  %6330 = vmatprep.subr.mxu0 0.0
  %6331 = vmatpush1.msra.mxu0 0.0
  %6332 = vmatprep.subr.mxu0 0.0
  %6333 = vmatpush1.msra.mxu0 0.0
  %6334 = vmatprep.subr.mxu0 0.0
  %6335 = vmatpush1.msra.mxu0 0.0
  %6336 = vmatprep.subr.mxu0 0.0
  %6337 = vmatpush1.msra.mxu0 0.0
  %6338 = vmatprep.subr.mxu0 0.0
  %6339 = vmatpush1.msra.mxu0 0.0
  %6340 = vmatprep.subr.mxu0 0.0
  %6341 = vmatpush1.msra.mxu0 0.0
  %6342 = vmatprep.subr.mxu0 0.0
  %6343 = vmatpush1.msra.mxu0 0.0
  %6344 = vmatprep.subr.mxu0 0.0
  %6345 = vmatpush1.msra.mxu0 0.0
  %6346 = vmatprep.subr.mxu0 0.0
  %6347 = vmatpush1.msra.mxu0 0.0
  %6348 = vmatprep.subr.mxu0 0.0
  %6349 = vmatpush1.msra.mxu0 0.0
  %6350 = vmatprep.subr.mxu0 0.0
  %6351 = vmatpush1.msra.mxu0 0.0
  %6352 = vmatprep.subr.mxu0 0.0
  %6353 = vmatpush1.msra.mxu0 0.0
  %6354 = vmatprep.subr.mxu0 0.0
  %6355 = vmatpush1.msra.mxu0 0.0
  %6356 = vmatprep.subr.mxu0 0.0
  %6357 = vmatpush1.msra.mxu0 0.0
  %6358 = vmatprep.mubr.f32.mxu0 0.0
  %6359 = vmatmul.mubr.f32.gmra.mrb[0].mxu0 %v6292
  %v6360 = vpop.f32.mrb[0].mxu0
  %v6361 = vadd.f32 0.0, %v6360
  %v6362 = vpop.f32.mrb[0].mxu0
  %6363 = vdwg.mxu0
  %v6364 = vadd.f32 %v6281, %v6361
  %v6365 = vld [vmem:[#allocation4 + $0x66] sm:$0x3]
  %v6366 = vld [vmem:[%s7 + $0x900] sm:$0xff]
  %v6367 = vld [vmem:[%s7 + $0x908] sm:$0xff]
  %v6368 = vld [vmem:[%s7 + $0x910] sm:$0xff]
  %v6369 = vld [vmem:[%s7 + $0x918] sm:$0xff]
  %v6370 = vld [vmem:[%s7 + $0x920] sm:$0xff]
  %v6371 = vld [vmem:[%s7 + $0x928] sm:$0xff]
  %v6372 = vld [vmem:[%s7 + $0x930] sm:$0xff]
  %v6373 = vld [vmem:[%s7 + $0x938] sm:$0xff]
  %v6375 = vsel %vm2357, %v6365, 0
  %6377 = vmatprep.subr.mxu0 0.0
  %6378 = vmatpush1.msra.mxu0 %v6366
  %6379 = vmatprep.subr.mxu0 0.0
  %6380 = vmatpush1.msra.mxu0 %v6367
  %6381 = vmatprep.subr.mxu0 0.0
  %6382 = vmatpush1.msra.mxu0 %v6368
  %6383 = vmatprep.subr.mxu0 0.0
  %6384 = vmatpush1.msra.mxu0 %v6369
  %6385 = vmatprep.subr.mxu0 0.0
  %6386 = vmatpush1.msra.mxu0 %v6370
  %6387 = vmatprep.subr.mxu0 0.0
  %6388 = vmatpush1.msra.mxu0 %v6371
  %6389 = vmatprep.subr.mxu0 0.0
  %6390 = vmatpush1.msra.mxu0 %v6372
  %6391 = vmatprep.subr.mxu0 0.0
  %6392 = vmatpush1.msra.mxu0 %v6373
  %6393 = vmatprep.subr.mxu0 0.0
  %6394 = vmatpush1.msra.mxu0 0.0
  %6395 = vmatprep.subr.mxu0 0.0
  %6396 = vmatpush1.msra.mxu0 0.0
  %6397 = vmatprep.subr.mxu0 0.0
  %6398 = vmatpush1.msra.mxu0 0.0
  %6399 = vmatprep.subr.mxu0 0.0
  %6400 = vmatpush1.msra.mxu0 0.0
  %6401 = vmatprep.subr.mxu0 0.0
  %6402 = vmatpush1.msra.mxu0 0.0
  %6403 = vmatprep.subr.mxu0 0.0
  %6404 = vmatpush1.msra.mxu0 0.0
  %6405 = vmatprep.subr.mxu0 0.0
  %6406 = vmatpush1.msra.mxu0 0.0
  %6407 = vmatprep.subr.mxu0 0.0
  %6408 = vmatpush1.msra.mxu0 0.0
  %6409 = vmatprep.subr.mxu0 0.0
  %6410 = vmatpush1.msra.mxu0 0.0
  %6411 = vmatprep.subr.mxu0 0.0
  %6412 = vmatpush1.msra.mxu0 0.0
  %6413 = vmatprep.subr.mxu0 0.0
  %6414 = vmatpush1.msra.mxu0 0.0
  %6415 = vmatprep.subr.mxu0 0.0
  %6416 = vmatpush1.msra.mxu0 0.0
  %6417 = vmatprep.subr.mxu0 0.0
  %6418 = vmatpush1.msra.mxu0 0.0
  %6419 = vmatprep.subr.mxu0 0.0
  %6420 = vmatpush1.msra.mxu0 0.0
  %6421 = vmatprep.subr.mxu0 0.0
  %6422 = vmatpush1.msra.mxu0 0.0
  %6423 = vmatprep.subr.mxu0 0.0
  %6424 = vmatpush1.msra.mxu0 0.0
  %6425 = vmatprep.subr.mxu0 0.0
  %6426 = vmatpush1.msra.mxu0 0.0
  %6427 = vmatprep.subr.mxu0 0.0
  %6428 = vmatpush1.msra.mxu0 0.0
  %6429 = vmatprep.subr.mxu0 0.0
  %6430 = vmatpush1.msra.mxu0 0.0
  %6431 = vmatprep.subr.mxu0 0.0
  %6432 = vmatpush1.msra.mxu0 0.0
  %6433 = vmatprep.subr.mxu0 0.0
  %6434 = vmatpush1.msra.mxu0 0.0
  %6435 = vmatprep.subr.mxu0 0.0
  %6436 = vmatpush1.msra.mxu0 0.0
  %6437 = vmatprep.subr.mxu0 0.0
  %6438 = vmatpush1.msra.mxu0 0.0
  %6439 = vmatprep.subr.mxu0 0.0
  %6440 = vmatpush1.msra.mxu0 0.0
  %6441 = vmatprep.mubr.f32.mxu0 0.0
  %6442 = vmatmul.mubr.f32.gmra.mrb[0].mxu0 %v6375
  %v6443 = vpop.f32.mrb[0].mxu0
  %v6444 = vadd.f32 0.0, %v6443
  %v6445 = vpop.f32.mrb[0].mxu0
  %6446 = vdwg.mxu0
  %v6447 = vadd.f32 %v6364, %v6444
  %v6448 = vld [vmem:[#allocation4 + $0x68] sm:$0x3]
  %v6449 = vld [vmem:[%s7 + $0x940] sm:$0xff]
  %v6450 = vld [vmem:[%s7 + $0x948] sm:$0xff]
  %v6451 = vld [vmem:[%s7 + $0x950] sm:$0xff]
  %v6452 = vld [vmem:[%s7 + $0x958] sm:$0xff]
  %v6453 = vld [vmem:[%s7 + $0x960] sm:$0xff]
  %v6454 = vld [vmem:[%s7 + $0x968] sm:$0xff]
  %v6455 = vld [vmem:[%s7 + $0x970] sm:$0xff]
  %v6456 = vld [vmem:[%s7 + $0x978] sm:$0xff]
  %v6458 = vsel %vm2357, %v6448, 0
  %6460 = vmatprep.subr.mxu0 0.0
  %6461 = vmatpush1.msra.mxu0 %v6449
  %6462 = vmatprep.subr.mxu0 0.0
  %6463 = vmatpush1.msra.mxu0 %v6450
  %6464 = vmatprep.subr.mxu0 0.0
  %6465 = vmatpush1.msra.mxu0 %v6451
  %6466 = vmatprep.subr.mxu0 0.0
  %6467 = vmatpush1.msra.mxu0 %v6452
  %6468 = vmatprep.subr.mxu0 0.0
  %6469 = vmatpush1.msra.mxu0 %v6453
  %6470 = vmatprep.subr.mxu0 0.0
  %6471 = vmatpush1.msra.mxu0 %v6454
  %6472 = vmatprep.subr.mxu0 0.0
  %6473 = vmatpush1.msra.mxu0 %v6455
  %6474 = vmatprep.subr.mxu0 0.0
  %6475 = vmatpush1.msra.mxu0 %v6456
  %6476 = vmatprep.subr.mxu0 0.0
  %6477 = vmatpush1.msra.mxu0 0.0
  %6478 = vmatprep.subr.mxu0 0.0
  %6479 = vmatpush1.msra.mxu0 0.0
  %6480 = vmatprep.subr.mxu0 0.0
  %6481 = vmatpush1.msra.mxu0 0.0
  %6482 = vmatprep.subr.mxu0 0.0
  %6483 = vmatpush1.msra.mxu0 0.0
  %6484 = vmatprep.subr.mxu0 0.0
  %6485 = vmatpush1.msra.mxu0 0.0
  %6486 = vmatprep.subr.mxu0 0.0
  %6487 = vmatpush1.msra.mxu0 0.0
  %6488 = vmatprep.subr.mxu0 0.0
  %6489 = vmatpush1.msra.mxu0 0.0
  %6490 = vmatprep.subr.mxu0 0.0
  %6491 = vmatpush1.msra.mxu0 0.0
  %6492 = vmatprep.subr.mxu0 0.0
  %6493 = vmatpush1.msra.mxu0 0.0
  %6494 = vmatprep.subr.mxu0 0.0
  %6495 = vmatpush1.msra.mxu0 0.0
  %6496 = vmatprep.subr.mxu0 0.0
  %6497 = vmatpush1.msra.mxu0 0.0
  %6498 = vmatprep.subr.mxu0 0.0
  %6499 = vmatpush1.msra.mxu0 0.0
  %6500 = vmatprep.subr.mxu0 0.0
  %6501 = vmatpush1.msra.mxu0 0.0
  %6502 = vmatprep.subr.mxu0 0.0
  %6503 = vmatpush1.msra.mxu0 0.0
  %6504 = vmatprep.subr.mxu0 0.0
  %6505 = vmatpush1.msra.mxu0 0.0
  %6506 = vmatprep.subr.mxu0 0.0
  %6507 = vmatpush1.msra.mxu0 0.0
  %6508 = vmatprep.subr.mxu0 0.0
  %6509 = vmatpush1.msra.mxu0 0.0
  %6510 = vmatprep.subr.mxu0 0.0
  %6511 = vmatpush1.msra.mxu0 0.0
  %6512 = vmatprep.subr.mxu0 0.0
  %6513 = vmatpush1.msra.mxu0 0.0
  %6514 = vmatprep.subr.mxu0 0.0
  %6515 = vmatpush1.msra.mxu0 0.0
  %6516 = vmatprep.subr.mxu0 0.0
  %6517 = vmatpush1.msra.mxu0 0.0
  %6518 = vmatprep.subr.mxu0 0.0
  %6519 = vmatpush1.msra.mxu0 0.0
  %6520 = vmatprep.subr.mxu0 0.0
  %6521 = vmatpush1.msra.mxu0 0.0
  %6522 = vmatprep.subr.mxu0 0.0
  %6523 = vmatpush1.msra.mxu0 0.0
  %6524 = vmatprep.mubr.f32.mxu0 0.0
  %6525 = vmatmul.mubr.f32.gmra.mrb[0].mxu0 %v6458
  %v6526 = vpop.f32.mrb[0].mxu0
  %v6527 = vadd.f32 0.0, %v6526
  %v6528 = vpop.f32.mrb[0].mxu0
  %6529 = vdwg.mxu0
  %v6530 = vadd.f32 %v6447, %v6527
  %v6531 = vld [vmem:[#allocation4 + $0x6a] sm:$0x3]
  %v6532 = vld [vmem:[%s7 + $0x980] sm:$0xff]
  %v6533 = vld [vmem:[%s7 + $0x988] sm:$0xff]
  %v6534 = vld [vmem:[%s7 + $0x990] sm:$0xff]
  %v6535 = vld [vmem:[%s7 + $0x998] sm:$0xff]
  %v6536 = vld [vmem:[%s7 + $0x9a0] sm:$0xff]
  %v6537 = vld [vmem:[%s7 + $0x9a8] sm:$0xff]
  %v6538 = vld [vmem:[%s7 + $0x9b0] sm:$0xff]
  %v6539 = vld [vmem:[%s7 + $0x9b8] sm:$0xff]
  %v6541 = vsel %vm2357, %v6531, 0
  %6543 = vmatprep.subr.mxu0 0.0
  %6544 = vmatpush1.msra.mxu0 %v6532
  %6545 = vmatprep.subr.mxu0 0.0
  %6546 = vmatpush1.msra.mxu0 %v6533
  %6547 = vmatprep.subr.mxu0 0.0
  %6548 = vmatpush1.msra.mxu0 %v6534
  %6549 = vmatprep.subr.mxu0 0.0
  %6550 = vmatpush1.msra.mxu0 %v6535
  %6551 = vmatprep.subr.mxu0 0.0
  %6552 = vmatpush1.msra.mxu0 %v6536
  %6553 = vmatprep.subr.mxu0 0.0
  %6554 = vmatpush1.msra.mxu0 %v6537
  %6555 = vmatprep.subr.mxu0 0.0
  %6556 = vmatpush1.msra.mxu0 %v6538
  %6557 = vmatprep.subr.mxu0 0.0
  %6558 = vmatpush1.msra.mxu0 %v6539
  %6559 = vmatprep.subr.mxu0 0.0
  %6560 = vmatpush1.msra.mxu0 0.0
  %6561 = vmatprep.subr.mxu0 0.0
  %6562 = vmatpush1.msra.mxu0 0.0
  %6563 = vmatprep.subr.mxu0 0.0
  %6564 = vmatpush1.msra.mxu0 0.0
  %6565 = vmatprep.subr.mxu0 0.0
  %6566 = vmatpush1.msra.mxu0 0.0
  %6567 = vmatprep.subr.mxu0 0.0
  %6568 = vmatpush1.msra.mxu0 0.0
  %6569 = vmatprep.subr.mxu0 0.0
  %6570 = vmatpush1.msra.mxu0 0.0
  %6571 = vmatprep.subr.mxu0 0.0
  %6572 = vmatpush1.msra.mxu0 0.0
  %6573 = vmatprep.subr.mxu0 0.0
  %6574 = vmatpush1.msra.mxu0 0.0
  %6575 = vmatprep.subr.mxu0 0.0
  %6576 = vmatpush1.msra.mxu0 0.0
  %6577 = vmatprep.subr.mxu0 0.0
  %6578 = vmatpush1.msra.mxu0 0.0
  %6579 = vmatprep.subr.mxu0 0.0
  %6580 = vmatpush1.msra.mxu0 0.0
  %6581 = vmatprep.subr.mxu0 0.0
  %6582 = vmatpush1.msra.mxu0 0.0
  %6583 = vmatprep.subr.mxu0 0.0
  %6584 = vmatpush1.msra.mxu0 0.0
  %6585 = vmatprep.subr.mxu0 0.0
  %6586 = vmatpush1.msra.mxu0 0.0
  %6587 = vmatprep.subr.mxu0 0.0
  %6588 = vmatpush1.msra.mxu0 0.0
  %6589 = vmatprep.subr.mxu0 0.0
  %6590 = vmatpush1.msra.mxu0 0.0
  %6591 = vmatprep.subr.mxu0 0.0
  %6592 = vmatpush1.msra.mxu0 0.0
  %6593 = vmatprep.subr.mxu0 0.0
  %6594 = vmatpush1.msra.mxu0 0.0
  %6595 = vmatprep.subr.mxu0 0.0
  %6596 = vmatpush1.msra.mxu0 0.0
  %6597 = vmatprep.subr.mxu0 0.0
  %6598 = vmatpush1.msra.mxu0 0.0
  %6599 = vmatprep.subr.mxu0 0.0
  %6600 = vmatpush1.msra.mxu0 0.0
  %6601 = vmatprep.subr.mxu0 0.0
  %6602 = vmatpush1.msra.mxu0 0.0
  %6603 = vmatprep.subr.mxu0 0.0
  %6604 = vmatpush1.msra.mxu0 0.0
  %6605 = vmatprep.subr.mxu0 0.0
  %6606 = vmatpush1.msra.mxu0 0.0
  %6607 = vmatprep.mubr.f32.mxu0 0.0
  %6608 = vmatmul.mubr.f32.gmra.mrb[0].mxu0 %v6541
  %v6609 = vpop.f32.mrb[0].mxu0
  %v6610 = vadd.f32 0.0, %v6609
  %v6611 = vpop.f32.mrb[0].mxu0
  %6612 = vdwg.mxu0
  %v6613 = vadd.f32 %v6530, %v6610
  %v6614 = vld [vmem:[#allocation4 + $0x6c] sm:$0x3]
  %v6615 = vld [vmem:[%s7 + $0x9c0] sm:$0xff]
  %v6616 = vld [vmem:[%s7 + $0x9c8] sm:$0xff]
  %v6617 = vld [vmem:[%s7 + $0x9d0] sm:$0xff]
  %v6618 = vld [vmem:[%s7 + $0x9d8] sm:$0xff]
  %v6619 = vld [vmem:[%s7 + $0x9e0] sm:$0xff]
  %v6620 = vld [vmem:[%s7 + $0x9e8] sm:$0xff]
  %v6621 = vld [vmem:[%s7 + $0x9f0] sm:$0xff]
  %v6622 = vld [vmem:[%s7 + $0x9f8] sm:$0xff]
  %v6624 = vsel %vm2357, %v6614, 0
  %6626 = vmatprep.subr.mxu0 0.0
  %6627 = vmatpush1.msra.mxu0 %v6615
  %6628 = vmatprep.subr.mxu0 0.0
  %6629 = vmatpush1.msra.mxu0 %v6616
  %6630 = vmatprep.subr.mxu0 0.0
  %6631 = vmatpush1.msra.mxu0 %v6617
  %6632 = vmatprep.subr.mxu0 0.0
  %6633 = vmatpush1.msra.mxu0 %v6618
  %6634 = vmatprep.subr.mxu0 0.0
  %6635 = vmatpush1.msra.mxu0 %v6619
  %6636 = vmatprep.subr.mxu0 0.0
  %6637 = vmatpush1.msra.mxu0 %v6620
  %6638 = vmatprep.subr.mxu0 0.0
  %6639 = vmatpush1.msra.mxu0 %v6621
  %6640 = vmatprep.subr.mxu0 0.0
  %6641 = vmatpush1.msra.mxu0 %v6622
  %6642 = vmatprep.subr.mxu0 0.0
  %6643 = vmatpush1.msra.mxu0 0.0
  %6644 = vmatprep.subr.mxu0 0.0
  %6645 = vmatpush1.msra.mxu0 0.0
  %6646 = vmatprep.subr.mxu0 0.0
  %6647 = vmatpush1.msra.mxu0 0.0
  %6648 = vmatprep.subr.mxu0 0.0
  %6649 = vmatpush1.msra.mxu0 0.0
  %6650 = vmatprep.subr.mxu0 0.0
  %6651 = vmatpush1.msra.mxu0 0.0
  %6652 = vmatprep.subr.mxu0 0.0
  %6653 = vmatpush1.msra.mxu0 0.0
  %6654 = vmatprep.subr.mxu0 0.0
  %6655 = vmatpush1.msra.mxu0 0.0
  %6656 = vmatprep.subr.mxu0 0.0
  %6657 = vmatpush1.msra.mxu0 0.0
  %6658 = vmatprep.subr.mxu0 0.0
  %6659 = vmatpush1.msra.mxu0 0.0
  %6660 = vmatprep.subr.mxu0 0.0
  %6661 = vmatpush1.msra.mxu0 0.0
  %6662 = vmatprep.subr.mxu0 0.0
  %6663 = vmatpush1.msra.mxu0 0.0
  %6664 = vmatprep.subr.mxu0 0.0
  %6665 = vmatpush1.msra.mxu0 0.0
  %6666 = vmatprep.subr.mxu0 0.0
  %6667 = vmatpush1.msra.mxu0 0.0
  %6668 = vmatprep.subr.mxu0 0.0
  %6669 = vmatpush1.msra.mxu0 0.0
  %6670 = vmatprep.subr.mxu0 0.0
  %6671 = vmatpush1.msra.mxu0 0.0
  %6672 = vmatprep.subr.mxu0 0.0
  %6673 = vmatpush1.msra.mxu0 0.0
  %6674 = vmatprep.subr.mxu0 0.0
  %6675 = vmatpush1.msra.mxu0 0.0
  %6676 = vmatprep.subr.mxu0 0.0
  %6677 = vmatpush1.msra.mxu0 0.0
  %6678 = vmatprep.subr.mxu0 0.0
  %6679 = vmatpush1.msra.mxu0 0.0
  %6680 = vmatprep.subr.mxu0 0.0
  %6681 = vmatpush1.msra.mxu0 0.0
  %6682 = vmatprep.subr.mxu0 0.0
  %6683 = vmatpush1.msra.mxu0 0.0
  %6684 = vmatprep.subr.mxu0 0.0
  %6685 = vmatpush1.msra.mxu0 0.0
  %6686 = vmatprep.subr.mxu0 0.0
  %6687 = vmatpush1.msra.mxu0 0.0
  %6688 = vmatprep.subr.mxu0 0.0
  %6689 = vmatpush1.msra.mxu0 0.0
  %6690 = vmatprep.mubr.f32.mxu0 0.0
  %6691 = vmatmul.mubr.f32.gmra.mrb[0].mxu0 %v6624
  %v6692 = vpop.f32.mrb[0].mxu0
  %v6693 = vadd.f32 0.0, %v6692
  %v6694 = vpop.f32.mrb[0].mxu0
  %6695 = vdwg.mxu0
  %v6696 = vadd.f32 %v6613, %v6693
  %v6697 = vld [vmem:[#allocation4 + $0x6e] sm:$0x3]
  %v6698 = vld [vmem:[%s7 + $0xa00] sm:$0xff]
  %v6699 = vld [vmem:[%s7 + $0xa08] sm:$0xff]
  %v6700 = vld [vmem:[%s7 + $0xa10] sm:$0xff]
  %v6701 = vld [vmem:[%s7 + $0xa18] sm:$0xff]
  %v6702 = vld [vmem:[%s7 + $0xa20] sm:$0xff]
  %v6703 = vld [vmem:[%s7 + $0xa28] sm:$0xff]
  %v6704 = vld [vmem:[%s7 + $0xa30] sm:$0xff]
  %v6705 = vld [vmem:[%s7 + $0xa38] sm:$0xff]
  %v6707 = vsel %vm2357, %v6697, 0
  %6709 = vmatprep.subr.mxu0 0.0
  %6710 = vmatpush1.msra.mxu0 %v6698
  %6711 = vmatprep.subr.mxu0 0.0
  %6712 = vmatpush1.msra.mxu0 %v6699
  %6713 = vmatprep.subr.mxu0 0.0
  %6714 = vmatpush1.msra.mxu0 %v6700
  %6715 = vmatprep.subr.mxu0 0.0
  %6716 = vmatpush1.msra.mxu0 %v6701
  %6717 = vmatprep.subr.mxu0 0.0
  %6718 = vmatpush1.msra.mxu0 %v6702
  %6719 = vmatprep.subr.mxu0 0.0
  %6720 = vmatpush1.msra.mxu0 %v6703
  %6721 = vmatprep.subr.mxu0 0.0
  %6722 = vmatpush1.msra.mxu0 %v6704
  %6723 = vmatprep.subr.mxu0 0.0
  %6724 = vmatpush1.msra.mxu0 %v6705
  %6725 = vmatprep.subr.mxu0 0.0
  %6726 = vmatpush1.msra.mxu0 0.0
  %6727 = vmatprep.subr.mxu0 0.0
  %6728 = vmatpush1.msra.mxu0 0.0
  %6729 = vmatprep.subr.mxu0 0.0
  %6730 = vmatpush1.msra.mxu0 0.0
  %6731 = vmatprep.subr.mxu0 0.0
  %6732 = vmatpush1.msra.mxu0 0.0
  %6733 = vmatprep.subr.mxu0 0.0
  %6734 = vmatpush1.msra.mxu0 0.0
  %6735 = vmatprep.subr.mxu0 0.0
  %6736 = vmatpush1.msra.mxu0 0.0
  %6737 = vmatprep.subr.mxu0 0.0
  %6738 = vmatpush1.msra.mxu0 0.0
  %6739 = vmatprep.subr.mxu0 0.0
  %6740 = vmatpush1.msra.mxu0 0.0
  %6741 = vmatprep.subr.mxu0 0.0
  %6742 = vmatpush1.msra.mxu0 0.0
  %6743 = vmatprep.subr.mxu0 0.0
  %6744 = vmatpush1.msra.mxu0 0.0
  %6745 = vmatprep.subr.mxu0 0.0
  %6746 = vmatpush1.msra.mxu0 0.0
  %6747 = vmatprep.subr.mxu0 0.0
  %6748 = vmatpush1.msra.mxu0 0.0
  %6749 = vmatprep.subr.mxu0 0.0
  %6750 = vmatpush1.msra.mxu0 0.0
  %6751 = vmatprep.subr.mxu0 0.0
  %6752 = vmatpush1.msra.mxu0 0.0
  %6753 = vmatprep.subr.mxu0 0.0
  %6754 = vmatpush1.msra.mxu0 0.0
  %6755 = vmatprep.subr.mxu0 0.0
  %6756 = vmatpush1.msra.mxu0 0.0
  %6757 = vmatprep.subr.mxu0 0.0
  %6758 = vmatpush1.msra.mxu0 0.0
  %6759 = vmatprep.subr.mxu0 0.0
  %6760 = vmatpush1.msra.mxu0 0.0
  %6761 = vmatprep.subr.mxu0 0.0
  %6762 = vmatpush1.msra.mxu0 0.0
  %6763 = vmatprep.subr.mxu0 0.0
  %6764 = vmatpush1.msra.mxu0 0.0
  %6765 = vmatprep.subr.mxu0 0.0
  %6766 = vmatpush1.msra.mxu0 0.0
  %6767 = vmatprep.subr.mxu0 0.0
  %6768 = vmatpush1.msra.mxu0 0.0
  %6769 = vmatprep.subr.mxu0 0.0
  %6770 = vmatpush1.msra.mxu0 0.0
  %6771 = vmatprep.subr.mxu0 0.0
  %6772 = vmatpush1.msra.mxu0 0.0
  %6773 = vmatprep.mubr.f32.mxu0 0.0
  %6774 = vmatmul.mubr.f32.gmra.mrb[0].mxu0 %v6707
  %v6775 = vpop.f32.mrb[0].mxu0
  %v6776 = vadd.f32 0.0, %v6775
  %v6777 = vpop.f32.mrb[0].mxu0
  %6778 = vdwg.mxu0
  %v6779 = vadd.f32 %v6696, %v6776
  %v6780 = vld [vmem:[#allocation4 + $0x70] sm:$0x3]
  %v6781 = vld [vmem:[%s7 + $0xa40] sm:$0xff]
  %v6782 = vld [vmem:[%s7 + $0xa48] sm:$0xff]
  %v6783 = vld [vmem:[%s7 + $0xa50] sm:$0xff]
  %v6784 = vld [vmem:[%s7 + $0xa58] sm:$0xff]
  %v6785 = vld [vmem:[%s7 + $0xa60] sm:$0xff]
  %v6786 = vld [vmem:[%s7 + $0xa68] sm:$0xff]
  %v6787 = vld [vmem:[%s7 + $0xa70] sm:$0xff]
  %v6788 = vld [vmem:[%s7 + $0xa78] sm:$0xff]
  %v6790 = vsel %vm2357, %v6780, 0
  %6792 = vmatprep.subr.mxu0 0.0
  %6793 = vmatpush1.msra.mxu0 %v6781
  %6794 = vmatprep.subr.mxu0 0.0
  %6795 = vmatpush1.msra.mxu0 %v6782
  %6796 = vmatprep.subr.mxu0 0.0
  %6797 = vmatpush1.msra.mxu0 %v6783
  %6798 = vmatprep.subr.mxu0 0.0
  %6799 = vmatpush1.msra.mxu0 %v6784
  %6800 = vmatprep.subr.mxu0 0.0
  %6801 = vmatpush1.msra.mxu0 %v6785
  %6802 = vmatprep.subr.mxu0 0.0
  %6803 = vmatpush1.msra.mxu0 %v6786
  %6804 = vmatprep.subr.mxu0 0.0
  %6805 = vmatpush1.msra.mxu0 %v6787
  %6806 = vmatprep.subr.mxu0 0.0
  %6807 = vmatpush1.msra.mxu0 %v6788
  %6808 = vmatprep.subr.mxu0 0.0
  %6809 = vmatpush1.msra.mxu0 0.0
  %6810 = vmatprep.subr.mxu0 0.0
  %6811 = vmatpush1.msra.mxu0 0.0
  %6812 = vmatprep.subr.mxu0 0.0
  %6813 = vmatpush1.msra.mxu0 0.0
  %6814 = vmatprep.subr.mxu0 0.0
  %6815 = vmatpush1.msra.mxu0 0.0
  %6816 = vmatprep.subr.mxu0 0.0
  %6817 = vmatpush1.msra.mxu0 0.0
  %6818 = vmatprep.subr.mxu0 0.0
  %6819 = vmatpush1.msra.mxu0 0.0
  %6820 = vmatprep.subr.mxu0 0.0
  %6821 = vmatpush1.msra.mxu0 0.0
  %6822 = vmatprep.subr.mxu0 0.0
  %6823 = vmatpush1.msra.mxu0 0.0
  %6824 = vmatprep.subr.mxu0 0.0
  %6825 = vmatpush1.msra.mxu0 0.0
  %6826 = vmatprep.subr.mxu0 0.0
  %6827 = vmatpush1.msra.mxu0 0.0
  %6828 = vmatprep.subr.mxu0 0.0
  %6829 = vmatpush1.msra.mxu0 0.0
  %6830 = vmatprep.subr.mxu0 0.0
  %6831 = vmatpush1.msra.mxu0 0.0
  %6832 = vmatprep.subr.mxu0 0.0
  %6833 = vmatpush1.msra.mxu0 0.0
  %6834 = vmatprep.subr.mxu0 0.0
  %6835 = vmatpush1.msra.mxu0 0.0
  %6836 = vmatprep.subr.mxu0 0.0
  %6837 = vmatpush1.msra.mxu0 0.0
  %6838 = vmatprep.subr.mxu0 0.0
  %6839 = vmatpush1.msra.mxu0 0.0
  %6840 = vmatprep.subr.mxu0 0.0
  %6841 = vmatpush1.msra.mxu0 0.0
  %6842 = vmatprep.subr.mxu0 0.0
  %6843 = vmatpush1.msra.mxu0 0.0
  %6844 = vmatprep.subr.mxu0 0.0
  %6845 = vmatpush1.msra.mxu0 0.0
  %6846 = vmatprep.subr.mxu0 0.0
  %6847 = vmatpush1.msra.mxu0 0.0
  %6848 = vmatprep.subr.mxu0 0.0
  %6849 = vmatpush1.msra.mxu0 0.0
  %6850 = vmatprep.subr.mxu0 0.0
  %6851 = vmatpush1.msra.mxu0 0.0
  %6852 = vmatprep.subr.mxu0 0.0
  %6853 = vmatpush1.msra.mxu0 0.0
  %6854 = vmatprep.subr.mxu0 0.0
  %6855 = vmatpush1.msra.mxu0 0.0
  %6856 = vmatprep.mubr.f32.mxu0 0.0
  %6857 = vmatmul.mubr.f32.gmra.mrb[0].mxu0 %v6790
  %v6858 = vpop.f32.mrb[0].mxu0
  %v6859 = vadd.f32 0.0, %v6858
  %v6860 = vpop.f32.mrb[0].mxu0
  %6861 = vdwg.mxu0
  %v6862 = vadd.f32 %v6779, %v6859
  %v6863 = vld [vmem:[#allocation4 + $0x78] sm:$0x3]
  %v6864 = vld [vmem:[%s7 + $0xa80] sm:$0xff]
  %v6865 = vld [vmem:[%s7 + $0xa88] sm:$0xff]
  %v6866 = vld [vmem:[%s7 + $0xa90] sm:$0xff]
  %v6867 = vld [vmem:[%s7 + $0xa98] sm:$0xff]
  %v6868 = vld [vmem:[%s7 + $0xaa0] sm:$0xff]
  %v6869 = vld [vmem:[%s7 + $0xaa8] sm:$0xff]
  %v6870 = vld [vmem:[%s7 + $0xab0] sm:$0xff]
  %v6871 = vld [vmem:[%s7 + $0xab8] sm:$0xff]
  %v6873 = vsel %vm2357, %v6863, 0
  %6875 = vmatprep.subr.mxu0 0.0
  %6876 = vmatpush1.msra.mxu0 %v6864
  %6877 = vmatprep.subr.mxu0 0.0
  %6878 = vmatpush1.msra.mxu0 %v6865
  %6879 = vmatprep.subr.mxu0 0.0
  %6880 = vmatpush1.msra.mxu0 %v6866
  %6881 = vmatprep.subr.mxu0 0.0
  %6882 = vmatpush1.msra.mxu0 %v6867
  %6883 = vmatprep.subr.mxu0 0.0
  %6884 = vmatpush1.msra.mxu0 %v6868
  %6885 = vmatprep.subr.mxu0 0.0
  %6886 = vmatpush1.msra.mxu0 %v6869
  %6887 = vmatprep.subr.mxu0 0.0
  %6888 = vmatpush1.msra.mxu0 %v6870
  %6889 = vmatprep.subr.mxu0 0.0
  %6890 = vmatpush1.msra.mxu0 %v6871
  %6891 = vmatprep.subr.mxu0 0.0
  %6892 = vmatpush1.msra.mxu0 0.0
  %6893 = vmatprep.subr.mxu0 0.0
  %6894 = vmatpush1.msra.mxu0 0.0
  %6895 = vmatprep.subr.mxu0 0.0
  %6896 = vmatpush1.msra.mxu0 0.0
  %6897 = vmatprep.subr.mxu0 0.0
  %6898 = vmatpush1.msra.mxu0 0.0
  %6899 = vmatprep.subr.mxu0 0.0
  %6900 = vmatpush1.msra.mxu0 0.0
  %6901 = vmatprep.subr.mxu0 0.0
  %6902 = vmatpush1.msra.mxu0 0.0
  %6903 = vmatprep.subr.mxu0 0.0
  %6904 = vmatpush1.msra.mxu0 0.0
  %6905 = vmatprep.subr.mxu0 0.0
  %6906 = vmatpush1.msra.mxu0 0.0
  %6907 = vmatprep.subr.mxu0 0.0
  %6908 = vmatpush1.msra.mxu0 0.0
  %6909 = vmatprep.subr.mxu0 0.0
  %6910 = vmatpush1.msra.mxu0 0.0
  %6911 = vmatprep.subr.mxu0 0.0
  %6912 = vmatpush1.msra.mxu0 0.0
  %6913 = vmatprep.subr.mxu0 0.0
  %6914 = vmatpush1.msra.mxu0 0.0
  %6915 = vmatprep.subr.mxu0 0.0
  %6916 = vmatpush1.msra.mxu0 0.0
  %6917 = vmatprep.subr.mxu0 0.0
  %6918 = vmatpush1.msra.mxu0 0.0
  %6919 = vmatprep.subr.mxu0 0.0
  %6920 = vmatpush1.msra.mxu0 0.0
  %6921 = vmatprep.subr.mxu0 0.0
  %6922 = vmatpush1.msra.mxu0 0.0
  %6923 = vmatprep.subr.mxu0 0.0
  %6924 = vmatpush1.msra.mxu0 0.0
  %6925 = vmatprep.subr.mxu0 0.0
  %6926 = vmatpush1.msra.mxu0 0.0
  %6927 = vmatprep.subr.mxu0 0.0
  %6928 = vmatpush1.msra.mxu0 0.0
  %6929 = vmatprep.subr.mxu0 0.0
  %6930 = vmatpush1.msra.mxu0 0.0
  %6931 = vmatprep.subr.mxu0 0.0
  %6932 = vmatpush1.msra.mxu0 0.0
  %6933 = vmatprep.subr.mxu0 0.0
  %6934 = vmatpush1.msra.mxu0 0.0
  %6935 = vmatprep.subr.mxu0 0.0
  %6936 = vmatpush1.msra.mxu0 0.0
  %6937 = vmatprep.subr.mxu0 0.0
  %6938 = vmatpush1.msra.mxu0 0.0
  %6939 = vmatprep.mubr.f32.mxu0 0.0
  %6940 = vmatmul.mubr.f32.gmra.mrb[0].mxu0 %v6873
  %v6941 = vpop.f32.mrb[0].mxu0
  %v6942 = vadd.f32 0.0, %v6941
  %v6943 = vpop.f32.mrb[0].mxu0
  %6944 = vdwg.mxu0
  %v6945 = vadd.f32 %v6862, %v6942
  %v6946 = vld [vmem:[#allocation4 + $0x7a] sm:$0x3]
  %v6947 = vld [vmem:[%s7 + $0xac0] sm:$0xff]
  %v6948 = vld [vmem:[%s7 + $0xac8] sm:$0xff]
  %v6949 = vld [vmem:[%s7 + $0xad0] sm:$0xff]
  %v6950 = vld [vmem:[%s7 + $0xad8] sm:$0xff]
  %v6951 = vld [vmem:[%s7 + $0xae0] sm:$0xff]
  %v6952 = vld [vmem:[%s7 + $0xae8] sm:$0xff]
  %v6953 = vld [vmem:[%s7 + $0xaf0] sm:$0xff]
  %v6954 = vld [vmem:[%s7 + $0xaf8] sm:$0xff]
  %v6956 = vsel %vm2357, %v6946, 0
  %6958 = vmatprep.subr.mxu0 0.0
  %6959 = vmatpush1.msra.mxu0 %v6947
  %6960 = vmatprep.subr.mxu0 0.0
  %6961 = vmatpush1.msra.mxu0 %v6948
  %6962 = vmatprep.subr.mxu0 0.0
  %6963 = vmatpush1.msra.mxu0 %v6949
  %6964 = vmatprep.subr.mxu0 0.0
  %6965 = vmatpush1.msra.mxu0 %v6950
  %6966 = vmatprep.subr.mxu0 0.0
  %6967 = vmatpush1.msra.mxu0 %v6951
  %6968 = vmatprep.subr.mxu0 0.0
  %6969 = vmatpush1.msra.mxu0 %v6952
  %6970 = vmatprep.subr.mxu0 0.0
  %6971 = vmatpush1.msra.mxu0 %v6953
  %6972 = vmatprep.subr.mxu0 0.0
  %6973 = vmatpush1.msra.mxu0 %v6954
  %6974 = vmatprep.subr.mxu0 0.0
  %6975 = vmatpush1.msra.mxu0 0.0
  %6976 = vmatprep.subr.mxu0 0.0
  %6977 = vmatpush1.msra.mxu0 0.0
  %6978 = vmatprep.subr.mxu0 0.0
  %6979 = vmatpush1.msra.mxu0 0.0
  %6980 = vmatprep.subr.mxu0 0.0
  %6981 = vmatpush1.msra.mxu0 0.0
  %6982 = vmatprep.subr.mxu0 0.0
  %6983 = vmatpush1.msra.mxu0 0.0
  %6984 = vmatprep.subr.mxu0 0.0
  %6985 = vmatpush1.msra.mxu0 0.0
  %6986 = vmatprep.subr.mxu0 0.0
  %6987 = vmatpush1.msra.mxu0 0.0
  %6988 = vmatprep.subr.mxu0 0.0
  %6989 = vmatpush1.msra.mxu0 0.0
  %6990 = vmatprep.subr.mxu0 0.0
  %6991 = vmatpush1.msra.mxu0 0.0
  %6992 = vmatprep.subr.mxu0 0.0
  %6993 = vmatpush1.msra.mxu0 0.0
  %6994 = vmatprep.subr.mxu0 0.0
  %6995 = vmatpush1.msra.mxu0 0.0
  %6996 = vmatprep.subr.mxu0 0.0
  %6997 = vmatpush1.msra.mxu0 0.0
  %6998 = vmatprep.subr.mxu0 0.0
  %6999 = vmatpush1.msra.mxu0 0.0
  %7000 = vmatprep.subr.mxu0 0.0
  %7001 = vmatpush1.msra.mxu0 0.0
  %7002 = vmatprep.subr.mxu0 0.0
  %7003 = vmatpush1.msra.mxu0 0.0
  %7004 = vmatprep.subr.mxu0 0.0
  %7005 = vmatpush1.msra.mxu0 0.0
  %7006 = vmatprep.subr.mxu0 0.0
  %7007 = vmatpush1.msra.mxu0 0.0
  %7008 = vmatprep.subr.mxu0 0.0
  %7009 = vmatpush1.msra.mxu0 0.0
  %7010 = vmatprep.subr.mxu0 0.0
  %7011 = vmatpush1.msra.mxu0 0.0
  %7012 = vmatprep.subr.mxu0 0.0
  %7013 = vmatpush1.msra.mxu0 0.0
  %7014 = vmatprep.subr.mxu0 0.0
  %7015 = vmatpush1.msra.mxu0 0.0
  %7016 = vmatprep.subr.mxu0 0.0
  %7017 = vmatpush1.msra.mxu0 0.0
  %7018 = vmatprep.subr.mxu0 0.0
  %7019 = vmatpush1.msra.mxu0 0.0
  %7020 = vmatprep.subr.mxu0 0.0
  %7021 = vmatpush1.msra.mxu0 0.0
  %7022 = vmatprep.mubr.f32.mxu0 0.0
  %7023 = vmatmul.mubr.f32.gmra.mrb[0].mxu0 %v6956
  %v7024 = vpop.f32.mrb[0].mxu0
  %v7025 = vadd.f32 0.0, %v7024
  %v7026 = vpop.f32.mrb[0].mxu0
  %7027 = vdwg.mxu0
  %v7028 = vadd.f32 %v6945, %v7025
  %v7029 = vld [vmem:[#allocation4 + $0x7c] sm:$0x3]
  %v7030 = vld [vmem:[%s7 + $0xb00] sm:$0xff]
  %v7031 = vld [vmem:[%s7 + $0xb08] sm:$0xff]
  %v7032 = vld [vmem:[%s7 + $0xb10] sm:$0xff]
  %v7033 = vld [vmem:[%s7 + $0xb18] sm:$0xff]
  %v7034 = vld [vmem:[%s7 + $0xb20] sm:$0xff]
  %v7035 = vld [vmem:[%s7 + $0xb28] sm:$0xff]
  %v7036 = vld [vmem:[%s7 + $0xb30] sm:$0xff]
  %v7037 = vld [vmem:[%s7 + $0xb38] sm:$0xff]
  %v7039 = vsel %vm2357, %v7029, 0
  %7041 = vmatprep.subr.mxu0 0.0
  %7042 = vmatpush1.msra.mxu0 %v7030
  %7043 = vmatprep.subr.mxu0 0.0
  %7044 = vmatpush1.msra.mxu0 %v7031
  %7045 = vmatprep.subr.mxu0 0.0
  %7046 = vmatpush1.msra.mxu0 %v7032
  %7047 = vmatprep.subr.mxu0 0.0
  %7048 = vmatpush1.msra.mxu0 %v7033
  %7049 = vmatprep.subr.mxu0 0.0
  %7050 = vmatpush1.msra.mxu0 %v7034
  %7051 = vmatprep.subr.mxu0 0.0
  %7052 = vmatpush1.msra.mxu0 %v7035
  %7053 = vmatprep.subr.mxu0 0.0
  %7054 = vmatpush1.msra.mxu0 %v7036
  %7055 = vmatprep.subr.mxu0 0.0
  %7056 = vmatpush1.msra.mxu0 %v7037
  %7057 = vmatprep.subr.mxu0 0.0
  %7058 = vmatpush1.msra.mxu0 0.0
  %7059 = vmatprep.subr.mxu0 0.0
  %7060 = vmatpush1.msra.mxu0 0.0
  %7061 = vmatprep.subr.mxu0 0.0
  %7062 = vmatpush1.msra.mxu0 0.0
  %7063 = vmatprep.subr.mxu0 0.0
  %7064 = vmatpush1.msra.mxu0 0.0
  %7065 = vmatprep.subr.mxu0 0.0
  %7066 = vmatpush1.msra.mxu0 0.0
  %7067 = vmatprep.subr.mxu0 0.0
  %7068 = vmatpush1.msra.mxu0 0.0
  %7069 = vmatprep.subr.mxu0 0.0
  %7070 = vmatpush1.msra.mxu0 0.0
  %7071 = vmatprep.subr.mxu0 0.0
  %7072 = vmatpush1.msra.mxu0 0.0
  %7073 = vmatprep.subr.mxu0 0.0
  %7074 = vmatpush1.msra.mxu0 0.0
  %7075 = vmatprep.subr.mxu0 0.0
  %7076 = vmatpush1.msra.mxu0 0.0
  %7077 = vmatprep.subr.mxu0 0.0
  %7078 = vmatpush1.msra.mxu0 0.0
  %7079 = vmatprep.subr.mxu0 0.0
  %7080 = vmatpush1.msra.mxu0 0.0
  %7081 = vmatprep.subr.mxu0 0.0
  %7082 = vmatpush1.msra.mxu0 0.0
  %7083 = vmatprep.subr.mxu0 0.0
  %7084 = vmatpush1.msra.mxu0 0.0
  %7085 = vmatprep.subr.mxu0 0.0
  %7086 = vmatpush1.msra.mxu0 0.0
  %7087 = vmatprep.subr.mxu0 0.0
  %7088 = vmatpush1.msra.mxu0 0.0
  %7089 = vmatprep.subr.mxu0 0.0
  %7090 = vmatpush1.msra.mxu0 0.0
  %7091 = vmatprep.subr.mxu0 0.0
  %7092 = vmatpush1.msra.mxu0 0.0
  %7093 = vmatprep.subr.mxu0 0.0
  %7094 = vmatpush1.msra.mxu0 0.0
  %7095 = vmatprep.subr.mxu0 0.0
  %7096 = vmatpush1.msra.mxu0 0.0
  %7097 = vmatprep.subr.mxu0 0.0
  %7098 = vmatpush1.msra.mxu0 0.0
  %7099 = vmatprep.subr.mxu0 0.0
  %7100 = vmatpush1.msra.mxu0 0.0
  %7101 = vmatprep.subr.mxu0 0.0
  %7102 = vmatpush1.msra.mxu0 0.0
  %7103 = vmatprep.subr.mxu0 0.0
  %7104 = vmatpush1.msra.mxu0 0.0
  %7105 = vmatprep.mubr.f32.mxu0 0.0
  %7106 = vmatmul.mubr.f32.gmra.mrb[0].mxu0 %v7039
  %v7107 = vpop.f32.mrb[0].mxu0
  %v7108 = vadd.f32 0.0, %v7107
  %v7109 = vpop.f32.mrb[0].mxu0
  %7110 = vdwg.mxu0
  %v7111 = vadd.f32 %v7028, %v7108
  %v7112 = vld [vmem:[#allocation4 + $0x7e] sm:$0x3]
  %v7113 = vld [vmem:[%s7 + $0xb40] sm:$0xff]
  %v7114 = vld [vmem:[%s7 + $0xb48] sm:$0xff]
  %v7115 = vld [vmem:[%s7 + $0xb50] sm:$0xff]
  %v7116 = vld [vmem:[%s7 + $0xb58] sm:$0xff]
  %v7117 = vld [vmem:[%s7 + $0xb60] sm:$0xff]
  %v7118 = vld [vmem:[%s7 + $0xb68] sm:$0xff]
  %v7119 = vld [vmem:[%s7 + $0xb70] sm:$0xff]
  %v7120 = vld [vmem:[%s7 + $0xb78] sm:$0xff]
  %v7122 = vsel %vm2357, %v7112, 0
  %7124 = vmatprep.subr.mxu0 0.0
  %7125 = vmatpush1.msra.mxu0 %v7113
  %7126 = vmatprep.subr.mxu0 0.0
  %7127 = vmatpush1.msra.mxu0 %v7114
  %7128 = vmatprep.subr.mxu0 0.0
  %7129 = vmatpush1.msra.mxu0 %v7115
  %7130 = vmatprep.subr.mxu0 0.0
  %7131 = vmatpush1.msra.mxu0 %v7116
  %7132 = vmatprep.subr.mxu0 0.0
  %7133 = vmatpush1.msra.mxu0 %v7117
  %7134 = vmatprep.subr.mxu0 0.0
  %7135 = vmatpush1.msra.mxu0 %v7118
  %7136 = vmatprep.subr.mxu0 0.0
  %7137 = vmatpush1.msra.mxu0 %v7119
  %7138 = vmatprep.subr.mxu0 0.0
  %7139 = vmatpush1.msra.mxu0 %v7120
  %7140 = vmatprep.subr.mxu0 0.0
  %7141 = vmatpush1.msra.mxu0 0.0
  %7142 = vmatprep.subr.mxu0 0.0
  %7143 = vmatpush1.msra.mxu0 0.0
  %7144 = vmatprep.subr.mxu0 0.0
  %7145 = vmatpush1.msra.mxu0 0.0
  %7146 = vmatprep.subr.mxu0 0.0
  %7147 = vmatpush1.msra.mxu0 0.0
  %7148 = vmatprep.subr.mxu0 0.0
  %7149 = vmatpush1.msra.mxu0 0.0
  %7150 = vmatprep.subr.mxu0 0.0
  %7151 = vmatpush1.msra.mxu0 0.0
  %7152 = vmatprep.subr.mxu0 0.0
  %7153 = vmatpush1.msra.mxu0 0.0
  %7154 = vmatprep.subr.mxu0 0.0
  %7155 = vmatpush1.msra.mxu0 0.0
  %7156 = vmatprep.subr.mxu0 0.0
  %7157 = vmatpush1.msra.mxu0 0.0
  %7158 = vmatprep.subr.mxu0 0.0
  %7159 = vmatpush1.msra.mxu0 0.0
  %7160 = vmatprep.subr.mxu0 0.0
  %7161 = vmatpush1.msra.mxu0 0.0
  %7162 = vmatprep.subr.mxu0 0.0
  %7163 = vmatpush1.msra.mxu0 0.0
  %7164 = vmatprep.subr.mxu0 0.0
  %7165 = vmatpush1.msra.mxu0 0.0
  %7166 = vmatprep.subr.mxu0 0.0
  %7167 = vmatpush1.msra.mxu0 0.0
  %7168 = vmatprep.subr.mxu0 0.0
  %7169 = vmatpush1.msra.mxu0 0.0
  %7170 = vmatprep.subr.mxu0 0.0
  %7171 = vmatpush1.msra.mxu0 0.0
  %7172 = vmatprep.subr.mxu0 0.0
  %7173 = vmatpush1.msra.mxu0 0.0
  %7174 = vmatprep.subr.mxu0 0.0
  %7175 = vmatpush1.msra.mxu0 0.0
  %7176 = vmatprep.subr.mxu0 0.0
  %7177 = vmatpush1.msra.mxu0 0.0
  %7178 = vmatprep.subr.mxu0 0.0
  %7179 = vmatpush1.msra.mxu0 0.0
  %7180 = vmatprep.subr.mxu0 0.0
  %7181 = vmatpush1.msra.mxu0 0.0
  %7182 = vmatprep.subr.mxu0 0.0
  %7183 = vmatpush1.msra.mxu0 0.0
  %7184 = vmatprep.subr.mxu0 0.0
  %7185 = vmatpush1.msra.mxu0 0.0
  %7186 = vmatprep.subr.mxu0 0.0
  %7187 = vmatpush1.msra.mxu0 0.0
  %7188 = vmatprep.mubr.f32.mxu0 0.0
  %7189 = vmatmul.mubr.f32.gmra.mrb[0].mxu0 %v7122
  %v7190 = vpop.f32.mrb[0].mxu0
  %v7191 = vadd.f32 0.0, %v7190
  %v7192 = vpop.f32.mrb[0].mxu0
  %7193 = vdwg.mxu0
  %v7194 = vadd.f32 %v7111, %v7191
  %v7195 = vld [vmem:[#allocation4 + $0x80] sm:$0x3]
  %v7196 = vld [vmem:[%s7 + $0xb80] sm:$0xff]
  %v7197 = vld [vmem:[%s7 + $0xb88] sm:$0xff]
  %v7198 = vld [vmem:[%s7 + $0xb90] sm:$0xff]
  %v7199 = vld [vmem:[%s7 + $0xb98] sm:$0xff]
  %v7200 = vld [vmem:[%s7 + $0xba0] sm:$0xff]
  %v7201 = vld [vmem:[%s7 + $0xba8] sm:$0xff]
  %v7202 = vld [vmem:[%s7 + $0xbb0] sm:$0xff]
  %v7203 = vld [vmem:[%s7 + $0xbb8] sm:$0xff]
  %v7205 = vsel %vm2357, %v7195, 0
  %7207 = vmatprep.subr.mxu0 0.0
  %7208 = vmatpush1.msra.mxu0 %v7196
  %7209 = vmatprep.subr.mxu0 0.0
  %7210 = vmatpush1.msra.mxu0 %v7197
  %7211 = vmatprep.subr.mxu0 0.0
  %7212 = vmatpush1.msra.mxu0 %v7198
  %7213 = vmatprep.subr.mxu0 0.0
  %7214 = vmatpush1.msra.mxu0 %v7199
  %7215 = vmatprep.subr.mxu0 0.0
  %7216 = vmatpush1.msra.mxu0 %v7200
  %7217 = vmatprep.subr.mxu0 0.0
  %7218 = vmatpush1.msra.mxu0 %v7201
  %7219 = vmatprep.subr.mxu0 0.0
  %7220 = vmatpush1.msra.mxu0 %v7202
  %7221 = vmatprep.subr.mxu0 0.0
  %7222 = vmatpush1.msra.mxu0 %v7203
  %7223 = vmatprep.subr.mxu0 0.0
  %7224 = vmatpush1.msra.mxu0 0.0
  %7225 = vmatprep.subr.mxu0 0.0
  %7226 = vmatpush1.msra.mxu0 0.0
  %7227 = vmatprep.subr.mxu0 0.0
  %7228 = vmatpush1.msra.mxu0 0.0
  %7229 = vmatprep.subr.mxu0 0.0
  %7230 = vmatpush1.msra.mxu0 0.0
  %7231 = vmatprep.subr.mxu0 0.0
  %7232 = vmatpush1.msra.mxu0 0.0
  %7233 = vmatprep.subr.mxu0 0.0
  %7234 = vmatpush1.msra.mxu0 0.0
  %7235 = vmatprep.subr.mxu0 0.0
  %7236 = vmatpush1.msra.mxu0 0.0
  %7237 = vmatprep.subr.mxu0 0.0
  %7238 = vmatpush1.msra.mxu0 0.0
  %7239 = vmatprep.subr.mxu0 0.0
  %7240 = vmatpush1.msra.mxu0 0.0
  %7241 = vmatprep.subr.mxu0 0.0
  %7242 = vmatpush1.msra.mxu0 0.0
  %7243 = vmatprep.subr.mxu0 0.0
  %7244 = vmatpush1.msra.mxu0 0.0
  %7245 = vmatprep.subr.mxu0 0.0
  %7246 = vmatpush1.msra.mxu0 0.0
  %7247 = vmatprep.subr.mxu0 0.0
  %7248 = vmatpush1.msra.mxu0 0.0
  %7249 = vmatprep.subr.mxu0 0.0
  %7250 = vmatpush1.msra.mxu0 0.0
  %7251 = vmatprep.subr.mxu0 0.0
  %7252 = vmatpush1.msra.mxu0 0.0
  %7253 = vmatprep.subr.mxu0 0.0
  %7254 = vmatpush1.msra.mxu0 0.0
  %7255 = vmatprep.subr.mxu0 0.0
  %7256 = vmatpush1.msra.mxu0 0.0
  %7257 = vmatprep.subr.mxu0 0.0
  %7258 = vmatpush1.msra.mxu0 0.0
  %7259 = vmatprep.subr.mxu0 0.0
  %7260 = vmatpush1.msra.mxu0 0.0
  %7261 = vmatprep.subr.mxu0 0.0
  %7262 = vmatpush1.msra.mxu0 0.0
  %7263 = vmatprep.subr.mxu0 0.0
  %7264 = vmatpush1.msra.mxu0 0.0
  %7265 = vmatprep.subr.mxu0 0.0
  %7266 = vmatpush1.msra.mxu0 0.0
  %7267 = vmatprep.subr.mxu0 0.0
  %7268 = vmatpush1.msra.mxu0 0.0
  %7269 = vmatprep.subr.mxu0 0.0
  %7270 = vmatpush1.msra.mxu0 0.0
  %7271 = vmatprep.mubr.f32.mxu0 0.0
  %7272 = vmatmul.mubr.f32.gmra.mrb[0].mxu0 %v7205
  %v7273 = vpop.f32.mrb[0].mxu0
  %v7274 = vadd.f32 0.0, %v7273
  %v7275 = vpop.f32.mrb[0].mxu0
  %7276 = vdwg.mxu0
  %v7277 = vadd.f32 %v7194, %v7274
  %v7278 = vld [vmem:[#allocation4 + $0x82] sm:$0x3]
  %v7279 = vld [vmem:[%s7 + $0xbc0] sm:$0xff]
  %v7280 = vld [vmem:[%s7 + $0xbc8] sm:$0xff]
  %v7281 = vld [vmem:[%s7 + $0xbd0] sm:$0xff]
  %v7282 = vld [vmem:[%s7 + $0xbd8] sm:$0xff]
  %v7283 = vld [vmem:[%s7 + $0xbe0] sm:$0xff]
  %v7284 = vld [vmem:[%s7 + $0xbe8] sm:$0xff]
  %v7285 = vld [vmem:[%s7 + $0xbf0] sm:$0xff]
  %v7286 = vld [vmem:[%s7 + $0xbf8] sm:$0xff]
  %v7288 = vsel %vm2357, %v7278, 0
  %7290 = vmatprep.subr.mxu0 0.0
  %7291 = vmatpush1.msra.mxu0 %v7279
  %7292 = vmatprep.subr.mxu0 0.0
  %7293 = vmatpush1.msra.mxu0 %v7280
  %7294 = vmatprep.subr.mxu0 0.0
  %7295 = vmatpush1.msra.mxu0 %v7281
  %7296 = vmatprep.subr.mxu0 0.0
  %7297 = vmatpush1.msra.mxu0 %v7282
  %7298 = vmatprep.subr.mxu0 0.0
  %7299 = vmatpush1.msra.mxu0 %v7283
  %7300 = vmatprep.subr.mxu0 0.0
  %7301 = vmatpush1.msra.mxu0 %v7284
  %7302 = vmatprep.subr.mxu0 0.0
  %7303 = vmatpush1.msra.mxu0 %v7285
  %7304 = vmatprep.subr.mxu0 0.0
  %7305 = vmatpush1.msra.mxu0 %v7286
  %7306 = vmatprep.subr.mxu0 0.0
  %7307 = vmatpush1.msra.mxu0 0.0
  %7308 = vmatprep.subr.mxu0 0.0
  %7309 = vmatpush1.msra.mxu0 0.0
  %7310 = vmatprep.subr.mxu0 0.0
  %7311 = vmatpush1.msra.mxu0 0.0
  %7312 = vmatprep.subr.mxu0 0.0
  %7313 = vmatpush1.msra.mxu0 0.0
  %7314 = vmatprep.subr.mxu0 0.0
  %7315 = vmatpush1.msra.mxu0 0.0
  %7316 = vmatprep.subr.mxu0 0.0
  %7317 = vmatpush1.msra.mxu0 0.0
  %7318 = vmatprep.subr.mxu0 0.0
  %7319 = vmatpush1.msra.mxu0 0.0
  %7320 = vmatprep.subr.mxu0 0.0
  %7321 = vmatpush1.msra.mxu0 0.0
  %7322 = vmatprep.subr.mxu0 0.0
  %7323 = vmatpush1.msra.mxu0 0.0
  %7324 = vmatprep.subr.mxu0 0.0
  %7325 = vmatpush1.msra.mxu0 0.0
  %7326 = vmatprep.subr.mxu0 0.0
  %7327 = vmatpush1.msra.mxu0 0.0
  %7328 = vmatprep.subr.mxu0 0.0
  %7329 = vmatpush1.msra.mxu0 0.0
  %7330 = vmatprep.subr.mxu0 0.0
  %7331 = vmatpush1.msra.mxu0 0.0
  %7332 = vmatprep.subr.mxu0 0.0
  %7333 = vmatpush1.msra.mxu0 0.0
  %7334 = vmatprep.subr.mxu0 0.0
  %7335 = vmatpush1.msra.mxu0 0.0
  %7336 = vmatprep.subr.mxu0 0.0
  %7337 = vmatpush1.msra.mxu0 0.0
  %7338 = vmatprep.subr.mxu0 0.0
  %7339 = vmatpush1.msra.mxu0 0.0
  %7340 = vmatprep.subr.mxu0 0.0
  %7341 = vmatpush1.msra.mxu0 0.0
  %7342 = vmatprep.subr.mxu0 0.0
  %7343 = vmatpush1.msra.mxu0 0.0
  %7344 = vmatprep.subr.mxu0 0.0
  %7345 = vmatpush1.msra.mxu0 0.0
  %7346 = vmatprep.subr.mxu0 0.0
  %7347 = vmatpush1.msra.mxu0 0.0
  %7348 = vmatprep.subr.mxu0 0.0
  %7349 = vmatpush1.msra.mxu0 0.0
  %7350 = vmatprep.subr.mxu0 0.0
  %7351 = vmatpush1.msra.mxu0 0.0
  %7352 = vmatprep.subr.mxu0 0.0
  %7353 = vmatpush1.msra.mxu0 0.0
  %7354 = vmatprep.mubr.f32.mxu0 0.0
  %7355 = vmatmul.mubr.f32.gmra.mrb[0].mxu0 %v7288
  %v7356 = vpop.f32.mrb[0].mxu0
  %v7357 = vadd.f32 0.0, %v7356
  %v7358 = vpop.f32.mrb[0].mxu0
  %7359 = vdwg.mxu0
  %v7360 = vadd.f32 %v7277, %v7357
  %v7361 = vld [vmem:[#allocation4 + $0x84] sm:$0x3]
  %v7362 = vld [vmem:[%s7 + $0xc00] sm:$0xff]
  %v7363 = vld [vmem:[%s7 + $0xc08] sm:$0xff]
  %v7364 = vld [vmem:[%s7 + $0xc10] sm:$0xff]
  %v7365 = vld [vmem:[%s7 + $0xc18] sm:$0xff]
  %v7366 = vld [vmem:[%s7 + $0xc20] sm:$0xff]
  %v7367 = vld [vmem:[%s7 + $0xc28] sm:$0xff]
  %v7368 = vld [vmem:[%s7 + $0xc30] sm:$0xff]
  %v7369 = vld [vmem:[%s7 + $0xc38] sm:$0xff]
  %v7371 = vsel %vm2357, %v7361, 0
  %7373 = vmatprep.subr.mxu0 0.0
  %7374 = vmatpush1.msra.mxu0 %v7362
  %7375 = vmatprep.subr.mxu0 0.0
  %7376 = vmatpush1.msra.mxu0 %v7363
  %7377 = vmatprep.subr.mxu0 0.0
  %7378 = vmatpush1.msra.mxu0 %v7364
  %7379 = vmatprep.subr.mxu0 0.0
  %7380 = vmatpush1.msra.mxu0 %v7365
  %7381 = vmatprep.subr.mxu0 0.0
  %7382 = vmatpush1.msra.mxu0 %v7366
  %7383 = vmatprep.subr.mxu0 0.0
  %7384 = vmatpush1.msra.mxu0 %v7367
  %7385 = vmatprep.subr.mxu0 0.0
  %7386 = vmatpush1.msra.mxu0 %v7368
  %7387 = vmatprep.subr.mxu0 0.0
  %7388 = vmatpush1.msra.mxu0 %v7369
  %7389 = vmatprep.subr.mxu0 0.0
  %7390 = vmatpush1.msra.mxu0 0.0
  %7391 = vmatprep.subr.mxu0 0.0
  %7392 = vmatpush1.msra.mxu0 0.0
  %7393 = vmatprep.subr.mxu0 0.0
  %7394 = vmatpush1.msra.mxu0 0.0
  %7395 = vmatprep.subr.mxu0 0.0
  %7396 = vmatpush1.msra.mxu0 0.0
  %7397 = vmatprep.subr.mxu0 0.0
  %7398 = vmatpush1.msra.mxu0 0.0
  %7399 = vmatprep.subr.mxu0 0.0
  %7400 = vmatpush1.msra.mxu0 0.0
  %7401 = vmatprep.subr.mxu0 0.0
  %7402 = vmatpush1.msra.mxu0 0.0
  %7403 = vmatprep.subr.mxu0 0.0
  %7404 = vmatpush1.msra.mxu0 0.0
  %7405 = vmatprep.subr.mxu0 0.0
  %7406 = vmatpush1.msra.mxu0 0.0
  %7407 = vmatprep.subr.mxu0 0.0
  %7408 = vmatpush1.msra.mxu0 0.0
  %7409 = vmatprep.subr.mxu0 0.0
  %7410 = vmatpush1.msra.mxu0 0.0
  %7411 = vmatprep.subr.mxu0 0.0
  %7412 = vmatpush1.msra.mxu0 0.0
  %7413 = vmatprep.subr.mxu0 0.0
  %7414 = vmatpush1.msra.mxu0 0.0
  %7415 = vmatprep.subr.mxu0 0.0
  %7416 = vmatpush1.msra.mxu0 0.0
  %7417 = vmatprep.subr.mxu0 0.0
  %7418 = vmatpush1.msra.mxu0 0.0
  %7419 = vmatprep.subr.mxu0 0.0
  %7420 = vmatpush1.msra.mxu0 0.0
  %7421 = vmatprep.subr.mxu0 0.0
  %7422 = vmatpush1.msra.mxu0 0.0
  %7423 = vmatprep.subr.mxu0 0.0
  %7424 = vmatpush1.msra.mxu0 0.0
  %7425 = vmatprep.subr.mxu0 0.0
  %7426 = vmatpush1.msra.mxu0 0.0
  %7427 = vmatprep.subr.mxu0 0.0
  %7428 = vmatpush1.msra.mxu0 0.0
  %7429 = vmatprep.subr.mxu0 0.0
  %7430 = vmatpush1.msra.mxu0 0.0
  %7431 = vmatprep.subr.mxu0 0.0
  %7432 = vmatpush1.msra.mxu0 0.0
  %7433 = vmatprep.subr.mxu0 0.0
  %7434 = vmatpush1.msra.mxu0 0.0
  %7435 = vmatprep.subr.mxu0 0.0
  %7436 = vmatpush1.msra.mxu0 0.0
  %7437 = vmatprep.mubr.f32.mxu0 0.0
  %7438 = vmatmul.mubr.f32.gmra.mrb[0].mxu0 %v7371
  %v7439 = vpop.f32.mrb[0].mxu0
  %v7440 = vadd.f32 0.0, %v7439
  %v7441 = vpop.f32.mrb[0].mxu0
  %7442 = vdwg.mxu0
  %v7443 = vadd.f32 %v7360, %v7440
  %v7444 = vld [vmem:[%s8] sm:$0x1]
  %v7446 = vlaneseq
  %v7447 = vshrl.u32 %v7446, 7
  %v7448 = vsub.s32 0, %v7447
  %v7449 = vrot.slane %v7444, %v7448
  %v7451 = vadd.f32 %v7443, %v7449
  %v7452 = vmax.f32 %v7451, 0.0
  %v7453 = vld [vmem:[%s9] sm:$0xff]
  %v7454 = vld [vmem:[%s9 + $0x8] sm:$0xff]
  %v7455 = vld [vmem:[%s9 + $0x10] sm:$0xff]
  %v7456 = vld [vmem:[%s9 + $0x18] sm:$0xff]
  %v7457 = vld [vmem:[%s9 + $0x20] sm:$0xff]
  %v7458 = vld [vmem:[%s9 + $0x28] sm:$0xff]
  %v7459 = vld [vmem:[%s9 + $0x30] sm:$0xff]
  %v7460 = vld [vmem:[%s9 + $0x38] sm:$0xff]
  %v7461 = vld [vmem:[%s10] sm:$0x1]
  %v7463 = vlaneseq
  %v7464 = vshrl.u32 %v7463, 7
  %v7465 = vsub.s32 0, %v7464
  %v7466 = vrot.slane %v7461, %v7465
  %v7469 = vsel %vm2357, %v7452, 0
  %7471 = vmatprep.subr.mxu0 0.0
  %7472 = vmatpush1.msra.mxu0 %v7453
  %7473 = vmatprep.subr.mxu0 0.0
  %7474 = vmatpush1.msra.mxu0 %v7454
  %7475 = vmatprep.subr.mxu0 0.0
  %7476 = vmatpush1.msra.mxu0 %v7455
  %7477 = vmatprep.subr.mxu0 0.0
  %7478 = vmatpush1.msra.mxu0 %v7456
  %7479 = vmatprep.subr.mxu0 0.0
  %7480 = vmatpush1.msra.mxu0 %v7457
  %7481 = vmatprep.subr.mxu0 0.0
  %7482 = vmatpush1.msra.mxu0 %v7458
  %7483 = vmatprep.subr.mxu0 0.0
  %7484 = vmatpush1.msra.mxu0 %v7459
  %7485 = vmatprep.subr.mxu0 0.0
  %7486 = vmatpush1.msra.mxu0 %v7460
  %7487 = vmatprep.subr.mxu0 0.0
  %7488 = vmatpush1.msra.mxu0 0.0
  %7489 = vmatprep.subr.mxu0 0.0
  %7490 = vmatpush1.msra.mxu0 0.0
  %7491 = vmatprep.subr.mxu0 0.0
  %7492 = vmatpush1.msra.mxu0 0.0
  %7493 = vmatprep.subr.mxu0 0.0
  %7494 = vmatpush1.msra.mxu0 0.0
  %7495 = vmatprep.subr.mxu0 0.0
  %7496 = vmatpush1.msra.mxu0 0.0
  %7497 = vmatprep.subr.mxu0 0.0
  %7498 = vmatpush1.msra.mxu0 0.0
  %7499 = vmatprep.subr.mxu0 0.0
  %7500 = vmatpush1.msra.mxu0 0.0
  %7501 = vmatprep.subr.mxu0 0.0
  %7502 = vmatpush1.msra.mxu0 0.0
  %7503 = vmatprep.subr.mxu0 0.0
  %7504 = vmatpush1.msra.mxu0 0.0
  %7505 = vmatprep.subr.mxu0 0.0
  %7506 = vmatpush1.msra.mxu0 0.0
  %7507 = vmatprep.subr.mxu0 0.0
  %7508 = vmatpush1.msra.mxu0 0.0
  %7509 = vmatprep.subr.mxu0 0.0
  %7510 = vmatpush1.msra.mxu0 0.0
  %7511 = vmatprep.subr.mxu0 0.0
  %7512 = vmatpush1.msra.mxu0 0.0
  %7513 = vmatprep.subr.mxu0 0.0
  %7514 = vmatpush1.msra.mxu0 0.0
  %7515 = vmatprep.subr.mxu0 0.0
  %7516 = vmatpush1.msra.mxu0 0.0
  %7517 = vmatprep.subr.mxu0 0.0
  %7518 = vmatpush1.msra.mxu0 0.0
  %7519 = vmatprep.subr.mxu0 0.0
  %7520 = vmatpush1.msra.mxu0 0.0
  %7521 = vmatprep.subr.mxu0 0.0
  %7522 = vmatpush1.msra.mxu0 0.0
  %7523 = vmatprep.subr.mxu0 0.0
  %7524 = vmatpush1.msra.mxu0 0.0
  %7525 = vmatprep.subr.mxu0 0.0
  %7526 = vmatpush1.msra.mxu0 0.0
  %7527 = vmatprep.subr.mxu0 0.0
  %7528 = vmatpush1.msra.mxu0 0.0
  %7529 = vmatprep.subr.mxu0 0.0
  %7530 = vmatpush1.msra.mxu0 0.0
  %7531 = vmatprep.subr.mxu0 0.0
  %7532 = vmatpush1.msra.mxu0 0.0
  %7533 = vmatprep.subr.mxu0 0.0
  %7534 = vmatpush1.msra.mxu0 0.0
  %7535 = vmatprep.mubr.f32.mxu0 0.0
  %7536 = vmatmul.mubr.f32.gmra.mrb[0].mxu0 %v7469
  %v7537 = vpop.f32.mrb[0].mxu0
  %v7538 = vadd.f32 %v7466, %v7537
  %v7539 = vpop.f32.mrb[0].mxu0
  %7540 = vdwg.mxu0
  %vm7541 = vcmask 107520
  %7542 = vst.msk [vmem:[%s11] sm:$0x3] %vm7541, %v7538
  // Predicated region
  $region46: #{adversarial_pursuit_forward.1} parent=0 // pred_check
    _
  $region47: #{adversarial_pursuit_forward.1} parent=0 // pred_check_branch
    %7544 = sbr.rel (0) target = $region49
  $region48: #{adversarial_pursuit_forward.1} parent=0 // pred_region
    _
  $region49: #{adversarial_pursuit_forward.1} parent=0 // pred_fallthru
    _
  // Predicated region
  $region50: #{adversarial_pursuit_forward.1} parent=0 // pred_check
    _
  $region51: #{adversarial_pursuit_forward.1} parent=0 // pred_check_branch
    %7546 = sbr.rel (0) target = $region53
  $region52: #{adversarial_pursuit_forward.1} parent=0 // pred_region
    _
  $region53: #{adversarial_pursuit_forward.1} parent=0 // pred_fallthru
    _

</llo_original>
